<compile_context>
chip_gen: v6e
topology: v6e:2x2x1
jax: 0.10.0
libtpu: 0.0.40
codegen_flags: <defaults>
</compile_context>

<pallas_src>
import functools

import jax
import jax.numpy as jnp
from jax.experimental import pallas as pl
from jax.experimental.pallas import tpu as pltpu

_LN_EPS = 1e-6                    # timm ConvNeXt LayerNorm eps
_MXU_DTYPE = jnp.bfloat16         # MXU / activation dtype (f32 accumulation in-kernel).
                                  # Set to jnp.float32 for bit-closer parity with PyTorch.
_ROW_CAP = 256                    # token-row tile for matmul / block_tail
_LARGE_ROW_CAP = 128              # row tile when the MLP weights must be h-tiled (C=1536)
_LARGE_HID_CAP = 512              # hidden (4C) tile for the C=1536 stage
_W_RESIDENT_BYTES = 12 * 2**20    # keep both MLP weights resident below this size
_DW_H_CAP = 64                    # dwconv7 H-strip rows
_DW_C_CAP = 128                   # dwconv7 channel tile


# ----------------------------------------------------------------------------- helpers
@functools.lru_cache(maxsize=None)
def _vmem_limit():
    """~80% of physical VMEM: ~51 MiB on v7x (64 MiB), ~102 MiB on v5e/v6e (128 MiB)."""
    try:
        cap = pltpu.get_tpu_info().vmem_capacity_bytes
        return max(32 * 2**20, int(cap * 0.8))
    except Exception:
        return 48 * 2**20


def _div_tile(n, cap, quantum):
    """Largest divisor of n that is <= cap and a multiple of quantum, else n (full dim)."""
    if n <= cap:
        return n
    start = (cap // quantum) * quantum
    for cand in range(start, quantum - 1, -quantum):
        if n % cand == 0:
            return cand
    return n


def _gelu_tanh(x):
    # tanh-GELU: exp/tanh land on the EUP slot instead of ~12 VALU ops per element.
    # TODO(synk): PyTorch nn.GELU() is the exact erf variant; this is the standard tanh
    # approximation (|err| < 1e-3) traded for VALU headroom between the two MXU matmuls.
    c = 0.7978845608028654  # sqrt(2/pi)
    return 0.5 * x * (1.0 + jnp.tanh(c * (x + 0.044715 * x * x * x)))


# ----------------------------------------------------------------------------- matmul (strided convs)
def _matmul_bias_kernel(x_ref, w_ref, b_ref, *args, fuse_ln):
    if fuse_ln:
        g_ref, beta_ref, o_ref, acc_ref = args
    else:
        o_ref, acc_ref = args

    @pl.when(pl.program_id(2) == 0)
    def _():
        acc_ref[...] = jnp.zeros_like(acc_ref)

    acc_ref[...] += jnp.dot(x_ref[...].astype(w_ref.dtype), w_ref[...],
                            preferred_element_type=jnp.float32)

    @pl.when(pl.program_id(2) == pl.num_programs(2) - 1)
    def _():
        y = acc_ref[...] + b_ref[...].astype(jnp.float32)
        if fuse_ln:
            # fused LayerNorm over the output-channel dim (requires tn == N)
            mu = jnp.mean(y, axis=-1, keepdims=True)
            var = jnp.mean(jnp.square(y - mu), axis=-1, keepdims=True)
            y = (y - mu) * jax.lax.rsqrt(var + _LN_EPS)
            y = y * g_ref[...].astype(jnp.float32) + beta_ref[...].astype(jnp.float32)
        o_ref[...] = y.astype(o_ref.dtype)


def matmul_bias(x, w, b, post_ln=None):
    """[M,K] @ [K,N] + b (optionally followed by LayerNorm over N) with an (M,N,K) grid."""
    M, K = x.shape
    N = w.shape[1]
    fuse = post_ln is not None
    tm = _div_tile(M, _ROW_CAP, 8)
    tn = N if fuse else _div_tile(N, 384, 128)   # full 256-wide MXU feed on v6e/v7x
    tk = _div_tile(K, 512, 256)

    in_specs = [pl.BlockSpec((tm, tk), lambda i, j, k: (i, k)),
                pl.BlockSpec((tk, tn), lambda i, j, k: (k, j)),
                pl.BlockSpec((1, tn), lambda i, j, k: (0, j))]
    args = [x, w.astype(_MXU_DTYPE), b.reshape(1, N)]
    if fuse:
        g, beta = post_ln
        in_specs += [pl.BlockSpec((1, N), lambda i, j, k: (0, 0)),
                     pl.BlockSpec((1, N), lambda i, j, k: (0, 0))]
        args += [g.reshape(1, N), beta.reshape(1, N)]

    cost = pl.CostEstimate(flops=2 * M * K * N, transcendentals=0,
                           bytes_accessed=(M * K + M * N + K * N) * 2 + N * 4)
    return pl.pallas_call(
        functools.partial(_matmul_bias_kernel, fuse_ln=fuse),
        out_shape=jax.ShapeDtypeStruct((M, N), x.dtype),
        grid=(M // tm, N // tn, K // tk),
        in_specs=in_specs,
        out_specs=pl.BlockSpec((tm, tn), lambda i, j, k: (i, j)),
        scratch_shapes=[pltpu.VMEM((tm, tn), jnp.float32)],
        compiler_params=pltpu.CompilerParams(
            dimension_semantics=("parallel", "parallel", "arbitrary"),
            vmem_limit_bytes=_vmem_limit()),
        cost_estimate=cost,
    )(*args)


# ----------------------------------------------------------------------------- depthwise 7x7
def _dwconv7_kernel(*refs, th, W, halo):
    # Column-sum formulation: for each kx, accumulate the 7 ky taps at full padded width
    # (aligned, no shift), then apply a single W-offset slice per kx (7 instead of 49
    # misaligned sublane slices).
    if halo:
        xm_ref, xh_ref, w_ref, b_ref, o_ref, xs_ref = refs
        xs_ref[:, :th, :, :] = xm_ref[...]          # main th rows
        xs_ref[:, th:th + 6, :, :] = xh_ref[:, :6, :, :]   # 6-row halo from next block
        src = xs_ref
    else:
        x_ref, w_ref, b_ref, o_ref = refs
        src = x_ref
    Wp = src.shape[2]
    tc = src.shape[3]
    wf = w_ref[...].astype(jnp.float32)
    acc = jnp.zeros((1, th, W, tc), jnp.float32)
    for kx in range(7):
        col = jnp.zeros((1, th, Wp, tc), jnp.float32)
        for ky in range(7):
            col = col + (src[:, ky:ky + th, :, :].astype(jnp.float32)
                         * wf[ky * 7 + kx].reshape(1, 1, 1, tc))
        acc = acc + col[:, :, kx:kx + W, :]
    acc = acc + b_ref[...].astype(jnp.float32).reshape(1, 1, 1, tc)
    o_ref[...] = acc.astype(o_ref.dtype)


def dwconv7(x_nhwc, w49c, b):
    """Depthwise 7x7 (stride 1, pad 3). H-strip + channel tiled, all-parallel grid."""
    x_nhwc = x_nhwc.astype(_MXU_DTYPE)
    N, H, W, C = x_nhwc.shape
    Wp = pl.cdiv(W + 6, 8) * 8                      # pad W to a multiple of 8 (layout)
    tc = _div_tile(C, _DW_C_CAP, 128)
    use_strip = (H % 8 == 0) and (H >= 8)
    # TODO(synk): feature maps with H not a multiple of 8 fall back to full-image blocks;
    # fine for the small late-stage maps where that occurs.
    if use_strip:
        th = _div_tile(H, _DW_H_CAP, 8)
        Hp = H + 8                                   # 3 top + (3+2) bottom for the halo block
        xpad = jnp.pad(x_nhwc, ((0, 0), (3, Hp - H - 3), (3, Wp - W - 3), (0, 0)))
        grid = (N, H // th, C // tc)
        kernel = functools.partial(_dwconv7_kernel, th=th, W=W, halo=True)
        in_specs = [
            pl.BlockSpec((1, th, Wp, tc), lambda n, h, c: (n, h, 0, c)),
            pl.BlockSpec((1, 8, Wp, tc), lambda n, h, c: (n, (h + 1) * (th // 8), 0, c)),
            pl.BlockSpec((49, tc), lambda n, h, c: (0, c)),
            pl.BlockSpec((1, tc), lambda n, h, c: (0, c)),
        ]
        out_spec = pl.BlockSpec((1, th, W, tc), lambda n, h, c: (n, h, 0, c))
        args = (xpad, xpad, w49c, b.reshape(1, C))
        scratch = [pltpu.VMEM((1, th + 6, Wp, tc), _MXU_DTYPE)]
        sems = ("parallel", "parallel", "parallel")
    else:
        Hp = H + 6
        xpad = jnp.pad(x_nhwc, ((0, 0), (3, 3), (3, Wp - W - 3), (0, 0)))
        grid = (N, C // tc)
        kernel = functools.partial(_dwconv7_kernel, th=H, W=W, halo=False)
        in_specs = [
            pl.BlockSpec((1, Hp, Wp, tc), lambda n, c: (n, 0, 0, c)),
            pl.BlockSpec((49, tc), lambda n, c: (0, c)),
            pl.BlockSpec((1, tc), lambda n, c: (0, c)),
        ]
        out_spec = pl.BlockSpec((1, H, W, tc), lambda n, c: (n, 0, 0, c))
        args = (xpad, w49c, b.reshape(1, C))
        scratch = []
        sems = ("parallel", "parallel")

    return pl.pallas_call(
        kernel,
        out_shape=jax.ShapeDtypeStruct((N, H, W, C), x_nhwc.dtype),
        grid=grid, in_specs=in_specs, out_specs=out_spec,
        scratch_shapes=scratch,
        compiler_params=pltpu.CompilerParams(dimension_semantics=sems,
                                             vmem_limit_bytes=_vmem_limit()),
        cost_estimate=pl.CostEstimate(flops=2 * 49 * N * H * W * C, transcendentals=0,
                                      bytes_accessed=int(2.2 * N * H * W * C * 2)),
    )(*args)


# ----------------------------------------------------------------------------- fused block tail
def _block_tail_kernel(x_ref, sc_ref, lng_ref, lnb_ref, w1_ref, b1_ref,
                       w2_ref, b2_ref, gamma_ref, *args, fuse_post_ln):
    # Fused: LayerNorm -> Linear(C,4C) -> GELU(tanh) -> Linear(4C,C) -> *gamma -> +shortcut,
    # optionally followed by the next stage's downsample LayerNorm.
    if fuse_post_ln:
        pg_ref, pb_ref, o_ref, acc_ref, xn_ref = args
    else:
        o_ref, acc_ref, xn_ref = args
    h = pl.program_id(1)

    @pl.when(h == 0)
    def _():
        x = x_ref[...].astype(jnp.float32)
        mu = jnp.mean(x, axis=-1, keepdims=True)
        var = jnp.mean(jnp.square(x - mu), axis=-1, keepdims=True)
        xn = (x - mu) * jax.lax.rsqrt(var + _LN_EPS)
        xn = xn * lng_ref[...].astype(jnp.float32) + lnb_ref[...].astype(jnp.float32)
        xn_ref[...] = xn.astype(xn_ref.dtype)      # staged once per row tile (MXU dtype)
        acc_ref[...] = jnp.zeros_like(acc_ref)

    hid = jnp.dot(xn_ref[...], w1_ref[...], preferred_element_type=jnp.float32)
    hid = _gelu_tanh(hid + b1_ref[...].astype(jnp.float32))
    acc_ref[...] += jnp.dot(hid.astype(w2_ref.dtype), w2_ref[...],
                            preferred_element_type=jnp.float32)

    @pl.when(h == pl.num_programs(1) - 1)
    def _():
        y = acc_ref[...] + b2_ref[...].astype(jnp.float32)
        out = sc_ref[...].astype(jnp.float32) + gamma_ref[...].astype(jnp.float32) * y
        if fuse_post_ln:
            mu = jnp.mean(out, axis=-1, keepdims=True)
            var = jnp.mean(jnp.square(out - mu), axis=-1, keepdims=True)
            out = (out - mu) * jax.lax.rsqrt(var + _LN_EPS)
            out = (out * pg_ref[...].astype(jnp.float32)
                   + pb_ref[...].astype(jnp.float32))
        o_ref[...] = out.astype(o_ref.dtype)


def block_tail(tokens, shortcut, ln_g, ln_b, w1, b1, w2, b2, gamma, post_ln=None):
    M, C = tokens.shape
    H4 = w1.shape[1]  # 4*C
    fuse = post_ln is not None
    # Keep both MLP weights resident (constant index_map -> DMA'd once) whenever they fit;
    # only the largest stage (C=1536) keeps the hidden-tile reduction axis.
    if 2 * C * H4 * jnp.dtype(_MXU_DTYPE).itemsize <= _W_RESIDENT_BYTES:
        tm, th = _div_tile(M, _ROW_CAP, 8), H4
    else:
        tm, th = _div_tile(M, _LARGE_ROW_CAP, 8), _div_tile(H4, _LARGE_HID_CAP, 128)

    in_specs = [pl.BlockSpec((tm, C), lambda r, h: (r, 0)),    # tokens (dwconv out)
                pl.BlockSpec((tm, C), lambda r, h: (r, 0)),    # residual shortcut
                pl.BlockSpec((1, C), lambda r, h: (0, 0)),     # ln gamma
                pl.BlockSpec((1, C), lambda r, h: (0, 0)),     # ln beta
                pl.BlockSpec((C, th), lambda r, h: (0, h)),    # w1 [C, 4C]
                pl.BlockSpec((1, th), lambda r, h: (0, h)),    # b1
                pl.BlockSpec((th, C), lambda r, h: (h, 0)),    # w2 [4C, C]
                pl.BlockSpec((1, C), lambda r, h: (0, 0)),     # b2
                pl.BlockSpec((1, C), lambda r, h: (0, 0))]     # layerscale gamma
    args = [tokens, shortcut, ln_g.reshape(1, C), ln_b.reshape(1, C),
            w1.astype(_MXU_DTYPE), b1.reshape(1, H4),
            w2.astype(_MXU_DTYPE), b2.reshape(1, C), gamma.reshape(1, C)]
    if fuse:
        pg, pb = post_ln
        in_specs += [pl.BlockSpec((1, C), lambda r, h: (0, 0)),
                     pl.BlockSpec((1, C), lambda r, h: (0, 0))]
        args += [pg.reshape(1, C), pb.reshape(1, C)]

    cost = pl.CostEstimate(flops=4 * M * C * H4, transcendentals=M * H4,
                           bytes_accessed=3 * M * C * 2 + 2 * C * H4 * 2)

    # Aliasing is safe: output row tiles are disjoint and each tile's input is consumed
    # (staged to xn/acc) before that same tile is written back.
    return pl.pallas_call(
        functools.partial(_block_tail_kernel, fuse_post_ln=fuse),
        out_shape=jax.ShapeDtypeStruct((M, C), tokens.dtype),
        grid=(M // tm, H4 // th),
        in_specs=in_specs,
        out_specs=pl.BlockSpec((tm, C), lambda r, h: (r, 0)),
        scratch_shapes=[pltpu.VMEM((tm, C), jnp.float32),   # f32 accumulator
                        pltpu.VMEM((tm, C), _MXU_DTYPE)],   # staged LN(x) for the MXU
        compiler_params=pltpu.CompilerParams(
            dimension_semantics=("parallel", "arbitrary"),
            vmem_limit_bytes=_vmem_limit()),
        input_output_aliases={0: 0},   # output reuses the dwconv-tokens HBM buffer
        cost_estimate=cost,
    )(*args)


# ----------------------------------------------------------------------------- glue
def conv_patch(x_nhwc, w_pt, b, k, post_ln=None):
    """k x k stride-k conv via patch extraction + tiled matmul kernel (+ optional fused LN).
    w_pt has PyTorch conv layout [Cout, Cin, k, k]."""
    x_nhwc = x_nhwc.astype(_MXU_DTYPE)   # halves the patch copy and all matmul DMA bytes
    N, H, W, Cin = x_nhwc.shape
    Cout = w_pt.shape[0]
    Ho, Wo = H // k, W // k
    # TODO(synk): fold the patch gather into the matmul in_spec (NHWC index_map) to avoid
    # materializing the transposed patch tensor in HBM entirely.
    patches = (x_nhwc.reshape(N, Ho, k, Wo, k, Cin)
               .transpose(0, 1, 3, 2, 4, 5)
               .reshape(N * Ho * Wo, k * k * Cin))
    wmat = jnp.transpose(w_pt, (2, 3, 1, 0)).reshape(k * k * Cin, Cout)
    out = matmul_bias(patches, wmat, b, post_ln=post_ln)
    return out.reshape(N, Ho, Wo, Cout)


def convnext_block(x_nhwc, p, post_ln=None):
    N, H, W, C = x_nhwc.shape
    # depthwise 7x7, pad 3 (PyTorch dw weight [C,1,7,7] -> [49,C])
    w49c = jnp.transpose(p['dw_w'][:, 0, :, :], (1, 2, 0)).reshape(49, C)
    xd = dwconv7(x_nhwc, w49c, p['dw_b'])
    tokens = xd.reshape(N * H * W, C)
    sc = x_nhwc.reshape(N * H * W, C)
    # PyTorch Linear weights are [out, in]; the kernel multiplies on the right.
    out = block_tail(tokens, sc, p['ln_g'], p['ln_b'],
                     p['w1'].T, p['b1'], p['w2'].T, p['b2'], p['gamma'],
                     post_ln=post_ln)
    return out.reshape(N, H, W, C)


def clip_forward(x_nchw, params):
    """extract_features_convnext: stem -> stages[0..3] -> norm_pre (Identity)."""
    x = jnp.transpose(x_nchw, (0, 2, 3, 1)).astype(_MXU_DTYPE)  # NCHW -> NHWC, bf16 acts
    # stem: Conv2d(3, dims[0], 4, 4) + LayerNorm (fused into the matmul epilogue)
    x = conv_patch(x, params['stem_conv_w'], params['stem_conv_b'], k=4,
                   post_ln=(params['stem_ln_g'], params['stem_ln_b']))
    for i in range(4):
        st = params['stages'][i]
        if i > 0:
            # The downsample LayerNorm was fused into the previous stage's last block tail
            # (post_ln below); only the strided 2x2 conv remains here.
            x = conv_patch(x, st['ds_conv_w'], st['ds_conv_b'], k=2)
        blocks = st['blocks']
        for j, blk in enumerate(blocks):
            post_ln = None
            if j == len(blocks) - 1 and i < 3:
                nxt = params['stages'][i + 1]
                post_ln = (nxt['ds_ln_g'], nxt['ds_ln_b'])
            x = convnext_block(x, blk, post_ln=post_ln)
    # norm_pre is nn.Identity() in timm ConvNeXt CLIP trunks (head_norm_first=False)
    x = jnp.transpose(x.astype(jnp.float32), (0, 3, 1, 2))  # back to NCHW f32
    return {'clip_vis_dense': x}


# ----------------------------------------------------------------------------- params
def init_params(key, in_chans=3, dims=(32, 64, 128, 256), depths=(1, 1, 1, 1)):
    keys = iter(jax.random.split(key, 256))

    def nrm(shape, std=0.02):
        return std * jax.random.normal(next(keys), shape, jnp.float32)

    params = {
        'stem_conv_w': nrm((dims[0], in_chans, 4, 4)),
        'stem_conv_b': nrm((dims[0],)),
        'stem_ln_g': jnp.ones((dims[0],), jnp.float32),
        'stem_ln_b': jnp.zeros((dims[0],), jnp.float32),
        'stages': [],
    }
    prev = dims[0]
    for i in range(4):
        C = dims[i]
        st = {}
        if i > 0:
            st['ds_ln_g'] = jnp.ones((prev,), jnp.float32)
            st['ds_ln_b'] = jnp.zeros((prev,), jnp.float32)
            st['ds_conv_w'] = nrm((C, prev, 2, 2))
            st['ds_conv_b'] = nrm((C,))
        blocks = []
        for _ in range(depths[i]):
            blocks.append({
                'dw_w': nrm((C, 1, 7, 7)),
                'dw_b': nrm((C,)),
                'ln_g': jnp.ones((C,), jnp.float32),
                'ln_b': jnp.zeros((C,), jnp.float32),
                'w1': nrm((4 * C, C)), 'b1': nrm((4 * C,)),
                'w2': nrm((C, 4 * C)), 'b2': nrm((C,)),
                'gamma': jnp.full((C,), 1e-6, jnp.float32),  # timm ls_init_value
            })
        st['blocks'] = blocks
        params['stages'].append(st)
        prev = C
    return params


# ----------------------------------------------------------------------------- main
if __name__ == "__main__":
    key = jax.random.PRNGKey(0)
    k1, k2, k3, k4, k5 = jax.random.split(key, 5)

    # --- self-check 1: depthwise 7x7 kernel (exercises the H-strip + halo path) ---
    C = 128
    xdw = jax.random.normal(k3, (1, 72, 12, C), jnp.float32).astype(jnp.bfloat16)
    wdw = 0.05 * jax.random.normal(k4, (C, 1, 7, 7), jnp.float32)
    bdw = 0.05 * jax.random.normal(k5, (C,), jnp.float32)
    w49c = jnp.transpose(wdw[:, 0, :, :], (1, 2, 0)).reshape(49, C)
    got = dwconv7(xdw, w49c, bdw).astype(jnp.float32)
    ref = jax.lax.conv_general_dilated(
        jnp.transpose(xdw.astype(jnp.float32), (0, 3, 1, 2)), wdw,
        window_strides=(1, 1), padding=((3, 3), (3, 3)), feature_group_count=C)
    ref = jnp.transpose(ref, (0, 2, 3, 1)) + bdw.reshape(1, 1, 1, C)
    err = float(jnp.max(jnp.abs(got - ref)))
    assert err < 3e-2, f"dwconv7 mismatch: {err}"

    # --- self-check 2: stem conv with fused LayerNorm epilogue ---
    xs = jax.random.normal(k2, (1, 3, 16, 16), jnp.float32)
    ws = 0.05 * jax.random.normal(k1, (32, 3, 4, 4), jnp.float32)
    bs = 0.05 * jax.random.normal(k2, (32,), jnp.float32)
    gs = 1.0 + 0.1 * jax.random.normal(k3, (32,), jnp.float32)
    es = 0.1 * jax.random.normal(k4, (32,), jnp.float32)
    x_nhwc = jnp.transpose(xs, (0, 2, 3, 1)).astype(jnp.bfloat16)
    got2 = conv_patch(x_nhwc, ws, bs, 4, post_ln=(gs, es)).astype(jnp.float32)
    refc = jax.lax.conv_general_dilated(
        jnp.transpose(x_nhwc.astype(jnp.float32), (0, 3, 1, 2)), ws,
        window_strides=(4, 4), padding='VALID')
    refc = jnp.transpose(refc, (0, 2, 3, 1)) + bs
    mu = refc.mean(-1, keepdims=True)
    var = ((refc - mu) ** 2).mean(-1, keepdims=True)
    refn = (refc - mu) * jax.lax.rsqrt(var + _LN_EPS) * gs + es
    err2 = float(jnp.max(jnp.abs(got2 - refn)))
    assert err2 < 5e-2, f"stem conv+LN mismatch: {err2}"

    # --- full forward ---
    params = init_params(k1)
    x = jax.random.normal(k2, (2, 3, 64, 64), jnp.float32)  # NCHW, like PyTorch

    fwd = jax.jit(clip_forward)
    out = fwd(x, params)
    feat = jax.block_until_ready(out['clip_vis_dense'])

    assert feat.shape == (2, 256, 2, 2), feat.shape
    assert feat.dtype == jnp.float32
    assert bool(jnp.all(jnp.isfinite(feat)))
    print("KERNEL_OK")
</pallas_src>

<mosaic_0001>
module attributes {stable_mosaic.version = 11 : i64} {
  func.func @_dwconv7_kernel(%arg0: i32, %arg1: i32, %arg2: i32, %arg3: memref<1x24x24x128xbf16, #tpu.memory_space<vmem>>, %arg4: memref<1x8x24x128xbf16, #tpu.memory_space<vmem>>, %arg5: memref<49x128xf32, #tpu.memory_space<vmem>>, %arg6: memref<1x128xf32, #tpu.memory_space<vmem>>, %arg7: memref<1x24x12x128xbf16, #tpu.memory_space<vmem>>, %arg8: memref<1x30x24x128xbf16, #tpu.memory_space<vmem>>) attributes {dimension_semantics = [#tpu.dimension_semantics<parallel>, #tpu.dimension_semantics<parallel>, #tpu.dimension_semantics<parallel>], iteration_bounds = array<i64: 1, 3, 1>, scalar_prefetch = 0 : i64, scratch_operands = 1 : i64, tpu.core_type = #tpu.core_type<tc>, window_params = [{transform_indices = @transform_0, window_bounds = array<i64: 1, 24, 24, 128>}, {transform_indices = @transform_1, window_bounds = array<i64: 1, 8, 24, 128>}, {transform_indices = @transform_2, window_bounds = array<i64: 49, 128>}, {transform_indices = @transform_3, window_bounds = array<i64: 1, 128>}, {transform_indices = @transform_4, window_bounds = array<i64: 1, 24, 12, 128>}]} {
    %c0 = arith.constant 0 : index
    %c0_0 = arith.constant 0 : index
    %c0_1 = arith.constant 0 : index
    %c0_2 = arith.constant 0 : index
    %0 = vector.load %arg3[%c0, %c0_0, %c0_1, %c0_2] : memref<1x24x24x128xbf16, #tpu.memory_space<vmem>>, vector<1x24x24x128xbf16>
    %c0_3 = arith.constant 0 : index
    %c0_4 = arith.constant 0 : index
    %c0_5 = arith.constant 0 : index
    %c0_6 = arith.constant 0 : index
    %1 = vector.load %arg8[%c0_3, %c0_4, %c0_5, %c0_6] : memref<1x30x24x128xbf16, #tpu.memory_space<vmem>>, vector<1x24x24x128xbf16>
    tpu.vector_store %arg8[%c0_3, %c0_4, %c0_5, %c0_6], %0 {strides = array<i32>} : memref<1x30x24x128xbf16, #tpu.memory_space<vmem>>, vector<1x24x24x128xbf16>,
    %c0_7 = arith.constant 0 : index
    %c0_8 = arith.constant 0 : index
    %c0_9 = arith.constant 0 : index
    %c0_10 = arith.constant 0 : index
    %2 = vector.load %arg4[%c0_7, %c0_8, %c0_9, %c0_10] : memref<1x8x24x128xbf16, #tpu.memory_space<vmem>>, vector<1x6x24x128xbf16>
    %c0_11 = arith.constant 0 : index
    %c24 = arith.constant 24 : index
    %c0_12 = arith.constant 0 : index
    %c0_13 = arith.constant 0 : index
    %3 = vector.load %arg8[%c0_11, %c24, %c0_12, %c0_13] : memref<1x30x24x128xbf16, #tpu.memory_space<vmem>>, vector<1x6x24x128xbf16>
    tpu.vector_store %arg8[%c0_11, %c24, %c0_12, %c0_13], %2 {strides = array<i32>} : memref<1x30x24x128xbf16, #tpu.memory_space<vmem>>, vector<1x6x24x128xbf16>,
    %c0_14 = arith.constant 0 : index
    %c0_15 = arith.constant 0 : index
    %4 = vector.load %arg5[%c0_14, %c0_15] : memref<49x128xf32, #tpu.memory_space<vmem>>, vector<49x128xf32>
    %cst = arith.constant 0.000000e+00 : f32
    %5 = vector.broadcast %cst : f32 to vector<1x24x12x128xf32>
    %cst_16 = arith.constant 0.000000e+00 : f32
    %6 = vector.broadcast %cst_16 : f32 to vector<1x24x24x128xf32>
    %c0_17 = arith.constant 0 : index
    %c0_18 = arith.constant 0 : index
    %c0_19 = arith.constant 0 : index
    %c0_20 = arith.constant 0 : index
    %7 = vector.load %arg8[%c0_17, %c0_18, %c0_19, %c0_20] : memref<1x30x24x128xbf16, #tpu.memory_space<vmem>>, vector<1x24x24x128xbf16>
    %8 = arith.extf %7 : vector<1x24x24x128xbf16> to vector<1x24x24x128xf32>
    %9 = vector.extract_strided_slice %4 {offsets = [0, 0], sizes = [1, 128], strides = [1, 1]} : vector<49x128xf32> to vector<1x128xf32>
    %10 = vector.shape_cast %9 : vector<1x128xf32> to vector<128xf32>
    %11 = vector.shape_cast %10 : vector<128xf32> to vector<1x1x1x128xf32>
    %12 = vector.broadcast %11 : vector<1x1x1x128xf32> to vector<1x24x24x128xf32>
    %13 = arith.mulf %8, %12 : vector<1x24x24x128xf32>
    %14 = arith.addf %6, %13 : vector<1x24x24x128xf32>
    %c0_21 = arith.constant 0 : index
    %c1 = arith.constant 1 : index
    %c0_22 = arith.constant 0 : index
    %c0_23 = arith.constant 0 : index
    %15 = vector.load %arg8[%c0_21, %c1, %c0_22, %c0_23] : memref<1x30x24x128xbf16, #tpu.memory_space<vmem>>, vector<1x24x24x128xbf16>
    %16 = arith.extf %15 : vector<1x24x24x128xbf16> to vector<1x24x24x128xf32>
    %17 = vector.extract_strided_slice %4 {offsets = [7, 0], sizes = [1, 128], strides = [1, 1]} : vector<49x128xf32> to vector<1x128xf32>
    %18 = vector.shape_cast %17 : vector<1x128xf32> to vector<128xf32>
    %19 = vector.shape_cast %18 : vector<128xf32> to vector<1x1x1x128xf32>
    %20 = vector.broadcast %19 : vector<1x1x1x128xf32> to vector<1x24x24x128xf32>
    %21 = arith.mulf %16, %20 : vector<1x24x24x128xf32>
    %22 = arith.addf %14, %21 : vector<1x24x24x128xf32>
    %c0_24 = arith.constant 0 : index
    %c2 = arith.constant 2 : index
    %c0_25 = arith.constant 0 : index
    %c0_26 = arith.constant 0 : index
    %23 = vector.load %arg8[%c0_24, %c2, %c0_25, %c0_26] : memref<1x30x24x128xbf16, #tpu.memory_space<vmem>>, vector<1x24x24x128xbf16>
    %24 = arith.extf %23 : vector<1x24x24x128xbf16> to vector<1x24x24x128xf32>
    %25 = vector.extract_strided_slice %4 {offsets = [14, 0], sizes = [1, 128], strides = [1, 1]} : vector<49x128xf32> to vector<1x128xf32>
    %26 = vector.shape_cast %25 : vector<1x128xf32> to vector<128xf32>
    %27 = vector.shape_cast %26 : vector<128xf32> to vector<1x1x1x128xf32>
    %28 = vector.broadcast %27 : vector<1x1x1x128xf32> to vector<1x24x24x128xf32>
    %29 = arith.mulf %24, %28 : vector<1x24x24x128xf32>
    %30 = arith.addf %22, %29 : vector<1x24x24x128xf32>
    %c0_27 = arith.constant 0 : index
    %c3 = arith.constant 3 : index
    %c0_28 = arith.constant 0 : index
    %c0_29 = arith.constant 0 : index
    %31 = vector.load %arg8[%c0_27, %c3, %c0_28, %c0_29] : memref<1x30x24x128xbf16, #tpu.memory_space<vmem>>, vector<1x24x24x128xbf16>
    %32 = arith.extf %31 : vector<1x24x24x128xbf16> to vector<1x24x24x128xf32>
    %33 = vector.extract_strided_slice %4 {offsets = [21, 0], sizes = [1, 128], strides = [1, 1]} : vector<49x128xf32> to vector<1x128xf32>
    %34 = vector.shape_cast %33 : vector<1x128xf32> to vector<128xf32>
    %35 = vector.shape_cast %34 : vector<128xf32> to vector<1x1x1x128xf32>
    %36 = vector.broadcast %35 : vector<1x1x1x128xf32> to vector<1x24x24x128xf32>
    %37 = arith.mulf %32, %36 : vector<1x24x24x128xf32>
    %38 = arith.addf %30, %37 : vector<1x24x24x128xf32>
    %c0_30 = arith.constant 0 : index
    %c4 = arith.constant 4 : index
    %c0_31 = arith.constant 0 : index
    %c0_32 = arith.constant 0 : index
    %39 = vector.load %arg8[%c0_30, %c4, %c0_31, %c0_32] : memref<1x30x24x128xbf16, #tpu.memory_space<vmem>>, vector<1x24x24x128xbf16>
    %40 = arith.extf %39 : vector<1x24x24x128xbf16> to vector<1x24x24x128xf32>
    %41 = vector.extract_strided_slice %4 {offsets = [28, 0], sizes = [1, 128], strides = [1, 1]} : vector<49x128xf32> to vector<1x128xf32>
    %42 = vector.shape_cast %41 : vector<1x128xf32> to vector<128xf32>
    %43 = vector.shape_cast %42 : vector<128xf32> to vector<1x1x1x128xf32>
    %44 = vector.broadcast %43 : vector<1x1x1x128xf32> to vector<1x24x24x128xf32>
    %45 = arith.mulf %40, %44 : vector<1x24x24x128xf32>
    %46 = arith.addf %38, %45 : vector<1x24x24x128xf32>
    %c0_33 = arith.constant 0 : index
    %c5 = arith.constant 5 : index
    %c0_34 = arith.constant 0 : index
    %c0_35 = arith.constant 0 : index
    %47 = vector.load %arg8[%c0_33, %c5, %c0_34, %c0_35] : memref<1x30x24x128xbf16, #tpu.memory_space<vmem>>, vector<1x24x24x128xbf16>
    %48 = arith.extf %47 : vector<1x24x24x128xbf16> to vector<1x24x24x128xf32>
    %49 = vector.extract_strided_slice %4 {offsets = [35, 0], sizes = [1, 128], strides = [1, 1]} : vector<49x128xf32> to vector<1x128xf32>
    %50 = vector.shape_cast %49 : vector<1x128xf32> to vector<128xf32>
    %51 = vector.shape_cast %50 : vector<128xf32> to vector<1x1x1x128xf32>
    %52 = vector.broadcast %51 : vector<1x1x1x128xf32> to vector<1x24x24x128xf32>
    %53 = arith.mulf %48, %52 : vector<1x24x24x128xf32>
    %54 = arith.addf %46, %53 : vector<1x24x24x128xf32>
    %c0_36 = arith.constant 0 : index
    %c6 = arith.constant 6 : index
    %c0_37 = arith.constant 0 : index
    %c0_38 = arith.constant 0 : index
    %55 = vector.load %arg8[%c0_36, %c6, %c0_37, %c0_38] : memref<1x30x24x128xbf16, #tpu.memory_space<vmem>>, vector<1x24x24x128xbf16>
    %56 = arith.extf %55 : vector<1x24x24x128xbf16> to vector<1x24x24x128xf32>
    %57 = vector.extract_strided_slice %4 {offsets = [42, 0], sizes = [1, 128], strides = [1, 1]} : vector<49x128xf32> to vector<1x128xf32>
    %58 = vector.shape_cast %57 : vector<1x128xf32> to vector<128xf32>
    %59 = vector.shape_cast %58 : vector<128xf32> to vector<1x1x1x128xf32>
    %60 = vector.broadcast %59 : vector<1x1x1x128xf32> to vector<1x24x24x128xf32>
    %61 = arith.mulf %56, %60 : vector<1x24x24x128xf32>
    %62 = arith.addf %54, %61 : vector<1x24x24x128xf32>
    %63 = vector.extract_strided_slice %62 {offsets = [0, 0, 0, 0], sizes = [1, 24, 12, 128], strides = [1, 1, 1, 1]} : vector<1x24x24x128xf32> to vector<1x24x12x128xf32>
    %64 = arith.addf %5, %63 : vector<1x24x12x128xf32>
    %cst_39 = arith.constant 0.000000e+00 : f32
    %65 = vector.broadcast %cst_39 : f32 to vector<1x24x24x128xf32>
    %c0_40 = arith.constant 0 : index
    %c0_41 = arith.constant 0 : index
    %c0_42 = arith.constant 0 : index
    %c0_43 = arith.constant 0 : index
    %66 = vector.load %arg8[%c0_40, %c0_41, %c0_42, %c0_43] : memref<1x30x24x128xbf16, #tpu.memory_space<vmem>>, vector<1x24x24x128xbf16>
    %67 = arith.extf %66 : vector<1x24x24x128xbf16> to vector<1x24x24x128xf32>
    %68 = vector.extract_strided_slice %4 {offsets = [1, 0], sizes = [1, 128], strides = [1, 1]} : vector<49x128xf32> to vector<1x128xf32>
    %69 = vector.shape_cast %68 : vector<1x128xf32> to vector<128xf32>
    %70 = vector.shape_cast %69 : vector<128xf32> to vector<1x1x1x128xf32>
    %71 = vector.broadcast %70 : vector<1x1x1x128xf32> to vector<1x24x24x128xf32>
    %72 = arith.mulf %67, %71 : vector<1x24x24x128xf32>
    %73 = arith.addf %65, %72 : vector<1x24x24x128xf32>
    %c0_44 = arith.constant 0 : index
    %c1_45 = arith.constant 1 : index
    %c0_46 = arith.constant 0 : index
    %c0_47 = arith.constant 0 : index
    %74 = vector.load %arg8[%c0_44, %c1_45, %c0_46, %c0_47] : memref<1x30x24x128xbf16, #tpu.memory_space<vmem>>, vector<1x24x24x128xbf16>
    %75 = arith.extf %74 : vector<1x24x24x128xbf16> to vector<1x24x24x128xf32>
    %76 = vector.extract_strided_slice %4 {offsets = [8, 0], sizes = [1, 128], strides = [1, 1]} : vector<49x128xf32> to vector<1x128xf32>
    %77 = vector.shape_cast %76 : vector<1x128xf32> to vector<128xf32>
    %78 = vector.shape_cast %77 : vector<128xf32> to vector<1x1x1x128xf32>
    %79 = vector.broadcast %78 : vector<1x1x1x128xf32> to vector<1x24x24x128xf32>
    %80 = arith.mulf %75, %79 : vector<1x24x24x128xf32>
    %81 = arith.addf %73, %80 : vector<1x24x24x128xf32>
    %c0_48 = arith.constant 0 : index
    %c2_49 = arith.constant 2 : index
    %c0_50 = arith.constant 0 : index
    %c0_51 = arith.constant 0 : index
    %82 = vector.load %arg8[%c0_48, %c2_49, %c0_50, %c0_51] : memref<1x30x24x128xbf16, #tpu.memory_space<vmem>>, vector<1x24x24x128xbf16>
    %83 = arith.extf %82 : vector<1x24x24x128xbf16> to vector<1x24x24x128xf32>
    %84 = vector.extract_strided_slice %4 {offsets = [15, 0], sizes = [1, 128], strides = [1, 1]} : vector<49x128xf32> to vector<1x128xf32>
    %85 = vector.shape_cast %84 : vector<1x128xf32> to vector<128xf32>
    %86 = vector.shape_cast %85 : vector<128xf32> to vector<1x1x1x128xf32>
    %87 = vector.broadcast %86 : vector<1x1x1x128xf32> to vector<1x24x24x128xf32>
    %88 = arith.mulf %83, %87 : vector<1x24x24x128xf32>
    %89 = arith.addf %81, %88 : vector<1x24x24x128xf32>
    %c0_52 = arith.constant 0 : index
    %c3_53 = arith.constant 3 : index
    %c0_54 = arith.constant 0 : index
    %c0_55 = arith.constant 0 : index
    %90 = vector.load %arg8[%c0_52, %c3_53, %c0_54, %c0_55] : memref<1x30x24x128xbf16, #tpu.memory_space<vmem>>, vector<1x24x24x128xbf16>
    %91 = arith.extf %90 : vector<1x24x24x128xbf16> to vector<1x24x24x128xf32>
    %92 = vector.extract_strided_slice %4 {offsets = [22, 0], sizes = [1, 128], strides = [1, 1]} : vector<49x128xf32> to vector<1x128xf32>
    %93 = vector.shape_cast %92 : vector<1x128xf32> to vector<128xf32>
    %94 = vector.shape_cast %93 : vector<128xf32> to vector<1x1x1x128xf32>
    %95 = vector.broadcast %94 : vector<1x1x1x128xf32> to vector<1x24x24x128xf32>
    %96 = arith.mulf %91, %95 : vector<1x24x24x128xf32>
    %97 = arith.addf %89, %96 : vector<1x24x24x128xf32>
    %c0_56 = arith.constant 0 : index
    %c4_57 = arith.constant 4 : index
    %c0_58 = arith.constant 0 : index
    %c0_59 = arith.constant 0 : index
    %98 = vector.load %arg8[%c0_56, %c4_57, %c0_58, %c0_59] : memref<1x30x24x128xbf16, #tpu.memory_space<vmem>>, vector<1x24x24x128xbf16>
    %99 = arith.extf %98 : vector<1x24x24x128xbf16> to vector<1x24x24x128xf32>
    %100 = vector.extract_strided_slice %4 {offsets = [29, 0], sizes = [1, 128], strides = [1, 1]} : vector<49x128xf32> to vector<1x128xf32>
    %101 = vector.shape_cast %100 : vector<1x128xf32> to vector<128xf32>
    %102 = vector.shape_cast %101 : vector<128xf32> to vector<1x1x1x128xf32>
    %103 = vector.broadcast %102 : vector<1x1x1x128xf32> to vector<1x24x24x128xf32>
    %104 = arith.mulf %99, %103 : vector<1x24x24x128xf32>
    %105 = arith.addf %97, %104 : vector<1x24x24x128xf32>
    %c0_60 = arith.constant 0 : index
    %c5_61 = arith.constant 5 : index
    %c0_62 = arith.constant 0 : index
    %c0_63 = arith.constant 0 : index
    %106 = vector.load %arg8[%c0_60, %c5_61, %c0_62, %c0_63] : memref<1x30x24x128xbf16, #tpu.memory_space<vmem>>, vector<1x24x24x128xbf16>
    %107 = arith.extf %106 : vector<1x24x24x128xbf16> to vector<1x24x24x128xf32>
    %108 = vector.extract_strided_slice %4 {offsets = [36, 0], sizes = [1, 128], strides = [1, 1]} : vector<49x128xf32> to vector<1x128xf32>
    %109 = vector.shape_cast %108 : vector<1x128xf32> to vector<128xf32>
    %110 = vector.shape_cast %109 : vector<128xf32> to vector<1x1x1x128xf32>
    %111 = vector.broadcast %110 : vector<1x1x1x128xf32> to vector<1x24x24x128xf32>
    %112 = arith.mulf %107, %111 : vector<1x24x24x128xf32>
    %113 = arith.addf %105, %112 : vector<1x24x24x128xf32>
    %c0_64 = arith.constant 0 : index
    %c6_65 = arith.constant 6 : index
    %c0_66 = arith.constant 0 : index
    %c0_67 = arith.constant 0 : index
    %114 = vector.load %arg8[%c0_64, %c6_65, %c0_66, %c0_67] : memref<1x30x24x128xbf16, #tpu.memory_space<vmem>>, vector<1x24x24x128xbf16>
    %115 = arith.extf %114 : vector<1x24x24x128xbf16> to vector<1x24x24x128xf32>
    %116 = vector.extract_strided_slice %4 {offsets = [43, 0], sizes = [1, 128], strides = [1, 1]} : vector<49x128xf32> to vector<1x128xf32>
    %117 = vector.shape_cast %116 : vector<1x128xf32> to vector<128xf32>
    %118 = vector.shape_cast %117 : vector<128xf32> to vector<1x1x1x128xf32>
    %119 = vector.broadcast %118 : vector<1x1x1x128xf32> to vector<1x24x24x128xf32>
    %120 = arith.mulf %115, %119 : vector<1x24x24x128xf32>
    %121 = arith.addf %113, %120 : vector<1x24x24x128xf32>
    %122 = vector.extract_strided_slice %121 {offsets = [0, 0, 1, 0], sizes = [1, 24, 12, 128], strides = [1, 1, 1, 1]} : vector<1x24x24x128xf32> to vector<1x24x12x128xf32>
    %123 = arith.addf %64, %122 : vector<1x24x12x128xf32>
    %cst_68 = arith.constant 0.000000e+00 : f32
    %124 = vector.broadcast %cst_68 : f32 to vector<1x24x24x128xf32>
    %c0_69 = arith.constant 0 : index
    %c0_70 = arith.constant 0 : index
    %c0_71 = arith.constant 0 : index
    %c0_72 = arith.constant 0 : index
    %125 = vector.load %arg8[%c0_69, %c0_70, %c0_71, %c0_72] : memref<1x30x24x128xbf16, #tpu.memory_space<vmem>>, vector<1x24x24x128xbf16>
    %126 = arith.extf %125 : vector<1x24x24x128xbf16> to vector<1x24x24x128xf32>
    %127 = vector.extract_strided_slice %4 {offsets = [2, 0], sizes = [1, 128], strides = [1, 1]} : vector<49x128xf32> to vector<1x128xf32>
    %128 = vector.shape_cast %127 : vector<1x128xf32> to vector<128xf32>
    %129 = vector.shape_cast %128 : vector<128xf32> to vector<1x1x1x128xf32>
    %130 = vector.broadcast %129 : vector<1x1x1x128xf32> to vector<1x24x24x128xf32>
    %131 = arith.mulf %126, %130 : vector<1x24x24x128xf32>
    %132 = arith.addf %124, %131 : vector<1x24x24x128xf32>
    %c0_73 = arith.constant 0 : index
    %c1_74 = arith.constant 1 : index
    %c0_75 = arith.constant 0 : index
    %c0_76 = arith.constant 0 : index
    %133 = vector.load %arg8[%c0_73, %c1_74, %c0_75, %c0_76] : memref<1x30x24x128xbf16, #tpu.memory_space<vmem>>, vector<1x24x24x128xbf16>
    %134 = arith.extf %133 : vector<1x24x24x128xbf16> to vector<1x24x24x128xf32>
    %135 = vector.extract_strided_slice %4 {offsets = [9, 0], sizes = [1, 128], strides = [1, 1]} : vector<49x128xf32> to vector<1x128xf32>
    %136 = vector.shape_cast %135 : vector<1x128xf32> to vector<128xf32>
    %137 = vector.shape_cast %136 : vector<128xf32> to vector<1x1x1x128xf32>
    %138 = vector.broadcast %137 : vector<1x1x1x128xf32> to vector<1x24x24x128xf32>
    %139 = arith.mulf %134, %138 : vector<1x24x24x128xf32>
    %140 = arith.addf %132, %139 : vector<1x24x24x128xf32>
    %c0_77 = arith.constant 0 : index
    %c2_78 = arith.constant 2 : index
    %c0_79 = arith.constant 0 : index
    %c0_80 = arith.constant 0 : index
    %141 = vector.load %arg8[%c0_77, %c2_78, %c0_79, %c0_80] : memref<1x30x24x128xbf16, #tpu.memory_space<vmem>>, vector<1x24x24x128xbf16>
    %142 = arith.extf %141 : vector<1x24x24x128xbf16> to vector<1x24x24x128xf32>
    %143 = vector.extract_strided_slice %4 {offsets = [16, 0], sizes = [1, 128], strides = [1, 1]} : vector<49x128xf32> to vector<1x128xf32>
    %144 = vector.shape_cast %143 : vector<1x128xf32> to vector<128xf32>
    %145 = vector.shape_cast %144 : vector<128xf32> to vector<1x1x1x128xf32>
    %146 = vector.broadcast %145 : vector<1x1x1x128xf32> to vector<1x24x24x128xf32>
    %147 = arith.mulf %142, %146 : vector<1x24x24x128xf32>
    %148 = arith.addf %140, %147 : vector<1x24x24x128xf32>
    %c0_81 = arith.constant 0 : index
    %c3_82 = arith.constant 3 : index
    %c0_83 = arith.constant 0 : index
    %c0_84 = arith.constant 0 : index
    %149 = vector.load %arg8[%c0_81, %c3_82, %c0_83, %c0_84] : memref<1x30x24x128xbf16, #tpu.memory_space<vmem>>, vector<1x24x24x128xbf16>
    %150 = arith.extf %149 : vector<1x24x24x128xbf16> to vector<1x24x24x128xf32>
    %151 = vector.extract_strided_slice %4 {offsets = [23, 0], sizes = [1, 128], strides = [1, 1]} : vector<49x128xf32> to vector<1x128xf32>
    %152 = vector.shape_cast %151 : vector<1x128xf32> to vector<128xf32>
    %153 = vector.shape_cast %152 : vector<128xf32> to vector<1x1x1x128xf32>
    %154 = vector.broadcast %153 : vector<1x1x1x128xf32> to vector<1x24x24x128xf32>
    %155 = arith.mulf %150, %154 : vector<1x24x24x128xf32>
    %156 = arith.addf %148, %155 : vector<1x24x24x128xf32>
    %c0_85 = arith.constant 0 : index
    %c4_86 = arith.constant 4 : index
    %c0_87 = arith.constant 0 : index
    %c0_88 = arith.constant 0 : index
    %157 = vector.load %arg8[%c0_85, %c4_86, %c0_87, %c0_88] : memref<1x30x24x128xbf16, #tpu.memory_space<vmem>>, vector<1x24x24x128xbf16>
    %158 = arith.extf %157 : vector<1x24x24x128xbf16> to vector<1x24x24x128xf32>
    %159 = vector.extract_strided_slice %4 {offsets = [30, 0], sizes = [1, 128], strides = [1, 1]} : vector<49x128xf32> to vector<1x128xf32>
    %160 = vector.shape_cast %159 : vector<1x128xf32> to vector<128xf32>
    %161 = vector.shape_cast %160 : vector<128xf32> to vector<1x1x1x128xf32>
    %162 = vector.broadcast %161 : vector<1x1x1x128xf32> to vector<1x24x24x128xf32>
    %163 = arith.mulf %158, %162 : vector<1x24x24x128xf32>
    %164 = arith.addf %156, %163 : vector<1x24x24x128xf32>
    %c0_89 = arith.constant 0 : index
    %c5_90 = arith.constant 5 : index
    %c0_91 = arith.constant 0 : index
    %c0_92 = arith.constant 0 : index
    %165 = vector.load %arg8[%c0_89, %c5_90, %c0_91, %c0_92] : memref<1x30x24x128xbf16, #tpu.memory_space<vmem>>, vector<1x24x24x128xbf16>
    %166 = arith.extf %165 : vector<1x24x24x128xbf16> to vector<1x24x24x128xf32>
    %167 = vector.extract_strided_slice %4 {offsets = [37, 0], sizes = [1, 128], strides = [1, 1]} : vector<49x128xf32> to vector<1x128xf32>
    %168 = vector.shape_cast %167 : vector<1x128xf32> to vector<128xf32>
    %169 = vector.shape_cast %168 : vector<128xf32> to vector<1x1x1x128xf32>
    %170 = vector.broadcast %169 : vector<1x1x1x128xf32> to vector<1x24x24x128xf32>
    %171 = arith.mulf %166, %170 : vector<1x24x24x128xf32>
    %172 = arith.addf %164, %171 : vector<1x24x24x128xf32>
    %c0_93 = arith.constant 0 : index
    %c6_94 = arith.constant 6 : index
    %c0_95 = arith.constant 0 : index
    %c0_96 = arith.constant 0 : index
    %173 = vector.load %arg8[%c0_93, %c6_94, %c0_95, %c0_96] : memref<1x30x24x128xbf16, #tpu.memory_space<vmem>>, vector<1x24x24x128xbf16>
    %174 = arith.extf %173 : vector<1x24x24x128xbf16> to vector<1x24x24x128xf32>
    %175 = vector.extract_strided_slice %4 {offsets = [44, 0], sizes = [1, 128], strides = [1, 1]} : vector<49x128xf32> to vector<1x128xf32>
    %176 = vector.shape_cast %175 : vector<1x128xf32> to vector<128xf32>
    %177 = vector.shape_cast %176 : vector<128xf32> to vector<1x1x1x128xf32>
    %178 = vector.broadcast %177 : vector<1x1x1x128xf32> to vector<1x24x24x128xf32>
    %179 = arith.mulf %174, %178 : vector<1x24x24x128xf32>
    %180 = arith.addf %172, %179 : vector<1x24x24x128xf32>
    %181 = vector.extract_strided_slice %180 {offsets = [0, 0, 2, 0], sizes = [1, 24, 12, 128], strides = [1, 1, 1, 1]} : vector<1x24x24x128xf32> to vector<1x24x12x128xf32>
    %182 = arith.addf %123, %181 : vector<1x24x12x128xf32>
    %cst_97 = arith.constant 0.000000e+00 : f32
    %183 = vector.broadcast %cst_97 : f32 to vector<1x24x24x128xf32>
    %c0_98 = arith.constant 0 : index
    %c0_99 = arith.constant 0 : index
    %c0_100 = arith.constant 0 : index
    %c0_101 = arith.constant 0 : index
    %184 = vector.load %arg8[%c0_98, %c0_99, %c0_100, %c0_101] : memref<1x30x24x128xbf16, #tpu.memory_space<vmem>>, vector<1x24x24x128xbf16>
    %185 = arith.extf %184 : vector<1x24x24x128xbf16> to vector<1x24x24x128xf32>
    %186 = vector.extract_strided_slice %4 {offsets = [3, 0], sizes = [1, 128], strides = [1, 1]} : vector<49x128xf32> to vector<1x128xf32>
    %187 = vector.shape_cast %186 : vector<1x128xf32> to vector<128xf32>
    %188 = vector.shape_cast %187 : vector<128xf32> to vector<1x1x1x128xf32>
    %189 = vector.broadcast %188 : vector<1x1x1x128xf32> to vector<1x24x24x128xf32>
    %190 = arith.mulf %185, %189 : vector<1x24x24x128xf32>
    %191 = arith.addf %183, %190 : vector<1x24x24x128xf32>
    %c0_102 = arith.constant 0 : index
    %c1_103 = arith.constant 1 : index
    %c0_104 = arith.constant 0 : index
    %c0_105 = arith.constant 0 : index
    %192 = vector.load %arg8[%c0_102, %c1_103, %c0_104, %c0_105] : memref<1x30x24x128xbf16, #tpu.memory_space<vmem>>, vector<1x24x24x128xbf16>
    %193 = arith.extf %192 : vector<1x24x24x128xbf16> to vector<1x24x24x128xf32>
    %194 = vector.extract_strided_slice %4 {offsets = [10, 0], sizes = [1, 128], strides = [1, 1]} : vector<49x128xf32> to vector<1x128xf32>
    %195 = vector.shape_cast %194 : vector<1x128xf32> to vector<128xf32>
    %196 = vector.shape_cast %195 : vector<128xf32> to vector<1x1x1x128xf32>
    %197 = vector.broadcast %196 : vector<1x1x1x128xf32> to vector<1x24x24x128xf32>
    %198 = arith.mulf %193, %197 : vector<1x24x24x128xf32>
    %199 = arith.addf %191, %198 : vector<1x24x24x128xf32>
    %c0_106 = arith.constant 0 : index
    %c2_107 = arith.constant 2 : index
    %c0_108 = arith.constant 0 : index
    %c0_109 = arith.constant 0 : index
    %200 = vector.load %arg8[%c0_106, %c2_107, %c0_108, %c0_109] : memref<1x30x24x128xbf16, #tpu.memory_space<vmem>>, vector<1x24x24x128xbf16>
    %201 = arith.extf %200 : vector<1x24x24x128xbf16> to vector<1x24x24x128xf32>
    %202 = vector.extract_strided_slice %4 {offsets = [17, 0], sizes = [1, 128], strides = [1, 1]} : vector<49x128xf32> to vector<1x128xf32>
    %203 = vector.shape_cast %202 : vector<1x128xf32> to vector<128xf32>
    %204 = vector.shape_cast %203 : vector<128xf32> to vector<1x1x1x128xf32>
    %205 = vector.broadcast %204 : vector<1x1x1x128xf32> to vector<1x24x24x128xf32>
    %206 = arith.mulf %201, %205 : vector<1x24x24x128xf32>
    %207 = arith.addf %199, %206 : vector<1x24x24x128xf32>
    %c0_110 = arith.constant 0 : index
    %c3_111 = arith.constant 3 : index
    %c0_112 = arith.constant 0 : index
    %c0_113 = arith.constant 0 : index
    %208 = vector.load %arg8[%c0_110, %c3_111, %c0_112, %c0_113] : memref<1x30x24x128xbf16, #tpu.memory_space<vmem>>, vector<1x24x24x128xbf16>
    %209 = arith.extf %208 : vector<1x24x24x128xbf16> to vector<1x24x24x128xf32>
    %210 = vector.extract_strided_slice %4 {offsets = [24, 0], sizes = [1, 128], strides = [1, 1]} : vector<49x128xf32> to vector<1x128xf32>
    %211 = vector.shape_cast %210 : vector<1x128xf32> to vector<128xf32>
    %212 = vector.shape_cast %211 : vector<128xf32> to vector<1x1x1x128xf32>
    %213 = vector.broadcast %212 : vector<1x1x1x128xf32> to vector<1x24x24x128xf32>
    %214 = arith.mulf %209, %213 : vector<1x24x24x128xf32>
    %215 = arith.addf %207, %214 : vector<1x24x24x128xf32>
    %c0_114 = arith.constant 0 : index
    %c4_115 = arith.constant 4 : index
    %c0_116 = arith.constant 0 : index
    %c0_117 = arith.constant 0 : index
    %216 = vector.load %arg8[%c0_114, %c4_115, %c0_116, %c0_117] : memref<1x30x24x128xbf16, #tpu.memory_space<vmem>>, vector<1x24x24x128xbf16>
    %217 = arith.extf %216 : vector<1x24x24x128xbf16> to vector<1x24x24x128xf32>
    %218 = vector.extract_strided_slice %4 {offsets = [31, 0], sizes = [1, 128], strides = [1, 1]} : vector<49x128xf32> to vector<1x128xf32>
    %219 = vector.shape_cast %218 : vector<1x128xf32> to vector<128xf32>
    %220 = vector.shape_cast %219 : vector<128xf32> to vector<1x1x1x128xf32>
    %221 = vector.broadcast %220 : vector<1x1x1x128xf32> to vector<1x24x24x128xf32>
    %222 = arith.mulf %217, %221 : vector<1x24x24x128xf32>
    %223 = arith.addf %215, %222 : vector<1x24x24x128xf32>
    %c0_118 = arith.constant 0 : index
    %c5_119 = arith.constant 5 : index
    %c0_120 = arith.constant 0 : index
    %c0_121 = arith.constant 0 : index
    %224 = vector.load %arg8[%c0_118, %c5_119, %c0_120, %c0_121] : memref<1x30x24x128xbf16, #tpu.memory_space<vmem>>, vector<1x24x24x128xbf16>
    %225 = arith.extf %224 : vector<1x24x24x128xbf16> to vector<1x24x24x128xf32>
    %226 = vector.extract_strided_slice %4 {offsets = [38, 0], sizes = [1, 128], strides = [1, 1]} : vector<49x128xf32> to vector<1x128xf32>
    %227 = vector.shape_cast %226 : vector<1x128xf32> to vector<128xf32>
    %228 = vector.shape_cast %227 : vector<128xf32> to vector<1x1x1x128xf32>
    %229 = vector.broadcast %228 : vector<1x1x1x128xf32> to vector<1x24x24x128xf32>
    %230 = arith.mulf %225, %229 : vector<1x24x24x128xf32>
    %231 = arith.addf %223, %230 : vector<1x24x24x128xf32>
    %c0_122 = arith.constant 0 : index
    %c6_123 = arith.constant 6 : index
    %c0_124 = arith.constant 0 : index
    %c0_125 = arith.constant 0 : index
    %232 = vector.load %arg8[%c0_122, %c6_123, %c0_124, %c0_125] : memref<1x30x24x128xbf16, #tpu.memory_space<vmem>>, vector<1x24x24x128xbf16>
    %233 = arith.extf %232 : vector<1x24x24x128xbf16> to vector<1x24x24x128xf32>
    %234 = vector.extract_strided_slice %4 {offsets = [45, 0], sizes = [1, 128], strides = [1, 1]} : vector<49x128xf32> to vector<1x128xf32>
    %235 = vector.shape_cast %234 : vector<1x128xf32> to vector<128xf32>
    %236 = vector.shape_cast %235 : vector<128xf32> to vector<1x1x1x128xf32>
    %237 = vector.broadcast %236 : vector<1x1x1x128xf32> to vector<1x24x24x128xf32>
    %238 = arith.mulf %233, %237 : vector<1x24x24x128xf32>
    %239 = arith.addf %231, %238 : vector<1x24x24x128xf32>
    %240 = vector.extract_strided_slice %239 {offsets = [0, 0, 3, 0], sizes = [1, 24, 12, 128], strides = [1, 1, 1, 1]} : vector<1x24x24x128xf32> to vector<1x24x12x128xf32>
    %241 = arith.addf %182, %240 : vector<1x24x12x128xf32>
    %cst_126 = arith.constant 0.000000e+00 : f32
    %242 = vector.broadcast %cst_126 : f32 to vector<1x24x24x128xf32>
    %c0_127 = arith.constant 0 : index
    %c0_128 = arith.constant 0 : index
    %c0_129 = arith.constant 0 : index
    %c0_130 = arith.constant 0 : index
    %243 = vector.load %arg8[%c0_127, %c0_128, %c0_129, %c0_130] : memref<1x30x24x128xbf16, #tpu.memory_space<vmem>>, vector<1x24x24x128xbf16>
    %244 = arith.extf %243 : vector<1x24x24x128xbf16> to vector<1x24x24x128xf32>
    %245 = vector.extract_strided_slice %4 {offsets = [4, 0], sizes = [1, 128], strides = [1, 1]} : vector<49x128xf32> to vector<1x128xf32>
    %246 = vector.shape_cast %245 : vector<1x128xf32> to vector<128xf32>
    %247 = vector.shape_cast %246 : vector<128xf32> to vector<1x1x1x128xf32>
    %248 = vector.broadcast %247 : vector<1x1x1x128xf32> to vector<1x24x24x128xf32>
    %249 = arith.mulf %244, %248 : vector<1x24x24x128xf32>
    %250 = arith.addf %242, %249 : vector<1x24x24x128xf32>
    %c0_131 = arith.constant 0 : index
    %c1_132 = arith.constant 1 : index
    %c0_133 = arith.constant 0 : index
    %c0_134 = arith.constant 0 : index
    %251 = vector.load %arg8[%c0_131, %c1_132, %c0_133, %c0_134] : memref<1x30x24x128xbf16, #tpu.memory_space<vmem>>, vector<1x24x24x128xbf16>
    %252 = arith.extf %251 : vector<1x24x24x128xbf16> to vector<1x24x24x128xf32>
    %253 = vector.extract_strided_slice %4 {offsets = [11, 0], sizes = [1, 128], strides = [1, 1]} : vector<49x128xf32> to vector<1x128xf32>
    %254 = vector.shape_cast %253 : vector<1x128xf32> to vector<128xf32>
    %255 = vector.shape_cast %254 : vector<128xf32> to vector<1x1x1x128xf32>
    %256 = vector.broadcast %255 : vector<1x1x1x128xf32> to vector<1x24x24x128xf32>
    %257 = arith.mulf %252, %256 : vector<1x24x24x128xf32>
    %258 = arith.addf %250, %257 : vector<1x24x24x128xf32>
    %c0_135 = arith.constant 0 : index
    %c2_136 = arith.constant 2 : index
    %c0_137 = arith.constant 0 : index
    %c0_138 = arith.constant 0 : index
    %259 = vector.load %arg8[%c0_135, %c2_136, %c0_137, %c0_138] : memref<1x30x24x128xbf16, #tpu.memory_space<vmem>>, vector<1x24x24x128xbf16>
    %260 = arith.extf %259 : vector<1x24x24x128xbf16> to vector<1x24x24x128xf32>
    %261 = vector.extract_strided_slice %4 {offsets = [18, 0], sizes = [1, 128], strides = [1, 1]} : vector<49x128xf32> to vector<1x128xf32>
    %262 = vector.shape_cast %261 : vector<1x128xf32> to vector<128xf32>
    %263 = vector.shape_cast %262 : vector<128xf32> to vector<1x1x1x128xf32>
    %264 = vector.broadcast %263 : vector<1x1x1x128xf32> to vector<1x24x24x128xf32>
    %265 = arith.mulf %260, %264 : vector<1x24x24x128xf32>
    %266 = arith.addf %258, %265 : vector<1x24x24x128xf32>
    %c0_139 = arith.constant 0 : index
    %c3_140 = arith.constant 3 : index
    %c0_141 = arith.constant 0 : index
    %c0_142 = arith.constant 0 : index
    %267 = vector.load %arg8[%c0_139, %c3_140, %c0_141, %c0_142] : memref<1x30x24x128xbf16, #tpu.memory_space<vmem>>, vector<1x24x24x128xbf16>
    %268 = arith.extf %267 : vector<1x24x24x128xbf16> to vector<1x24x24x128xf32>
    %269 = vector.extract_strided_slice %4 {offsets = [25, 0], sizes = [1, 128], strides = [1, 1]} : vector<49x128xf32> to vector<1x128xf32>
    %270 = vector.shape_cast %269 : vector<1x128xf32> to vector<128xf32>
    %271 = vector.shape_cast %270 : vector<128xf32> to vector<1x1x1x128xf32>
    %272 = vector.broadcast %271 : vector<1x1x1x128xf32> to vector<1x24x24x128xf32>
    %273 = arith.mulf %268, %272 : vector<1x24x24x128xf32>
    %274 = arith.addf %266, %273 : vector<1x24x24x128xf32>
    %c0_143 = arith.constant 0 : index
    %c4_144 = arith.constant 4 : index
    %c0_145 = arith.constant 0 : index
    %c0_146 = arith.constant 0 : index
    %275 = vector.load %arg8[%c0_143, %c4_144, %c0_145, %c0_146] : memref<1x30x24x128xbf16, #tpu.memory_space<vmem>>, vector<1x24x24x128xbf16>
    %276 = arith.extf %275 : vector<1x24x24x128xbf16> to vector<1x24x24x128xf32>
    %277 = vector.extract_strided_slice %4 {offsets = [32, 0], sizes = [1, 128], strides = [1, 1]} : vector<49x128xf32> to vector<1x128xf32>
    %278 = vector.shape_cast %277 : vector<1x128xf32> to vector<128xf32>
    %279 = vector.shape_cast %278 : vector<128xf32> to vector<1x1x1x128xf32>
    %280 = vector.broadcast %279 : vector<1x1x1x128xf32> to vector<1x24x24x128xf32>
    %281 = arith.mulf %276, %280 : vector<1x24x24x128xf32>
    %282 = arith.addf %274, %281 : vector<1x24x24x128xf32>
    %c0_147 = arith.constant 0 : index
    %c5_148 = arith.constant 5 : index
    %c0_149 = arith.constant 0 : index
    %c0_150 = arith.constant 0 : index
    %283 = vector.load %arg8[%c0_147, %c5_148, %c0_149, %c0_150] : memref<1x30x24x128xbf16, #tpu.memory_space<vmem>>, vector<1x24x24x128xbf16>
    %284 = arith.extf %283 : vector<1x24x24x128xbf16> to vector<1x24x24x128xf32>
    %285 = vector.extract_strided_slice %4 {offsets = [39, 0], sizes = [1, 128], strides = [1, 1]} : vector<49x128xf32> to vector<1x128xf32>
    %286 = vector.shape_cast %285 : vector<1x128xf32> to vector<128xf32>
    %287 = vector.shape_cast %286 : vector<128xf32> to vector<1x1x1x128xf32>
    %288 = vector.broadcast %287 : vector<1x1x1x128xf32> to vector<1x24x24x128xf32>
    %289 = arith.mulf %284, %288 : vector<1x24x24x128xf32>
    %290 = arith.addf %282, %289 : vector<1x24x24x128xf32>
    %c0_151 = arith.constant 0 : index
    %c6_152 = arith.constant 6 : index
    %c0_153 = arith.constant 0 : index
    %c0_154 = arith.constant 0 : index
    %291 = vector.load %arg8[%c0_151, %c6_152, %c0_153, %c0_154] : memref<1x30x24x128xbf16, #tpu.memory_space<vmem>>, vector<1x24x24x128xbf16>
    %292 = arith.extf %291 : vector<1x24x24x128xbf16> to vector<1x24x24x128xf32>
    %293 = vector.extract_strided_slice %4 {offsets = [46, 0], sizes = [1, 128], strides = [1, 1]} : vector<49x128xf32> to vector<1x128xf32>
    %294 = vector.shape_cast %293 : vector<1x128xf32> to vector<128xf32>
    %295 = vector.shape_cast %294 : vector<128xf32> to vector<1x1x1x128xf32>
    %296 = vector.broadcast %295 : vector<1x1x1x128xf32> to vector<1x24x24x128xf32>
    %297 = arith.mulf %292, %296 : vector<1x24x24x128xf32>
    %298 = arith.addf %290, %297 : vector<1x24x24x128xf32>
    %299 = vector.extract_strided_slice %298 {offsets = [0, 0, 4, 0], sizes = [1, 24, 12, 128], strides = [1, 1, 1, 1]} : vector<1x24x24x128xf32> to vector<1x24x12x128xf32>
    %300 = arith.addf %241, %299 : vector<1x24x12x128xf32>
    %cst_155 = arith.constant 0.000000e+00 : f32
    %301 = vector.broadcast %cst_155 : f32 to vector<1x24x24x128xf32>
    %c0_156 = arith.constant 0 : index
    %c0_157 = arith.constant 0 : index
    %c0_158 = arith.constant 0 : index
    %c0_159 = arith.constant 0 : index
    %302 = vector.load %arg8[%c0_156, %c0_157, %c0_158, %c0_159] : memref<1x30x24x128xbf16, #tpu.memory_space<vmem>>, vector<1x24x24x128xbf16>
    %303 = arith.extf %302 : vector<1x24x24x128xbf16> to vector<1x24x24x128xf32>
    %304 = vector.extract_strided_slice %4 {offsets = [5, 0], sizes = [1, 128], strides = [1, 1]} : vector<49x128xf32> to vector<1x128xf32>
    %305 = vector.shape_cast %304 : vector<1x128xf32> to vector<128xf32>
    %306 = vector.shape_cast %305 : vector<128xf32> to vector<1x1x1x128xf32>
    %307 = vector.broadcast %306 : vector<1x1x1x128xf32> to vector<1x24x24x128xf32>
    %308 = arith.mulf %303, %307 : vector<1x24x24x128xf32>
    %309 = arith.addf %301, %308 : vector<1x24x24x128xf32>
    %c0_160 = arith.constant 0 : index
    %c1_161 = arith.constant 1 : index
    %c0_162 = arith.constant 0 : index
    %c0_163 = arith.constant 0 : index
    %310 = vector.load %arg8[%c0_160, %c1_161, %c0_162, %c0_163] : memref<1x30x24x128xbf16, #tpu.memory_space<vmem>>, vector<1x24x24x128xbf16>
    %311 = arith.extf %310 : vector<1x24x24x128xbf16> to vector<1x24x24x128xf32>
    %312 = vector.extract_strided_slice %4 {offsets = [12, 0], sizes = [1, 128], strides = [1, 1]} : vector<49x128xf32> to vector<1x128xf32>
    %313 = vector.shape_cast %312 : vector<1x128xf32> to vector<128xf32>
    %314 = vector.shape_cast %313 : vector<128xf32> to vector<1x1x1x128xf32>
    %315 = vector.broadcast %314 : vector<1x1x1x128xf32> to vector<1x24x24x128xf32>
    %316 = arith.mulf %311, %315 : vector<1x24x24x128xf32>
    %317 = arith.addf %309, %316 : vector<1x24x24x128xf32>
    %c0_164 = arith.constant 0 : index
    %c2_165 = arith.constant 2 : index
    %c0_166 = arith.constant 0 : index
    %c0_167 = arith.constant 0 : index
    %318 = vector.load %arg8[%c0_164, %c2_165, %c0_166, %c0_167] : memref<1x30x24x128xbf16, #tpu.memory_space<vmem>>, vector<1x24x24x128xbf16>
    %319 = arith.extf %318 : vector<1x24x24x128xbf16> to vector<1x24x24x128xf32>
    %320 = vector.extract_strided_slice %4 {offsets = [19, 0], sizes = [1, 128], strides = [1, 1]} : vector<49x128xf32> to vector<1x128xf32>
    %321 = vector.shape_cast %320 : vector<1x128xf32> to vector<128xf32>
    %322 = vector.shape_cast %321 : vector<128xf32> to vector<1x1x1x128xf32>
    %323 = vector.broadcast %322 : vector<1x1x1x128xf32> to vector<1x24x24x128xf32>
    %324 = arith.mulf %319, %323 : vector<1x24x24x128xf32>
    %325 = arith.addf %317, %324 : vector<1x24x24x128xf32>
    %c0_168 = arith.constant 0 : index
    %c3_169 = arith.constant 3 : index
    %c0_170 = arith.constant 0 : index
    %c0_171 = arith.constant 0 : index
    %326 = vector.load %arg8[%c0_168, %c3_169, %c0_170, %c0_171] : memref<1x30x24x128xbf16, #tpu.memory_space<vmem>>, vector<1x24x24x128xbf16>
    %327 = arith.extf %326 : vector<1x24x24x128xbf16> to vector<1x24x24x128xf32>
    %328 = vector.extract_strided_slice %4 {offsets = [26, 0], sizes = [1, 128], strides = [1, 1]} : vector<49x128xf32> to vector<1x128xf32>
    %329 = vector.shape_cast %328 : vector<1x128xf32> to vector<128xf32>
    %330 = vector.shape_cast %329 : vector<128xf32> to vector<1x1x1x128xf32>
    %331 = vector.broadcast %330 : vector<1x1x1x128xf32> to vector<1x24x24x128xf32>
    %332 = arith.mulf %327, %331 : vector<1x24x24x128xf32>
    %333 = arith.addf %325, %332 : vector<1x24x24x128xf32>
    %c0_172 = arith.constant 0 : index
    %c4_173 = arith.constant 4 : index
    %c0_174 = arith.constant 0 : index
    %c0_175 = arith.constant 0 : index
    %334 = vector.load %arg8[%c0_172, %c4_173, %c0_174, %c0_175] : memref<1x30x24x128xbf16, #tpu.memory_space<vmem>>, vector<1x24x24x128xbf16>
    %335 = arith.extf %334 : vector<1x24x24x128xbf16> to vector<1x24x24x128xf32>
    %336 = vector.extract_strided_slice %4 {offsets = [33, 0], sizes = [1, 128], strides = [1, 1]} : vector<49x128xf32> to vector<1x128xf32>
    %337 = vector.shape_cast %336 : vector<1x128xf32> to vector<128xf32>
    %338 = vector.shape_cast %337 : vector<128xf32> to vector<1x1x1x128xf32>
    %339 = vector.broadcast %338 : vector<1x1x1x128xf32> to vector<1x24x24x128xf32>
    %340 = arith.mulf %335, %339 : vector<1x24x24x128xf32>
    %341 = arith.addf %333, %340 : vector<1x24x24x128xf32>
    %c0_176 = arith.constant 0 : index
    %c5_177 = arith.constant 5 : index
    %c0_178 = arith.constant 0 : index
    %c0_179 = arith.constant 0 : index
    %342 = vector.load %arg8[%c0_176, %c5_177, %c0_178, %c0_179] : memref<1x30x24x128xbf16, #tpu.memory_space<vmem>>, vector<1x24x24x128xbf16>
    %343 = arith.extf %342 : vector<1x24x24x128xbf16> to vector<1x24x24x128xf32>
    %344 = vector.extract_strided_slice %4 {offsets = [40, 0], sizes = [1, 128], strides = [1, 1]} : vector<49x128xf32> to vector<1x128xf32>
    %345 = vector.shape_cast %344 : vector<1x128xf32> to vector<128xf32>
    %346 = vector.shape_cast %345 : vector<128xf32> to vector<1x1x1x128xf32>
    %347 = vector.broadcast %346 : vector<1x1x1x128xf32> to vector<1x24x24x128xf32>
    %348 = arith.mulf %343, %347 : vector<1x24x24x128xf32>
    %349 = arith.addf %341, %348 : vector<1x24x24x128xf32>
    %c0_180 = arith.constant 0 : index
    %c6_181 = arith.constant 6 : index
    %c0_182 = arith.constant 0 : index
    %c0_183 = arith.constant 0 : index
    %350 = vector.load %arg8[%c0_180, %c6_181, %c0_182, %c0_183] : memref<1x30x24x128xbf16, #tpu.memory_space<vmem>>, vector<1x24x24x128xbf16>
    %351 = arith.extf %350 : vector<1x24x24x128xbf16> to vector<1x24x24x128xf32>
    %352 = vector.extract_strided_slice %4 {offsets = [47, 0], sizes = [1, 128], strides = [1, 1]} : vector<49x128xf32> to vector<1x128xf32>
    %353 = vector.shape_cast %352 : vector<1x128xf32> to vector<128xf32>
    %354 = vector.shape_cast %353 : vector<128xf32> to vector<1x1x1x128xf32>
    %355 = vector.broadcast %354 : vector<1x1x1x128xf32> to vector<1x24x24x128xf32>
    %356 = arith.mulf %351, %355 : vector<1x24x24x128xf32>
    %357 = arith.addf %349, %356 : vector<1x24x24x128xf32>
    %358 = vector.extract_strided_slice %357 {offsets = [0, 0, 5, 0], sizes = [1, 24, 12, 128], strides = [1, 1, 1, 1]} : vector<1x24x24x128xf32> to vector<1x24x12x128xf32>
    %359 = arith.addf %300, %358 : vector<1x24x12x128xf32>
    %cst_184 = arith.constant 0.000000e+00 : f32
    %360 = vector.broadcast %cst_184 : f32 to vector<1x24x24x128xf32>
    %c0_185 = arith.constant 0 : index
    %c0_186 = arith.constant 0 : index
    %c0_187 = arith.constant 0 : index
    %c0_188 = arith.constant 0 : index
    %361 = vector.load %arg8[%c0_185, %c0_186, %c0_187, %c0_188] : memref<1x30x24x128xbf16, #tpu.memory_space<vmem>>, vector<1x24x24x128xbf16>
    %362 = arith.extf %361 : vector<1x24x24x128xbf16> to vector<1x24x24x128xf32>
    %363 = vector.extract_strided_slice %4 {offsets = [6, 0], sizes = [1, 128], strides = [1, 1]} : vector<49x128xf32> to vector<1x128xf32>
    %364 = vector.shape_cast %363 : vector<1x128xf32> to vector<128xf32>
    %365 = vector.shape_cast %364 : vector<128xf32> to vector<1x1x1x128xf32>
    %366 = vector.broadcast %365 : vector<1x1x1x128xf32> to vector<1x24x24x128xf32>
    %367 = arith.mulf %362, %366 : vector<1x24x24x128xf32>
    %368 = arith.addf %360, %367 : vector<1x24x24x128xf32>
    %c0_189 = arith.constant 0 : index
    %c1_190 = arith.constant 1 : index
    %c0_191 = arith.constant 0 : index
    %c0_192 = arith.constant 0 : index
    %369 = vector.load %arg8[%c0_189, %c1_190, %c0_191, %c0_192] : memref<1x30x24x128xbf16, #tpu.memory_space<vmem>>, vector<1x24x24x128xbf16>
    %370 = arith.extf %369 : vector<1x24x24x128xbf16> to vector<1x24x24x128xf32>
    %371 = vector.extract_strided_slice %4 {offsets = [13, 0], sizes = [1, 128], strides = [1, 1]} : vector<49x128xf32> to vector<1x128xf32>
    %372 = vector.shape_cast %371 : vector<1x128xf32> to vector<128xf32>
    %373 = vector.shape_cast %372 : vector<128xf32> to vector<1x1x1x128xf32>
    %374 = vector.broadcast %373 : vector<1x1x1x128xf32> to vector<1x24x24x128xf32>
    %375 = arith.mulf %370, %374 : vector<1x24x24x128xf32>
    %376 = arith.addf %368, %375 : vector<1x24x24x128xf32>
    %c0_193 = arith.constant 0 : index
    %c2_194 = arith.constant 2 : index
    %c0_195 = arith.constant 0 : index
    %c0_196 = arith.constant 0 : index
    %377 = vector.load %arg8[%c0_193, %c2_194, %c0_195, %c0_196] : memref<1x30x24x128xbf16, #tpu.memory_space<vmem>>, vector<1x24x24x128xbf16>
    %378 = arith.extf %377 : vector<1x24x24x128xbf16> to vector<1x24x24x128xf32>
    %379 = vector.extract_strided_slice %4 {offsets = [20, 0], sizes = [1, 128], strides = [1, 1]} : vector<49x128xf32> to vector<1x128xf32>
    %380 = vector.shape_cast %379 : vector<1x128xf32> to vector<128xf32>
    %381 = vector.shape_cast %380 : vector<128xf32> to vector<1x1x1x128xf32>
    %382 = vector.broadcast %381 : vector<1x1x1x128xf32> to vector<1x24x24x128xf32>
    %383 = arith.mulf %378, %382 : vector<1x24x24x128xf32>
    %384 = arith.addf %376, %383 : vector<1x24x24x128xf32>
    %c0_197 = arith.constant 0 : index
    %c3_198 = arith.constant 3 : index
    %c0_199 = arith.constant 0 : index
    %c0_200 = arith.constant 0 : index
    %385 = vector.load %arg8[%c0_197, %c3_198, %c0_199, %c0_200] : memref<1x30x24x128xbf16, #tpu.memory_space<vmem>>, vector<1x24x24x128xbf16>
    %386 = arith.extf %385 : vector<1x24x24x128xbf16> to vector<1x24x24x128xf32>
    %387 = vector.extract_strided_slice %4 {offsets = [27, 0], sizes = [1, 128], strides = [1, 1]} : vector<49x128xf32> to vector<1x128xf32>
    %388 = vector.shape_cast %387 : vector<1x128xf32> to vector<128xf32>
    %389 = vector.shape_cast %388 : vector<128xf32> to vector<1x1x1x128xf32>
    %390 = vector.broadcast %389 : vector<1x1x1x128xf32> to vector<1x24x24x128xf32>
    %391 = arith.mulf %386, %390 : vector<1x24x24x128xf32>
    %392 = arith.addf %384, %391 : vector<1x24x24x128xf32>
    %c0_201 = arith.constant 0 : index
    %c4_202 = arith.constant 4 : index
    %c0_203 = arith.constant 0 : index
    %c0_204 = arith.constant 0 : index
    %393 = vector.load %arg8[%c0_201, %c4_202, %c0_203, %c0_204] : memref<1x30x24x128xbf16, #tpu.memory_space<vmem>>, vector<1x24x24x128xbf16>
    %394 = arith.extf %393 : vector<1x24x24x128xbf16> to vector<1x24x24x128xf32>
    %395 = vector.extract_strided_slice %4 {offsets = [34, 0], sizes = [1, 128], strides = [1, 1]} : vector<49x128xf32> to vector<1x128xf32>
    %396 = vector.shape_cast %395 : vector<1x128xf32> to vector<128xf32>
    %397 = vector.shape_cast %396 : vector<128xf32> to vector<1x1x1x128xf32>
    %398 = vector.broadcast %397 : vector<1x1x1x128xf32> to vector<1x24x24x128xf32>
    %399 = arith.mulf %394, %398 : vector<1x24x24x128xf32>
    %400 = arith.addf %392, %399 : vector<1x24x24x128xf32>
    %c0_205 = arith.constant 0 : index
    %c5_206 = arith.constant 5 : index
    %c0_207 = arith.constant 0 : index
    %c0_208 = arith.constant 0 : index
    %401 = vector.load %arg8[%c0_205, %c5_206, %c0_207, %c0_208] : memref<1x30x24x128xbf16, #tpu.memory_space<vmem>>, vector<1x24x24x128xbf16>
    %402 = arith.extf %401 : vector<1x24x24x128xbf16> to vector<1x24x24x128xf32>
    %403 = vector.extract_strided_slice %4 {offsets = [41, 0], sizes = [1, 128], strides = [1, 1]} : vector<49x128xf32> to vector<1x128xf32>
    %404 = vector.shape_cast %403 : vector<1x128xf32> to vector<128xf32>
    %405 = vector.shape_cast %404 : vector<128xf32> to vector<1x1x1x128xf32>
    %406 = vector.broadcast %405 : vector<1x1x1x128xf32> to vector<1x24x24x128xf32>
    %407 = arith.mulf %402, %406 : vector<1x24x24x128xf32>
    %408 = arith.addf %400, %407 : vector<1x24x24x128xf32>
    %c0_209 = arith.constant 0 : index
    %c6_210 = arith.constant 6 : index
    %c0_211 = arith.constant 0 : index
    %c0_212 = arith.constant 0 : index
    %409 = vector.load %arg8[%c0_209, %c6_210, %c0_211, %c0_212] : memref<1x30x24x128xbf16, #tpu.memory_space<vmem>>, vector<1x24x24x128xbf16>
    %410 = arith.extf %409 : vector<1x24x24x128xbf16> to vector<1x24x24x128xf32>
    %411 = vector.extract_strided_slice %4 {offsets = [48, 0], sizes = [1, 128], strides = [1, 1]} : vector<49x128xf32> to vector<1x128xf32>
    %412 = vector.shape_cast %411 : vector<1x128xf32> to vector<128xf32>
    %413 = vector.shape_cast %412 : vector<128xf32> to vector<1x1x1x128xf32>
    %414 = vector.broadcast %413 : vector<1x1x1x128xf32> to vector<1x24x24x128xf32>
    %415 = arith.mulf %410, %414 : vector<1x24x24x128xf32>
    %416 = arith.addf %408, %415 : vector<1x24x24x128xf32>
    %417 = vector.extract_strided_slice %416 {offsets = [0, 0, 6, 0], sizes = [1, 24, 12, 128], strides = [1, 1, 1, 1]} : vector<1x24x24x128xf32> to vector<1x24x12x128xf32>
    %418 = arith.addf %359, %417 : vector<1x24x12x128xf32>
    %c0_213 = arith.constant 0 : index
    %c0_214 = arith.constant 0 : index
    %419 = vector.load %arg6[%c0_213, %c0_214] : memref<1x128xf32, #tpu.memory_space<vmem>>, vector<1x128xf32>
    %420 = vector.shape_cast %419 : vector<1x128xf32> to vector<1x1x1x128xf32>
    %421 = vector.broadcast %420 : vector<1x1x1x128xf32> to vector<1x24x12x128xf32>
    %422 = arith.addf %418, %421 : vector<1x24x12x128xf32>
    %423 = arith.truncf %422 : vector<1x24x12x128xf32> to vector<1x24x12x128xbf16>
    %c0_215 = arith.constant 0 : index
    %c0_216 = arith.constant 0 : index
    %c0_217 = arith.constant 0 : index
    %c0_218 = arith.constant 0 : index
    %424 = vector.load %arg7[%c0_215, %c0_216, %c0_217, %c0_218] : memref<1x24x12x128xbf16, #tpu.memory_space<vmem>>, vector<1x24x12x128xbf16>
    tpu.vector_store %arg7[%c0_215, %c0_216, %c0_217, %c0_218], %423 {strides = array<i32>} : memref<1x24x12x128xbf16, #tpu.memory_space<vmem>>, vector<1x24x12x128xbf16>,
    return
  }
  func.func @transform_0(%arg0: i32, %arg1: i32, %arg2: i32) -> (i32, i32, i32, i32) {
    %c0_i32 = arith.constant 0 : i32
    %c0_i32_0 = arith.constant 0 : i32
    return %arg0, %arg1, %c0_i32, %arg2 : i32, i32, i32, i32
  }
  func.func @transform_1(%arg0: i32, %arg1: i32, %arg2: i32) -> (i32, i32, i32, i32) {
    %c1_i32 = arith.constant 1 : i32
    %0 = arith.addi %arg1, %c1_i32 : i32
    %c3_i32 = arith.constant 3 : i32
    %1 = arith.muli %0, %c3_i32 : i32
    %c0_i32 = arith.constant 0 : i32
    %c0_i32_0 = arith.constant 0 : i32
    return %arg0, %1, %c0_i32, %arg2 : i32, i32, i32, i32
  }
  func.func @transform_2(%arg0: i32, %arg1: i32, %arg2: i32) -> (i32, i32) {
    %c0_i32 = arith.constant 0 : i32
    %c0_i32_0 = arith.constant 0 : i32
    return %c0_i32, %arg2 : i32, i32
  }
  func.func @transform_3(%arg0: i32, %arg1: i32, %arg2: i32) -> (i32, i32) {
    %c0_i32 = arith.constant 0 : i32
    %c0_i32_0 = arith.constant 0 : i32
    return %c0_i32, %arg2 : i32, i32
  }
  func.func @transform_4(%arg0: i32, %arg1: i32, %arg2: i32) -> (i32, i32, i32, i32) {
    %c0_i32 = arith.constant 0 : i32
    %c0_i32_0 = arith.constant 0 : i32
    return %arg0, %arg1, %c0_i32, %arg2 : i32, i32, i32, i32
  }
}

</mosaic_0001>

<llo_original>
// kernel: tpu_custom_call.1
$region0: #{tpu_custom_call.1}
  #allocation0 [shape = 'u32[]', space=smem, size = 0x4, offset = 0x4, fixed_abs, tag = 'smem constant byte address 0x4 - core index']
  #allocation1 [shape = 'u32[144,128]{1,0:T(1,128)}', space=vmem, size = 0x12000, scoped, tag = 'internal scratch']
  #allocation2 [shape = 'bf16[1,30,24,128]{3,2,1,0:T(8,128)(2,1)}', space=vmem, size = 0x2d000, scoped, tag = 'scratch operand']
  %s0 = inlined_call_operand.hbm [shape: bf16[1,80,24,128], index: 0, kind: input, shape index: {}]
  %s1 = inlined_call_operand.hbm [shape: bf16[1,80,24,128], index: 1, kind: input, shape index: {}]
  %s2 = inlined_call_operand.hbm [shape: f32[49,128], index: 2, kind: input, shape index: {}]
  %s3 = inlined_call_operand.vmem [shape: f32[1,128], index: 3, kind: input, shape index: {}]
  %s4 = inlined_call_operand.vmem [shape: bf16[1,72,12,128], index: 4, kind: output, shape index: {}]
  %s5 = sld [smem:[#allocation0]]
  $region61: #{tpu_custom_call.1} parent=0
    _
  %s7 = ssub.s32 1, %s5
  %s8 = scalar_select 0, %s7, %s5
  $region1: #{tpu_custom_call.1} parent=0
    #allocation3 [shape = 'u8[294912]{0}', space=vmem, size = 0x48000, scoped, tag = 'input window, operand 0']
    #allocation4 [shape = 's32[2]{0}', space=sflag, size = 0x8, scoped, tag = 'scoped memory for tpu_custom_call.1']
    #allocation5 [shape = 'u8[98304]{0}', space=vmem, size = 0x18000, scoped, tag = 'input window, operand 1']
    #allocation6 [shape = 's32[2]{0}', space=sflag, size = 0x8, scoped, tag = 'scoped memory for tpu_custom_call.1']
    #allocation7 [shape = 'u8[28672]{0}', space=vmem, size = 0x7000, scoped, tag = 'input window, operand 2, single buffered']
    %9 = vsyncpa [#allocation4], 0
    %s10 = scalar_lea.sflag [#allocation4], 1
    %11 = vsyncpa %s10, 0
    %12 = vsyncpa [#allocation6], 0
    %s13 = scalar_lea.sflag [#allocation6], 1
    %14 = vsyncpa %s13, 0
    loop: start=0, step=1, limit=5
    $region2: #{tpu_custom_call.1} parent=1 // loop_pre_header
      _
    $region3: #{tpu_custom_call.1} parent=1 // loop_header
      %s16 = sphi 0, %s20
      %p17 = scmp.ge.s32.totalorder %s16, 5
      %s23 = sphi 0, %s42
      %s24 = sphi 0, %s38
      %s25 = sphi 0, %s34
      %s26 = sphi 0, %s23
      %s27 = sphi 0, %s24
      %s28 = sphi 0, %s25
      %s29 = sphi 0, %s26
      %s30 = sphi 0, %s27
      %s31 = sphi 0, %s28
      %s49 = sphi 0, %s51
      %s52 = sphi 0, %s49
      %s53 = sphi 0, %s52
      %s69 = sphi 0, %s53
      %s83 = sphi 0, %s85
      %s86 = sphi 0, %s83
      %s87 = sphi 0, %s86
      %s103 = sphi 0, %s87
      %s109 = sphi 0, %s111
      %s112 = sphi 0, %s109
      %s113 = sphi 0, %s112
      %s129 = sphi 0, %s113
      %s135 = sphi 0, %s137
      %s138 = sphi 0, %s135
      %s139 = sphi 0, %s138
      %s155 = sphi 0, %s139
      %s165 = sphi 0, %s167
      %s168 = sphi 0, %s165
      %s169 = sphi 0, %s168
      %s185 = sphi 0, %s169
    $region4: #{tpu_custom_call.1} parent=1 // loop_header_branch
      %19 = sbr.rel (%p17) target = $region8
    $region5: #{tpu_custom_call.1} parent=1 // loop_body
      %s21 = ssub.s32 %s16, 1
      %s22 = ssub.s32 %s16, 2
      %s32 = sadd.s32 1, %s25
      %p33 = scmp.ge.s32.totalorder %s32, 1
      %s34 = scalar_select %p33, 0, %s32
      %s35 = sadd.s32 1, %s24
      %s36 = scalar_select %p33, %s35, %s24
      %p37 = scmp.ge.s32.totalorder %s36, 3
      %s38 = scalar_select %p37, 0, %s36
      %s39 = sadd.s32 1, %s23
      %s40 = scalar_select %p37, %s39, %s23
      %p41 = scmp.ge.s32.totalorder %s40, 1
      %s42 = scalar_select %p41, 0, %s40
      %s43 = ssub.s32 %s23, %s42
      %s44 = ssub.s32 %s24, %s38
      %s45 = sor.u32 %s43, %s44
      %s46 = ssub.s32 %s25, %s34
      %s47 = sor.u32 %s45, %s46
      %p48 = scmp.eq.s32.totalorder %s47, 0
      %s50 = sadd.s32 %s49, 1
      %s51 = scalar_select %p48, %s49, %s50
      %p54 = pneg %p48
      %p55 = scmp.eq.s32.totalorder %s16, 2
      %p56 = por %p54, %p55
      %p57 = scmp.ne.s32.totalorder %s49, %s52
      %p58 = scmp.eq.s32.totalorder %s16, 0
      %p59 = por %p57, %p58
      %p60 = scmp.ne.s32.totalorder %s49, %s52
      %p61 = scmp.eq.s32.totalorder %s21, 2
      %p62 = por %p60, %p61
      %p63 = scmp.ne.s32.totalorder %s52, %s53
      %p64 = scmp.eq.s32.totalorder %s21, 0
      %p65 = por %p63, %p64
      %p66 = scmp.ne.s32.totalorder %s52, %s53
      %p67 = scmp.eq.s32.totalorder %s22, 2
      %p68 = por %p66, %p67
      %p70 = scmp.ne.s32.totalorder %s53, %s69
      %p71 = scmp.eq.s32.totalorder %s22, 0
      %p72 = por %p70, %p71
      %s73 = sadd.s32 %s24, 1
      %s74 = smul.u32 %s73, 3
      %s75 = sadd.s32 %s38, 1
      %s76 = smul.u32 %s75, 3
      %s77 = ssub.s32 %s23, %s42
      %s78 = ssub.s32 %s74, %s76
      %s79 = sor.u32 %s77, %s78
      %s80 = ssub.s32 %s25, %s34
      %s81 = sor.u32 %s79, %s80
      %p82 = scmp.eq.s32.totalorder %s81, 0
      %s84 = sadd.s32 %s83, 1
      %s85 = scalar_select %p82, %s83, %s84
      %p88 = pneg %p82
      %p89 = scmp.eq.s32.totalorder %s16, 2
      %p90 = por %p88, %p89
      %p91 = scmp.ne.s32.totalorder %s83, %s86
      %p92 = scmp.eq.s32.totalorder %s16, 0
      %p93 = por %p91, %p92
      %p94 = scmp.ne.s32.totalorder %s83, %s86
      %p95 = scmp.eq.s32.totalorder %s21, 2
      %p96 = por %p94, %p95
      %p97 = scmp.ne.s32.totalorder %s86, %s87
      %p98 = scmp.eq.s32.totalorder %s21, 0
      %p99 = por %p97, %p98
      %p100 = scmp.ne.s32.totalorder %s86, %s87
      %p101 = scmp.eq.s32.totalorder %s22, 2
      %p102 = por %p100, %p101
      %p104 = scmp.ne.s32.totalorder %s87, %s103
      %p105 = scmp.eq.s32.totalorder %s22, 0
      %p106 = por %p104, %p105
      %s107 = ssub.s32 %s25, %s34
      %p108 = scmp.eq.s32.totalorder %s107, 0
      %s110 = sadd.s32 %s109, 1
      %s111 = scalar_select %p108, %s109, %s110
      %p114 = pneg %p108
      %p115 = scmp.eq.s32.totalorder %s16, 2
      %p116 = por %p114, %p115
      %p117 = scmp.ne.s32.totalorder %s109, %s112
      %p118 = scmp.eq.s32.totalorder %s16, 0
      %p119 = por %p117, %p118
      %p120 = scmp.ne.s32.totalorder %s109, %s112
      %p121 = scmp.eq.s32.totalorder %s21, 2
      %p122 = por %p120, %p121
      %p123 = scmp.ne.s32.totalorder %s112, %s113
      %p124 = scmp.eq.s32.totalorder %s21, 0
      %p125 = por %p123, %p124
      %p126 = scmp.ne.s32.totalorder %s112, %s113
      %p127 = scmp.eq.s32.totalorder %s22, 2
      %p128 = por %p126, %p127
      %p130 = scmp.ne.s32.totalorder %s113, %s129
      %p131 = scmp.eq.s32.totalorder %s22, 0
      %p132 = por %p130, %p131
      %s133 = ssub.s32 %s25, %s34
      %p134 = scmp.eq.s32.totalorder %s133, 0
      %s136 = sadd.s32 %s135, 1
      %s137 = scalar_select %p134, %s135, %s136
      %p140 = pneg %p134
      %p141 = scmp.eq.s32.totalorder %s16, 2
      %p142 = por %p140, %p141
      %p143 = scmp.ne.s32.totalorder %s135, %s138
      %p144 = scmp.eq.s32.totalorder %s16, 0
      %p145 = por %p143, %p144
      %p146 = scmp.ne.s32.totalorder %s135, %s138
      %p147 = scmp.eq.s32.totalorder %s21, 2
      %p148 = por %p146, %p147
      %p149 = scmp.ne.s32.totalorder %s138, %s139
      %p150 = scmp.eq.s32.totalorder %s21, 0
      %p151 = por %p149, %p150
      %p152 = scmp.ne.s32.totalorder %s138, %s139
      %p153 = scmp.eq.s32.totalorder %s22, 2
      %p154 = por %p152, %p153
      %p156 = scmp.ne.s32.totalorder %s139, %s155
      %p157 = scmp.eq.s32.totalorder %s22, 0
      %p158 = por %p156, %p157
      %s159 = ssub.s32 %s23, %s42
      %s160 = ssub.s32 %s24, %s38
      %s161 = sor.u32 %s159, %s160
      %s162 = ssub.s32 %s25, %s34
      %s163 = sor.u32 %s161, %s162
      %p164 = scmp.eq.s32.totalorder %s163, 0
      %s166 = sadd.s32 %s165, 1
      %s167 = scalar_select %p164, %s165, %s166
      %p170 = pneg %p164
      %p171 = scmp.eq.s32.totalorder %s16, 2
      %p172 = por %p170, %p171
      %p173 = scmp.ne.s32.totalorder %s165, %s168
      %p174 = scmp.eq.s32.totalorder %s16, 0
      %p175 = por %p173, %p174
      %p176 = scmp.ne.s32.totalorder %s165, %s168
      %p177 = scmp.eq.s32.totalorder %s21, 2
      %p178 = por %p176, %p177
      %p179 = scmp.ne.s32.totalorder %s168, %s169
      %p180 = scmp.eq.s32.totalorder %s21, 0
      %p181 = por %p179, %p180
      %p182 = scmp.ne.s32.totalorder %s168, %s169
      %p183 = scmp.eq.s32.totalorder %s22, 2
      %p184 = por %p182, %p183
      %p186 = scmp.ne.s32.totalorder %s169, %s185
      %p187 = scmp.eq.s32.totalorder %s22, 0
      %p188 = por %p186, %p187
      %p189 = scmp.le.s32.totalorder 1, %s16
      %p190 = scmp.lt.s32.totalorder %s16, 4
      %p191 = pnand %p189, %p190
      %p192 = pneg %p191
      // Predicated region
      $region9: #{tpu_custom_call.1} parent=5 // pred_check
        _
      $region10: #{tpu_custom_call.1} parent=5 // pred_check_branch
        %194 = sbr.rel (%p191) target = $region12
      $region11: #{tpu_custom_call.1} parent=5 // pred_region
        %s195 = ssub.s32 %s16, 1
        // Predicated region
        $region13: #{tpu_custom_call.1} parent=11 // pred_check
          %p196 = pneg %p125
        $region14: #{tpu_custom_call.1} parent=11 // pred_check_branch
          %198 = sbr.rel (%p196) target = $region16
        $region15: #{tpu_custom_call.1} parent=11 // pred_region
          %s200 = ssub.s32 896, 896
          %201 = vsyncadd [#allocation6], %s200
          %s202 = smul.addr %s28, 128
          %s203 = scalar_lea.hbm %s2, %s202
          %s204 = sshll.u32 [#allocation7], 4
          %s205 = int_to_ptr.vmem [resolvable:$true] %s204
          %210 = dma.hbm_to_vmem [thread:$0]  %s203, 896, %s205, [#allocation6], 128, 128, 8
        $region16: #{tpu_custom_call.1} parent=11 // pred_fallthru
          _
        // Predicated region
        $region17: #{tpu_custom_call.1} parent=11 // pred_check
          %p211 = pneg %p151
        $region18: #{tpu_custom_call.1} parent=11 // pred_check_branch
          %213 = sbr.rel (%p211) target = $region20
        $region19: #{tpu_custom_call.1} parent=11 // pred_region
          %p214 = scmp.lt.s32.totalorder %s28, 0
          %s215 = scalar_select %p214, %s28, 0
          %s216 = scalar_lea.vmem %s3, %s215
        $region20: #{tpu_custom_call.1} parent=11 // pred_fallthru
          _
      $region12: #{tpu_custom_call.1} parent=5 // pred_fallthru
        _
      %p217 = scmp.lt.s32.totalorder %s16, 3
      // Predicated region
      $region21: #{tpu_custom_call.1} parent=5 // pred_check
        %p218 = pneg %p217
      $region22: #{tpu_custom_call.1} parent=5 // pred_check_branch
        %220 = sbr.rel (%p218) target = $region24
      $region23: #{tpu_custom_call.1} parent=5 // pred_region
        // Predicated region
        $region25: #{tpu_custom_call.1} parent=23 // pred_check
          %p221 = pneg %p59
        $region26: #{tpu_custom_call.1} parent=23 // pred_check_branch
          %223 = sbr.rel (%p221) target = $region28
        $region27: #{tpu_custom_call.1} parent=23 // pred_region
          %s224 = sand.u32 %s49, 1
          %s225 = scalar_lea.sflag [#allocation4], %s224
          %s226 = sand.u32 %s49, 1
          %s227 = smul.addr %s226, 288
          %s228 = scalar_lea.vmem [#allocation3], %s227
          %s229 = smul.u32 24, %s24
          %s230 = ssub.s32 80, %s229
          %p231 = scmp.lt.s32.totalorder %s230, 24
          %s232 = scalar_select %p231, %s230, 24
          %s233 = smul.u32 64, %s232
          %s234 = smul.u32 %s233, 3
          %s236 = ssub.s32 4608, %s234
          %237 = vsyncadd %s225, %s236
          %p238 = scmp.ne.s32.totalorder 0, %s234
          %s239 = smul.addr %s229, 3
          %s240 = sadd.s32 %s25, %s239
          %s241 = smul.addr %s23, 240
          %s242 = sadd.s32 %s240, %s241
          %s243 = smul.addr %s242, 64
          %s244 = scalar_lea.hbm %s0, %s243
          %s245 = smul.u32 %s232, 3
          %s246 = smul.u32 4, %s245
          %s247 = sshll.u32 %s228, 4
          %s248 = int_to_ptr.vmem [resolvable:$true] %s247
          %s249 = sshll.u32 %s246, 4
          %253 = dma.hbm_to_vmem [thread:$0]  (%p238), %s244, %s249, %s248, %s225, 64, 64, 4
        $region28: #{tpu_custom_call.1} parent=23 // pred_fallthru
          _
        // Predicated region
        $region29: #{tpu_custom_call.1} parent=23 // pred_check
          %p254 = pneg %p93
        $region30: #{tpu_custom_call.1} parent=23 // pred_check_branch
          %256 = sbr.rel (%p254) target = $region32
        $region31: #{tpu_custom_call.1} parent=23 // pred_region
          %s257 = sand.u32 %s16, 1
          %s258 = scalar_lea.sflag [#allocation6], %s257
          %s259 = sand.u32 %s83, 1
          %s260 = smul.addr %s259, 96
          %s261 = scalar_lea.vmem [#allocation5], %s260
          %s262 = sadd.s32 %s24, 1
          %s263 = smul.u32 %s262, 3
          %s264 = smul.u32 8, %s263
          %s266 = ssub.s32 1536, 1536
          %267 = vsyncadd %s258, %s266
          %s268 = smul.addr %s264, 3
          %s269 = sadd.s32 %s25, %s268
          %s270 = smul.addr %s23, 240
          %s271 = sadd.s32 %s269, %s270
          %s272 = smul.addr %s271, 64
          %s273 = scalar_lea.hbm %s1, %s272
          %s274 = sshll.u32 %s261, 4
          %s275 = int_to_ptr.vmem [resolvable:$true] %s274
          %280 = dma.hbm_to_vmem [thread:$0]  %s273, 1536, %s275, %s258, 64, 64, 4
        $region32: #{tpu_custom_call.1} parent=23 // pred_fallthru
          _
      $region24: #{tpu_custom_call.1} parent=5 // pred_fallthru
        _
      %p281 = scmp.le.s32.totalorder 1, %s16
      %p282 = scmp.lt.s32.totalorder %s16, 4
      %p283 = pnand %p281, %p282
      %p284 = pneg %p283
      // Predicated region
      $region33: #{tpu_custom_call.1} parent=5 // pred_check
        _
      $region34: #{tpu_custom_call.1} parent=5 // pred_check_branch
        %286 = sbr.rel (%p283) target = $region36
      $region35: #{tpu_custom_call.1} parent=5 // pred_region
        %s287 = ssub.s32 %s16, 1
        %s288 = sand.u32 %s52, 1
        %s289 = scalar_lea.sflag [#allocation4], %s288
        %s290 = sand.u32 %s52, 1
        %s291 = smul.addr %s290, 288
        %s292 = scalar_lea.vmem [#allocation3], %s291
        // Predicated region
        $region37: #{tpu_custom_call.1} parent=35 // pred_check
          %p293 = pneg %p65
        $region38: #{tpu_custom_call.1} parent=35 // pred_check_branch
          %295 = sbr.rel (%p293) target = $region40
        $region39: #{tpu_custom_call.1} parent=35 // pred_region
          %296 = dma.done %s289, 4608
        $region40: #{tpu_custom_call.1} parent=35 // pred_fallthru
          _
        %s297 = sand.u32 %s21, 1
        %s298 = scalar_lea.sflag [#allocation6], %s297
        %s299 = sand.u32 %s86, 1
        %s300 = smul.addr %s299, 96
        %s301 = scalar_lea.vmem [#allocation5], %s300
        // Predicated region
        $region41: #{tpu_custom_call.1} parent=35 // pred_check
          %p302 = pneg %p99
        $region42: #{tpu_custom_call.1} parent=35 // pred_check_branch
          %304 = sbr.rel (%p302) target = $region44
        $region43: #{tpu_custom_call.1} parent=35 // pred_region
          %305 = dma.done %s298, 1536
        $region44: #{tpu_custom_call.1} parent=35 // pred_fallthru
          _
        // Predicated region
        $region45: #{tpu_custom_call.1} parent=35 // pred_check
          %p306 = pneg %p125
        $region46: #{tpu_custom_call.1} parent=35 // pred_check_branch
          %308 = sbr.rel (%p306) target = $region48
        $region47: #{tpu_custom_call.1} parent=35 // pred_region
          %309 = dma.done [#allocation6], 896
        $region48: #{tpu_custom_call.1} parent=35 // pred_fallthru
          _
        %s310 = sand.u32 %s52, 1
        %s311 = scalar_lea.sflag [#allocation4], %s310
        %s312 = sand.u32 %s52, 1
        %s313 = smul.addr %s312, 288
        %s314 = scalar_lea.vmem [#allocation3], %s313
        %p315 = pneg %p65
        %p316 = pneg %p62
        %s317 = sand.u32 %s21, 1
        %s318 = scalar_lea.sflag [#allocation6], %s317
        %s319 = sand.u32 %s86, 1
        %s320 = smul.addr %s319, 96
        %s321 = scalar_lea.vmem [#allocation5], %s320
        %p322 = pneg %p99
        %p323 = pneg %p96
        %p324 = pneg %p125
        %p325 = pneg %p122
        %p326 = scmp.lt.s32.totalorder %s28, 0
        %s327 = scalar_select %p326, %s28, 0
        %s328 = scalar_lea.vmem %s3, %s327
        %p329 = pneg %p151
        %p330 = pneg %p148
        %p331 = pneg %p181
        %p332 = pneg %p178
        %s333 = smul.u32 24, %s27
        %p334 = scmp.lt.s32.totalorder %s26, 0
        %s335 = scalar_select %p334, %s26, 0
        %p336 = scmp.lt.s32.totalorder %s333, 71
        %s337 = scalar_select %p336, %s333, 71
        %p338 = scmp.lt.s32.totalorder %s28, 0
        %s339 = scalar_select %p338, %s28, 0
        %s340 = smul.addr %s337, 2
        %s341 = sadd.s32 %s339, %s340
        %s342 = smul.addr %s335, 144
        %s343 = sadd.s32 %s341, %s342
        %s344 = smul.addr %s343, 4
        %s345 = scalar_lea.vmem %s4, %s344
        %s346 = smul.u32 24, %s27
        %s347 = ssub.s32 80, %s346
        %p348 = scmp.lt.s32.totalorder %s347, 24
        %s349 = scalar_select %p348, %s347, 24
        %s350 = smul.u32 64, %s349
        %s351 = smul.u32 %s350, 3
        %s352 = sadd.s32 %s27, 1
        %s353 = smul.u32 %s352, 3
        %s354 = smul.u32 8, %s353
        %p355 = scmp.lt.s32.totalorder %s28, 0
        %s356 = scalar_select %p355, %s28, 0
        %s357 = scalar_lea.vmem %s3, %s356
        %s358 = smul.u32 24, %s27
        %p359 = scmp.lt.s32.totalorder %s26, 0
        %s360 = scalar_select %p359, %s26, 0
        %p361 = scmp.lt.s32.totalorder %s358, 71
        %s362 = scalar_select %p361, %s358, 71
        %p363 = scmp.lt.s32.totalorder %s28, 0
        %s364 = scalar_select %p363, %s28, 0
        %s365 = smul.addr %s362, 2
        %s366 = sadd.s32 %s364, %s365
        %s367 = smul.addr %s360, 144
        %s368 = sadd.s32 %s366, %s367
        %s369 = smul.addr %s368, 4
        %s370 = scalar_lea.vmem %s4, %s369
        %s371 = smul.u32 24, %s27
        %v372 = vld [vmem:[%s292] sm:$0xf]
        %v373 = vld [vmem:[%s292 + $0x4] sm:$0xf]
        %v374 = vld [vmem:[%s292 + $0x8] sm:$0xf]
        %v375 = vld [vmem:[%s292 + $0xc] sm:$0xf]
        %v376 = vld [vmem:[%s292 + $0x10] sm:$0xf]
        %v377 = vld [vmem:[%s292 + $0x14] sm:$0xf]
        %v378 = vld [vmem:[%s292 + $0x18] sm:$0xf]
        %v379 = vld [vmem:[%s292 + $0x1c] sm:$0xf]
        %v380 = vld [vmem:[%s292 + $0x20] sm:$0xf]
        %v381 = vld [vmem:[%s292 + $0x24] sm:$0xf]
        %v382 = vld [vmem:[%s292 + $0x28] sm:$0xf]
        %v383 = vld [vmem:[%s292 + $0x2c] sm:$0xf]
        %v384 = vld [vmem:[%s292 + $0x30] sm:$0xf]
        %v385 = vld [vmem:[%s292 + $0x34] sm:$0xf]
        %v386 = vld [vmem:[%s292 + $0x38] sm:$0xf]
        %v387 = vld [vmem:[%s292 + $0x3c] sm:$0xf]
        %v388 = vld [vmem:[%s292 + $0x40] sm:$0xf]
        %v389 = vld [vmem:[%s292 + $0x44] sm:$0xf]
        %v390 = vld [vmem:[%s292 + $0x48] sm:$0xf]
        %v391 = vld [vmem:[%s292 + $0x4c] sm:$0xf]
        %v392 = vld [vmem:[%s292 + $0x50] sm:$0xf]
        %v393 = vld [vmem:[%s292 + $0x54] sm:$0xf]
        %v394 = vld [vmem:[%s292 + $0x58] sm:$0xf]
        %v395 = vld [vmem:[%s292 + $0x5c] sm:$0xf]
        %v396 = vld [vmem:[%s292 + $0x60] sm:$0xf]
        %v397 = vld [vmem:[%s292 + $0x64] sm:$0xf]
        %v398 = vld [vmem:[%s292 + $0x68] sm:$0xf]
        %v399 = vld [vmem:[%s292 + $0x6c] sm:$0xf]
        %v400 = vld [vmem:[%s292 + $0x70] sm:$0xf]
        %v401 = vld [vmem:[%s292 + $0x74] sm:$0xf]
        %v402 = vld [vmem:[%s292 + $0x78] sm:$0xf]
        %v403 = vld [vmem:[%s292 + $0x7c] sm:$0xf]
        %v404 = vld [vmem:[%s292 + $0x80] sm:$0xf]
        %v405 = vld [vmem:[%s292 + $0x84] sm:$0xf]
        %v406 = vld [vmem:[%s292 + $0x88] sm:$0xf]
        %v407 = vld [vmem:[%s292 + $0x8c] sm:$0xf]
        %v408 = vld [vmem:[%s292 + $0x90] sm:$0xf]
        %v409 = vld [vmem:[%s292 + $0x94] sm:$0xf]
        %v410 = vld [vmem:[%s292 + $0x98] sm:$0xf]
        %v411 = vld [vmem:[%s292 + $0x9c] sm:$0xf]
        %v412 = vld [vmem:[%s292 + $0xa0] sm:$0xf]
        %v413 = vld [vmem:[%s292 + $0xa4] sm:$0xf]
        %v414 = vld [vmem:[%s292 + $0xa8] sm:$0xf]
        %v415 = vld [vmem:[%s292 + $0xac] sm:$0xf]
        %v416 = vld [vmem:[%s292 + $0xb0] sm:$0xf]
        %v417 = vld [vmem:[%s292 + $0xb4] sm:$0xf]
        %v418 = vld [vmem:[%s292 + $0xb8] sm:$0xf]
        %v419 = vld [vmem:[%s292 + $0xbc] sm:$0xf]
        %v420 = vld [vmem:[%s292 + $0xc0] sm:$0xf]
        %v421 = vld [vmem:[%s292 + $0xc4] sm:$0xf]
        %v422 = vld [vmem:[%s292 + $0xc8] sm:$0xf]
        %v423 = vld [vmem:[%s292 + $0xcc] sm:$0xf]
        %v424 = vld [vmem:[%s292 + $0xd0] sm:$0xf]
        %v425 = vld [vmem:[%s292 + $0xd4] sm:$0xf]
        %v426 = vld [vmem:[%s292 + $0xd8] sm:$0xf]
        %v427 = vld [vmem:[%s292 + $0xdc] sm:$0xf]
        %v428 = vld [vmem:[%s292 + $0xe0] sm:$0xf]
        %v429 = vld [vmem:[%s292 + $0xe4] sm:$0xf]
        %v430 = vld [vmem:[%s292 + $0xe8] sm:$0xf]
        %v431 = vld [vmem:[%s292 + $0xec] sm:$0xf]
        %v432 = vld [vmem:[%s292 + $0xf0] sm:$0xf]
        %v433 = vld [vmem:[%s292 + $0xf4] sm:$0xf]
        %v434 = vld [vmem:[%s292 + $0xf8] sm:$0xf]
        %v435 = vld [vmem:[%s292 + $0xfc] sm:$0xf]
        %v436 = vld [vmem:[%s292 + $0x100] sm:$0xf]
        %v437 = vld [vmem:[%s292 + $0x104] sm:$0xf]
        %v438 = vld [vmem:[%s292 + $0x108] sm:$0xf]
        %v439 = vld [vmem:[%s292 + $0x10c] sm:$0xf]
        %v440 = vld [vmem:[%s292 + $0x110] sm:$0xf]
        %v441 = vld [vmem:[%s292 + $0x114] sm:$0xf]
        %v442 = vld [vmem:[%s292 + $0x118] sm:$0xf]
        %v443 = vld [vmem:[%s292 + $0x11c] sm:$0xf]
        %444 = vst [vmem:[#allocation2] sm:$0xf] %v372
        %445 = vst [vmem:[#allocation2 + $0x4] sm:$0xf] %v373
        %446 = vst [vmem:[#allocation2 + $0x8] sm:$0xf] %v374
        %447 = vst [vmem:[#allocation2 + $0xc] sm:$0xf] %v375
        %448 = vst [vmem:[#allocation2 + $0x10] sm:$0xf] %v376
        %449 = vst [vmem:[#allocation2 + $0x14] sm:$0xf] %v377
        %450 = vst [vmem:[#allocation2 + $0x18] sm:$0xf] %v378
        %451 = vst [vmem:[#allocation2 + $0x1c] sm:$0xf] %v379
        %452 = vst [vmem:[#allocation2 + $0x20] sm:$0xf] %v380
        %453 = vst [vmem:[#allocation2 + $0x24] sm:$0xf] %v381
        %454 = vst [vmem:[#allocation2 + $0x28] sm:$0xf] %v382
        %455 = vst [vmem:[#allocation2 + $0x2c] sm:$0xf] %v383
        %456 = vst [vmem:[#allocation2 + $0x30] sm:$0xf] %v384
        %457 = vst [vmem:[#allocation2 + $0x34] sm:$0xf] %v385
        %458 = vst [vmem:[#allocation2 + $0x38] sm:$0xf] %v386
        %459 = vst [vmem:[#allocation2 + $0x3c] sm:$0xf] %v387
        %460 = vst [vmem:[#allocation2 + $0x40] sm:$0xf] %v388
        %461 = vst [vmem:[#allocation2 + $0x44] sm:$0xf] %v389
        %462 = vst [vmem:[#allocation2 + $0x48] sm:$0xf] %v390
        %463 = vst [vmem:[#allocation2 + $0x4c] sm:$0xf] %v391
        %464 = vst [vmem:[#allocation2 + $0x50] sm:$0xf] %v392
        %465 = vst [vmem:[#allocation2 + $0x54] sm:$0xf] %v393
        %466 = vst [vmem:[#allocation2 + $0x58] sm:$0xf] %v394
        %467 = vst [vmem:[#allocation2 + $0x5c] sm:$0xf] %v395
        %468 = vst [vmem:[#allocation2 + $0x60] sm:$0xf] %v396
        %469 = vst [vmem:[#allocation2 + $0x64] sm:$0xf] %v397
        %470 = vst [vmem:[#allocation2 + $0x68] sm:$0xf] %v398
        %471 = vst [vmem:[#allocation2 + $0x6c] sm:$0xf] %v399
        %472 = vst [vmem:[#allocation2 + $0x70] sm:$0xf] %v400
        %473 = vst [vmem:[#allocation2 + $0x74] sm:$0xf] %v401
        %474 = vst [vmem:[#allocation2 + $0x78] sm:$0xf] %v402
        %475 = vst [vmem:[#allocation2 + $0x7c] sm:$0xf] %v403
        %476 = vst [vmem:[#allocation2 + $0x80] sm:$0xf] %v404
        %477 = vst [vmem:[#allocation2 + $0x84] sm:$0xf] %v405
        %478 = vst [vmem:[#allocation2 + $0x88] sm:$0xf] %v406
        %479 = vst [vmem:[#allocation2 + $0x8c] sm:$0xf] %v407
        %480 = vst [vmem:[#allocation2 + $0x90] sm:$0xf] %v408
        %481 = vst [vmem:[#allocation2 + $0x94] sm:$0xf] %v409
        %482 = vst [vmem:[#allocation2 + $0x98] sm:$0xf] %v410
        %483 = vst [vmem:[#allocation2 + $0x9c] sm:$0xf] %v411
        %484 = vst [vmem:[#allocation2 + $0xa0] sm:$0xf] %v412
        %485 = vst [vmem:[#allocation2 + $0xa4] sm:$0xf] %v413
        %486 = vst [vmem:[#allocation2 + $0xa8] sm:$0xf] %v414
        %487 = vst [vmem:[#allocation2 + $0xac] sm:$0xf] %v415
        %488 = vst [vmem:[#allocation2 + $0xb0] sm:$0xf] %v416
        %489 = vst [vmem:[#allocation2 + $0xb4] sm:$0xf] %v417
        %490 = vst [vmem:[#allocation2 + $0xb8] sm:$0xf] %v418
        %491 = vst [vmem:[#allocation2 + $0xbc] sm:$0xf] %v419
        %492 = vst [vmem:[#allocation2 + $0xc0] sm:$0xf] %v420
        %493 = vst [vmem:[#allocation2 + $0xc4] sm:$0xf] %v421
        %494 = vst [vmem:[#allocation2 + $0xc8] sm:$0xf] %v422
        %495 = vst [vmem:[#allocation2 + $0xcc] sm:$0xf] %v423
        %496 = vst [vmem:[#allocation2 + $0xd0] sm:$0xf] %v424
        %497 = vst [vmem:[#allocation2 + $0xd4] sm:$0xf] %v425
        %498 = vst [vmem:[#allocation2 + $0xd8] sm:$0xf] %v426
        %499 = vst [vmem:[#allocation2 + $0xdc] sm:$0xf] %v427
        %500 = vst [vmem:[#allocation2 + $0xe0] sm:$0xf] %v428
        %501 = vst [vmem:[#allocation2 + $0xe4] sm:$0xf] %v429
        %502 = vst [vmem:[#allocation2 + $0xe8] sm:$0xf] %v430
        %503 = vst [vmem:[#allocation2 + $0xec] sm:$0xf] %v431
        %504 = vst [vmem:[#allocation2 + $0xf0] sm:$0xf] %v432
        %505 = vst [vmem:[#allocation2 + $0xf4] sm:$0xf] %v433
        %506 = vst [vmem:[#allocation2 + $0xf8] sm:$0xf] %v434
        %507 = vst [vmem:[#allocation2 + $0xfc] sm:$0xf] %v435
        %508 = vst [vmem:[#allocation2 + $0x100] sm:$0xf] %v436
        %509 = vst [vmem:[#allocation2 + $0x104] sm:$0xf] %v437
        %510 = vst [vmem:[#allocation2 + $0x108] sm:$0xf] %v438
        %511 = vst [vmem:[#allocation2 + $0x10c] sm:$0xf] %v439
        %512 = vst [vmem:[#allocation2 + $0x110] sm:$0xf] %v440
        %513 = vst [vmem:[#allocation2 + $0x114] sm:$0xf] %v441
        %514 = vst [vmem:[#allocation2 + $0x118] sm:$0xf] %v442
        %515 = vst [vmem:[#allocation2 + $0x11c] sm:$0xf] %v443
        %v516 = vld [vmem:[%s301] sm:$0xf]
        %v517 = vld [vmem:[%s301 + $0x4] sm:$0xf]
        %v518 = vld [vmem:[%s301 + $0x8] sm:$0xf]
        %v519 = vld [vmem:[%s301 + $0xc] sm:$0xf]
        %v520 = vld [vmem:[%s301 + $0x10] sm:$0xf]
        %v521 = vld [vmem:[%s301 + $0x14] sm:$0xf]
        %v522 = vld [vmem:[%s301 + $0x18] sm:$0xf]
        %v523 = vld [vmem:[%s301 + $0x1c] sm:$0xf]
        %v524 = vld [vmem:[%s301 + $0x20] sm:$0xf]
        %v525 = vld [vmem:[%s301 + $0x24] sm:$0xf]
        %v526 = vld [vmem:[%s301 + $0x28] sm:$0xf]
        %v527 = vld [vmem:[%s301 + $0x2c] sm:$0xf]
        %v528 = vld [vmem:[%s301 + $0x30] sm:$0xf]
        %v529 = vld [vmem:[%s301 + $0x34] sm:$0xf]
        %v530 = vld [vmem:[%s301 + $0x38] sm:$0xf]
        %v531 = vld [vmem:[%s301 + $0x3c] sm:$0xf]
        %v532 = vld [vmem:[%s301 + $0x40] sm:$0xf]
        %v533 = vld [vmem:[%s301 + $0x44] sm:$0xf]
        %s534 = scalar_lea.vmem [#allocation2], 288
        %535 = vst [vmem:[%s534] sm:$0xf] %v516
        %536 = vst [vmem:[%s534 + $0x4] sm:$0xf] %v517
        %537 = vst [vmem:[%s534 + $0x8] sm:$0xf] %v518
        %538 = vst [vmem:[%s534 + $0xc] sm:$0xf] %v519
        %539 = vst [vmem:[%s534 + $0x10] sm:$0xf] %v520
        %540 = vst [vmem:[%s534 + $0x14] sm:$0xf] %v521
        %541 = vst [vmem:[%s534 + $0x18] sm:$0xf] %v522
        %542 = vst [vmem:[%s534 + $0x1c] sm:$0xf] %v523
        %543 = vst [vmem:[%s534 + $0x20] sm:$0xf] %v524
        %544 = vst [vmem:[%s534 + $0x24] sm:$0xf] %v525
        %545 = vst [vmem:[%s534 + $0x28] sm:$0xf] %v526
        %546 = vst [vmem:[%s534 + $0x2c] sm:$0xf] %v527
        %547 = vst [vmem:[%s534 + $0x30] sm:$0xf] %v528
        %548 = vst [vmem:[%s534 + $0x34] sm:$0xf] %v529
        %549 = vst [vmem:[%s534 + $0x38] sm:$0xf] %v530
        %550 = vst [vmem:[%s534 + $0x3c] sm:$0xf] %v531
        %551 = vst [vmem:[%s534 + $0x40] sm:$0xf] %v532
        %552 = vst [vmem:[%s534 + $0x44] sm:$0xf] %v533
        %v553 = vld [vmem:[#allocation7] sm:$0xff]
        %v554 = vld [vmem:[#allocation7 + $0x8] sm:$0xff]
        %v555 = vld [vmem:[#allocation7 + $0x10] sm:$0xff]
        %v556 = vld [vmem:[#allocation7 + $0x18] sm:$0xff]
        %v557 = vld [vmem:[#allocation7 + $0x20] sm:$0xff]
        %v558 = vld [vmem:[#allocation7 + $0x28] sm:$0xff]
        %v559 = vld [vmem:[#allocation7 + $0x30] sm:$0x1]
        %v560 = vld [vmem:[#allocation2] sm:$0xf]
        %v561 = vld [vmem:[#allocation2 + $0x4] sm:$0xf]
        %v562 = vld [vmem:[#allocation2 + $0x8] sm:$0xf]
        %v563 = vld [vmem:[#allocation2 + $0xc] sm:$0xf]
        %v564 = vld [vmem:[#allocation2 + $0x10] sm:$0xf]
        %v565 = vld [vmem:[#allocation2 + $0x14] sm:$0xf]
        %v566 = vld [vmem:[#allocation2 + $0x18] sm:$0xf]
        %v567 = vld [vmem:[#allocation2 + $0x1c] sm:$0xf]
        %v568 = vld [vmem:[#allocation2 + $0x20] sm:$0xf]
        %v569 = vld [vmem:[#allocation2 + $0x24] sm:$0xf]
        %v570 = vld [vmem:[#allocation2 + $0x28] sm:$0xf]
        %v571 = vld [vmem:[#allocation2 + $0x2c] sm:$0xf]
        %v572 = vld [vmem:[#allocation2 + $0x30] sm:$0xf]
        %v573 = vld [vmem:[#allocation2 + $0x34] sm:$0xf]
        %v574 = vld [vmem:[#allocation2 + $0x38] sm:$0xf]
        %v575 = vld [vmem:[#allocation2 + $0x3c] sm:$0xf]
        %v576 = vld [vmem:[#allocation2 + $0x40] sm:$0xf]
        %v577 = vld [vmem:[#allocation2 + $0x44] sm:$0xf]
        %v578 = vld [vmem:[#allocation2 + $0x48] sm:$0xf]
        %v579 = vld [vmem:[#allocation2 + $0x4c] sm:$0xf]
        %v580 = vld [vmem:[#allocation2 + $0x50] sm:$0xf]
        %v581 = vld [vmem:[#allocation2 + $0x54] sm:$0xf]
        %v582 = vld [vmem:[#allocation2 + $0x58] sm:$0xf]
        %v583 = vld [vmem:[#allocation2 + $0x5c] sm:$0xf]
        %v584 = vld [vmem:[#allocation2 + $0x60] sm:$0xf]
        %v585 = vld [vmem:[#allocation2 + $0x64] sm:$0xf]
        %v586 = vld [vmem:[#allocation2 + $0x68] sm:$0xf]
        %v587 = vld [vmem:[#allocation2 + $0x6c] sm:$0xf]
        %v588 = vld [vmem:[#allocation2 + $0x70] sm:$0xf]
        %v589 = vld [vmem:[#allocation2 + $0x74] sm:$0xf]
        %v590 = vld [vmem:[#allocation2 + $0x78] sm:$0xf]
        %v591 = vld [vmem:[#allocation2 + $0x7c] sm:$0xf]
        %v592 = vld [vmem:[#allocation2 + $0x80] sm:$0xf]
        %v593 = vld [vmem:[#allocation2 + $0x84] sm:$0xf]
        %v594 = vld [vmem:[#allocation2 + $0x88] sm:$0xf]
        %v595 = vld [vmem:[#allocation2 + $0x8c] sm:$0xf]
        %v596 = vld [vmem:[#allocation2 + $0x90] sm:$0xf]
        %v597 = vld [vmem:[#allocation2 + $0x94] sm:$0xf]
        %v598 = vld [vmem:[#allocation2 + $0x98] sm:$0xf]
        %v599 = vld [vmem:[#allocation2 + $0x9c] sm:$0xf]
        %v600 = vld [vmem:[#allocation2 + $0xa0] sm:$0xf]
        %v601 = vld [vmem:[#allocation2 + $0xa4] sm:$0xf]
        %v602 = vld [vmem:[#allocation2 + $0xa8] sm:$0xf]
        %v603 = vld [vmem:[#allocation2 + $0xac] sm:$0xf]
        %v604 = vld [vmem:[#allocation2 + $0xb0] sm:$0xf]
        %v605 = vld [vmem:[#allocation2 + $0xb4] sm:$0xf]
        %v606 = vld [vmem:[#allocation2 + $0xb8] sm:$0xf]
        %v607 = vld [vmem:[#allocation2 + $0xbc] sm:$0xf]
        %v608 = vld [vmem:[#allocation2 + $0xc0] sm:$0xf]
        %v609 = vld [vmem:[#allocation2 + $0xc4] sm:$0xf]
        %v610 = vld [vmem:[#allocation2 + $0xc8] sm:$0xf]
        %v611 = vld [vmem:[#allocation2 + $0xcc] sm:$0xf]
        %v612 = vld [vmem:[#allocation2 + $0xd0] sm:$0xf]
        %v613 = vld [vmem:[#allocation2 + $0xd4] sm:$0xf]
        %v614 = vld [vmem:[#allocation2 + $0xd8] sm:$0xf]
        %v615 = vld [vmem:[#allocation2 + $0xdc] sm:$0xf]
        %v616 = vld [vmem:[#allocation2 + $0xe0] sm:$0xf]
        %v617 = vld [vmem:[#allocation2 + $0xe4] sm:$0xf]
        %v618 = vld [vmem:[#allocation2 + $0xe8] sm:$0xf]
        %v619 = vld [vmem:[#allocation2 + $0xec] sm:$0xf]
        %v620 = vld [vmem:[#allocation2 + $0xf0] sm:$0xf]
        %v621 = vld [vmem:[#allocation2 + $0xf4] sm:$0xf]
        %v622 = vld [vmem:[#allocation2 + $0xf8] sm:$0xf]
        %v623 = vld [vmem:[#allocation2 + $0xfc] sm:$0xf]
        %v624 = vld [vmem:[#allocation2 + $0x100] sm:$0xf]
        %v625 = vld [vmem:[#allocation2 + $0x104] sm:$0xf]
        %v626 = vld [vmem:[#allocation2 + $0x108] sm:$0xf]
        %v627 = vld [vmem:[#allocation2 + $0x10c] sm:$0xf]
        %v628 = vld [vmem:[#allocation2 + $0x110] sm:$0xf]
        %v629 = vld [vmem:[#allocation2 + $0x114] sm:$0xf]
        %v630 = vld [vmem:[#allocation2 + $0x118] sm:$0xf]
        %v631 = vld [vmem:[#allocation2 + $0x11c] sm:$0xf]
        %v632 = vunpack.c.l.bf16 %v560
        %v633 = vunpack.c.l.bf16 %v561
        %v634 = vunpack.c.l.bf16 %v562
        %v635 = vunpack.c.l.bf16 %v563
        %v636 = vunpack.c.l.bf16 %v564
        %v637 = vunpack.c.l.bf16 %v565
        %v638 = vunpack.c.l.bf16 %v566
        %v639 = vunpack.c.l.bf16 %v567
        %v640 = vunpack.c.l.bf16 %v568
        %v641 = vunpack.c.l.bf16 %v569
        %v642 = vunpack.c.l.bf16 %v570
        %v643 = vunpack.c.l.bf16 %v571
        %v644 = vunpack.c.l.bf16 %v572
        %v645 = vunpack.c.l.bf16 %v573
        %v646 = vunpack.c.l.bf16 %v574
        %v647 = vunpack.c.l.bf16 %v575
        %v648 = vunpack.c.l.bf16 %v576
        %v649 = vunpack.c.l.bf16 %v577
        %v650 = vunpack.c.l.bf16 %v578
        %v651 = vunpack.c.l.bf16 %v579
        %v652 = vunpack.c.l.bf16 %v580
        %v653 = vunpack.c.l.bf16 %v581
        %v654 = vunpack.c.l.bf16 %v582
        %v655 = vunpack.c.l.bf16 %v583
        %v656 = vunpack.c.l.bf16 %v584
        %v657 = vunpack.c.l.bf16 %v585
        %v658 = vunpack.c.l.bf16 %v586
        %v659 = vunpack.c.l.bf16 %v587
        %v660 = vunpack.c.l.bf16 %v588
        %v661 = vunpack.c.l.bf16 %v589
        %v662 = vunpack.c.l.bf16 %v590
        %v663 = vunpack.c.l.bf16 %v591
        %v664 = vunpack.c.l.bf16 %v592
        %v665 = vunpack.c.l.bf16 %v593
        %v666 = vunpack.c.l.bf16 %v594
        %v667 = vunpack.c.l.bf16 %v595
        %v668 = vunpack.c.l.bf16 %v596
        %v669 = vunpack.c.l.bf16 %v597
        %v670 = vunpack.c.l.bf16 %v598
        %v671 = vunpack.c.l.bf16 %v599
        %v672 = vunpack.c.l.bf16 %v600
        %v673 = vunpack.c.l.bf16 %v601
        %v674 = vunpack.c.l.bf16 %v602
        %v675 = vunpack.c.l.bf16 %v603
        %v676 = vunpack.c.l.bf16 %v604
        %v677 = vunpack.c.l.bf16 %v605
        %v678 = vunpack.c.l.bf16 %v606
        %v679 = vunpack.c.l.bf16 %v607
        %v680 = vunpack.c.l.bf16 %v608
        %v681 = vunpack.c.l.bf16 %v609
        %v682 = vunpack.c.l.bf16 %v610
        %v683 = vunpack.c.l.bf16 %v611
        %v684 = vunpack.c.l.bf16 %v612
        %v685 = vunpack.c.l.bf16 %v613
        %v686 = vunpack.c.l.bf16 %v614
        %v687 = vunpack.c.l.bf16 %v615
        %v688 = vunpack.c.l.bf16 %v616
        %v689 = vunpack.c.l.bf16 %v617
        %v690 = vunpack.c.l.bf16 %v618
        %v691 = vunpack.c.l.bf16 %v619
        %v692 = vunpack.c.l.bf16 %v620
        %v693 = vunpack.c.l.bf16 %v621
        %v694 = vunpack.c.l.bf16 %v622
        %v695 = vunpack.c.l.bf16 %v623
        %v696 = vunpack.c.l.bf16 %v624
        %v697 = vunpack.c.l.bf16 %v625
        %v698 = vunpack.c.l.bf16 %v626
        %v699 = vunpack.c.l.bf16 %v627
        %v700 = vunpack.c.l.bf16 %v628
        %v701 = vunpack.c.l.bf16 %v629
        %v702 = vunpack.c.l.bf16 %v630
        %v703 = vunpack.c.l.bf16 %v631
        %v704 = vlaneseq
        %v705 = vshrl.u32 %v704, 7
        %v706 = vsub.s32 0, %v705
        %v707 = vrot.slane %v553, %v706
        %v708 = vmul.f32 %v632, %v707
        %v709 = vmul.f32 %v633, %v707
        %v710 = vmul.f32 %v635, %v707
        %v711 = vmul.f32 %v636, %v707
        %v712 = vmul.f32 %v638, %v707
        %v713 = vmul.f32 %v639, %v707
        %v714 = vmul.f32 %v641, %v707
        %v715 = vmul.f32 %v642, %v707
        %v716 = vmul.f32 %v644, %v707
        %v717 = vmul.f32 %v645, %v707
        %v718 = vmul.f32 %v647, %v707
        %v719 = vmul.f32 %v648, %v707
        %v720 = vmul.f32 %v650, %v707
        %v721 = vmul.f32 %v651, %v707
        %v722 = vmul.f32 %v653, %v707
        %v723 = vmul.f32 %v654, %v707
        %v724 = vmul.f32 %v656, %v707
        %v725 = vmul.f32 %v657, %v707
        %v726 = vmul.f32 %v659, %v707
        %v727 = vmul.f32 %v660, %v707
        %v728 = vmul.f32 %v662, %v707
        %v729 = vmul.f32 %v663, %v707
        %v730 = vmul.f32 %v665, %v707
        %v731 = vmul.f32 %v666, %v707
        %v732 = vmul.f32 %v668, %v707
        %v733 = vmul.f32 %v669, %v707
        %v734 = vmul.f32 %v671, %v707
        %v735 = vmul.f32 %v672, %v707
        %v736 = vmul.f32 %v674, %v707
        %v737 = vmul.f32 %v675, %v707
        %v738 = vmul.f32 %v677, %v707
        %v739 = vmul.f32 %v678, %v707
        %v740 = vmul.f32 %v680, %v707
        %v741 = vmul.f32 %v681, %v707
        %v742 = vmul.f32 %v683, %v707
        %v743 = vmul.f32 %v684, %v707
        %v744 = vmul.f32 %v686, %v707
        %v745 = vmul.f32 %v687, %v707
        %v746 = vmul.f32 %v689, %v707
        %v747 = vmul.f32 %v690, %v707
        %v748 = vmul.f32 %v692, %v707
        %v749 = vmul.f32 %v693, %v707
        %v750 = vmul.f32 %v695, %v707
        %v751 = vmul.f32 %v696, %v707
        %v752 = vmul.f32 %v698, %v707
        %v753 = vmul.f32 %v699, %v707
        %v754 = vmul.f32 %v701, %v707
        %v755 = vmul.f32 %v702, %v707
        %v756 = vadd.f32 %v708, 0.0
        %v757 = vadd.f32 %v709, 0.0
        %v758 = vadd.f32 %v710, 0.0
        %v759 = vadd.f32 %v711, 0.0
        %v760 = vadd.f32 %v712, 0.0
        %v761 = vadd.f32 %v713, 0.0
        %v762 = vadd.f32 %v714, 0.0
        %v763 = vadd.f32 %v715, 0.0
        %v764 = vadd.f32 %v716, 0.0
        %v765 = vadd.f32 %v717, 0.0
        %v766 = vadd.f32 %v718, 0.0
        %v767 = vadd.f32 %v719, 0.0
        %v768 = vadd.f32 %v720, 0.0
        %v769 = vadd.f32 %v721, 0.0
        %v770 = vadd.f32 %v722, 0.0
        %v771 = vadd.f32 %v723, 0.0
        %v772 = vadd.f32 %v724, 0.0
        %v773 = vadd.f32 %v725, 0.0
        %v774 = vadd.f32 %v726, 0.0
        %v775 = vadd.f32 %v727, 0.0
        %v776 = vadd.f32 %v728, 0.0
        %v777 = vadd.f32 %v729, 0.0
        %v778 = vadd.f32 %v730, 0.0
        %v779 = vadd.f32 %v731, 0.0
        %v780 = vadd.f32 %v732, 0.0
        %v781 = vadd.f32 %v733, 0.0
        %v782 = vadd.f32 %v734, 0.0
        %v783 = vadd.f32 %v735, 0.0
        %v784 = vadd.f32 %v736, 0.0
        %v785 = vadd.f32 %v737, 0.0
        %v786 = vadd.f32 %v738, 0.0
        %v787 = vadd.f32 %v739, 0.0
        %v788 = vadd.f32 %v740, 0.0
        %v789 = vadd.f32 %v741, 0.0
        %v790 = vadd.f32 %v742, 0.0
        %v791 = vadd.f32 %v743, 0.0
        %v792 = vadd.f32 %v744, 0.0
        %v793 = vadd.f32 %v745, 0.0
        %v794 = vadd.f32 %v746, 0.0
        %v795 = vadd.f32 %v747, 0.0
        %v796 = vadd.f32 %v748, 0.0
        %v797 = vadd.f32 %v749, 0.0
        %v798 = vadd.f32 %v750, 0.0
        %v799 = vadd.f32 %v751, 0.0
        %v800 = vadd.f32 %v752, 0.0
        %v801 = vadd.f32 %v753, 0.0
        %v802 = vadd.f32 %v754, 0.0
        %v803 = vadd.f32 %v755, 0.0
        %s804 = scalar_lea.vmem [#allocation2], 12
        %v805 = vld [vmem:[%s804] sm:$0xf]
        %v806 = vld [vmem:[%s804 + $0x4] sm:$0xf]
        %v807 = vld [vmem:[%s804 + $0x8] sm:$0xf]
        %v808 = vld [vmem:[%s804 + $0xc] sm:$0xf]
        %v809 = vld [vmem:[%s804 + $0x10] sm:$0xf]
        %v810 = vld [vmem:[%s804 + $0x14] sm:$0xf]
        %v811 = vld [vmem:[%s804 + $0x18] sm:$0xf]
        %v812 = vld [vmem:[%s804 + $0x1c] sm:$0xf]
        %v813 = vld [vmem:[%s804 + $0x20] sm:$0xf]
        %v814 = vld [vmem:[%s804 + $0x24] sm:$0xf]
        %v815 = vld [vmem:[%s804 + $0x28] sm:$0xf]
        %v816 = vld [vmem:[%s804 + $0x2c] sm:$0xf]
        %v817 = vld [vmem:[%s804 + $0x30] sm:$0xf]
        %v818 = vld [vmem:[%s804 + $0x34] sm:$0xf]
        %v819 = vld [vmem:[%s804 + $0x38] sm:$0xf]
        %v820 = vld [vmem:[%s804 + $0x3c] sm:$0xf]
        %v821 = vld [vmem:[%s804 + $0x40] sm:$0xf]
        %v822 = vld [vmem:[%s804 + $0x44] sm:$0xf]
        %v823 = vld [vmem:[%s804 + $0x48] sm:$0xf]
        %v824 = vld [vmem:[%s804 + $0x4c] sm:$0xf]
        %v825 = vld [vmem:[%s804 + $0x50] sm:$0xf]
        %v826 = vld [vmem:[%s804 + $0x54] sm:$0xf]
        %v827 = vld [vmem:[%s804 + $0x58] sm:$0xf]
        %v828 = vld [vmem:[%s804 + $0x5c] sm:$0xf]
        %v829 = vld [vmem:[%s804 + $0x60] sm:$0xf]
        %v830 = vld [vmem:[%s804 + $0x64] sm:$0xf]
        %v831 = vld [vmem:[%s804 + $0x68] sm:$0xf]
        %v832 = vld [vmem:[%s804 + $0x6c] sm:$0xf]
        %v833 = vld [vmem:[%s804 + $0x70] sm:$0xf]
        %v834 = vld [vmem:[%s804 + $0x74] sm:$0xf]
        %v835 = vld [vmem:[%s804 + $0x78] sm:$0xf]
        %v836 = vld [vmem:[%s804 + $0x7c] sm:$0xf]
        %v837 = vld [vmem:[%s804 + $0x80] sm:$0xf]
        %v838 = vld [vmem:[%s804 + $0x84] sm:$0xf]
        %v839 = vld [vmem:[%s804 + $0x88] sm:$0xf]
        %v840 = vld [vmem:[%s804 + $0x8c] sm:$0xf]
        %v841 = vld [vmem:[%s804 + $0x90] sm:$0xf]
        %v842 = vld [vmem:[%s804 + $0x94] sm:$0xf]
        %v843 = vld [vmem:[%s804 + $0x98] sm:$0xf]
        %v844 = vld [vmem:[%s804 + $0x9c] sm:$0xf]
        %v845 = vld [vmem:[%s804 + $0xa0] sm:$0xf]
        %v846 = vld [vmem:[%s804 + $0xa4] sm:$0xf]
        %v847 = vld [vmem:[%s804 + $0xa8] sm:$0xf]
        %v848 = vld [vmem:[%s804 + $0xac] sm:$0xf]
        %v849 = vld [vmem:[%s804 + $0xb0] sm:$0xf]
        %v850 = vld [vmem:[%s804 + $0xb4] sm:$0xf]
        %v851 = vld [vmem:[%s804 + $0xb8] sm:$0xf]
        %v852 = vld [vmem:[%s804 + $0xbc] sm:$0xf]
        %v853 = vld [vmem:[%s804 + $0xc0] sm:$0xf]
        %v854 = vld [vmem:[%s804 + $0xc4] sm:$0xf]
        %v855 = vld [vmem:[%s804 + $0xc8] sm:$0xf]
        %v856 = vld [vmem:[%s804 + $0xcc] sm:$0xf]
        %v857 = vld [vmem:[%s804 + $0xd0] sm:$0xf]
        %v858 = vld [vmem:[%s804 + $0xd4] sm:$0xf]
        %v859 = vld [vmem:[%s804 + $0xd8] sm:$0xf]
        %v860 = vld [vmem:[%s804 + $0xdc] sm:$0xf]
        %v861 = vld [vmem:[%s804 + $0xe0] sm:$0xf]
        %v862 = vld [vmem:[%s804 + $0xe4] sm:$0xf]
        %v863 = vld [vmem:[%s804 + $0xe8] sm:$0xf]
        %v864 = vld [vmem:[%s804 + $0xec] sm:$0xf]
        %v865 = vld [vmem:[%s804 + $0xf0] sm:$0xf]
        %v866 = vld [vmem:[%s804 + $0xf4] sm:$0xf]
        %v867 = vld [vmem:[%s804 + $0xf8] sm:$0xf]
        %v868 = vld [vmem:[%s804 + $0xfc] sm:$0xf]
        %v869 = vld [vmem:[%s804 + $0x100] sm:$0xf]
        %v870 = vld [vmem:[%s804 + $0x104] sm:$0xf]
        %v871 = vld [vmem:[%s804 + $0x108] sm:$0xf]
        %v872 = vld [vmem:[%s804 + $0x10c] sm:$0xf]
        %v873 = vld [vmem:[%s804 + $0x110] sm:$0xf]
        %v874 = vld [vmem:[%s804 + $0x114] sm:$0xf]
        %v875 = vld [vmem:[%s804 + $0x118] sm:$0xf]
        %v876 = vld [vmem:[%s804 + $0x11c] sm:$0xf]
        %v877 = vunpack.c.l.bf16 %v805
        %v878 = vunpack.c.l.bf16 %v806
        %v879 = vunpack.c.l.bf16 %v807
        %v880 = vunpack.c.l.bf16 %v808
        %v881 = vunpack.c.l.bf16 %v809
        %v882 = vunpack.c.l.bf16 %v810
        %v883 = vunpack.c.l.bf16 %v811
        %v884 = vunpack.c.l.bf16 %v812
        %v885 = vunpack.c.l.bf16 %v813
        %v886 = vunpack.c.l.bf16 %v814
        %v887 = vunpack.c.l.bf16 %v815
        %v888 = vunpack.c.l.bf16 %v816
        %v889 = vunpack.c.l.bf16 %v817
        %v890 = vunpack.c.l.bf16 %v818
        %v891 = vunpack.c.l.bf16 %v819
        %v892 = vunpack.c.l.bf16 %v820
        %v893 = vunpack.c.l.bf16 %v821
        %v894 = vunpack.c.l.bf16 %v822
        %v895 = vunpack.c.l.bf16 %v823
        %v896 = vunpack.c.l.bf16 %v824
        %v897 = vunpack.c.l.bf16 %v825
        %v898 = vunpack.c.l.bf16 %v826
        %v899 = vunpack.c.l.bf16 %v827
        %v900 = vunpack.c.l.bf16 %v828
        %v901 = vunpack.c.l.bf16 %v829
        %v902 = vunpack.c.l.bf16 %v830
        %v903 = vunpack.c.l.bf16 %v831
        %v904 = vunpack.c.l.bf16 %v832
        %v905 = vunpack.c.l.bf16 %v833
        %v906 = vunpack.c.l.bf16 %v834
        %v907 = vunpack.c.l.bf16 %v835
        %v908 = vunpack.c.l.bf16 %v836
        %v909 = vunpack.c.l.bf16 %v837
        %v910 = vunpack.c.l.bf16 %v838
        %v911 = vunpack.c.l.bf16 %v839
        %v912 = vunpack.c.l.bf16 %v840
        %v913 = vunpack.c.l.bf16 %v841
        %v914 = vunpack.c.l.bf16 %v842
        %v915 = vunpack.c.l.bf16 %v843
        %v916 = vunpack.c.l.bf16 %v844
        %v917 = vunpack.c.l.bf16 %v845
        %v918 = vunpack.c.l.bf16 %v846
        %v919 = vunpack.c.l.bf16 %v847
        %v920 = vunpack.c.l.bf16 %v848
        %v921 = vunpack.c.l.bf16 %v849
        %v922 = vunpack.c.l.bf16 %v850
        %v923 = vunpack.c.l.bf16 %v851
        %v924 = vunpack.c.l.bf16 %v852
        %v925 = vunpack.c.l.bf16 %v853
        %v926 = vunpack.c.l.bf16 %v854
        %v927 = vunpack.c.l.bf16 %v855
        %v928 = vunpack.c.l.bf16 %v856
        %v929 = vunpack.c.l.bf16 %v857
        %v930 = vunpack.c.l.bf16 %v858
        %v931 = vunpack.c.l.bf16 %v859
        %v932 = vunpack.c.l.bf16 %v860
        %v933 = vunpack.c.l.bf16 %v861
        %v934 = vunpack.c.l.bf16 %v862
        %v935 = vunpack.c.l.bf16 %v863
        %v936 = vunpack.c.l.bf16 %v864
        %v937 = vunpack.c.l.bf16 %v865
        %v938 = vunpack.c.l.bf16 %v866
        %v939 = vunpack.c.l.bf16 %v867
        %v940 = vunpack.c.l.bf16 %v868
        %v941 = vunpack.c.l.bf16 %v869
        %v942 = vunpack.c.l.bf16 %v870
        %v943 = vunpack.c.l.bf16 %v871
        %v944 = vunpack.c.l.bf16 %v872
        %v945 = vunpack.c.l.bf16 %v873
        %v946 = vunpack.c.l.bf16 %v874
        %v947 = vunpack.c.l.bf16 %v875
        %v948 = vunpack.c.l.bf16 %v876
        %v949 = vlaneseq
        %v950 = vshrl.u32 %v949, 7
        %v951 = vsub.s32 7, %v950
        %v952 = vrot.slane %v553, %v951
        %v953 = vmul.f32 %v877, %v952
        %v954 = vmul.f32 %v878, %v952
        %v955 = vmul.f32 %v880, %v952
        %v956 = vmul.f32 %v881, %v952
        %v957 = vmul.f32 %v883, %v952
        %v958 = vmul.f32 %v884, %v952
        %v959 = vmul.f32 %v886, %v952
        %v960 = vmul.f32 %v887, %v952
        %v961 = vmul.f32 %v889, %v952
        %v962 = vmul.f32 %v890, %v952
        %v963 = vmul.f32 %v892, %v952
        %v964 = vmul.f32 %v893, %v952
        %v965 = vmul.f32 %v895, %v952
        %v966 = vmul.f32 %v896, %v952
        %v967 = vmul.f32 %v898, %v952
        %v968 = vmul.f32 %v899, %v952
        %v969 = vmul.f32 %v901, %v952
        %v970 = vmul.f32 %v902, %v952
        %v971 = vmul.f32 %v904, %v952
        %v972 = vmul.f32 %v905, %v952
        %v973 = vmul.f32 %v907, %v952
        %v974 = vmul.f32 %v908, %v952
        %v975 = vmul.f32 %v910, %v952
        %v976 = vmul.f32 %v911, %v952
        %v977 = vmul.f32 %v913, %v952
        %v978 = vmul.f32 %v914, %v952
        %v979 = vmul.f32 %v916, %v952
        %v980 = vmul.f32 %v917, %v952
        %v981 = vmul.f32 %v919, %v952
        %v982 = vmul.f32 %v920, %v952
        %v983 = vmul.f32 %v922, %v952
        %v984 = vmul.f32 %v923, %v952
        %v985 = vmul.f32 %v925, %v952
        %v986 = vmul.f32 %v926, %v952
        %v987 = vmul.f32 %v928, %v952
        %v988 = vmul.f32 %v929, %v952
        %v989 = vmul.f32 %v931, %v952
        %v990 = vmul.f32 %v932, %v952
        %v991 = vmul.f32 %v934, %v952
        %v992 = vmul.f32 %v935, %v952
        %v993 = vmul.f32 %v937, %v952
        %v994 = vmul.f32 %v938, %v952
        %v995 = vmul.f32 %v940, %v952
        %v996 = vmul.f32 %v941, %v952
        %v997 = vmul.f32 %v943, %v952
        %v998 = vmul.f32 %v944, %v952
        %v999 = vmul.f32 %v946, %v952
        %v1000 = vmul.f32 %v947, %v952
        %v1001 = vadd.f32 %v756, %v953
        %v1002 = vadd.f32 %v757, %v954
        %v1003 = vadd.f32 %v758, %v955
        %v1004 = vadd.f32 %v759, %v956
        %v1005 = vadd.f32 %v760, %v957
        %v1006 = vadd.f32 %v761, %v958
        %v1007 = vadd.f32 %v762, %v959
        %v1008 = vadd.f32 %v763, %v960
        %v1009 = vadd.f32 %v764, %v961
        %v1010 = vadd.f32 %v765, %v962
        %v1011 = vadd.f32 %v766, %v963
        %v1012 = vadd.f32 %v767, %v964
        %v1013 = vadd.f32 %v768, %v965
        %v1014 = vadd.f32 %v769, %v966
        %v1015 = vadd.f32 %v770, %v967
        %v1016 = vadd.f32 %v771, %v968
        %v1017 = vadd.f32 %v772, %v969
        %v1018 = vadd.f32 %v773, %v970
        %v1019 = vadd.f32 %v774, %v971
        %v1020 = vadd.f32 %v775, %v972
        %v1021 = vadd.f32 %v776, %v973
        %v1022 = vadd.f32 %v777, %v974
        %v1023 = vadd.f32 %v778, %v975
        %v1024 = vadd.f32 %v779, %v976
        %v1025 = vadd.f32 %v780, %v977
        %v1026 = vadd.f32 %v781, %v978
        %v1027 = vadd.f32 %v782, %v979
        %v1028 = vadd.f32 %v783, %v980
        %v1029 = vadd.f32 %v784, %v981
        %v1030 = vadd.f32 %v785, %v982
        %v1031 = vadd.f32 %v786, %v983
        %v1032 = vadd.f32 %v787, %v984
        %v1033 = vadd.f32 %v788, %v985
        %v1034 = vadd.f32 %v789, %v986
        %v1035 = vadd.f32 %v790, %v987
        %v1036 = vadd.f32 %v791, %v988
        %v1037 = vadd.f32 %v792, %v989
        %v1038 = vadd.f32 %v793, %v990
        %v1039 = vadd.f32 %v794, %v991
        %v1040 = vadd.f32 %v795, %v992
        %v1041 = vadd.f32 %v796, %v993
        %v1042 = vadd.f32 %v797, %v994
        %v1043 = vadd.f32 %v798, %v995
        %v1044 = vadd.f32 %v799, %v996
        %v1045 = vadd.f32 %v800, %v997
        %v1046 = vadd.f32 %v801, %v998
        %v1047 = vadd.f32 %v802, %v999
        %v1048 = vadd.f32 %v803, %v1000
        %s1049 = scalar_lea.vmem [#allocation2], 24
        %v1050 = vld [vmem:[%s1049] sm:$0xf]
        %v1051 = vld [vmem:[%s1049 + $0x4] sm:$0xf]
        %v1052 = vld [vmem:[%s1049 + $0x8] sm:$0xf]
        %v1053 = vld [vmem:[%s1049 + $0xc] sm:$0xf]
        %v1054 = vld [vmem:[%s1049 + $0x10] sm:$0xf]
        %v1055 = vld [vmem:[%s1049 + $0x14] sm:$0xf]
        %v1056 = vld [vmem:[%s1049 + $0x18] sm:$0xf]
        %v1057 = vld [vmem:[%s1049 + $0x1c] sm:$0xf]
        %v1058 = vld [vmem:[%s1049 + $0x20] sm:$0xf]
        %v1059 = vld [vmem:[%s1049 + $0x24] sm:$0xf]
        %v1060 = vld [vmem:[%s1049 + $0x28] sm:$0xf]
        %v1061 = vld [vmem:[%s1049 + $0x2c] sm:$0xf]
        %v1062 = vld [vmem:[%s1049 + $0x30] sm:$0xf]
        %v1063 = vld [vmem:[%s1049 + $0x34] sm:$0xf]
        %v1064 = vld [vmem:[%s1049 + $0x38] sm:$0xf]
        %v1065 = vld [vmem:[%s1049 + $0x3c] sm:$0xf]
        %v1066 = vld [vmem:[%s1049 + $0x40] sm:$0xf]
        %v1067 = vld [vmem:[%s1049 + $0x44] sm:$0xf]
        %v1068 = vld [vmem:[%s1049 + $0x48] sm:$0xf]
        %v1069 = vld [vmem:[%s1049 + $0x4c] sm:$0xf]
        %v1070 = vld [vmem:[%s1049 + $0x50] sm:$0xf]
        %v1071 = vld [vmem:[%s1049 + $0x54] sm:$0xf]
        %v1072 = vld [vmem:[%s1049 + $0x58] sm:$0xf]
        %v1073 = vld [vmem:[%s1049 + $0x5c] sm:$0xf]
        %v1074 = vld [vmem:[%s1049 + $0x60] sm:$0xf]
        %v1075 = vld [vmem:[%s1049 + $0x64] sm:$0xf]
        %v1076 = vld [vmem:[%s1049 + $0x68] sm:$0xf]
        %v1077 = vld [vmem:[%s1049 + $0x6c] sm:$0xf]
        %v1078 = vld [vmem:[%s1049 + $0x70] sm:$0xf]
        %v1079 = vld [vmem:[%s1049 + $0x74] sm:$0xf]
        %v1080 = vld [vmem:[%s1049 + $0x78] sm:$0xf]
        %v1081 = vld [vmem:[%s1049 + $0x7c] sm:$0xf]
        %v1082 = vld [vmem:[%s1049 + $0x80] sm:$0xf]
        %v1083 = vld [vmem:[%s1049 + $0x84] sm:$0xf]
        %v1084 = vld [vmem:[%s1049 + $0x88] sm:$0xf]
        %v1085 = vld [vmem:[%s1049 + $0x8c] sm:$0xf]
        %v1086 = vld [vmem:[%s1049 + $0x90] sm:$0xf]
        %v1087 = vld [vmem:[%s1049 + $0x94] sm:$0xf]
        %v1088 = vld [vmem:[%s1049 + $0x98] sm:$0xf]
        %v1089 = vld [vmem:[%s1049 + $0x9c] sm:$0xf]
        %v1090 = vld [vmem:[%s1049 + $0xa0] sm:$0xf]
        %v1091 = vld [vmem:[%s1049 + $0xa4] sm:$0xf]
        %v1092 = vld [vmem:[%s1049 + $0xa8] sm:$0xf]
        %v1093 = vld [vmem:[%s1049 + $0xac] sm:$0xf]
        %v1094 = vld [vmem:[%s1049 + $0xb0] sm:$0xf]
        %v1095 = vld [vmem:[%s1049 + $0xb4] sm:$0xf]
        %v1096 = vld [vmem:[%s1049 + $0xb8] sm:$0xf]
        %v1097 = vld [vmem:[%s1049 + $0xbc] sm:$0xf]
        %v1098 = vld [vmem:[%s1049 + $0xc0] sm:$0xf]
        %v1099 = vld [vmem:[%s1049 + $0xc4] sm:$0xf]
        %v1100 = vld [vmem:[%s1049 + $0xc8] sm:$0xf]
        %v1101 = vld [vmem:[%s1049 + $0xcc] sm:$0xf]
        %v1102 = vld [vmem:[%s1049 + $0xd0] sm:$0xf]
        %v1103 = vld [vmem:[%s1049 + $0xd4] sm:$0xf]
        %v1104 = vld [vmem:[%s1049 + $0xd8] sm:$0xf]
        %v1105 = vld [vmem:[%s1049 + $0xdc] sm:$0xf]
        %v1106 = vld [vmem:[%s1049 + $0xe0] sm:$0xf]
        %v1107 = vld [vmem:[%s1049 + $0xe4] sm:$0xf]
        %v1108 = vld [vmem:[%s1049 + $0xe8] sm:$0xf]
        %v1109 = vld [vmem:[%s1049 + $0xec] sm:$0xf]
        %v1110 = vld [vmem:[%s1049 + $0xf0] sm:$0xf]
        %v1111 = vld [vmem:[%s1049 + $0xf4] sm:$0xf]
        %v1112 = vld [vmem:[%s1049 + $0xf8] sm:$0xf]
        %v1113 = vld [vmem:[%s1049 + $0xfc] sm:$0xf]
        %v1114 = vld [vmem:[%s1049 + $0x100] sm:$0xf]
        %v1115 = vld [vmem:[%s1049 + $0x104] sm:$0xf]
        %v1116 = vld [vmem:[%s1049 + $0x108] sm:$0xf]
        %v1117 = vld [vmem:[%s1049 + $0x10c] sm:$0xf]
        %v1118 = vld [vmem:[%s1049 + $0x110] sm:$0xf]
        %v1119 = vld [vmem:[%s1049 + $0x114] sm:$0xf]
        %v1120 = vld [vmem:[%s1049 + $0x118] sm:$0xf]
        %v1121 = vld [vmem:[%s1049 + $0x11c] sm:$0xf]
        %v1122 = vunpack.c.l.bf16 %v1050
        %v1123 = vunpack.c.l.bf16 %v1051
        %v1124 = vunpack.c.l.bf16 %v1052
        %v1125 = vunpack.c.l.bf16 %v1053
        %v1126 = vunpack.c.l.bf16 %v1054
        %v1127 = vunpack.c.l.bf16 %v1055
        %v1128 = vunpack.c.l.bf16 %v1056
        %v1129 = vunpack.c.l.bf16 %v1057
        %v1130 = vunpack.c.l.bf16 %v1058
        %v1131 = vunpack.c.l.bf16 %v1059
        %v1132 = vunpack.c.l.bf16 %v1060
        %v1133 = vunpack.c.l.bf16 %v1061
        %v1134 = vunpack.c.l.bf16 %v1062
        %v1135 = vunpack.c.l.bf16 %v1063
        %v1136 = vunpack.c.l.bf16 %v1064
        %v1137 = vunpack.c.l.bf16 %v1065
        %v1138 = vunpack.c.l.bf16 %v1066
        %v1139 = vunpack.c.l.bf16 %v1067
        %v1140 = vunpack.c.l.bf16 %v1068
        %v1141 = vunpack.c.l.bf16 %v1069
        %v1142 = vunpack.c.l.bf16 %v1070
        %v1143 = vunpack.c.l.bf16 %v1071
        %v1144 = vunpack.c.l.bf16 %v1072
        %v1145 = vunpack.c.l.bf16 %v1073
        %v1146 = vunpack.c.l.bf16 %v1074
        %v1147 = vunpack.c.l.bf16 %v1075
        %v1148 = vunpack.c.l.bf16 %v1076
        %v1149 = vunpack.c.l.bf16 %v1077
        %v1150 = vunpack.c.l.bf16 %v1078
        %v1151 = vunpack.c.l.bf16 %v1079
        %v1152 = vunpack.c.l.bf16 %v1080
        %v1153 = vunpack.c.l.bf16 %v1081
        %v1154 = vunpack.c.l.bf16 %v1082
        %v1155 = vunpack.c.l.bf16 %v1083
        %v1156 = vunpack.c.l.bf16 %v1084
        %v1157 = vunpack.c.l.bf16 %v1085
        %v1158 = vunpack.c.l.bf16 %v1086
        %v1159 = vunpack.c.l.bf16 %v1087
        %v1160 = vunpack.c.l.bf16 %v1088
        %v1161 = vunpack.c.l.bf16 %v1089
        %v1162 = vunpack.c.l.bf16 %v1090
        %v1163 = vunpack.c.l.bf16 %v1091
        %v1164 = vunpack.c.l.bf16 %v1092
        %v1165 = vunpack.c.l.bf16 %v1093
        %v1166 = vunpack.c.l.bf16 %v1094
        %v1167 = vunpack.c.l.bf16 %v1095
        %v1168 = vunpack.c.l.bf16 %v1096
        %v1169 = vunpack.c.l.bf16 %v1097
        %v1170 = vunpack.c.l.bf16 %v1098
        %v1171 = vunpack.c.l.bf16 %v1099
        %v1172 = vunpack.c.l.bf16 %v1100
        %v1173 = vunpack.c.l.bf16 %v1101
        %v1174 = vunpack.c.l.bf16 %v1102
        %v1175 = vunpack.c.l.bf16 %v1103
        %v1176 = vunpack.c.l.bf16 %v1104
        %v1177 = vunpack.c.l.bf16 %v1105
        %v1178 = vunpack.c.l.bf16 %v1106
        %v1179 = vunpack.c.l.bf16 %v1107
        %v1180 = vunpack.c.l.bf16 %v1108
        %v1181 = vunpack.c.l.bf16 %v1109
        %v1182 = vunpack.c.l.bf16 %v1110
        %v1183 = vunpack.c.l.bf16 %v1111
        %v1184 = vunpack.c.l.bf16 %v1112
        %v1185 = vunpack.c.l.bf16 %v1113
        %v1186 = vunpack.c.l.bf16 %v1114
        %v1187 = vunpack.c.l.bf16 %v1115
        %v1188 = vunpack.c.l.bf16 %v1116
        %v1189 = vunpack.c.l.bf16 %v1117
        %v1190 = vunpack.c.l.bf16 %v1118
        %v1191 = vunpack.c.l.bf16 %v1119
        %v1192 = vunpack.c.l.bf16 %v1120
        %v1193 = vunpack.c.l.bf16 %v1121
        %v1194 = vlaneseq
        %v1195 = vshrl.u32 %v1194, 7
        %v1196 = vsub.s32 6, %v1195
        %v1197 = vrot.slane %v554, %v1196
        %v1198 = vmul.f32 %v1122, %v1197
        %v1199 = vmul.f32 %v1123, %v1197
        %v1200 = vmul.f32 %v1125, %v1197
        %v1201 = vmul.f32 %v1126, %v1197
        %v1202 = vmul.f32 %v1128, %v1197
        %v1203 = vmul.f32 %v1129, %v1197
        %v1204 = vmul.f32 %v1131, %v1197
        %v1205 = vmul.f32 %v1132, %v1197
        %v1206 = vmul.f32 %v1134, %v1197
        %v1207 = vmul.f32 %v1135, %v1197
        %v1208 = vmul.f32 %v1137, %v1197
        %v1209 = vmul.f32 %v1138, %v1197
        %v1210 = vmul.f32 %v1140, %v1197
        %v1211 = vmul.f32 %v1141, %v1197
        %v1212 = vmul.f32 %v1143, %v1197
        %v1213 = vmul.f32 %v1144, %v1197
        %v1214 = vmul.f32 %v1146, %v1197
        %v1215 = vmul.f32 %v1147, %v1197
        %v1216 = vmul.f32 %v1149, %v1197
        %v1217 = vmul.f32 %v1150, %v1197
        %v1218 = vmul.f32 %v1152, %v1197
        %v1219 = vmul.f32 %v1153, %v1197
        %v1220 = vmul.f32 %v1155, %v1197
        %v1221 = vmul.f32 %v1156, %v1197
        %v1222 = vmul.f32 %v1158, %v1197
        %v1223 = vmul.f32 %v1159, %v1197
        %v1224 = vmul.f32 %v1161, %v1197
        %v1225 = vmul.f32 %v1162, %v1197
        %v1226 = vmul.f32 %v1164, %v1197
        %v1227 = vmul.f32 %v1165, %v1197
        %v1228 = vmul.f32 %v1167, %v1197
        %v1229 = vmul.f32 %v1168, %v1197
        %v1230 = vmul.f32 %v1170, %v1197
        %v1231 = vmul.f32 %v1171, %v1197
        %v1232 = vmul.f32 %v1173, %v1197
        %v1233 = vmul.f32 %v1174, %v1197
        %v1234 = vmul.f32 %v1176, %v1197
        %v1235 = vmul.f32 %v1177, %v1197
        %v1236 = vmul.f32 %v1179, %v1197
        %v1237 = vmul.f32 %v1180, %v1197
        %v1238 = vmul.f32 %v1182, %v1197
        %v1239 = vmul.f32 %v1183, %v1197
        %v1240 = vmul.f32 %v1185, %v1197
        %v1241 = vmul.f32 %v1186, %v1197
        %v1242 = vmul.f32 %v1188, %v1197
        %v1243 = vmul.f32 %v1189, %v1197
        %v1244 = vmul.f32 %v1191, %v1197
        %v1245 = vmul.f32 %v1192, %v1197
        %v1246 = vadd.f32 %v1001, %v1198
        %v1247 = vadd.f32 %v1002, %v1199
        %v1248 = vadd.f32 %v1003, %v1200
        %v1249 = vadd.f32 %v1004, %v1201
        %v1250 = vadd.f32 %v1005, %v1202
        %v1251 = vadd.f32 %v1006, %v1203
        %v1252 = vadd.f32 %v1007, %v1204
        %v1253 = vadd.f32 %v1008, %v1205
        %v1254 = vadd.f32 %v1009, %v1206
        %v1255 = vadd.f32 %v1010, %v1207
        %v1256 = vadd.f32 %v1011, %v1208
        %v1257 = vadd.f32 %v1012, %v1209
        %v1258 = vadd.f32 %v1013, %v1210
        %v1259 = vadd.f32 %v1014, %v1211
        %v1260 = vadd.f32 %v1015, %v1212
        %v1261 = vadd.f32 %v1016, %v1213
        %v1262 = vadd.f32 %v1017, %v1214
        %v1263 = vadd.f32 %v1018, %v1215
        %v1264 = vadd.f32 %v1019, %v1216
        %v1265 = vadd.f32 %v1020, %v1217
        %v1266 = vadd.f32 %v1021, %v1218
        %v1267 = vadd.f32 %v1022, %v1219
        %v1268 = vadd.f32 %v1023, %v1220
        %v1269 = vadd.f32 %v1024, %v1221
        %v1270 = vadd.f32 %v1025, %v1222
        %v1271 = vadd.f32 %v1026, %v1223
        %v1272 = vadd.f32 %v1027, %v1224
        %v1273 = vadd.f32 %v1028, %v1225
        %v1274 = vadd.f32 %v1029, %v1226
        %v1275 = vadd.f32 %v1030, %v1227
        %v1276 = vadd.f32 %v1031, %v1228
        %v1277 = vadd.f32 %v1032, %v1229
        %v1278 = vadd.f32 %v1033, %v1230
        %v1279 = vadd.f32 %v1034, %v1231
        %v1280 = vadd.f32 %v1035, %v1232
        %v1281 = vadd.f32 %v1036, %v1233
        %v1282 = vadd.f32 %v1037, %v1234
        %v1283 = vadd.f32 %v1038, %v1235
        %v1284 = vadd.f32 %v1039, %v1236
        %v1285 = vadd.f32 %v1040, %v1237
        %v1286 = vadd.f32 %v1041, %v1238
        %v1287 = vadd.f32 %v1042, %v1239
        %v1288 = vadd.f32 %v1043, %v1240
        %v1289 = vadd.f32 %v1044, %v1241
        %v1290 = vadd.f32 %v1045, %v1242
        %v1291 = vadd.f32 %v1046, %v1243
        %v1292 = vadd.f32 %v1047, %v1244
        %v1293 = vadd.f32 %v1048, %v1245
        %s1294 = scalar_lea.vmem [#allocation2], 36
        %v1295 = vld [vmem:[%s1294] sm:$0xf]
        %v1296 = vld [vmem:[%s1294 + $0x4] sm:$0xf]
        %v1297 = vld [vmem:[%s1294 + $0x8] sm:$0xf]
        %v1298 = vld [vmem:[%s1294 + $0xc] sm:$0xf]
        %v1299 = vld [vmem:[%s1294 + $0x10] sm:$0xf]
        %v1300 = vld [vmem:[%s1294 + $0x14] sm:$0xf]
        %v1301 = vld [vmem:[%s1294 + $0x18] sm:$0xf]
        %v1302 = vld [vmem:[%s1294 + $0x1c] sm:$0xf]
        %v1303 = vld [vmem:[%s1294 + $0x20] sm:$0xf]
        %v1304 = vld [vmem:[%s1294 + $0x24] sm:$0xf]
        %v1305 = vld [vmem:[%s1294 + $0x28] sm:$0xf]
        %v1306 = vld [vmem:[%s1294 + $0x2c] sm:$0xf]
        %v1307 = vld [vmem:[%s1294 + $0x30] sm:$0xf]
        %v1308 = vld [vmem:[%s1294 + $0x34] sm:$0xf]
        %v1309 = vld [vmem:[%s1294 + $0x38] sm:$0xf]
        %v1310 = vld [vmem:[%s1294 + $0x3c] sm:$0xf]
        %v1311 = vld [vmem:[%s1294 + $0x40] sm:$0xf]
        %v1312 = vld [vmem:[%s1294 + $0x44] sm:$0xf]
        %v1313 = vld [vmem:[%s1294 + $0x48] sm:$0xf]
        %v1314 = vld [vmem:[%s1294 + $0x4c] sm:$0xf]
        %v1315 = vld [vmem:[%s1294 + $0x50] sm:$0xf]
        %v1316 = vld [vmem:[%s1294 + $0x54] sm:$0xf]
        %v1317 = vld [vmem:[%s1294 + $0x58] sm:$0xf]
        %v1318 = vld [vmem:[%s1294 + $0x5c] sm:$0xf]
        %v1319 = vld [vmem:[%s1294 + $0x60] sm:$0xf]
        %v1320 = vld [vmem:[%s1294 + $0x64] sm:$0xf]
        %v1321 = vld [vmem:[%s1294 + $0x68] sm:$0xf]
        %v1322 = vld [vmem:[%s1294 + $0x6c] sm:$0xf]
        %v1323 = vld [vmem:[%s1294 + $0x70] sm:$0xf]
        %v1324 = vld [vmem:[%s1294 + $0x74] sm:$0xf]
        %v1325 = vld [vmem:[%s1294 + $0x78] sm:$0xf]
        %v1326 = vld [vmem:[%s1294 + $0x7c] sm:$0xf]
        %v1327 = vld [vmem:[%s1294 + $0x80] sm:$0xf]
        %v1328 = vld [vmem:[%s1294 + $0x84] sm:$0xf]
        %v1329 = vld [vmem:[%s1294 + $0x88] sm:$0xf]
        %v1330 = vld [vmem:[%s1294 + $0x8c] sm:$0xf]
        %v1331 = vld [vmem:[%s1294 + $0x90] sm:$0xf]
        %v1332 = vld [vmem:[%s1294 + $0x94] sm:$0xf]
        %v1333 = vld [vmem:[%s1294 + $0x98] sm:$0xf]
        %v1334 = vld [vmem:[%s1294 + $0x9c] sm:$0xf]
        %v1335 = vld [vmem:[%s1294 + $0xa0] sm:$0xf]
        %v1336 = vld [vmem:[%s1294 + $0xa4] sm:$0xf]
        %v1337 = vld [vmem:[%s1294 + $0xa8] sm:$0xf]
        %v1338 = vld [vmem:[%s1294 + $0xac] sm:$0xf]
        %v1339 = vld [vmem:[%s1294 + $0xb0] sm:$0xf]
        %v1340 = vld [vmem:[%s1294 + $0xb4] sm:$0xf]
        %v1341 = vld [vmem:[%s1294 + $0xb8] sm:$0xf]
        %v1342 = vld [vmem:[%s1294 + $0xbc] sm:$0xf]
        %v1343 = vld [vmem:[%s1294 + $0xc0] sm:$0xf]
        %v1344 = vld [vmem:[%s1294 + $0xc4] sm:$0xf]
        %v1345 = vld [vmem:[%s1294 + $0xc8] sm:$0xf]
        %v1346 = vld [vmem:[%s1294 + $0xcc] sm:$0xf]
        %v1347 = vld [vmem:[%s1294 + $0xd0] sm:$0xf]
        %v1348 = vld [vmem:[%s1294 + $0xd4] sm:$0xf]
        %v1349 = vld [vmem:[%s1294 + $0xd8] sm:$0xf]
        %v1350 = vld [vmem:[%s1294 + $0xdc] sm:$0xf]
        %v1351 = vld [vmem:[%s1294 + $0xe0] sm:$0xf]
        %v1352 = vld [vmem:[%s1294 + $0xe4] sm:$0xf]
        %v1353 = vld [vmem:[%s1294 + $0xe8] sm:$0xf]
        %v1354 = vld [vmem:[%s1294 + $0xec] sm:$0xf]
        %v1355 = vld [vmem:[%s1294 + $0xf0] sm:$0xf]
        %v1356 = vld [vmem:[%s1294 + $0xf4] sm:$0xf]
        %v1357 = vld [vmem:[%s1294 + $0xf8] sm:$0xf]
        %v1358 = vld [vmem:[%s1294 + $0xfc] sm:$0xf]
        %v1359 = vld [vmem:[%s1294 + $0x100] sm:$0xf]
        %v1360 = vld [vmem:[%s1294 + $0x104] sm:$0xf]
        %v1361 = vld [vmem:[%s1294 + $0x108] sm:$0xf]
        %v1362 = vld [vmem:[%s1294 + $0x10c] sm:$0xf]
        %v1363 = vld [vmem:[%s1294 + $0x110] sm:$0xf]
        %v1364 = vld [vmem:[%s1294 + $0x114] sm:$0xf]
        %v1365 = vld [vmem:[%s1294 + $0x118] sm:$0xf]
        %v1366 = vld [vmem:[%s1294 + $0x11c] sm:$0xf]
        %v1367 = vunpack.c.l.bf16 %v1295
        %v1368 = vunpack.c.l.bf16 %v1296
        %v1369 = vunpack.c.l.bf16 %v1297
        %v1370 = vunpack.c.l.bf16 %v1298
        %v1371 = vunpack.c.l.bf16 %v1299
        %v1372 = vunpack.c.l.bf16 %v1300
        %v1373 = vunpack.c.l.bf16 %v1301
        %v1374 = vunpack.c.l.bf16 %v1302
        %v1375 = vunpack.c.l.bf16 %v1303
        %v1376 = vunpack.c.l.bf16 %v1304
        %v1377 = vunpack.c.l.bf16 %v1305
        %v1378 = vunpack.c.l.bf16 %v1306
        %v1379 = vunpack.c.l.bf16 %v1307
        %v1380 = vunpack.c.l.bf16 %v1308
        %v1381 = vunpack.c.l.bf16 %v1309
        %v1382 = vunpack.c.l.bf16 %v1310
        %v1383 = vunpack.c.l.bf16 %v1311
        %v1384 = vunpack.c.l.bf16 %v1312
        %v1385 = vunpack.c.l.bf16 %v1313
        %v1386 = vunpack.c.l.bf16 %v1314
        %v1387 = vunpack.c.l.bf16 %v1315
        %v1388 = vunpack.c.l.bf16 %v1316
        %v1389 = vunpack.c.l.bf16 %v1317
        %v1390 = vunpack.c.l.bf16 %v1318
        %v1391 = vunpack.c.l.bf16 %v1319
        %v1392 = vunpack.c.l.bf16 %v1320
        %v1393 = vunpack.c.l.bf16 %v1321
        %v1394 = vunpack.c.l.bf16 %v1322
        %v1395 = vunpack.c.l.bf16 %v1323
        %v1396 = vunpack.c.l.bf16 %v1324
        %v1397 = vunpack.c.l.bf16 %v1325
        %v1398 = vunpack.c.l.bf16 %v1326
        %v1399 = vunpack.c.l.bf16 %v1327
        %v1400 = vunpack.c.l.bf16 %v1328
        %v1401 = vunpack.c.l.bf16 %v1329
        %v1402 = vunpack.c.l.bf16 %v1330
        %v1403 = vunpack.c.l.bf16 %v1331
        %v1404 = vunpack.c.l.bf16 %v1332
        %v1405 = vunpack.c.l.bf16 %v1333
        %v1406 = vunpack.c.l.bf16 %v1334
        %v1407 = vunpack.c.l.bf16 %v1335
        %v1408 = vunpack.c.l.bf16 %v1336
        %v1409 = vunpack.c.l.bf16 %v1337
        %v1410 = vunpack.c.l.bf16 %v1338
        %v1411 = vunpack.c.l.bf16 %v1339
        %v1412 = vunpack.c.l.bf16 %v1340
        %v1413 = vunpack.c.l.bf16 %v1341
        %v1414 = vunpack.c.l.bf16 %v1342
        %v1415 = vunpack.c.l.bf16 %v1343
        %v1416 = vunpack.c.l.bf16 %v1344
        %v1417 = vunpack.c.l.bf16 %v1345
        %v1418 = vunpack.c.l.bf16 %v1346
        %v1419 = vunpack.c.l.bf16 %v1347
        %v1420 = vunpack.c.l.bf16 %v1348
        %v1421 = vunpack.c.l.bf16 %v1349
        %v1422 = vunpack.c.l.bf16 %v1350
        %v1423 = vunpack.c.l.bf16 %v1351
        %v1424 = vunpack.c.l.bf16 %v1352
        %v1425 = vunpack.c.l.bf16 %v1353
        %v1426 = vunpack.c.l.bf16 %v1354
        %v1427 = vunpack.c.l.bf16 %v1355
        %v1428 = vunpack.c.l.bf16 %v1356
        %v1429 = vunpack.c.l.bf16 %v1357
        %v1430 = vunpack.c.l.bf16 %v1358
        %v1431 = vunpack.c.l.bf16 %v1359
        %v1432 = vunpack.c.l.bf16 %v1360
        %v1433 = vunpack.c.l.bf16 %v1361
        %v1434 = vunpack.c.l.bf16 %v1362
        %v1435 = vunpack.c.l.bf16 %v1363
        %v1436 = vunpack.c.l.bf16 %v1364
        %v1437 = vunpack.c.l.bf16 %v1365
        %v1438 = vunpack.c.l.bf16 %v1366
        %v1439 = vlaneseq
        %v1440 = vshrl.u32 %v1439, 7
        %v1441 = vsub.s32 5, %v1440
        %v1442 = vrot.slane %v555, %v1441
        %v1443 = vmul.f32 %v1367, %v1442
        %v1444 = vmul.f32 %v1368, %v1442
        %v1445 = vmul.f32 %v1370, %v1442
        %v1446 = vmul.f32 %v1371, %v1442
        %v1447 = vmul.f32 %v1373, %v1442
        %v1448 = vmul.f32 %v1374, %v1442
        %v1449 = vmul.f32 %v1376, %v1442
        %v1450 = vmul.f32 %v1377, %v1442
        %v1451 = vmul.f32 %v1379, %v1442
        %v1452 = vmul.f32 %v1380, %v1442
        %v1453 = vmul.f32 %v1382, %v1442
        %v1454 = vmul.f32 %v1383, %v1442
        %v1455 = vmul.f32 %v1385, %v1442
        %v1456 = vmul.f32 %v1386, %v1442
        %v1457 = vmul.f32 %v1388, %v1442
        %v1458 = vmul.f32 %v1389, %v1442
        %v1459 = vmul.f32 %v1391, %v1442
        %v1460 = vmul.f32 %v1392, %v1442
        %v1461 = vmul.f32 %v1394, %v1442
        %v1462 = vmul.f32 %v1395, %v1442
        %v1463 = vmul.f32 %v1397, %v1442
        %v1464 = vmul.f32 %v1398, %v1442
        %v1465 = vmul.f32 %v1400, %v1442
        %v1466 = vmul.f32 %v1401, %v1442
        %v1467 = vmul.f32 %v1403, %v1442
        %v1468 = vmul.f32 %v1404, %v1442
        %v1469 = vmul.f32 %v1406, %v1442
        %v1470 = vmul.f32 %v1407, %v1442
        %v1471 = vmul.f32 %v1409, %v1442
        %v1472 = vmul.f32 %v1410, %v1442
        %v1473 = vmul.f32 %v1412, %v1442
        %v1474 = vmul.f32 %v1413, %v1442
        %v1475 = vmul.f32 %v1415, %v1442
        %v1476 = vmul.f32 %v1416, %v1442
        %v1477 = vmul.f32 %v1418, %v1442
        %v1478 = vmul.f32 %v1419, %v1442
        %v1479 = vmul.f32 %v1421, %v1442
        %v1480 = vmul.f32 %v1422, %v1442
        %v1481 = vmul.f32 %v1424, %v1442
        %v1482 = vmul.f32 %v1425, %v1442
        %v1483 = vmul.f32 %v1427, %v1442
        %v1484 = vmul.f32 %v1428, %v1442
        %v1485 = vmul.f32 %v1430, %v1442
        %v1486 = vmul.f32 %v1431, %v1442
        %v1487 = vmul.f32 %v1433, %v1442
        %v1488 = vmul.f32 %v1434, %v1442
        %v1489 = vmul.f32 %v1436, %v1442
        %v1490 = vmul.f32 %v1437, %v1442
        %v1491 = vadd.f32 %v1246, %v1443
        %v1492 = vadd.f32 %v1247, %v1444
        %v1493 = vadd.f32 %v1248, %v1445
        %v1494 = vadd.f32 %v1249, %v1446
        %v1495 = vadd.f32 %v1250, %v1447
        %v1496 = vadd.f32 %v1251, %v1448
        %v1497 = vadd.f32 %v1252, %v1449
        %v1498 = vadd.f32 %v1253, %v1450
        %v1499 = vadd.f32 %v1254, %v1451
        %v1500 = vadd.f32 %v1255, %v1452
        %v1501 = vadd.f32 %v1256, %v1453
        %v1502 = vadd.f32 %v1257, %v1454
        %v1503 = vadd.f32 %v1258, %v1455
        %v1504 = vadd.f32 %v1259, %v1456
        %v1505 = vadd.f32 %v1260, %v1457
        %v1506 = vadd.f32 %v1261, %v1458
        %v1507 = vadd.f32 %v1262, %v1459
        %v1508 = vadd.f32 %v1263, %v1460
        %v1509 = vadd.f32 %v1264, %v1461
        %v1510 = vadd.f32 %v1265, %v1462
        %v1511 = vadd.f32 %v1266, %v1463
        %v1512 = vadd.f32 %v1267, %v1464
        %v1513 = vadd.f32 %v1268, %v1465
        %v1514 = vadd.f32 %v1269, %v1466
        %v1515 = vadd.f32 %v1270, %v1467
        %v1516 = vadd.f32 %v1271, %v1468
        %v1517 = vadd.f32 %v1272, %v1469
        %v1518 = vadd.f32 %v1273, %v1470
        %v1519 = vadd.f32 %v1274, %v1471
        %v1520 = vadd.f32 %v1275, %v1472
        %v1521 = vadd.f32 %v1276, %v1473
        %v1522 = vadd.f32 %v1277, %v1474
        %v1523 = vadd.f32 %v1278, %v1475
        %v1524 = vadd.f32 %v1279, %v1476
        %v1525 = vadd.f32 %v1280, %v1477
        %v1526 = vadd.f32 %v1281, %v1478
        %v1527 = vadd.f32 %v1282, %v1479
        %v1528 = vadd.f32 %v1283, %v1480
        %v1529 = vadd.f32 %v1284, %v1481
        %v1530 = vadd.f32 %v1285, %v1482
        %v1531 = vadd.f32 %v1286, %v1483
        %v1532 = vadd.f32 %v1287, %v1484
        %v1533 = vadd.f32 %v1288, %v1485
        %v1534 = vadd.f32 %v1289, %v1486
        %v1535 = vadd.f32 %v1290, %v1487
        %v1536 = vadd.f32 %v1291, %v1488
        %v1537 = vadd.f32 %v1292, %v1489
        %v1538 = vadd.f32 %v1293, %v1490
        %s1539 = scalar_lea.vmem [#allocation2], 48
        %v1540 = vld [vmem:[%s1539] sm:$0xf]
        %v1541 = vld [vmem:[%s1539 + $0x4] sm:$0xf]
        %v1542 = vld [vmem:[%s1539 + $0x8] sm:$0xf]
        %v1543 = vld [vmem:[%s1539 + $0xc] sm:$0xf]
        %v1544 = vld [vmem:[%s1539 + $0x10] sm:$0xf]
        %v1545 = vld [vmem:[%s1539 + $0x14] sm:$0xf]
        %v1546 = vld [vmem:[%s1539 + $0x18] sm:$0xf]
        %v1547 = vld [vmem:[%s1539 + $0x1c] sm:$0xf]
        %v1548 = vld [vmem:[%s1539 + $0x20] sm:$0xf]
        %v1549 = vld [vmem:[%s1539 + $0x24] sm:$0xf]
        %v1550 = vld [vmem:[%s1539 + $0x28] sm:$0xf]
        %v1551 = vld [vmem:[%s1539 + $0x2c] sm:$0xf]
        %v1552 = vld [vmem:[%s1539 + $0x30] sm:$0xf]
        %v1553 = vld [vmem:[%s1539 + $0x34] sm:$0xf]
        %v1554 = vld [vmem:[%s1539 + $0x38] sm:$0xf]
        %v1555 = vld [vmem:[%s1539 + $0x3c] sm:$0xf]
        %v1556 = vld [vmem:[%s1539 + $0x40] sm:$0xf]
        %v1557 = vld [vmem:[%s1539 + $0x44] sm:$0xf]
        %v1558 = vld [vmem:[%s1539 + $0x48] sm:$0xf]
        %v1559 = vld [vmem:[%s1539 + $0x4c] sm:$0xf]
        %v1560 = vld [vmem:[%s1539 + $0x50] sm:$0xf]
        %v1561 = vld [vmem:[%s1539 + $0x54] sm:$0xf]
        %v1562 = vld [vmem:[%s1539 + $0x58] sm:$0xf]
        %v1563 = vld [vmem:[%s1539 + $0x5c] sm:$0xf]
        %v1564 = vld [vmem:[%s1539 + $0x60] sm:$0xf]
        %v1565 = vld [vmem:[%s1539 + $0x64] sm:$0xf]
        %v1566 = vld [vmem:[%s1539 + $0x68] sm:$0xf]
        %v1567 = vld [vmem:[%s1539 + $0x6c] sm:$0xf]
        %v1568 = vld [vmem:[%s1539 + $0x70] sm:$0xf]
        %v1569 = vld [vmem:[%s1539 + $0x74] sm:$0xf]
        %v1570 = vld [vmem:[%s1539 + $0x78] sm:$0xf]
        %v1571 = vld [vmem:[%s1539 + $0x7c] sm:$0xf]
        %v1572 = vld [vmem:[%s1539 + $0x80] sm:$0xf]
        %v1573 = vld [vmem:[%s1539 + $0x84] sm:$0xf]
        %v1574 = vld [vmem:[%s1539 + $0x88] sm:$0xf]
        %v1575 = vld [vmem:[%s1539 + $0x8c] sm:$0xf]
        %v1576 = vld [vmem:[%s1539 + $0x90] sm:$0xf]
        %v1577 = vld [vmem:[%s1539 + $0x94] sm:$0xf]
        %v1578 = vld [vmem:[%s1539 + $0x98] sm:$0xf]
        %v1579 = vld [vmem:[%s1539 + $0x9c] sm:$0xf]
        %v1580 = vld [vmem:[%s1539 + $0xa0] sm:$0xf]
        %v1581 = vld [vmem:[%s1539 + $0xa4] sm:$0xf]
        %v1582 = vld [vmem:[%s1539 + $0xa8] sm:$0xf]
        %v1583 = vld [vmem:[%s1539 + $0xac] sm:$0xf]
        %v1584 = vld [vmem:[%s1539 + $0xb0] sm:$0xf]
        %v1585 = vld [vmem:[%s1539 + $0xb4] sm:$0xf]
        %v1586 = vld [vmem:[%s1539 + $0xb8] sm:$0xf]
        %v1587 = vld [vmem:[%s1539 + $0xbc] sm:$0xf]
        %v1588 = vld [vmem:[%s1539 + $0xc0] sm:$0xf]
        %v1589 = vld [vmem:[%s1539 + $0xc4] sm:$0xf]
        %v1590 = vld [vmem:[%s1539 + $0xc8] sm:$0xf]
        %v1591 = vld [vmem:[%s1539 + $0xcc] sm:$0xf]
        %v1592 = vld [vmem:[%s1539 + $0xd0] sm:$0xf]
        %v1593 = vld [vmem:[%s1539 + $0xd4] sm:$0xf]
        %v1594 = vld [vmem:[%s1539 + $0xd8] sm:$0xf]
        %v1595 = vld [vmem:[%s1539 + $0xdc] sm:$0xf]
        %v1596 = vld [vmem:[%s1539 + $0xe0] sm:$0xf]
        %v1597 = vld [vmem:[%s1539 + $0xe4] sm:$0xf]
        %v1598 = vld [vmem:[%s1539 + $0xe8] sm:$0xf]
        %v1599 = vld [vmem:[%s1539 + $0xec] sm:$0xf]
        %v1600 = vld [vmem:[%s1539 + $0xf0] sm:$0xf]
        %v1601 = vld [vmem:[%s1539 + $0xf4] sm:$0xf]
        %v1602 = vld [vmem:[%s1539 + $0xf8] sm:$0xf]
        %v1603 = vld [vmem:[%s1539 + $0xfc] sm:$0xf]
        %v1604 = vld [vmem:[%s1539 + $0x100] sm:$0xf]
        %v1605 = vld [vmem:[%s1539 + $0x104] sm:$0xf]
        %v1606 = vld [vmem:[%s1539 + $0x108] sm:$0xf]
        %v1607 = vld [vmem:[%s1539 + $0x10c] sm:$0xf]
        %v1608 = vld [vmem:[%s1539 + $0x110] sm:$0xf]
        %v1609 = vld [vmem:[%s1539 + $0x114] sm:$0xf]
        %v1610 = vld [vmem:[%s1539 + $0x118] sm:$0xf]
        %v1611 = vld [vmem:[%s1539 + $0x11c] sm:$0xf]
        %v1612 = vunpack.c.l.bf16 %v1540
        %v1613 = vunpack.c.l.bf16 %v1541
        %v1614 = vunpack.c.l.bf16 %v1542
        %v1615 = vunpack.c.l.bf16 %v1543
        %v1616 = vunpack.c.l.bf16 %v1544
        %v1617 = vunpack.c.l.bf16 %v1545
        %v1618 = vunpack.c.l.bf16 %v1546
        %v1619 = vunpack.c.l.bf16 %v1547
        %v1620 = vunpack.c.l.bf16 %v1548
        %v1621 = vunpack.c.l.bf16 %v1549
        %v1622 = vunpack.c.l.bf16 %v1550
        %v1623 = vunpack.c.l.bf16 %v1551
        %v1624 = vunpack.c.l.bf16 %v1552
        %v1625 = vunpack.c.l.bf16 %v1553
        %v1626 = vunpack.c.l.bf16 %v1554
        %v1627 = vunpack.c.l.bf16 %v1555
        %v1628 = vunpack.c.l.bf16 %v1556
        %v1629 = vunpack.c.l.bf16 %v1557
        %v1630 = vunpack.c.l.bf16 %v1558
        %v1631 = vunpack.c.l.bf16 %v1559
        %v1632 = vunpack.c.l.bf16 %v1560
        %v1633 = vunpack.c.l.bf16 %v1561
        %v1634 = vunpack.c.l.bf16 %v1562
        %v1635 = vunpack.c.l.bf16 %v1563
        %v1636 = vunpack.c.l.bf16 %v1564
        %v1637 = vunpack.c.l.bf16 %v1565
        %v1638 = vunpack.c.l.bf16 %v1566
        %v1639 = vunpack.c.l.bf16 %v1567
        %v1640 = vunpack.c.l.bf16 %v1568
        %v1641 = vunpack.c.l.bf16 %v1569
        %v1642 = vunpack.c.l.bf16 %v1570
        %v1643 = vunpack.c.l.bf16 %v1571
        %v1644 = vunpack.c.l.bf16 %v1572
        %v1645 = vunpack.c.l.bf16 %v1573
        %v1646 = vunpack.c.l.bf16 %v1574
        %v1647 = vunpack.c.l.bf16 %v1575
        %v1648 = vunpack.c.l.bf16 %v1576
        %v1649 = vunpack.c.l.bf16 %v1577
        %v1650 = vunpack.c.l.bf16 %v1578
        %v1651 = vunpack.c.l.bf16 %v1579
        %v1652 = vunpack.c.l.bf16 %v1580
        %v1653 = vunpack.c.l.bf16 %v1581
        %v1654 = vunpack.c.l.bf16 %v1582
        %v1655 = vunpack.c.l.bf16 %v1583
        %v1656 = vunpack.c.l.bf16 %v1584
        %v1657 = vunpack.c.l.bf16 %v1585
        %v1658 = vunpack.c.l.bf16 %v1586
        %v1659 = vunpack.c.l.bf16 %v1587
        %v1660 = vunpack.c.l.bf16 %v1588
        %v1661 = vunpack.c.l.bf16 %v1589
        %v1662 = vunpack.c.l.bf16 %v1590
        %v1663 = vunpack.c.l.bf16 %v1591
        %v1664 = vunpack.c.l.bf16 %v1592
        %v1665 = vunpack.c.l.bf16 %v1593
        %v1666 = vunpack.c.l.bf16 %v1594
        %v1667 = vunpack.c.l.bf16 %v1595
        %v1668 = vunpack.c.l.bf16 %v1596
        %v1669 = vunpack.c.l.bf16 %v1597
        %v1670 = vunpack.c.l.bf16 %v1598
        %v1671 = vunpack.c.l.bf16 %v1599
        %v1672 = vunpack.c.l.bf16 %v1600
        %v1673 = vunpack.c.l.bf16 %v1601
        %v1674 = vunpack.c.l.bf16 %v1602
        %v1675 = vunpack.c.l.bf16 %v1603
        %v1676 = vunpack.c.l.bf16 %v1604
        %v1677 = vunpack.c.l.bf16 %v1605
        %v1678 = vunpack.c.l.bf16 %v1606
        %v1679 = vunpack.c.l.bf16 %v1607
        %v1680 = vunpack.c.l.bf16 %v1608
        %v1681 = vunpack.c.l.bf16 %v1609
        %v1682 = vunpack.c.l.bf16 %v1610
        %v1683 = vunpack.c.l.bf16 %v1611
        %v1684 = vlaneseq
        %v1685 = vshrl.u32 %v1684, 7
        %v1686 = vsub.s32 4, %v1685
        %v1687 = vrot.slane %v556, %v1686
        %v1688 = vmul.f32 %v1612, %v1687
        %v1689 = vmul.f32 %v1613, %v1687
        %v1690 = vmul.f32 %v1615, %v1687
        %v1691 = vmul.f32 %v1616, %v1687
        %v1692 = vmul.f32 %v1618, %v1687
        %v1693 = vmul.f32 %v1619, %v1687
        %v1694 = vmul.f32 %v1621, %v1687
        %v1695 = vmul.f32 %v1622, %v1687
        %v1696 = vmul.f32 %v1624, %v1687
        %v1697 = vmul.f32 %v1625, %v1687
        %v1698 = vmul.f32 %v1627, %v1687
        %v1699 = vmul.f32 %v1628, %v1687
        %v1700 = vmul.f32 %v1630, %v1687
        %v1701 = vmul.f32 %v1631, %v1687
        %v1702 = vmul.f32 %v1633, %v1687
        %v1703 = vmul.f32 %v1634, %v1687
        %v1704 = vmul.f32 %v1636, %v1687
        %v1705 = vmul.f32 %v1637, %v1687
        %v1706 = vmul.f32 %v1639, %v1687
        %v1707 = vmul.f32 %v1640, %v1687
        %v1708 = vmul.f32 %v1642, %v1687
        %v1709 = vmul.f32 %v1643, %v1687
        %v1710 = vmul.f32 %v1645, %v1687
        %v1711 = vmul.f32 %v1646, %v1687
        %v1712 = vmul.f32 %v1648, %v1687
        %v1713 = vmul.f32 %v1649, %v1687
        %v1714 = vmul.f32 %v1651, %v1687
        %v1715 = vmul.f32 %v1652, %v1687
        %v1716 = vmul.f32 %v1654, %v1687
        %v1717 = vmul.f32 %v1655, %v1687
        %v1718 = vmul.f32 %v1657, %v1687
        %v1719 = vmul.f32 %v1658, %v1687
        %v1720 = vmul.f32 %v1660, %v1687
        %v1721 = vmul.f32 %v1661, %v1687
        %v1722 = vmul.f32 %v1663, %v1687
        %v1723 = vmul.f32 %v1664, %v1687
        %v1724 = vmul.f32 %v1666, %v1687
        %v1725 = vmul.f32 %v1667, %v1687
        %v1726 = vmul.f32 %v1669, %v1687
        %v1727 = vmul.f32 %v1670, %v1687
        %v1728 = vmul.f32 %v1672, %v1687
        %v1729 = vmul.f32 %v1673, %v1687
        %v1730 = vmul.f32 %v1675, %v1687
        %v1731 = vmul.f32 %v1676, %v1687
        %v1732 = vmul.f32 %v1678, %v1687
        %v1733 = vmul.f32 %v1679, %v1687
        %v1734 = vmul.f32 %v1681, %v1687
        %v1735 = vmul.f32 %v1682, %v1687
        %v1736 = vadd.f32 %v1491, %v1688
        %v1737 = vadd.f32 %v1492, %v1689
        %v1738 = vadd.f32 %v1493, %v1690
        %v1739 = vadd.f32 %v1494, %v1691
        %v1740 = vadd.f32 %v1495, %v1692
        %v1741 = vadd.f32 %v1496, %v1693
        %v1742 = vadd.f32 %v1497, %v1694
        %v1743 = vadd.f32 %v1498, %v1695
        %v1744 = vadd.f32 %v1499, %v1696
        %v1745 = vadd.f32 %v1500, %v1697
        %v1746 = vadd.f32 %v1501, %v1698
        %v1747 = vadd.f32 %v1502, %v1699
        %v1748 = vadd.f32 %v1503, %v1700
        %v1749 = vadd.f32 %v1504, %v1701
        %v1750 = vadd.f32 %v1505, %v1702
        %v1751 = vadd.f32 %v1506, %v1703
        %v1752 = vadd.f32 %v1507, %v1704
        %v1753 = vadd.f32 %v1508, %v1705
        %v1754 = vadd.f32 %v1509, %v1706
        %v1755 = vadd.f32 %v1510, %v1707
        %v1756 = vadd.f32 %v1511, %v1708
        %v1757 = vadd.f32 %v1512, %v1709
        %v1758 = vadd.f32 %v1513, %v1710
        %v1759 = vadd.f32 %v1514, %v1711
        %v1760 = vadd.f32 %v1515, %v1712
        %v1761 = vadd.f32 %v1516, %v1713
        %v1762 = vadd.f32 %v1517, %v1714
        %v1763 = vadd.f32 %v1518, %v1715
        %v1764 = vadd.f32 %v1519, %v1716
        %v1765 = vadd.f32 %v1520, %v1717
        %v1766 = vadd.f32 %v1521, %v1718
        %v1767 = vadd.f32 %v1522, %v1719
        %v1768 = vadd.f32 %v1523, %v1720
        %v1769 = vadd.f32 %v1524, %v1721
        %v1770 = vadd.f32 %v1525, %v1722
        %v1771 = vadd.f32 %v1526, %v1723
        %v1772 = vadd.f32 %v1527, %v1724
        %v1773 = vadd.f32 %v1528, %v1725
        %v1774 = vadd.f32 %v1529, %v1726
        %v1775 = vadd.f32 %v1530, %v1727
        %v1776 = vadd.f32 %v1531, %v1728
        %v1777 = vadd.f32 %v1532, %v1729
        %v1778 = vadd.f32 %v1533, %v1730
        %v1779 = vadd.f32 %v1534, %v1731
        %v1780 = vadd.f32 %v1535, %v1732
        %v1781 = vadd.f32 %v1536, %v1733
        %v1782 = vadd.f32 %v1537, %v1734
        %v1783 = vadd.f32 %v1538, %v1735
        %s1784 = scalar_lea.vmem [#allocation2], 60
        %v1785 = vld [vmem:[%s1784] sm:$0xf]
        %v1786 = vld [vmem:[%s1784 + $0x4] sm:$0xf]
        %v1787 = vld [vmem:[%s1784 + $0x8] sm:$0xf]
        %v1788 = vld [vmem:[%s1784 + $0xc] sm:$0xf]
        %v1789 = vld [vmem:[%s1784 + $0x10] sm:$0xf]
        %v1790 = vld [vmem:[%s1784 + $0x14] sm:$0xf]
        %v1791 = vld [vmem:[%s1784 + $0x18] sm:$0xf]
        %v1792 = vld [vmem:[%s1784 + $0x1c] sm:$0xf]
        %v1793 = vld [vmem:[%s1784 + $0x20] sm:$0xf]
        %v1794 = vld [vmem:[%s1784 + $0x24] sm:$0xf]
        %v1795 = vld [vmem:[%s1784 + $0x28] sm:$0xf]
        %v1796 = vld [vmem:[%s1784 + $0x2c] sm:$0xf]
        %v1797 = vld [vmem:[%s1784 + $0x30] sm:$0xf]
        %v1798 = vld [vmem:[%s1784 + $0x34] sm:$0xf]
        %v1799 = vld [vmem:[%s1784 + $0x38] sm:$0xf]
        %v1800 = vld [vmem:[%s1784 + $0x3c] sm:$0xf]
        %v1801 = vld [vmem:[%s1784 + $0x40] sm:$0xf]
        %v1802 = vld [vmem:[%s1784 + $0x44] sm:$0xf]
        %v1803 = vld [vmem:[%s1784 + $0x48] sm:$0xf]
        %v1804 = vld [vmem:[%s1784 + $0x4c] sm:$0xf]
        %v1805 = vld [vmem:[%s1784 + $0x50] sm:$0xf]
        %v1806 = vld [vmem:[%s1784 + $0x54] sm:$0xf]
        %v1807 = vld [vmem:[%s1784 + $0x58] sm:$0xf]
        %v1808 = vld [vmem:[%s1784 + $0x5c] sm:$0xf]
        %v1809 = vld [vmem:[%s1784 + $0x60] sm:$0xf]
        %v1810 = vld [vmem:[%s1784 + $0x64] sm:$0xf]
        %v1811 = vld [vmem:[%s1784 + $0x68] sm:$0xf]
        %v1812 = vld [vmem:[%s1784 + $0x6c] sm:$0xf]
        %v1813 = vld [vmem:[%s1784 + $0x70] sm:$0xf]
        %v1814 = vld [vmem:[%s1784 + $0x74] sm:$0xf]
        %v1815 = vld [vmem:[%s1784 + $0x78] sm:$0xf]
        %v1816 = vld [vmem:[%s1784 + $0x7c] sm:$0xf]
        %v1817 = vld [vmem:[%s1784 + $0x80] sm:$0xf]
        %v1818 = vld [vmem:[%s1784 + $0x84] sm:$0xf]
        %v1819 = vld [vmem:[%s1784 + $0x88] sm:$0xf]
        %v1820 = vld [vmem:[%s1784 + $0x8c] sm:$0xf]
        %v1821 = vld [vmem:[%s1784 + $0x90] sm:$0xf]
        %v1822 = vld [vmem:[%s1784 + $0x94] sm:$0xf]
        %v1823 = vld [vmem:[%s1784 + $0x98] sm:$0xf]
        %v1824 = vld [vmem:[%s1784 + $0x9c] sm:$0xf]
        %v1825 = vld [vmem:[%s1784 + $0xa0] sm:$0xf]
        %v1826 = vld [vmem:[%s1784 + $0xa4] sm:$0xf]
        %v1827 = vld [vmem:[%s1784 + $0xa8] sm:$0xf]
        %v1828 = vld [vmem:[%s1784 + $0xac] sm:$0xf]
        %v1829 = vld [vmem:[%s1784 + $0xb0] sm:$0xf]
        %v1830 = vld [vmem:[%s1784 + $0xb4] sm:$0xf]
        %v1831 = vld [vmem:[%s1784 + $0xb8] sm:$0xf]
        %v1832 = vld [vmem:[%s1784 + $0xbc] sm:$0xf]
        %v1833 = vld [vmem:[%s1784 + $0xc0] sm:$0xf]
        %v1834 = vld [vmem:[%s1784 + $0xc4] sm:$0xf]
        %v1835 = vld [vmem:[%s1784 + $0xc8] sm:$0xf]
        %v1836 = vld [vmem:[%s1784 + $0xcc] sm:$0xf]
        %v1837 = vld [vmem:[%s1784 + $0xd0] sm:$0xf]
        %v1838 = vld [vmem:[%s1784 + $0xd4] sm:$0xf]
        %v1839 = vld [vmem:[%s1784 + $0xd8] sm:$0xf]
        %v1840 = vld [vmem:[%s1784 + $0xdc] sm:$0xf]
        %v1841 = vld [vmem:[%s1784 + $0xe0] sm:$0xf]
        %v1842 = vld [vmem:[%s1784 + $0xe4] sm:$0xf]
        %v1843 = vld [vmem:[%s1784 + $0xe8] sm:$0xf]
        %v1844 = vld [vmem:[%s1784 + $0xec] sm:$0xf]
        %v1845 = vld [vmem:[%s1784 + $0xf0] sm:$0xf]
        %v1846 = vld [vmem:[%s1784 + $0xf4] sm:$0xf]
        %v1847 = vld [vmem:[%s1784 + $0xf8] sm:$0xf]
        %v1848 = vld [vmem:[%s1784 + $0xfc] sm:$0xf]
        %v1849 = vld [vmem:[%s1784 + $0x100] sm:$0xf]
        %v1850 = vld [vmem:[%s1784 + $0x104] sm:$0xf]
        %v1851 = vld [vmem:[%s1784 + $0x108] sm:$0xf]
        %v1852 = vld [vmem:[%s1784 + $0x10c] sm:$0xf]
        %v1853 = vld [vmem:[%s1784 + $0x110] sm:$0xf]
        %v1854 = vld [vmem:[%s1784 + $0x114] sm:$0xf]
        %v1855 = vld [vmem:[%s1784 + $0x118] sm:$0xf]
        %v1856 = vld [vmem:[%s1784 + $0x11c] sm:$0xf]
        %v1857 = vunpack.c.l.bf16 %v1785
        %v1858 = vunpack.c.l.bf16 %v1786
        %v1859 = vunpack.c.l.bf16 %v1787
        %v1860 = vunpack.c.l.bf16 %v1788
        %v1861 = vunpack.c.l.bf16 %v1789
        %v1862 = vunpack.c.l.bf16 %v1790
        %v1863 = vunpack.c.l.bf16 %v1791
        %v1864 = vunpack.c.l.bf16 %v1792
        %v1865 = vunpack.c.l.bf16 %v1793
        %v1866 = vunpack.c.l.bf16 %v1794
        %v1867 = vunpack.c.l.bf16 %v1795
        %v1868 = vunpack.c.l.bf16 %v1796
        %v1869 = vunpack.c.l.bf16 %v1797
        %v1870 = vunpack.c.l.bf16 %v1798
        %v1871 = vunpack.c.l.bf16 %v1799
        %v1872 = vunpack.c.l.bf16 %v1800
        %v1873 = vunpack.c.l.bf16 %v1801
        %v1874 = vunpack.c.l.bf16 %v1802
        %v1875 = vunpack.c.l.bf16 %v1803
        %v1876 = vunpack.c.l.bf16 %v1804
        %v1877 = vunpack.c.l.bf16 %v1805
        %v1878 = vunpack.c.l.bf16 %v1806
        %v1879 = vunpack.c.l.bf16 %v1807
        %v1880 = vunpack.c.l.bf16 %v1808
        %v1881 = vunpack.c.l.bf16 %v1809
        %v1882 = vunpack.c.l.bf16 %v1810
        %v1883 = vunpack.c.l.bf16 %v1811
        %v1884 = vunpack.c.l.bf16 %v1812
        %v1885 = vunpack.c.l.bf16 %v1813
        %v1886 = vunpack.c.l.bf16 %v1814
        %v1887 = vunpack.c.l.bf16 %v1815
        %v1888 = vunpack.c.l.bf16 %v1816
        %v1889 = vunpack.c.l.bf16 %v1817
        %v1890 = vunpack.c.l.bf16 %v1818
        %v1891 = vunpack.c.l.bf16 %v1819
        %v1892 = vunpack.c.l.bf16 %v1820
        %v1893 = vunpack.c.l.bf16 %v1821
        %v1894 = vunpack.c.l.bf16 %v1822
        %v1895 = vunpack.c.l.bf16 %v1823
        %v1896 = vunpack.c.l.bf16 %v1824
        %v1897 = vunpack.c.l.bf16 %v1825
        %v1898 = vunpack.c.l.bf16 %v1826
        %v1899 = vunpack.c.l.bf16 %v1827
        %v1900 = vunpack.c.l.bf16 %v1828
        %v1901 = vunpack.c.l.bf16 %v1829
        %v1902 = vunpack.c.l.bf16 %v1830
        %v1903 = vunpack.c.l.bf16 %v1831
        %v1904 = vunpack.c.l.bf16 %v1832
        %v1905 = vunpack.c.l.bf16 %v1833
        %v1906 = vunpack.c.l.bf16 %v1834
        %v1907 = vunpack.c.l.bf16 %v1835
        %v1908 = vunpack.c.l.bf16 %v1836
        %v1909 = vunpack.c.l.bf16 %v1837
        %v1910 = vunpack.c.l.bf16 %v1838
        %v1911 = vunpack.c.l.bf16 %v1839
        %v1912 = vunpack.c.l.bf16 %v1840
        %v1913 = vunpack.c.l.bf16 %v1841
        %v1914 = vunpack.c.l.bf16 %v1842
        %v1915 = vunpack.c.l.bf16 %v1843
        %v1916 = vunpack.c.l.bf16 %v1844
        %v1917 = vunpack.c.l.bf16 %v1845
        %v1918 = vunpack.c.l.bf16 %v1846
        %v1919 = vunpack.c.l.bf16 %v1847
        %v1920 = vunpack.c.l.bf16 %v1848
        %v1921 = vunpack.c.l.bf16 %v1849
        %v1922 = vunpack.c.l.bf16 %v1850
        %v1923 = vunpack.c.l.bf16 %v1851
        %v1924 = vunpack.c.l.bf16 %v1852
        %v1925 = vunpack.c.l.bf16 %v1853
        %v1926 = vunpack.c.l.bf16 %v1854
        %v1927 = vunpack.c.l.bf16 %v1855
        %v1928 = vunpack.c.l.bf16 %v1856
        %v1929 = vlaneseq
        %v1930 = vshrl.u32 %v1929, 7
        %v1931 = vsub.s32 3, %v1930
        %v1932 = vrot.slane %v557, %v1931
        %v1933 = vmul.f32 %v1857, %v1932
        %v1934 = vmul.f32 %v1858, %v1932
        %v1935 = vmul.f32 %v1860, %v1932
        %v1936 = vmul.f32 %v1861, %v1932
        %v1937 = vmul.f32 %v1863, %v1932
        %v1938 = vmul.f32 %v1864, %v1932
        %v1939 = vmul.f32 %v1866, %v1932
        %v1940 = vmul.f32 %v1867, %v1932
        %v1941 = vmul.f32 %v1869, %v1932
        %v1942 = vmul.f32 %v1870, %v1932
        %v1943 = vmul.f32 %v1872, %v1932
        %v1944 = vmul.f32 %v1873, %v1932
        %v1945 = vmul.f32 %v1875, %v1932
        %v1946 = vmul.f32 %v1876, %v1932
        %v1947 = vmul.f32 %v1878, %v1932
        %v1948 = vmul.f32 %v1879, %v1932
        %v1949 = vmul.f32 %v1881, %v1932
        %v1950 = vmul.f32 %v1882, %v1932
        %v1951 = vmul.f32 %v1884, %v1932
        %v1952 = vmul.f32 %v1885, %v1932
        %v1953 = vmul.f32 %v1887, %v1932
        %v1954 = vmul.f32 %v1888, %v1932
        %v1955 = vmul.f32 %v1890, %v1932
        %v1956 = vmul.f32 %v1891, %v1932
        %v1957 = vmul.f32 %v1893, %v1932
        %v1958 = vmul.f32 %v1894, %v1932
        %v1959 = vmul.f32 %v1896, %v1932
        %v1960 = vmul.f32 %v1897, %v1932
        %v1961 = vmul.f32 %v1899, %v1932
        %v1962 = vmul.f32 %v1900, %v1932
        %v1963 = vmul.f32 %v1902, %v1932
        %v1964 = vmul.f32 %v1903, %v1932
        %v1965 = vmul.f32 %v1905, %v1932
        %v1966 = vmul.f32 %v1906, %v1932
        %v1967 = vmul.f32 %v1908, %v1932
        %v1968 = vmul.f32 %v1909, %v1932
        %v1969 = vmul.f32 %v1911, %v1932
        %v1970 = vmul.f32 %v1912, %v1932
        %v1971 = vmul.f32 %v1914, %v1932
        %v1972 = vmul.f32 %v1915, %v1932
        %v1973 = vmul.f32 %v1917, %v1932
        %v1974 = vmul.f32 %v1918, %v1932
        %v1975 = vmul.f32 %v1920, %v1932
        %v1976 = vmul.f32 %v1921, %v1932
        %v1977 = vmul.f32 %v1923, %v1932
        %v1978 = vmul.f32 %v1924, %v1932
        %v1979 = vmul.f32 %v1926, %v1932
        %v1980 = vmul.f32 %v1927, %v1932
        %v1981 = vadd.f32 %v1736, %v1933
        %v1982 = vadd.f32 %v1737, %v1934
        %v1983 = vadd.f32 %v1738, %v1935
        %v1984 = vadd.f32 %v1739, %v1936
        %v1985 = vadd.f32 %v1740, %v1937
        %v1986 = vadd.f32 %v1741, %v1938
        %v1987 = vadd.f32 %v1742, %v1939
        %v1988 = vadd.f32 %v1743, %v1940
        %v1989 = vadd.f32 %v1744, %v1941
        %v1990 = vadd.f32 %v1745, %v1942
        %v1991 = vadd.f32 %v1746, %v1943
        %v1992 = vadd.f32 %v1747, %v1944
        %v1993 = vadd.f32 %v1748, %v1945
        %v1994 = vadd.f32 %v1749, %v1946
        %v1995 = vadd.f32 %v1750, %v1947
        %v1996 = vadd.f32 %v1751, %v1948
        %v1997 = vadd.f32 %v1752, %v1949
        %v1998 = vadd.f32 %v1753, %v1950
        %v1999 = vadd.f32 %v1754, %v1951
        %v2000 = vadd.f32 %v1755, %v1952
        %v2001 = vadd.f32 %v1756, %v1953
        %v2002 = vadd.f32 %v1757, %v1954
        %v2003 = vadd.f32 %v1758, %v1955
        %v2004 = vadd.f32 %v1759, %v1956
        %v2005 = vadd.f32 %v1760, %v1957
        %v2006 = vadd.f32 %v1761, %v1958
        %v2007 = vadd.f32 %v1762, %v1959
        %v2008 = vadd.f32 %v1763, %v1960
        %v2009 = vadd.f32 %v1764, %v1961
        %v2010 = vadd.f32 %v1765, %v1962
        %v2011 = vadd.f32 %v1766, %v1963
        %v2012 = vadd.f32 %v1767, %v1964
        %v2013 = vadd.f32 %v1768, %v1965
        %v2014 = vadd.f32 %v1769, %v1966
        %v2015 = vadd.f32 %v1770, %v1967
        %v2016 = vadd.f32 %v1771, %v1968
        %v2017 = vadd.f32 %v1772, %v1969
        %v2018 = vadd.f32 %v1773, %v1970
        %v2019 = vadd.f32 %v1774, %v1971
        %v2020 = vadd.f32 %v1775, %v1972
        %v2021 = vadd.f32 %v1776, %v1973
        %v2022 = vadd.f32 %v1777, %v1974
        %v2023 = vadd.f32 %v1778, %v1975
        %v2024 = vadd.f32 %v1779, %v1976
        %v2025 = vadd.f32 %v1780, %v1977
        %v2026 = vadd.f32 %v1781, %v1978
        %v2027 = vadd.f32 %v1782, %v1979
        %v2028 = vadd.f32 %v1783, %v1980
        %s2029 = scalar_lea.vmem [#allocation2], 72
        %v2030 = vld [vmem:[%s2029] sm:$0xf]
        %v2031 = vld [vmem:[%s2029 + $0x4] sm:$0xf]
        %v2032 = vld [vmem:[%s2029 + $0x8] sm:$0xf]
        %v2033 = vld [vmem:[%s2029 + $0xc] sm:$0xf]
        %v2034 = vld [vmem:[%s2029 + $0x10] sm:$0xf]
        %v2035 = vld [vmem:[%s2029 + $0x14] sm:$0xf]
        %v2036 = vld [vmem:[%s2029 + $0x18] sm:$0xf]
        %v2037 = vld [vmem:[%s2029 + $0x1c] sm:$0xf]
        %v2038 = vld [vmem:[%s2029 + $0x20] sm:$0xf]
        %v2039 = vld [vmem:[%s2029 + $0x24] sm:$0xf]
        %v2040 = vld [vmem:[%s2029 + $0x28] sm:$0xf]
        %v2041 = vld [vmem:[%s2029 + $0x2c] sm:$0xf]
        %v2042 = vld [vmem:[%s2029 + $0x30] sm:$0xf]
        %v2043 = vld [vmem:[%s2029 + $0x34] sm:$0xf]
        %v2044 = vld [vmem:[%s2029 + $0x38] sm:$0xf]
        %v2045 = vld [vmem:[%s2029 + $0x3c] sm:$0xf]
        %v2046 = vld [vmem:[%s2029 + $0x40] sm:$0xf]
        %v2047 = vld [vmem:[%s2029 + $0x44] sm:$0xf]
        %v2048 = vld [vmem:[%s2029 + $0x48] sm:$0xf]
        %v2049 = vld [vmem:[%s2029 + $0x4c] sm:$0xf]
        %v2050 = vld [vmem:[%s2029 + $0x50] sm:$0xf]
        %v2051 = vld [vmem:[%s2029 + $0x54] sm:$0xf]
        %v2052 = vld [vmem:[%s2029 + $0x58] sm:$0xf]
        %v2053 = vld [vmem:[%s2029 + $0x5c] sm:$0xf]
        %v2054 = vld [vmem:[%s2029 + $0x60] sm:$0xf]
        %v2055 = vld [vmem:[%s2029 + $0x64] sm:$0xf]
        %v2056 = vld [vmem:[%s2029 + $0x68] sm:$0xf]
        %v2057 = vld [vmem:[%s2029 + $0x6c] sm:$0xf]
        %v2058 = vld [vmem:[%s2029 + $0x70] sm:$0xf]
        %v2059 = vld [vmem:[%s2029 + $0x74] sm:$0xf]
        %v2060 = vld [vmem:[%s2029 + $0x78] sm:$0xf]
        %v2061 = vld [vmem:[%s2029 + $0x7c] sm:$0xf]
        %v2062 = vld [vmem:[%s2029 + $0x80] sm:$0xf]
        %v2063 = vld [vmem:[%s2029 + $0x84] sm:$0xf]
        %v2064 = vld [vmem:[%s2029 + $0x88] sm:$0xf]
        %v2065 = vld [vmem:[%s2029 + $0x8c] sm:$0xf]
        %v2066 = vld [vmem:[%s2029 + $0x90] sm:$0xf]
        %v2067 = vld [vmem:[%s2029 + $0x94] sm:$0xf]
        %v2068 = vld [vmem:[%s2029 + $0x98] sm:$0xf]
        %v2069 = vld [vmem:[%s2029 + $0x9c] sm:$0xf]
        %v2070 = vld [vmem:[%s2029 + $0xa0] sm:$0xf]
        %v2071 = vld [vmem:[%s2029 + $0xa4] sm:$0xf]
        %v2072 = vld [vmem:[%s2029 + $0xa8] sm:$0xf]
        %v2073 = vld [vmem:[%s2029 + $0xac] sm:$0xf]
        %v2074 = vld [vmem:[%s2029 + $0xb0] sm:$0xf]
        %v2075 = vld [vmem:[%s2029 + $0xb4] sm:$0xf]
        %v2076 = vld [vmem:[%s2029 + $0xb8] sm:$0xf]
        %v2077 = vld [vmem:[%s2029 + $0xbc] sm:$0xf]
        %v2078 = vld [vmem:[%s2029 + $0xc0] sm:$0xf]
        %v2079 = vld [vmem:[%s2029 + $0xc4] sm:$0xf]
        %v2080 = vld [vmem:[%s2029 + $0xc8] sm:$0xf]
        %v2081 = vld [vmem:[%s2029 + $0xcc] sm:$0xf]
        %v2082 = vld [vmem:[%s2029 + $0xd0] sm:$0xf]
        %v2083 = vld [vmem:[%s2029 + $0xd4] sm:$0xf]
        %v2084 = vld [vmem:[%s2029 + $0xd8] sm:$0xf]
        %v2085 = vld [vmem:[%s2029 + $0xdc] sm:$0xf]
        %v2086 = vld [vmem:[%s2029 + $0xe0] sm:$0xf]
        %v2087 = vld [vmem:[%s2029 + $0xe4] sm:$0xf]
        %v2088 = vld [vmem:[%s2029 + $0xe8] sm:$0xf]
        %v2089 = vld [vmem:[%s2029 + $0xec] sm:$0xf]
        %v2090 = vld [vmem:[%s2029 + $0xf0] sm:$0xf]
        %v2091 = vld [vmem:[%s2029 + $0xf4] sm:$0xf]
        %v2092 = vld [vmem:[%s2029 + $0xf8] sm:$0xf]
        %v2093 = vld [vmem:[%s2029 + $0xfc] sm:$0xf]
        %v2094 = vld [vmem:[%s2029 + $0x100] sm:$0xf]
        %v2095 = vld [vmem:[%s2029 + $0x104] sm:$0xf]
        %v2096 = vld [vmem:[%s2029 + $0x108] sm:$0xf]
        %v2097 = vld [vmem:[%s2029 + $0x10c] sm:$0xf]
        %v2098 = vld [vmem:[%s2029 + $0x110] sm:$0xf]
        %v2099 = vld [vmem:[%s2029 + $0x114] sm:$0xf]
        %v2100 = vld [vmem:[%s2029 + $0x118] sm:$0xf]
        %v2101 = vld [vmem:[%s2029 + $0x11c] sm:$0xf]
        %v2102 = vunpack.c.l.bf16 %v2030
        %v2103 = vunpack.c.l.bf16 %v2031
        %v2104 = vunpack.c.l.bf16 %v2032
        %v2105 = vunpack.c.l.bf16 %v2033
        %v2106 = vunpack.c.l.bf16 %v2034
        %v2107 = vunpack.c.l.bf16 %v2035
        %v2108 = vunpack.c.l.bf16 %v2036
        %v2109 = vunpack.c.l.bf16 %v2037
        %v2110 = vunpack.c.l.bf16 %v2038
        %v2111 = vunpack.c.l.bf16 %v2039
        %v2112 = vunpack.c.l.bf16 %v2040
        %v2113 = vunpack.c.l.bf16 %v2041
        %v2114 = vunpack.c.l.bf16 %v2042
        %v2115 = vunpack.c.l.bf16 %v2043
        %v2116 = vunpack.c.l.bf16 %v2044
        %v2117 = vunpack.c.l.bf16 %v2045
        %v2118 = vunpack.c.l.bf16 %v2046
        %v2119 = vunpack.c.l.bf16 %v2047
        %v2120 = vunpack.c.l.bf16 %v2048
        %v2121 = vunpack.c.l.bf16 %v2049
        %v2122 = vunpack.c.l.bf16 %v2050
        %v2123 = vunpack.c.l.bf16 %v2051
        %v2124 = vunpack.c.l.bf16 %v2052
        %v2125 = vunpack.c.l.bf16 %v2053
        %v2126 = vunpack.c.l.bf16 %v2054
        %v2127 = vunpack.c.l.bf16 %v2055
        %v2128 = vunpack.c.l.bf16 %v2056
        %v2129 = vunpack.c.l.bf16 %v2057
        %v2130 = vunpack.c.l.bf16 %v2058
        %v2131 = vunpack.c.l.bf16 %v2059
        %v2132 = vunpack.c.l.bf16 %v2060
        %v2133 = vunpack.c.l.bf16 %v2061
        %v2134 = vunpack.c.l.bf16 %v2062
        %v2135 = vunpack.c.l.bf16 %v2063
        %v2136 = vunpack.c.l.bf16 %v2064
        %v2137 = vunpack.c.l.bf16 %v2065
        %v2138 = vunpack.c.l.bf16 %v2066
        %v2139 = vunpack.c.l.bf16 %v2067
        %v2140 = vunpack.c.l.bf16 %v2068
        %v2141 = vunpack.c.l.bf16 %v2069
        %v2142 = vunpack.c.l.bf16 %v2070
        %v2143 = vunpack.c.l.bf16 %v2071
        %v2144 = vunpack.c.l.bf16 %v2072
        %v2145 = vunpack.c.l.bf16 %v2073
        %v2146 = vunpack.c.l.bf16 %v2074
        %v2147 = vunpack.c.l.bf16 %v2075
        %v2148 = vunpack.c.l.bf16 %v2076
        %v2149 = vunpack.c.l.bf16 %v2077
        %v2150 = vunpack.c.l.bf16 %v2078
        %v2151 = vunpack.c.l.bf16 %v2079
        %v2152 = vunpack.c.l.bf16 %v2080
        %v2153 = vunpack.c.l.bf16 %v2081
        %v2154 = vunpack.c.l.bf16 %v2082
        %v2155 = vunpack.c.l.bf16 %v2083
        %v2156 = vunpack.c.l.bf16 %v2084
        %v2157 = vunpack.c.l.bf16 %v2085
        %v2158 = vunpack.c.l.bf16 %v2086
        %v2159 = vunpack.c.l.bf16 %v2087
        %v2160 = vunpack.c.l.bf16 %v2088
        %v2161 = vunpack.c.l.bf16 %v2089
        %v2162 = vunpack.c.l.bf16 %v2090
        %v2163 = vunpack.c.l.bf16 %v2091
        %v2164 = vunpack.c.l.bf16 %v2092
        %v2165 = vunpack.c.l.bf16 %v2093
        %v2166 = vunpack.c.l.bf16 %v2094
        %v2167 = vunpack.c.l.bf16 %v2095
        %v2168 = vunpack.c.l.bf16 %v2096
        %v2169 = vunpack.c.l.bf16 %v2097
        %v2170 = vunpack.c.l.bf16 %v2098
        %v2171 = vunpack.c.l.bf16 %v2099
        %v2172 = vunpack.c.l.bf16 %v2100
        %v2173 = vunpack.c.l.bf16 %v2101
        %v2174 = vlaneseq
        %v2175 = vshrl.u32 %v2174, 7
        %v2176 = vsub.s32 2, %v2175
        %v2177 = vrot.slane %v558, %v2176
        %v2178 = vmul.f32 %v2102, %v2177
        %v2179 = vmul.f32 %v2103, %v2177
        %v2180 = vmul.f32 %v2105, %v2177
        %v2181 = vmul.f32 %v2106, %v2177
        %v2182 = vmul.f32 %v2108, %v2177
        %v2183 = vmul.f32 %v2109, %v2177
        %v2184 = vmul.f32 %v2111, %v2177
        %v2185 = vmul.f32 %v2112, %v2177
        %v2186 = vmul.f32 %v2114, %v2177
        %v2187 = vmul.f32 %v2115, %v2177
        %v2188 = vmul.f32 %v2117, %v2177
        %v2189 = vmul.f32 %v2118, %v2177
        %v2190 = vmul.f32 %v2120, %v2177
        %v2191 = vmul.f32 %v2121, %v2177
        %v2192 = vmul.f32 %v2123, %v2177
        %v2193 = vmul.f32 %v2124, %v2177
        %v2194 = vmul.f32 %v2126, %v2177
        %v2195 = vmul.f32 %v2127, %v2177
        %v2196 = vmul.f32 %v2129, %v2177
        %v2197 = vmul.f32 %v2130, %v2177
        %v2198 = vmul.f32 %v2132, %v2177
        %v2199 = vmul.f32 %v2133, %v2177
        %v2200 = vmul.f32 %v2135, %v2177
        %v2201 = vmul.f32 %v2136, %v2177
        %v2202 = vmul.f32 %v2138, %v2177
        %v2203 = vmul.f32 %v2139, %v2177
        %v2204 = vmul.f32 %v2141, %v2177
        %v2205 = vmul.f32 %v2142, %v2177
        %v2206 = vmul.f32 %v2144, %v2177
        %v2207 = vmul.f32 %v2145, %v2177
        %v2208 = vmul.f32 %v2147, %v2177
        %v2209 = vmul.f32 %v2148, %v2177
        %v2210 = vmul.f32 %v2150, %v2177
        %v2211 = vmul.f32 %v2151, %v2177
        %v2212 = vmul.f32 %v2153, %v2177
        %v2213 = vmul.f32 %v2154, %v2177
        %v2214 = vmul.f32 %v2156, %v2177
        %v2215 = vmul.f32 %v2157, %v2177
        %v2216 = vmul.f32 %v2159, %v2177
        %v2217 = vmul.f32 %v2160, %v2177
        %v2218 = vmul.f32 %v2162, %v2177
        %v2219 = vmul.f32 %v2163, %v2177
        %v2220 = vmul.f32 %v2165, %v2177
        %v2221 = vmul.f32 %v2166, %v2177
        %v2222 = vmul.f32 %v2168, %v2177
        %v2223 = vmul.f32 %v2169, %v2177
        %v2224 = vmul.f32 %v2171, %v2177
        %v2225 = vmul.f32 %v2172, %v2177
        %v2226 = vadd.f32 %v1981, %v2178
        %v2227 = vadd.f32 %v1982, %v2179
        %v2228 = vadd.f32 %v1983, %v2180
        %v2229 = vadd.f32 %v1984, %v2181
        %v2230 = vadd.f32 %v1985, %v2182
        %v2231 = vadd.f32 %v1986, %v2183
        %v2232 = vadd.f32 %v1987, %v2184
        %v2233 = vadd.f32 %v1988, %v2185
        %v2234 = vadd.f32 %v1989, %v2186
        %v2235 = vadd.f32 %v1990, %v2187
        %v2236 = vadd.f32 %v1991, %v2188
        %v2237 = vadd.f32 %v1992, %v2189
        %v2238 = vadd.f32 %v1993, %v2190
        %v2239 = vadd.f32 %v1994, %v2191
        %v2240 = vadd.f32 %v1995, %v2192
        %v2241 = vadd.f32 %v1996, %v2193
        %v2242 = vadd.f32 %v1997, %v2194
        %v2243 = vadd.f32 %v1998, %v2195
        %v2244 = vadd.f32 %v1999, %v2196
        %v2245 = vadd.f32 %v2000, %v2197
        %v2246 = vadd.f32 %v2001, %v2198
        %v2247 = vadd.f32 %v2002, %v2199
        %v2248 = vadd.f32 %v2003, %v2200
        %v2249 = vadd.f32 %v2004, %v2201
        %v2250 = vadd.f32 %v2005, %v2202
        %v2251 = vadd.f32 %v2006, %v2203
        %v2252 = vadd.f32 %v2007, %v2204
        %v2253 = vadd.f32 %v2008, %v2205
        %v2254 = vadd.f32 %v2009, %v2206
        %v2255 = vadd.f32 %v2010, %v2207
        %v2256 = vadd.f32 %v2011, %v2208
        %v2257 = vadd.f32 %v2012, %v2209
        %v2258 = vadd.f32 %v2013, %v2210
        %v2259 = vadd.f32 %v2014, %v2211
        %v2260 = vadd.f32 %v2015, %v2212
        %v2261 = vadd.f32 %v2016, %v2213
        %v2262 = vadd.f32 %v2017, %v2214
        %v2263 = vadd.f32 %v2018, %v2215
        %v2264 = vadd.f32 %v2019, %v2216
        %v2265 = vadd.f32 %v2020, %v2217
        %v2266 = vadd.f32 %v2021, %v2218
        %v2267 = vadd.f32 %v2022, %v2219
        %v2268 = vadd.f32 %v2023, %v2220
        %v2269 = vadd.f32 %v2024, %v2221
        %v2270 = vadd.f32 %v2025, %v2222
        %v2271 = vadd.f32 %v2026, %v2223
        %v2272 = vadd.f32 %v2027, %v2224
        %v2273 = vadd.f32 %v2028, %v2225
        %v2274 = vadd.f32 %v2226, 0.0
        %v2275 = vadd.f32 %v2227, 0.0
        %v2276 = vadd.f32 %v2228, 0.0
        %v2277 = vadd.f32 %v2229, 0.0
        %v2278 = vadd.f32 %v2230, 0.0
        %v2279 = vadd.f32 %v2231, 0.0
        %v2280 = vadd.f32 %v2232, 0.0
        %v2281 = vadd.f32 %v2233, 0.0
        %v2282 = vadd.f32 %v2234, 0.0
        %v2283 = vadd.f32 %v2235, 0.0
        %v2284 = vadd.f32 %v2236, 0.0
        %v2285 = vadd.f32 %v2237, 0.0
        %v2286 = vadd.f32 %v2238, 0.0
        %v2287 = vadd.f32 %v2239, 0.0
        %v2288 = vadd.f32 %v2240, 0.0
        %v2289 = vadd.f32 %v2241, 0.0
        %v2290 = vadd.f32 %v2242, 0.0
        %v2291 = vadd.f32 %v2243, 0.0
        %v2292 = vadd.f32 %v2244, 0.0
        %v2293 = vadd.f32 %v2245, 0.0
        %v2294 = vadd.f32 %v2246, 0.0
        %v2295 = vadd.f32 %v2247, 0.0
        %v2296 = vadd.f32 %v2248, 0.0
        %v2297 = vadd.f32 %v2249, 0.0
        %v2298 = vadd.f32 %v2250, 0.0
        %v2299 = vadd.f32 %v2251, 0.0
        %v2300 = vadd.f32 %v2252, 0.0
        %v2301 = vadd.f32 %v2253, 0.0
        %v2302 = vadd.f32 %v2254, 0.0
        %v2303 = vadd.f32 %v2255, 0.0
        %v2304 = vadd.f32 %v2256, 0.0
        %v2305 = vadd.f32 %v2257, 0.0
        %v2306 = vadd.f32 %v2258, 0.0
        %v2307 = vadd.f32 %v2259, 0.0
        %v2308 = vadd.f32 %v2260, 0.0
        %v2309 = vadd.f32 %v2261, 0.0
        %v2310 = vadd.f32 %v2262, 0.0
        %v2311 = vadd.f32 %v2263, 0.0
        %v2312 = vadd.f32 %v2264, 0.0
        %v2313 = vadd.f32 %v2265, 0.0
        %v2314 = vadd.f32 %v2266, 0.0
        %v2315 = vadd.f32 %v2267, 0.0
        %v2316 = vadd.f32 %v2268, 0.0
        %v2317 = vadd.f32 %v2269, 0.0
        %v2318 = vadd.f32 %v2270, 0.0
        %v2319 = vadd.f32 %v2271, 0.0
        %v2320 = vadd.f32 %v2272, 0.0
        %v2321 = vadd.f32 %v2273, 0.0
        %v2322 = vlaneseq
        %v2323 = vshrl.u32 %v2322, 7
        %v2324 = vsub.s32 1, %v2323
        %v2325 = vrot.slane %v553, %v2324
        %v2326 = vmul.f32 %v632, %v2325
        %v2327 = vmul.f32 %v633, %v2325
        %v2328 = vmul.f32 %v635, %v2325
        %v2329 = vmul.f32 %v636, %v2325
        %v2330 = vmul.f32 %v638, %v2325
        %v2331 = vmul.f32 %v639, %v2325
        %v2332 = vmul.f32 %v641, %v2325
        %v2333 = vmul.f32 %v642, %v2325
        %v2334 = vmul.f32 %v644, %v2325
        %v2335 = vmul.f32 %v645, %v2325
        %v2336 = vmul.f32 %v647, %v2325
        %v2337 = vmul.f32 %v648, %v2325
        %v2338 = vmul.f32 %v650, %v2325
        %v2339 = vmul.f32 %v651, %v2325
        %v2340 = vmul.f32 %v653, %v2325
        %v2341 = vmul.f32 %v654, %v2325
        %v2342 = vmul.f32 %v656, %v2325
        %v2343 = vmul.f32 %v657, %v2325
        %v2344 = vmul.f32 %v659, %v2325
        %v2345 = vmul.f32 %v660, %v2325
        %v2346 = vmul.f32 %v662, %v2325
        %v2347 = vmul.f32 %v663, %v2325
        %v2348 = vmul.f32 %v665, %v2325
        %v2349 = vmul.f32 %v666, %v2325
        %v2350 = vmul.f32 %v668, %v2325
        %v2351 = vmul.f32 %v669, %v2325
        %v2352 = vmul.f32 %v671, %v2325
        %v2353 = vmul.f32 %v672, %v2325
        %v2354 = vmul.f32 %v674, %v2325
        %v2355 = vmul.f32 %v675, %v2325
        %v2356 = vmul.f32 %v677, %v2325
        %v2357 = vmul.f32 %v678, %v2325
        %v2358 = vmul.f32 %v680, %v2325
        %v2359 = vmul.f32 %v681, %v2325
        %v2360 = vmul.f32 %v683, %v2325
        %v2361 = vmul.f32 %v684, %v2325
        %v2362 = vmul.f32 %v686, %v2325
        %v2363 = vmul.f32 %v687, %v2325
        %v2364 = vmul.f32 %v689, %v2325
        %v2365 = vmul.f32 %v690, %v2325
        %v2366 = vmul.f32 %v692, %v2325
        %v2367 = vmul.f32 %v693, %v2325
        %v2368 = vmul.f32 %v695, %v2325
        %v2369 = vmul.f32 %v696, %v2325
        %v2370 = vmul.f32 %v698, %v2325
        %v2371 = vmul.f32 %v699, %v2325
        %v2372 = vmul.f32 %v701, %v2325
        %v2373 = vmul.f32 %v702, %v2325
        %v2374 = vadd.f32 %v2326, 0.0
        %v2375 = vadd.f32 %v2327, 0.0
        %v2376 = vadd.f32 %v2328, 0.0
        %v2377 = vadd.f32 %v2329, 0.0
        %v2378 = vadd.f32 %v2330, 0.0
        %v2379 = vadd.f32 %v2331, 0.0
        %v2380 = vadd.f32 %v2332, 0.0
        %v2381 = vadd.f32 %v2333, 0.0
        %v2382 = vadd.f32 %v2334, 0.0
        %v2383 = vadd.f32 %v2335, 0.0
        %v2384 = vadd.f32 %v2336, 0.0
        %v2385 = vadd.f32 %v2337, 0.0
        %v2386 = vadd.f32 %v2338, 0.0
        %v2387 = vadd.f32 %v2339, 0.0
        %v2388 = vadd.f32 %v2340, 0.0
        %v2389 = vadd.f32 %v2341, 0.0
        %v2390 = vadd.f32 %v2342, 0.0
        %v2391 = vadd.f32 %v2343, 0.0
        %v2392 = vadd.f32 %v2344, 0.0
        %v2393 = vadd.f32 %v2345, 0.0
        %v2394 = vadd.f32 %v2346, 0.0
        %v2395 = vadd.f32 %v2347, 0.0
        %v2396 = vadd.f32 %v2348, 0.0
        %v2397 = vadd.f32 %v2349, 0.0
        %v2398 = vadd.f32 %v2350, 0.0
        %v2399 = vadd.f32 %v2351, 0.0
        %v2400 = vadd.f32 %v2352, 0.0
        %v2401 = vadd.f32 %v2353, 0.0
        %v2402 = vadd.f32 %v2354, 0.0
        %v2403 = vadd.f32 %v2355, 0.0
        %v2404 = vadd.f32 %v2356, 0.0
        %v2405 = vadd.f32 %v2357, 0.0
        %v2406 = vadd.f32 %v2358, 0.0
        %v2407 = vadd.f32 %v2359, 0.0
        %v2408 = vadd.f32 %v2360, 0.0
        %v2409 = vadd.f32 %v2361, 0.0
        %v2410 = vadd.f32 %v2362, 0.0
        %v2411 = vadd.f32 %v2363, 0.0
        %v2412 = vadd.f32 %v2364, 0.0
        %v2413 = vadd.f32 %v2365, 0.0
        %v2414 = vadd.f32 %v2366, 0.0
        %v2415 = vadd.f32 %v2367, 0.0
        %v2416 = vadd.f32 %v2368, 0.0
        %v2417 = vadd.f32 %v2369, 0.0
        %v2418 = vadd.f32 %v2370, 0.0
        %v2419 = vadd.f32 %v2371, 0.0
        %v2420 = vadd.f32 %v2372, 0.0
        %v2421 = vadd.f32 %v2373, 0.0
        %v2422 = vlaneseq
        %v2423 = vshrl.u32 %v2422, 7
        %v2424 = vsub.s32 0, %v2423
        %v2425 = vrot.slane %v554, %v2424
        %v2426 = vmul.f32 %v877, %v2425
        %v2427 = vmul.f32 %v878, %v2425
        %v2428 = vmul.f32 %v880, %v2425
        %v2429 = vmul.f32 %v881, %v2425
        %v2430 = vmul.f32 %v883, %v2425
        %v2431 = vmul.f32 %v884, %v2425
        %v2432 = vmul.f32 %v886, %v2425
        %v2433 = vmul.f32 %v887, %v2425
        %v2434 = vmul.f32 %v889, %v2425
        %v2435 = vmul.f32 %v890, %v2425
        %v2436 = vmul.f32 %v892, %v2425
        %v2437 = vmul.f32 %v893, %v2425
        %v2438 = vmul.f32 %v895, %v2425
        %v2439 = vmul.f32 %v896, %v2425
        %v2440 = vmul.f32 %v898, %v2425
        %v2441 = vmul.f32 %v899, %v2425
        %v2442 = vmul.f32 %v901, %v2425
        %v2443 = vmul.f32 %v902, %v2425
        %v2444 = vmul.f32 %v904, %v2425
        %v2445 = vmul.f32 %v905, %v2425
        %v2446 = vmul.f32 %v907, %v2425
        %v2447 = vmul.f32 %v908, %v2425
        %v2448 = vmul.f32 %v910, %v2425
        %v2449 = vmul.f32 %v911, %v2425
        %v2450 = vmul.f32 %v913, %v2425
        %v2451 = vmul.f32 %v914, %v2425
        %v2452 = vmul.f32 %v916, %v2425
        %v2453 = vmul.f32 %v917, %v2425
        %v2454 = vmul.f32 %v919, %v2425
        %v2455 = vmul.f32 %v920, %v2425
        %v2456 = vmul.f32 %v922, %v2425
        %v2457 = vmul.f32 %v923, %v2425
        %v2458 = vmul.f32 %v925, %v2425
        %v2459 = vmul.f32 %v926, %v2425
        %v2460 = vmul.f32 %v928, %v2425
        %v2461 = vmul.f32 %v929, %v2425
        %v2462 = vmul.f32 %v931, %v2425
        %v2463 = vmul.f32 %v932, %v2425
        %v2464 = vmul.f32 %v934, %v2425
        %v2465 = vmul.f32 %v935, %v2425
        %v2466 = vmul.f32 %v937, %v2425
        %v2467 = vmul.f32 %v938, %v2425
        %v2468 = vmul.f32 %v940, %v2425
        %v2469 = vmul.f32 %v941, %v2425
        %v2470 = vmul.f32 %v943, %v2425
        %v2471 = vmul.f32 %v944, %v2425
        %v2472 = vmul.f32 %v946, %v2425
        %v2473 = vmul.f32 %v947, %v2425
        %v2474 = vadd.f32 %v2374, %v2426
        %v2475 = vadd.f32 %v2375, %v2427
        %v2476 = vadd.f32 %v2376, %v2428
        %v2477 = vadd.f32 %v2377, %v2429
        %v2478 = vadd.f32 %v2378, %v2430
        %v2479 = vadd.f32 %v2379, %v2431
        %v2480 = vadd.f32 %v2380, %v2432
        %v2481 = vadd.f32 %v2381, %v2433
        %v2482 = vadd.f32 %v2382, %v2434
        %v2483 = vadd.f32 %v2383, %v2435
        %v2484 = vadd.f32 %v2384, %v2436
        %v2485 = vadd.f32 %v2385, %v2437
        %v2486 = vadd.f32 %v2386, %v2438
        %v2487 = vadd.f32 %v2387, %v2439
        %v2488 = vadd.f32 %v2388, %v2440
        %v2489 = vadd.f32 %v2389, %v2441
        %v2490 = vadd.f32 %v2390, %v2442
        %v2491 = vadd.f32 %v2391, %v2443
        %v2492 = vadd.f32 %v2392, %v2444
        %v2493 = vadd.f32 %v2393, %v2445
        %v2494 = vadd.f32 %v2394, %v2446
        %v2495 = vadd.f32 %v2395, %v2447
        %v2496 = vadd.f32 %v2396, %v2448
        %v2497 = vadd.f32 %v2397, %v2449
        %v2498 = vadd.f32 %v2398, %v2450
        %v2499 = vadd.f32 %v2399, %v2451
        %v2500 = vadd.f32 %v2400, %v2452
        %v2501 = vadd.f32 %v2401, %v2453
        %v2502 = vadd.f32 %v2402, %v2454
        %v2503 = vadd.f32 %v2403, %v2455
        %v2504 = vadd.f32 %v2404, %v2456
        %v2505 = vadd.f32 %v2405, %v2457
        %v2506 = vadd.f32 %v2406, %v2458
        %v2507 = vadd.f32 %v2407, %v2459
        %v2508 = vadd.f32 %v2408, %v2460
        %v2509 = vadd.f32 %v2409, %v2461
        %v2510 = vadd.f32 %v2410, %v2462
        %v2511 = vadd.f32 %v2411, %v2463
        %v2512 = vadd.f32 %v2412, %v2464
        %v2513 = vadd.f32 %v2413, %v2465
        %v2514 = vadd.f32 %v2414, %v2466
        %v2515 = vadd.f32 %v2415, %v2467
        %v2516 = vadd.f32 %v2416, %v2468
        %v2517 = vadd.f32 %v2417, %v2469
        %v2518 = vadd.f32 %v2418, %v2470
        %v2519 = vadd.f32 %v2419, %v2471
        %v2520 = vadd.f32 %v2420, %v2472
        %v2521 = vadd.f32 %v2421, %v2473
        %v2522 = vlaneseq
        %v2523 = vshrl.u32 %v2522, 7
        %v2524 = vsub.s32 7, %v2523
        %v2525 = vrot.slane %v554, %v2524
        %v2526 = vmul.f32 %v1122, %v2525
        %v2527 = vmul.f32 %v1123, %v2525
        %v2528 = vmul.f32 %v1125, %v2525
        %v2529 = vmul.f32 %v1126, %v2525
        %v2530 = vmul.f32 %v1128, %v2525
        %v2531 = vmul.f32 %v1129, %v2525
        %v2532 = vmul.f32 %v1131, %v2525
        %v2533 = vmul.f32 %v1132, %v2525
        %v2534 = vmul.f32 %v1134, %v2525
        %v2535 = vmul.f32 %v1135, %v2525
        %v2536 = vmul.f32 %v1137, %v2525
        %v2537 = vmul.f32 %v1138, %v2525
        %v2538 = vmul.f32 %v1140, %v2525
        %v2539 = vmul.f32 %v1141, %v2525
        %v2540 = vmul.f32 %v1143, %v2525
        %v2541 = vmul.f32 %v1144, %v2525
        %v2542 = vmul.f32 %v1146, %v2525
        %v2543 = vmul.f32 %v1147, %v2525
        %v2544 = vmul.f32 %v1149, %v2525
        %v2545 = vmul.f32 %v1150, %v2525
        %v2546 = vmul.f32 %v1152, %v2525
        %v2547 = vmul.f32 %v1153, %v2525
        %v2548 = vmul.f32 %v1155, %v2525
        %v2549 = vmul.f32 %v1156, %v2525
        %v2550 = vmul.f32 %v1158, %v2525
        %v2551 = vmul.f32 %v1159, %v2525
        %v2552 = vmul.f32 %v1161, %v2525
        %v2553 = vmul.f32 %v1162, %v2525
        %v2554 = vmul.f32 %v1164, %v2525
        %v2555 = vmul.f32 %v1165, %v2525
        %v2556 = vmul.f32 %v1167, %v2525
        %v2557 = vmul.f32 %v1168, %v2525
        %v2558 = vmul.f32 %v1170, %v2525
        %v2559 = vmul.f32 %v1171, %v2525
        %v2560 = vmul.f32 %v1173, %v2525
        %v2561 = vmul.f32 %v1174, %v2525
        %v2562 = vmul.f32 %v1176, %v2525
        %v2563 = vmul.f32 %v1177, %v2525
        %v2564 = vmul.f32 %v1179, %v2525
        %v2565 = vmul.f32 %v1180, %v2525
        %v2566 = vmul.f32 %v1182, %v2525
        %v2567 = vmul.f32 %v1183, %v2525
        %v2568 = vmul.f32 %v1185, %v2525
        %v2569 = vmul.f32 %v1186, %v2525
        %v2570 = vmul.f32 %v1188, %v2525
        %v2571 = vmul.f32 %v1189, %v2525
        %v2572 = vmul.f32 %v1191, %v2525
        %v2573 = vmul.f32 %v1192, %v2525
        %v2574 = vadd.f32 %v2474, %v2526
        %v2575 = vadd.f32 %v2475, %v2527
        %v2576 = vadd.f32 %v2476, %v2528
        %v2577 = vadd.f32 %v2477, %v2529
        %v2578 = vadd.f32 %v2478, %v2530
        %v2579 = vadd.f32 %v2479, %v2531
        %v2580 = vadd.f32 %v2480, %v2532
        %v2581 = vadd.f32 %v2481, %v2533
        %v2582 = vadd.f32 %v2482, %v2534
        %v2583 = vadd.f32 %v2483, %v2535
        %v2584 = vadd.f32 %v2484, %v2536
        %v2585 = vadd.f32 %v2485, %v2537
        %v2586 = vadd.f32 %v2486, %v2538
        %v2587 = vadd.f32 %v2487, %v2539
        %v2588 = vadd.f32 %v2488, %v2540
        %v2589 = vadd.f32 %v2489, %v2541
        %v2590 = vadd.f32 %v2490, %v2542
        %v2591 = vadd.f32 %v2491, %v2543
        %v2592 = vadd.f32 %v2492, %v2544
        %v2593 = vadd.f32 %v2493, %v2545
        %v2594 = vadd.f32 %v2494, %v2546
        %v2595 = vadd.f32 %v2495, %v2547
        %v2596 = vadd.f32 %v2496, %v2548
        %v2597 = vadd.f32 %v2497, %v2549
        %v2598 = vadd.f32 %v2498, %v2550
        %v2599 = vadd.f32 %v2499, %v2551
        %v2600 = vadd.f32 %v2500, %v2552
        %v2601 = vadd.f32 %v2501, %v2553
        %v2602 = vadd.f32 %v2502, %v2554
        %v2603 = vadd.f32 %v2503, %v2555
        %v2604 = vadd.f32 %v2504, %v2556
        %v2605 = vadd.f32 %v2505, %v2557
        %v2606 = vadd.f32 %v2506, %v2558
        %v2607 = vadd.f32 %v2507, %v2559
        %v2608 = vadd.f32 %v2508, %v2560
        %v2609 = vadd.f32 %v2509, %v2561
        %v2610 = vadd.f32 %v2510, %v2562
        %v2611 = vadd.f32 %v2511, %v2563
        %v2612 = vadd.f32 %v2512, %v2564
        %v2613 = vadd.f32 %v2513, %v2565
        %v2614 = vadd.f32 %v2514, %v2566
        %v2615 = vadd.f32 %v2515, %v2567
        %v2616 = vadd.f32 %v2516, %v2568
        %v2617 = vadd.f32 %v2517, %v2569
        %v2618 = vadd.f32 %v2518, %v2570
        %v2619 = vadd.f32 %v2519, %v2571
        %v2620 = vadd.f32 %v2520, %v2572
        %v2621 = vadd.f32 %v2521, %v2573
        %v2622 = vlaneseq
        %v2623 = vshrl.u32 %v2622, 7
        %v2624 = vsub.s32 6, %v2623
        %v2625 = vrot.slane %v555, %v2624
        %v2626 = vmul.f32 %v1367, %v2625
        %v2627 = vmul.f32 %v1368, %v2625
        %v2628 = vmul.f32 %v1370, %v2625
        %v2629 = vmul.f32 %v1371, %v2625
        %v2630 = vmul.f32 %v1373, %v2625
        %v2631 = vmul.f32 %v1374, %v2625
        %v2632 = vmul.f32 %v1376, %v2625
        %v2633 = vmul.f32 %v1377, %v2625
        %v2634 = vmul.f32 %v1379, %v2625
        %v2635 = vmul.f32 %v1380, %v2625
        %v2636 = vmul.f32 %v1382, %v2625
        %v2637 = vmul.f32 %v1383, %v2625
        %v2638 = vmul.f32 %v1385, %v2625
        %v2639 = vmul.f32 %v1386, %v2625
        %v2640 = vmul.f32 %v1388, %v2625
        %v2641 = vmul.f32 %v1389, %v2625
        %v2642 = vmul.f32 %v1391, %v2625
        %v2643 = vmul.f32 %v1392, %v2625
        %v2644 = vmul.f32 %v1394, %v2625
        %v2645 = vmul.f32 %v1395, %v2625
        %v2646 = vmul.f32 %v1397, %v2625
        %v2647 = vmul.f32 %v1398, %v2625
        %v2648 = vmul.f32 %v1400, %v2625
        %v2649 = vmul.f32 %v1401, %v2625
        %v2650 = vmul.f32 %v1403, %v2625
        %v2651 = vmul.f32 %v1404, %v2625
        %v2652 = vmul.f32 %v1406, %v2625
        %v2653 = vmul.f32 %v1407, %v2625
        %v2654 = vmul.f32 %v1409, %v2625
        %v2655 = vmul.f32 %v1410, %v2625
        %v2656 = vmul.f32 %v1412, %v2625
        %v2657 = vmul.f32 %v1413, %v2625
        %v2658 = vmul.f32 %v1415, %v2625
        %v2659 = vmul.f32 %v1416, %v2625
        %v2660 = vmul.f32 %v1418, %v2625
        %v2661 = vmul.f32 %v1419, %v2625
        %v2662 = vmul.f32 %v1421, %v2625
        %v2663 = vmul.f32 %v1422, %v2625
        %v2664 = vmul.f32 %v1424, %v2625
        %v2665 = vmul.f32 %v1425, %v2625
        %v2666 = vmul.f32 %v1427, %v2625
        %v2667 = vmul.f32 %v1428, %v2625
        %v2668 = vmul.f32 %v1430, %v2625
        %v2669 = vmul.f32 %v1431, %v2625
        %v2670 = vmul.f32 %v1433, %v2625
        %v2671 = vmul.f32 %v1434, %v2625
        %v2672 = vmul.f32 %v1436, %v2625
        %v2673 = vmul.f32 %v1437, %v2625
        %v2674 = vadd.f32 %v2574, %v2626
        %v2675 = vadd.f32 %v2575, %v2627
        %v2676 = vadd.f32 %v2576, %v2628
        %v2677 = vadd.f32 %v2577, %v2629
        %v2678 = vadd.f32 %v2578, %v2630
        %v2679 = vadd.f32 %v2579, %v2631
        %v2680 = vadd.f32 %v2580, %v2632
        %v2681 = vadd.f32 %v2581, %v2633
        %v2682 = vadd.f32 %v2582, %v2634
        %v2683 = vadd.f32 %v2583, %v2635
        %v2684 = vadd.f32 %v2584, %v2636
        %v2685 = vadd.f32 %v2585, %v2637
        %v2686 = vadd.f32 %v2586, %v2638
        %v2687 = vadd.f32 %v2587, %v2639
        %v2688 = vadd.f32 %v2588, %v2640
        %v2689 = vadd.f32 %v2589, %v2641
        %v2690 = vadd.f32 %v2590, %v2642
        %v2691 = vadd.f32 %v2591, %v2643
        %v2692 = vadd.f32 %v2592, %v2644
        %v2693 = vadd.f32 %v2593, %v2645
        %v2694 = vadd.f32 %v2594, %v2646
        %v2695 = vadd.f32 %v2595, %v2647
        %v2696 = vadd.f32 %v2596, %v2648
        %v2697 = vadd.f32 %v2597, %v2649
        %v2698 = vadd.f32 %v2598, %v2650
        %v2699 = vadd.f32 %v2599, %v2651
        %v2700 = vadd.f32 %v2600, %v2652
        %v2701 = vadd.f32 %v2601, %v2653
        %v2702 = vadd.f32 %v2602, %v2654
        %v2703 = vadd.f32 %v2603, %v2655
        %v2704 = vadd.f32 %v2604, %v2656
        %v2705 = vadd.f32 %v2605, %v2657
        %v2706 = vadd.f32 %v2606, %v2658
        %v2707 = vadd.f32 %v2607, %v2659
        %v2708 = vadd.f32 %v2608, %v2660
        %v2709 = vadd.f32 %v2609, %v2661
        %v2710 = vadd.f32 %v2610, %v2662
        %v2711 = vadd.f32 %v2611, %v2663
        %v2712 = vadd.f32 %v2612, %v2664
        %v2713 = vadd.f32 %v2613, %v2665
        %v2714 = vadd.f32 %v2614, %v2666
        %v2715 = vadd.f32 %v2615, %v2667
        %v2716 = vadd.f32 %v2616, %v2668
        %v2717 = vadd.f32 %v2617, %v2669
        %v2718 = vadd.f32 %v2618, %v2670
        %v2719 = vadd.f32 %v2619, %v2671
        %v2720 = vadd.f32 %v2620, %v2672
        %v2721 = vadd.f32 %v2621, %v2673
        %v2722 = vlaneseq
        %v2723 = vshrl.u32 %v2722, 7
        %v2724 = vsub.s32 5, %v2723
        %v2725 = vrot.slane %v556, %v2724
        %v2726 = vmul.f32 %v1612, %v2725
        %v2727 = vmul.f32 %v1613, %v2725
        %v2728 = vmul.f32 %v1615, %v2725
        %v2729 = vmul.f32 %v1616, %v2725
        %v2730 = vmul.f32 %v1618, %v2725
        %v2731 = vmul.f32 %v1619, %v2725
        %v2732 = vmul.f32 %v1621, %v2725
        %v2733 = vmul.f32 %v1622, %v2725
        %v2734 = vmul.f32 %v1624, %v2725
        %v2735 = vmul.f32 %v1625, %v2725
        %v2736 = vmul.f32 %v1627, %v2725
        %v2737 = vmul.f32 %v1628, %v2725
        %v2738 = vmul.f32 %v1630, %v2725
        %v2739 = vmul.f32 %v1631, %v2725
        %v2740 = vmul.f32 %v1633, %v2725
        %v2741 = vmul.f32 %v1634, %v2725
        %v2742 = vmul.f32 %v1636, %v2725
        %v2743 = vmul.f32 %v1637, %v2725
        %v2744 = vmul.f32 %v1639, %v2725
        %v2745 = vmul.f32 %v1640, %v2725
        %v2746 = vmul.f32 %v1642, %v2725
        %v2747 = vmul.f32 %v1643, %v2725
        %v2748 = vmul.f32 %v1645, %v2725
        %v2749 = vmul.f32 %v1646, %v2725
        %v2750 = vmul.f32 %v1648, %v2725
        %v2751 = vmul.f32 %v1649, %v2725
        %v2752 = vmul.f32 %v1651, %v2725
        %v2753 = vmul.f32 %v1652, %v2725
        %v2754 = vmul.f32 %v1654, %v2725
        %v2755 = vmul.f32 %v1655, %v2725
        %v2756 = vmul.f32 %v1657, %v2725
        %v2757 = vmul.f32 %v1658, %v2725
        %v2758 = vmul.f32 %v1660, %v2725
        %v2759 = vmul.f32 %v1661, %v2725
        %v2760 = vmul.f32 %v1663, %v2725
        %v2761 = vmul.f32 %v1664, %v2725
        %v2762 = vmul.f32 %v1666, %v2725
        %v2763 = vmul.f32 %v1667, %v2725
        %v2764 = vmul.f32 %v1669, %v2725
        %v2765 = vmul.f32 %v1670, %v2725
        %v2766 = vmul.f32 %v1672, %v2725
        %v2767 = vmul.f32 %v1673, %v2725
        %v2768 = vmul.f32 %v1675, %v2725
        %v2769 = vmul.f32 %v1676, %v2725
        %v2770 = vmul.f32 %v1678, %v2725
        %v2771 = vmul.f32 %v1679, %v2725
        %v2772 = vmul.f32 %v1681, %v2725
        %v2773 = vmul.f32 %v1682, %v2725
        %v2774 = vadd.f32 %v2674, %v2726
        %v2775 = vadd.f32 %v2675, %v2727
        %v2776 = vadd.f32 %v2676, %v2728
        %v2777 = vadd.f32 %v2677, %v2729
        %v2778 = vadd.f32 %v2678, %v2730
        %v2779 = vadd.f32 %v2679, %v2731
        %v2780 = vadd.f32 %v2680, %v2732
        %v2781 = vadd.f32 %v2681, %v2733
        %v2782 = vadd.f32 %v2682, %v2734
        %v2783 = vadd.f32 %v2683, %v2735
        %v2784 = vadd.f32 %v2684, %v2736
        %v2785 = vadd.f32 %v2685, %v2737
        %v2786 = vadd.f32 %v2686, %v2738
        %v2787 = vadd.f32 %v2687, %v2739
        %v2788 = vadd.f32 %v2688, %v2740
        %v2789 = vadd.f32 %v2689, %v2741
        %v2790 = vadd.f32 %v2690, %v2742
        %v2791 = vadd.f32 %v2691, %v2743
        %v2792 = vadd.f32 %v2692, %v2744
        %v2793 = vadd.f32 %v2693, %v2745
        %v2794 = vadd.f32 %v2694, %v2746
        %v2795 = vadd.f32 %v2695, %v2747
        %v2796 = vadd.f32 %v2696, %v2748
        %v2797 = vadd.f32 %v2697, %v2749
        %v2798 = vadd.f32 %v2698, %v2750
        %v2799 = vadd.f32 %v2699, %v2751
        %v2800 = vadd.f32 %v2700, %v2752
        %v2801 = vadd.f32 %v2701, %v2753
        %v2802 = vadd.f32 %v2702, %v2754
        %v2803 = vadd.f32 %v2703, %v2755
        %v2804 = vadd.f32 %v2704, %v2756
        %v2805 = vadd.f32 %v2705, %v2757
        %v2806 = vadd.f32 %v2706, %v2758
        %v2807 = vadd.f32 %v2707, %v2759
        %v2808 = vadd.f32 %v2708, %v2760
        %v2809 = vadd.f32 %v2709, %v2761
        %v2810 = vadd.f32 %v2710, %v2762
        %v2811 = vadd.f32 %v2711, %v2763
        %v2812 = vadd.f32 %v2712, %v2764
        %v2813 = vadd.f32 %v2713, %v2765
        %v2814 = vadd.f32 %v2714, %v2766
        %v2815 = vadd.f32 %v2715, %v2767
        %v2816 = vadd.f32 %v2716, %v2768
        %v2817 = vadd.f32 %v2717, %v2769
        %v2818 = vadd.f32 %v2718, %v2770
        %v2819 = vadd.f32 %v2719, %v2771
        %v2820 = vadd.f32 %v2720, %v2772
        %v2821 = vadd.f32 %v2721, %v2773
        %v2822 = vlaneseq
        %v2823 = vshrl.u32 %v2822, 7
        %v2824 = vsub.s32 4, %v2823
        %v2825 = vrot.slane %v557, %v2824
        %v2826 = vmul.f32 %v1857, %v2825
        %v2827 = vmul.f32 %v1858, %v2825
        %v2828 = vmul.f32 %v1860, %v2825
        %v2829 = vmul.f32 %v1861, %v2825
        %v2830 = vmul.f32 %v1863, %v2825
        %v2831 = vmul.f32 %v1864, %v2825
        %v2832 = vmul.f32 %v1866, %v2825
        %v2833 = vmul.f32 %v1867, %v2825
        %v2834 = vmul.f32 %v1869, %v2825
        %v2835 = vmul.f32 %v1870, %v2825
        %v2836 = vmul.f32 %v1872, %v2825
        %v2837 = vmul.f32 %v1873, %v2825
        %v2838 = vmul.f32 %v1875, %v2825
        %v2839 = vmul.f32 %v1876, %v2825
        %v2840 = vmul.f32 %v1878, %v2825
        %v2841 = vmul.f32 %v1879, %v2825
        %v2842 = vmul.f32 %v1881, %v2825
        %v2843 = vmul.f32 %v1882, %v2825
        %v2844 = vmul.f32 %v1884, %v2825
        %v2845 = vmul.f32 %v1885, %v2825
        %v2846 = vmul.f32 %v1887, %v2825
        %v2847 = vmul.f32 %v1888, %v2825
        %v2848 = vmul.f32 %v1890, %v2825
        %v2849 = vmul.f32 %v1891, %v2825
        %v2850 = vmul.f32 %v1893, %v2825
        %v2851 = vmul.f32 %v1894, %v2825
        %v2852 = vmul.f32 %v1896, %v2825
        %v2853 = vmul.f32 %v1897, %v2825
        %v2854 = vmul.f32 %v1899, %v2825
        %v2855 = vmul.f32 %v1900, %v2825
        %v2856 = vmul.f32 %v1902, %v2825
        %v2857 = vmul.f32 %v1903, %v2825
        %v2858 = vmul.f32 %v1905, %v2825
        %v2859 = vmul.f32 %v1906, %v2825
        %v2860 = vmul.f32 %v1908, %v2825
        %v2861 = vmul.f32 %v1909, %v2825
        %v2862 = vmul.f32 %v1911, %v2825
        %v2863 = vmul.f32 %v1912, %v2825
        %v2864 = vmul.f32 %v1914, %v2825
        %v2865 = vmul.f32 %v1915, %v2825
        %v2866 = vmul.f32 %v1917, %v2825
        %v2867 = vmul.f32 %v1918, %v2825
        %v2868 = vmul.f32 %v1920, %v2825
        %v2869 = vmul.f32 %v1921, %v2825
        %v2870 = vmul.f32 %v1923, %v2825
        %v2871 = vmul.f32 %v1924, %v2825
        %v2872 = vmul.f32 %v1926, %v2825
        %v2873 = vmul.f32 %v1927, %v2825
        %v2874 = vadd.f32 %v2774, %v2826
        %v2875 = vadd.f32 %v2775, %v2827
        %v2876 = vadd.f32 %v2776, %v2828
        %v2877 = vadd.f32 %v2777, %v2829
        %v2878 = vadd.f32 %v2778, %v2830
        %v2879 = vadd.f32 %v2779, %v2831
        %v2880 = vadd.f32 %v2780, %v2832
        %v2881 = vadd.f32 %v2781, %v2833
        %v2882 = vadd.f32 %v2782, %v2834
        %v2883 = vadd.f32 %v2783, %v2835
        %v2884 = vadd.f32 %v2784, %v2836
        %v2885 = vadd.f32 %v2785, %v2837
        %v2886 = vadd.f32 %v2786, %v2838
        %v2887 = vadd.f32 %v2787, %v2839
        %v2888 = vadd.f32 %v2788, %v2840
        %v2889 = vadd.f32 %v2789, %v2841
        %v2890 = vadd.f32 %v2790, %v2842
        %v2891 = vadd.f32 %v2791, %v2843
        %v2892 = vadd.f32 %v2792, %v2844
        %v2893 = vadd.f32 %v2793, %v2845
        %v2894 = vadd.f32 %v2794, %v2846
        %v2895 = vadd.f32 %v2795, %v2847
        %v2896 = vadd.f32 %v2796, %v2848
        %v2897 = vadd.f32 %v2797, %v2849
        %v2898 = vadd.f32 %v2798, %v2850
        %v2899 = vadd.f32 %v2799, %v2851
        %v2900 = vadd.f32 %v2800, %v2852
        %v2901 = vadd.f32 %v2801, %v2853
        %v2902 = vadd.f32 %v2802, %v2854
        %v2903 = vadd.f32 %v2803, %v2855
        %v2904 = vadd.f32 %v2804, %v2856
        %v2905 = vadd.f32 %v2805, %v2857
        %v2906 = vadd.f32 %v2806, %v2858
        %v2907 = vadd.f32 %v2807, %v2859
        %v2908 = vadd.f32 %v2808, %v2860
        %v2909 = vadd.f32 %v2809, %v2861
        %v2910 = vadd.f32 %v2810, %v2862
        %v2911 = vadd.f32 %v2811, %v2863
        %v2912 = vadd.f32 %v2812, %v2864
        %v2913 = vadd.f32 %v2813, %v2865
        %v2914 = vadd.f32 %v2814, %v2866
        %v2915 = vadd.f32 %v2815, %v2867
        %v2916 = vadd.f32 %v2816, %v2868
        %v2917 = vadd.f32 %v2817, %v2869
        %v2918 = vadd.f32 %v2818, %v2870
        %v2919 = vadd.f32 %v2819, %v2871
        %v2920 = vadd.f32 %v2820, %v2872
        %v2921 = vadd.f32 %v2821, %v2873
        %v2922 = vlaneseq
        %v2923 = vshrl.u32 %v2922, 7
        %v2924 = vsub.s32 3, %v2923
        %v2925 = vrot.slane %v558, %v2924
        %v2926 = vmul.f32 %v2102, %v2925
        %v2927 = vmul.f32 %v2103, %v2925
        %v2928 = vmul.f32 %v2105, %v2925
        %v2929 = vmul.f32 %v2106, %v2925
        %v2930 = vmul.f32 %v2108, %v2925
        %v2931 = vmul.f32 %v2109, %v2925
        %v2932 = vmul.f32 %v2111, %v2925
        %v2933 = vmul.f32 %v2112, %v2925
        %v2934 = vmul.f32 %v2114, %v2925
        %v2935 = vmul.f32 %v2115, %v2925
        %v2936 = vmul.f32 %v2117, %v2925
        %v2937 = vmul.f32 %v2118, %v2925
        %v2938 = vmul.f32 %v2120, %v2925
        %v2939 = vmul.f32 %v2121, %v2925
        %v2940 = vmul.f32 %v2123, %v2925
        %v2941 = vmul.f32 %v2124, %v2925
        %v2942 = vmul.f32 %v2126, %v2925
        %v2943 = vmul.f32 %v2127, %v2925
        %v2944 = vmul.f32 %v2129, %v2925
        %v2945 = vmul.f32 %v2130, %v2925
        %v2946 = vmul.f32 %v2132, %v2925
        %v2947 = vmul.f32 %v2133, %v2925
        %v2948 = vmul.f32 %v2135, %v2925
        %v2949 = vmul.f32 %v2136, %v2925
        %v2950 = vmul.f32 %v2138, %v2925
        %v2951 = vmul.f32 %v2139, %v2925
        %v2952 = vmul.f32 %v2141, %v2925
        %v2953 = vmul.f32 %v2142, %v2925
        %v2954 = vmul.f32 %v2144, %v2925
        %v2955 = vmul.f32 %v2145, %v2925
        %v2956 = vmul.f32 %v2147, %v2925
        %v2957 = vmul.f32 %v2148, %v2925
        %v2958 = vmul.f32 %v2150, %v2925
        %v2959 = vmul.f32 %v2151, %v2925
        %v2960 = vmul.f32 %v2153, %v2925
        %v2961 = vmul.f32 %v2154, %v2925
        %v2962 = vmul.f32 %v2156, %v2925
        %v2963 = vmul.f32 %v2157, %v2925
        %v2964 = vmul.f32 %v2159, %v2925
        %v2965 = vmul.f32 %v2160, %v2925
        %v2966 = vmul.f32 %v2162, %v2925
        %v2967 = vmul.f32 %v2163, %v2925
        %v2968 = vmul.f32 %v2165, %v2925
        %v2969 = vmul.f32 %v2166, %v2925
        %v2970 = vmul.f32 %v2168, %v2925
        %v2971 = vmul.f32 %v2169, %v2925
        %v2972 = vmul.f32 %v2171, %v2925
        %v2973 = vmul.f32 %v2172, %v2925
        %v2974 = vadd.f32 %v2874, %v2926
        %v2975 = vadd.f32 %v2875, %v2927
        %v2976 = vadd.f32 %v2876, %v2928
        %v2977 = vadd.f32 %v2877, %v2929
        %v2978 = vadd.f32 %v2878, %v2930
        %v2979 = vadd.f32 %v2879, %v2931
        %v2980 = vadd.f32 %v2880, %v2932
        %v2981 = vadd.f32 %v2881, %v2933
        %v2982 = vadd.f32 %v2882, %v2934
        %v2983 = vadd.f32 %v2883, %v2935
        %v2984 = vadd.f32 %v2884, %v2936
        %v2985 = vadd.f32 %v2885, %v2937
        %v2986 = vadd.f32 %v2886, %v2938
        %v2987 = vadd.f32 %v2887, %v2939
        %v2988 = vadd.f32 %v2888, %v2940
        %v2989 = vadd.f32 %v2889, %v2941
        %v2990 = vadd.f32 %v2890, %v2942
        %v2991 = vadd.f32 %v2891, %v2943
        %v2992 = vadd.f32 %v2892, %v2944
        %v2993 = vadd.f32 %v2893, %v2945
        %v2994 = vadd.f32 %v2894, %v2946
        %v2995 = vadd.f32 %v2895, %v2947
        %v2996 = vadd.f32 %v2896, %v2948
        %v2997 = vadd.f32 %v2897, %v2949
        %v2998 = vadd.f32 %v2898, %v2950
        %v2999 = vadd.f32 %v2899, %v2951
        %v3000 = vadd.f32 %v2900, %v2952
        %v3001 = vadd.f32 %v2901, %v2953
        %v3002 = vadd.f32 %v2902, %v2954
        %v3003 = vadd.f32 %v2903, %v2955
        %v3004 = vadd.f32 %v2904, %v2956
        %v3005 = vadd.f32 %v2905, %v2957
        %v3006 = vadd.f32 %v2906, %v2958
        %v3007 = vadd.f32 %v2907, %v2959
        %v3008 = vadd.f32 %v2908, %v2960
        %v3009 = vadd.f32 %v2909, %v2961
        %v3010 = vadd.f32 %v2910, %v2962
        %v3011 = vadd.f32 %v2911, %v2963
        %v3012 = vadd.f32 %v2912, %v2964
        %v3013 = vadd.f32 %v2913, %v2965
        %v3014 = vadd.f32 %v2914, %v2966
        %v3015 = vadd.f32 %v2915, %v2967
        %v3016 = vadd.f32 %v2916, %v2968
        %v3017 = vadd.f32 %v2917, %v2969
        %v3018 = vadd.f32 %v2918, %v2970
        %v3019 = vadd.f32 %v2919, %v2971
        %v3020 = vadd.f32 %v2920, %v2972
        %v3021 = vadd.f32 %v2921, %v2973
        %vm3070 = vcmask 1046528
        %v3071 = vrot.slane %v2974, 1
        %v3072 = vrot.slane %v2975, 1
        %v3073 = vsel %vm3070, %v3071, %v3072
        %v3074 = vrot.slane %v2976, 1
        %v3075 = vrot.slane %v2977, 1
        %v3076 = vsel %vm3070, %v3074, %v3075
        %v3077 = vrot.slane %v2978, 1
        %v3078 = vrot.slane %v2979, 1
        %v3079 = vsel %vm3070, %v3077, %v3078
        %v3080 = vrot.slane %v2980, 1
        %v3081 = vrot.slane %v2981, 1
        %v3082 = vsel %vm3070, %v3080, %v3081
        %v3083 = vrot.slane %v2982, 1
        %v3084 = vrot.slane %v2983, 1
        %v3085 = vsel %vm3070, %v3083, %v3084
        %v3086 = vrot.slane %v2984, 1
        %v3087 = vrot.slane %v2985, 1
        %v3088 = vsel %vm3070, %v3086, %v3087
        %v3089 = vrot.slane %v2986, 1
        %v3090 = vrot.slane %v2987, 1
        %v3091 = vsel %vm3070, %v3089, %v3090
        %v3092 = vrot.slane %v2988, 1
        %v3093 = vrot.slane %v2989, 1
        %v3094 = vsel %vm3070, %v3092, %v3093
        %v3095 = vrot.slane %v2990, 1
        %v3096 = vrot.slane %v2991, 1
        %v3097 = vsel %vm3070, %v3095, %v3096
        %v3098 = vrot.slane %v2992, 1
        %v3099 = vrot.slane %v2993, 1
        %v3100 = vsel %vm3070, %v3098, %v3099
        %v3101 = vrot.slane %v2994, 1
        %v3102 = vrot.slane %v2995, 1
        %v3103 = vsel %vm3070, %v3101, %v3102
        %v3104 = vrot.slane %v2996, 1
        %v3105 = vrot.slane %v2997, 1
        %v3106 = vsel %vm3070, %v3104, %v3105
        %v3107 = vrot.slane %v2998, 1
        %v3108 = vrot.slane %v2999, 1
        %v3109 = vsel %vm3070, %v3107, %v3108
        %v3110 = vrot.slane %v3000, 1
        %v3111 = vrot.slane %v3001, 1
        %v3112 = vsel %vm3070, %v3110, %v3111
        %v3113 = vrot.slane %v3002, 1
        %v3114 = vrot.slane %v3003, 1
        %v3115 = vsel %vm3070, %v3113, %v3114
        %v3116 = vrot.slane %v3004, 1
        %v3117 = vrot.slane %v3005, 1
        %v3118 = vsel %vm3070, %v3116, %v3117
        %v3119 = vrot.slane %v3006, 1
        %v3120 = vrot.slane %v3007, 1
        %v3121 = vsel %vm3070, %v3119, %v3120
        %v3122 = vrot.slane %v3008, 1
        %v3123 = vrot.slane %v3009, 1
        %v3124 = vsel %vm3070, %v3122, %v3123
        %v3125 = vrot.slane %v3010, 1
        %v3126 = vrot.slane %v3011, 1
        %v3127 = vsel %vm3070, %v3125, %v3126
        %v3128 = vrot.slane %v3012, 1
        %v3129 = vrot.slane %v3013, 1
        %v3130 = vsel %vm3070, %v3128, %v3129
        %v3131 = vrot.slane %v3014, 1
        %v3132 = vrot.slane %v3015, 1
        %v3133 = vsel %vm3070, %v3131, %v3132
        %v3134 = vrot.slane %v3016, 1
        %v3135 = vrot.slane %v3017, 1
        %v3136 = vsel %vm3070, %v3134, %v3135
        %v3137 = vrot.slane %v3018, 1
        %v3138 = vrot.slane %v3019, 1
        %v3139 = vsel %vm3070, %v3137, %v3138
        %v3140 = vrot.slane %v3020, 1
        %v3141 = vrot.slane %v3021, 1
        %v3142 = vsel %vm3070, %v3140, %v3141
        %v3191 = vadd.f32 %v2274, %v3073
        %v3192 = vadd.f32 %v2275, %v3072
        %v3193 = vadd.f32 %v2276, %v3076
        %v3194 = vadd.f32 %v2277, %v3075
        %v3195 = vadd.f32 %v2278, %v3079
        %v3196 = vadd.f32 %v2279, %v3078
        %v3197 = vadd.f32 %v2280, %v3082
        %v3198 = vadd.f32 %v2281, %v3081
        %v3199 = vadd.f32 %v2282, %v3085
        %v3200 = vadd.f32 %v2283, %v3084
        %v3201 = vadd.f32 %v2284, %v3088
        %v3202 = vadd.f32 %v2285, %v3087
        %v3203 = vadd.f32 %v2286, %v3091
        %v3204 = vadd.f32 %v2287, %v3090
        %v3205 = vadd.f32 %v2288, %v3094
        %v3206 = vadd.f32 %v2289, %v3093
        %v3207 = vadd.f32 %v2290, %v3097
        %v3208 = vadd.f32 %v2291, %v3096
        %v3209 = vadd.f32 %v2292, %v3100
        %v3210 = vadd.f32 %v2293, %v3099
        %v3211 = vadd.f32 %v2294, %v3103
        %v3212 = vadd.f32 %v2295, %v3102
        %v3213 = vadd.f32 %v2296, %v3106
        %v3214 = vadd.f32 %v2297, %v3105
        %v3215 = vadd.f32 %v2298, %v3109
        %v3216 = vadd.f32 %v2299, %v3108
        %v3217 = vadd.f32 %v2300, %v3112
        %v3218 = vadd.f32 %v2301, %v3111
        %v3219 = vadd.f32 %v2302, %v3115
        %v3220 = vadd.f32 %v2303, %v3114
        %v3221 = vadd.f32 %v2304, %v3118
        %v3222 = vadd.f32 %v2305, %v3117
        %v3223 = vadd.f32 %v2306, %v3121
        %v3224 = vadd.f32 %v2307, %v3120
        %v3225 = vadd.f32 %v2308, %v3124
        %v3226 = vadd.f32 %v2309, %v3123
        %v3227 = vadd.f32 %v2310, %v3127
        %v3228 = vadd.f32 %v2311, %v3126
        %v3229 = vadd.f32 %v2312, %v3130
        %v3230 = vadd.f32 %v2313, %v3129
        %v3231 = vadd.f32 %v2314, %v3133
        %v3232 = vadd.f32 %v2315, %v3132
        %v3233 = vadd.f32 %v2316, %v3136
        %v3234 = vadd.f32 %v2317, %v3135
        %v3235 = vadd.f32 %v2318, %v3139
        %v3236 = vadd.f32 %v2319, %v3138
        %v3237 = vadd.f32 %v2320, %v3142
        %v3238 = vadd.f32 %v2321, %v3141
        %v3239 = vlaneseq
        %v3240 = vshrl.u32 %v3239, 7
        %v3241 = vsub.s32 2, %v3240
        %v3242 = vrot.slane %v553, %v3241
        %v3243 = vmul.f32 %v632, %v3242
        %v3244 = vmul.f32 %v633, %v3242
        %v3245 = vmul.f32 %v635, %v3242
        %v3246 = vmul.f32 %v636, %v3242
        %v3247 = vmul.f32 %v638, %v3242
        %v3248 = vmul.f32 %v639, %v3242
        %v3249 = vmul.f32 %v641, %v3242
        %v3250 = vmul.f32 %v642, %v3242
        %v3251 = vmul.f32 %v644, %v3242
        %v3252 = vmul.f32 %v645, %v3242
        %v3253 = vmul.f32 %v647, %v3242
        %v3254 = vmul.f32 %v648, %v3242
        %v3255 = vmul.f32 %v650, %v3242
        %v3256 = vmul.f32 %v651, %v3242
        %v3257 = vmul.f32 %v653, %v3242
        %v3258 = vmul.f32 %v654, %v3242
        %v3259 = vmul.f32 %v656, %v3242
        %v3260 = vmul.f32 %v657, %v3242
        %v3261 = vmul.f32 %v659, %v3242
        %v3262 = vmul.f32 %v660, %v3242
        %v3263 = vmul.f32 %v662, %v3242
        %v3264 = vmul.f32 %v663, %v3242
        %v3265 = vmul.f32 %v665, %v3242
        %v3266 = vmul.f32 %v666, %v3242
        %v3267 = vmul.f32 %v668, %v3242
        %v3268 = vmul.f32 %v669, %v3242
        %v3269 = vmul.f32 %v671, %v3242
        %v3270 = vmul.f32 %v672, %v3242
        %v3271 = vmul.f32 %v674, %v3242
        %v3272 = vmul.f32 %v675, %v3242
        %v3273 = vmul.f32 %v677, %v3242
        %v3274 = vmul.f32 %v678, %v3242
        %v3275 = vmul.f32 %v680, %v3242
        %v3276 = vmul.f32 %v681, %v3242
        %v3277 = vmul.f32 %v683, %v3242
        %v3278 = vmul.f32 %v684, %v3242
        %v3279 = vmul.f32 %v686, %v3242
        %v3280 = vmul.f32 %v687, %v3242
        %v3281 = vmul.f32 %v689, %v3242
        %v3282 = vmul.f32 %v690, %v3242
        %v3283 = vmul.f32 %v692, %v3242
        %v3284 = vmul.f32 %v693, %v3242
        %v3285 = vmul.f32 %v695, %v3242
        %v3286 = vmul.f32 %v696, %v3242
        %v3287 = vmul.f32 %v698, %v3242
        %v3288 = vmul.f32 %v699, %v3242
        %v3289 = vmul.f32 %v701, %v3242
        %v3290 = vmul.f32 %v702, %v3242
        %v3291 = vadd.f32 %v3243, 0.0
        %v3292 = vadd.f32 %v3244, 0.0
        %v3293 = vadd.f32 %v3245, 0.0
        %v3294 = vadd.f32 %v3246, 0.0
        %v3295 = vadd.f32 %v3247, 0.0
        %v3296 = vadd.f32 %v3248, 0.0
        %v3297 = vadd.f32 %v3249, 0.0
        %v3298 = vadd.f32 %v3250, 0.0
        %v3299 = vadd.f32 %v3251, 0.0
        %v3300 = vadd.f32 %v3252, 0.0
        %v3301 = vadd.f32 %v3253, 0.0
        %v3302 = vadd.f32 %v3254, 0.0
        %v3303 = vadd.f32 %v3255, 0.0
        %v3304 = vadd.f32 %v3256, 0.0
        %v3305 = vadd.f32 %v3257, 0.0
        %v3306 = vadd.f32 %v3258, 0.0
        %v3307 = vadd.f32 %v3259, 0.0
        %v3308 = vadd.f32 %v3260, 0.0
        %v3309 = vadd.f32 %v3261, 0.0
        %v3310 = vadd.f32 %v3262, 0.0
        %v3311 = vadd.f32 %v3263, 0.0
        %v3312 = vadd.f32 %v3264, 0.0
        %v3313 = vadd.f32 %v3265, 0.0
        %v3314 = vadd.f32 %v3266, 0.0
        %v3315 = vadd.f32 %v3267, 0.0
        %v3316 = vadd.f32 %v3268, 0.0
        %v3317 = vadd.f32 %v3269, 0.0
        %v3318 = vadd.f32 %v3270, 0.0
        %v3319 = vadd.f32 %v3271, 0.0
        %v3320 = vadd.f32 %v3272, 0.0
        %v3321 = vadd.f32 %v3273, 0.0
        %v3322 = vadd.f32 %v3274, 0.0
        %v3323 = vadd.f32 %v3275, 0.0
        %v3324 = vadd.f32 %v3276, 0.0
        %v3325 = vadd.f32 %v3277, 0.0
        %v3326 = vadd.f32 %v3278, 0.0
        %v3327 = vadd.f32 %v3279, 0.0
        %v3328 = vadd.f32 %v3280, 0.0
        %v3329 = vadd.f32 %v3281, 0.0
        %v3330 = vadd.f32 %v3282, 0.0
        %v3331 = vadd.f32 %v3283, 0.0
        %v3332 = vadd.f32 %v3284, 0.0
        %v3333 = vadd.f32 %v3285, 0.0
        %v3334 = vadd.f32 %v3286, 0.0
        %v3335 = vadd.f32 %v3287, 0.0
        %v3336 = vadd.f32 %v3288, 0.0
        %v3337 = vadd.f32 %v3289, 0.0
        %v3338 = vadd.f32 %v3290, 0.0
        %v3339 = vlaneseq
        %v3340 = vshrl.u32 %v3339, 7
        %v3341 = vsub.s32 1, %v3340
        %v3342 = vrot.slane %v554, %v3341
        %v3343 = vmul.f32 %v877, %v3342
        %v3344 = vmul.f32 %v878, %v3342
        %v3345 = vmul.f32 %v880, %v3342
        %v3346 = vmul.f32 %v881, %v3342
        %v3347 = vmul.f32 %v883, %v3342
        %v3348 = vmul.f32 %v884, %v3342
        %v3349 = vmul.f32 %v886, %v3342
        %v3350 = vmul.f32 %v887, %v3342
        %v3351 = vmul.f32 %v889, %v3342
        %v3352 = vmul.f32 %v890, %v3342
        %v3353 = vmul.f32 %v892, %v3342
        %v3354 = vmul.f32 %v893, %v3342
        %v3355 = vmul.f32 %v895, %v3342
        %v3356 = vmul.f32 %v896, %v3342
        %v3357 = vmul.f32 %v898, %v3342
        %v3358 = vmul.f32 %v899, %v3342
        %v3359 = vmul.f32 %v901, %v3342
        %v3360 = vmul.f32 %v902, %v3342
        %v3361 = vmul.f32 %v904, %v3342
        %v3362 = vmul.f32 %v905, %v3342
        %v3363 = vmul.f32 %v907, %v3342
        %v3364 = vmul.f32 %v908, %v3342
        %v3365 = vmul.f32 %v910, %v3342
        %v3366 = vmul.f32 %v911, %v3342
        %v3367 = vmul.f32 %v913, %v3342
        %v3368 = vmul.f32 %v914, %v3342
        %v3369 = vmul.f32 %v916, %v3342
        %v3370 = vmul.f32 %v917, %v3342
        %v3371 = vmul.f32 %v919, %v3342
        %v3372 = vmul.f32 %v920, %v3342
        %v3373 = vmul.f32 %v922, %v3342
        %v3374 = vmul.f32 %v923, %v3342
        %v3375 = vmul.f32 %v925, %v3342
        %v3376 = vmul.f32 %v926, %v3342
        %v3377 = vmul.f32 %v928, %v3342
        %v3378 = vmul.f32 %v929, %v3342
        %v3379 = vmul.f32 %v931, %v3342
        %v3380 = vmul.f32 %v932, %v3342
        %v3381 = vmul.f32 %v934, %v3342
        %v3382 = vmul.f32 %v935, %v3342
        %v3383 = vmul.f32 %v937, %v3342
        %v3384 = vmul.f32 %v938, %v3342
        %v3385 = vmul.f32 %v940, %v3342
        %v3386 = vmul.f32 %v941, %v3342
        %v3387 = vmul.f32 %v943, %v3342
        %v3388 = vmul.f32 %v944, %v3342
        %v3389 = vmul.f32 %v946, %v3342
        %v3390 = vmul.f32 %v947, %v3342
        %v3391 = vadd.f32 %v3291, %v3343
        %v3392 = vadd.f32 %v3292, %v3344
        %v3393 = vadd.f32 %v3293, %v3345
        %v3394 = vadd.f32 %v3294, %v3346
        %v3395 = vadd.f32 %v3295, %v3347
        %v3396 = vadd.f32 %v3296, %v3348
        %v3397 = vadd.f32 %v3297, %v3349
        %v3398 = vadd.f32 %v3298, %v3350
        %v3399 = vadd.f32 %v3299, %v3351
        %v3400 = vadd.f32 %v3300, %v3352
        %v3401 = vadd.f32 %v3301, %v3353
        %v3402 = vadd.f32 %v3302, %v3354
        %v3403 = vadd.f32 %v3303, %v3355
        %v3404 = vadd.f32 %v3304, %v3356
        %v3405 = vadd.f32 %v3305, %v3357
        %v3406 = vadd.f32 %v3306, %v3358
        %v3407 = vadd.f32 %v3307, %v3359
        %v3408 = vadd.f32 %v3308, %v3360
        %v3409 = vadd.f32 %v3309, %v3361
        %v3410 = vadd.f32 %v3310, %v3362
        %v3411 = vadd.f32 %v3311, %v3363
        %v3412 = vadd.f32 %v3312, %v3364
        %v3413 = vadd.f32 %v3313, %v3365
        %v3414 = vadd.f32 %v3314, %v3366
        %v3415 = vadd.f32 %v3315, %v3367
        %v3416 = vadd.f32 %v3316, %v3368
        %v3417 = vadd.f32 %v3317, %v3369
        %v3418 = vadd.f32 %v3318, %v3370
        %v3419 = vadd.f32 %v3319, %v3371
        %v3420 = vadd.f32 %v3320, %v3372
        %v3421 = vadd.f32 %v3321, %v3373
        %v3422 = vadd.f32 %v3322, %v3374
        %v3423 = vadd.f32 %v3323, %v3375
        %v3424 = vadd.f32 %v3324, %v3376
        %v3425 = vadd.f32 %v3325, %v3377
        %v3426 = vadd.f32 %v3326, %v3378
        %v3427 = vadd.f32 %v3327, %v3379
        %v3428 = vadd.f32 %v3328, %v3380
        %v3429 = vadd.f32 %v3329, %v3381
        %v3430 = vadd.f32 %v3330, %v3382
        %v3431 = vadd.f32 %v3331, %v3383
        %v3432 = vadd.f32 %v3332, %v3384
        %v3433 = vadd.f32 %v3333, %v3385
        %v3434 = vadd.f32 %v3334, %v3386
        %v3435 = vadd.f32 %v3335, %v3387
        %v3436 = vadd.f32 %v3336, %v3388
        %v3437 = vadd.f32 %v3337, %v3389
        %v3438 = vadd.f32 %v3338, %v3390
        %v3439 = vlaneseq
        %v3440 = vshrl.u32 %v3439, 7
        %v3441 = vsub.s32 0, %v3440
        %v3442 = vrot.slane %v555, %v3441
        %v3443 = vmul.f32 %v1122, %v3442
        %v3444 = vmul.f32 %v1123, %v3442
        %v3445 = vmul.f32 %v1125, %v3442
        %v3446 = vmul.f32 %v1126, %v3442
        %v3447 = vmul.f32 %v1128, %v3442
        %v3448 = vmul.f32 %v1129, %v3442
        %v3449 = vmul.f32 %v1131, %v3442
        %v3450 = vmul.f32 %v1132, %v3442
        %v3451 = vmul.f32 %v1134, %v3442
        %v3452 = vmul.f32 %v1135, %v3442
        %v3453 = vmul.f32 %v1137, %v3442
        %v3454 = vmul.f32 %v1138, %v3442
        %v3455 = vmul.f32 %v1140, %v3442
        %v3456 = vmul.f32 %v1141, %v3442
        %v3457 = vmul.f32 %v1143, %v3442
        %v3458 = vmul.f32 %v1144, %v3442
        %v3459 = vmul.f32 %v1146, %v3442
        %v3460 = vmul.f32 %v1147, %v3442
        %v3461 = vmul.f32 %v1149, %v3442
        %v3462 = vmul.f32 %v1150, %v3442
        %v3463 = vmul.f32 %v1152, %v3442
        %v3464 = vmul.f32 %v1153, %v3442
        %v3465 = vmul.f32 %v1155, %v3442
        %v3466 = vmul.f32 %v1156, %v3442
        %v3467 = vmul.f32 %v1158, %v3442
        %v3468 = vmul.f32 %v1159, %v3442
        %v3469 = vmul.f32 %v1161, %v3442
        %v3470 = vmul.f32 %v1162, %v3442
        %v3471 = vmul.f32 %v1164, %v3442
        %v3472 = vmul.f32 %v1165, %v3442
        %v3473 = vmul.f32 %v1167, %v3442
        %v3474 = vmul.f32 %v1168, %v3442
        %v3475 = vmul.f32 %v1170, %v3442
        %v3476 = vmul.f32 %v1171, %v3442
        %v3477 = vmul.f32 %v1173, %v3442
        %v3478 = vmul.f32 %v1174, %v3442
        %v3479 = vmul.f32 %v1176, %v3442
        %v3480 = vmul.f32 %v1177, %v3442
        %v3481 = vmul.f32 %v1179, %v3442
        %v3482 = vmul.f32 %v1180, %v3442
        %v3483 = vmul.f32 %v1182, %v3442
        %v3484 = vmul.f32 %v1183, %v3442
        %v3485 = vmul.f32 %v1185, %v3442
        %v3486 = vmul.f32 %v1186, %v3442
        %v3487 = vmul.f32 %v1188, %v3442
        %v3488 = vmul.f32 %v1189, %v3442
        %v3489 = vmul.f32 %v1191, %v3442
        %v3490 = vmul.f32 %v1192, %v3442
        %v3491 = vadd.f32 %v3391, %v3443
        %v3492 = vadd.f32 %v3392, %v3444
        %v3493 = vadd.f32 %v3393, %v3445
        %v3494 = vadd.f32 %v3394, %v3446
        %v3495 = vadd.f32 %v3395, %v3447
        %v3496 = vadd.f32 %v3396, %v3448
        %v3497 = vadd.f32 %v3397, %v3449
        %v3498 = vadd.f32 %v3398, %v3450
        %v3499 = vadd.f32 %v3399, %v3451
        %v3500 = vadd.f32 %v3400, %v3452
        %v3501 = vadd.f32 %v3401, %v3453
        %v3502 = vadd.f32 %v3402, %v3454
        %v3503 = vadd.f32 %v3403, %v3455
        %v3504 = vadd.f32 %v3404, %v3456
        %v3505 = vadd.f32 %v3405, %v3457
        %v3506 = vadd.f32 %v3406, %v3458
        %v3507 = vadd.f32 %v3407, %v3459
        %v3508 = vadd.f32 %v3408, %v3460
        %v3509 = vadd.f32 %v3409, %v3461
        %v3510 = vadd.f32 %v3410, %v3462
        %v3511 = vadd.f32 %v3411, %v3463
        %v3512 = vadd.f32 %v3412, %v3464
        %v3513 = vadd.f32 %v3413, %v3465
        %v3514 = vadd.f32 %v3414, %v3466
        %v3515 = vadd.f32 %v3415, %v3467
        %v3516 = vadd.f32 %v3416, %v3468
        %v3517 = vadd.f32 %v3417, %v3469
        %v3518 = vadd.f32 %v3418, %v3470
        %v3519 = vadd.f32 %v3419, %v3471
        %v3520 = vadd.f32 %v3420, %v3472
        %v3521 = vadd.f32 %v3421, %v3473
        %v3522 = vadd.f32 %v3422, %v3474
        %v3523 = vadd.f32 %v3423, %v3475
        %v3524 = vadd.f32 %v3424, %v3476
        %v3525 = vadd.f32 %v3425, %v3477
        %v3526 = vadd.f32 %v3426, %v3478
        %v3527 = vadd.f32 %v3427, %v3479
        %v3528 = vadd.f32 %v3428, %v3480
        %v3529 = vadd.f32 %v3429, %v3481
        %v3530 = vadd.f32 %v3430, %v3482
        %v3531 = vadd.f32 %v3431, %v3483
        %v3532 = vadd.f32 %v3432, %v3484
        %v3533 = vadd.f32 %v3433, %v3485
        %v3534 = vadd.f32 %v3434, %v3486
        %v3535 = vadd.f32 %v3435, %v3487
        %v3536 = vadd.f32 %v3436, %v3488
        %v3537 = vadd.f32 %v3437, %v3489
        %v3538 = vadd.f32 %v3438, %v3490
        %v3539 = vlaneseq
        %v3540 = vshrl.u32 %v3539, 7
        %v3541 = vsub.s32 7, %v3540
        %v3542 = vrot.slane %v555, %v3541
        %v3543 = vmul.f32 %v1367, %v3542
        %v3544 = vmul.f32 %v1368, %v3542
        %v3545 = vmul.f32 %v1370, %v3542
        %v3546 = vmul.f32 %v1371, %v3542
        %v3547 = vmul.f32 %v1373, %v3542
        %v3548 = vmul.f32 %v1374, %v3542
        %v3549 = vmul.f32 %v1376, %v3542
        %v3550 = vmul.f32 %v1377, %v3542
        %v3551 = vmul.f32 %v1379, %v3542
        %v3552 = vmul.f32 %v1380, %v3542
        %v3553 = vmul.f32 %v1382, %v3542
        %v3554 = vmul.f32 %v1383, %v3542
        %v3555 = vmul.f32 %v1385, %v3542
        %v3556 = vmul.f32 %v1386, %v3542
        %v3557 = vmul.f32 %v1388, %v3542
        %v3558 = vmul.f32 %v1389, %v3542
        %v3559 = vmul.f32 %v1391, %v3542
        %v3560 = vmul.f32 %v1392, %v3542
        %v3561 = vmul.f32 %v1394, %v3542
        %v3562 = vmul.f32 %v1395, %v3542
        %v3563 = vmul.f32 %v1397, %v3542
        %v3564 = vmul.f32 %v1398, %v3542
        %v3565 = vmul.f32 %v1400, %v3542
        %v3566 = vmul.f32 %v1401, %v3542
        %v3567 = vmul.f32 %v1403, %v3542
        %v3568 = vmul.f32 %v1404, %v3542
        %v3569 = vmul.f32 %v1406, %v3542
        %v3570 = vmul.f32 %v1407, %v3542
        %v3571 = vmul.f32 %v1409, %v3542
        %v3572 = vmul.f32 %v1410, %v3542
        %v3573 = vmul.f32 %v1412, %v3542
        %v3574 = vmul.f32 %v1413, %v3542
        %v3575 = vmul.f32 %v1415, %v3542
        %v3576 = vmul.f32 %v1416, %v3542
        %v3577 = vmul.f32 %v1418, %v3542
        %v3578 = vmul.f32 %v1419, %v3542
        %v3579 = vmul.f32 %v1421, %v3542
        %v3580 = vmul.f32 %v1422, %v3542
        %v3581 = vmul.f32 %v1424, %v3542
        %v3582 = vmul.f32 %v1425, %v3542
        %v3583 = vmul.f32 %v1427, %v3542
        %v3584 = vmul.f32 %v1428, %v3542
        %v3585 = vmul.f32 %v1430, %v3542
        %v3586 = vmul.f32 %v1431, %v3542
        %v3587 = vmul.f32 %v1433, %v3542
        %v3588 = vmul.f32 %v1434, %v3542
        %v3589 = vmul.f32 %v1436, %v3542
        %v3590 = vmul.f32 %v1437, %v3542
        %v3591 = vadd.f32 %v3491, %v3543
        %v3592 = vadd.f32 %v3492, %v3544
        %v3593 = vadd.f32 %v3493, %v3545
        %v3594 = vadd.f32 %v3494, %v3546
        %v3595 = vadd.f32 %v3495, %v3547
        %v3596 = vadd.f32 %v3496, %v3548
        %v3597 = vadd.f32 %v3497, %v3549
        %v3598 = vadd.f32 %v3498, %v3550
        %v3599 = vadd.f32 %v3499, %v3551
        %v3600 = vadd.f32 %v3500, %v3552
        %v3601 = vadd.f32 %v3501, %v3553
        %v3602 = vadd.f32 %v3502, %v3554
        %v3603 = vadd.f32 %v3503, %v3555
        %v3604 = vadd.f32 %v3504, %v3556
        %v3605 = vadd.f32 %v3505, %v3557
        %v3606 = vadd.f32 %v3506, %v3558
        %v3607 = vadd.f32 %v3507, %v3559
        %v3608 = vadd.f32 %v3508, %v3560
        %v3609 = vadd.f32 %v3509, %v3561
        %v3610 = vadd.f32 %v3510, %v3562
        %v3611 = vadd.f32 %v3511, %v3563
        %v3612 = vadd.f32 %v3512, %v3564
        %v3613 = vadd.f32 %v3513, %v3565
        %v3614 = vadd.f32 %v3514, %v3566
        %v3615 = vadd.f32 %v3515, %v3567
        %v3616 = vadd.f32 %v3516, %v3568
        %v3617 = vadd.f32 %v3517, %v3569
        %v3618 = vadd.f32 %v3518, %v3570
        %v3619 = vadd.f32 %v3519, %v3571
        %v3620 = vadd.f32 %v3520, %v3572
        %v3621 = vadd.f32 %v3521, %v3573
        %v3622 = vadd.f32 %v3522, %v3574
        %v3623 = vadd.f32 %v3523, %v3575
        %v3624 = vadd.f32 %v3524, %v3576
        %v3625 = vadd.f32 %v3525, %v3577
        %v3626 = vadd.f32 %v3526, %v3578
        %v3627 = vadd.f32 %v3527, %v3579
        %v3628 = vadd.f32 %v3528, %v3580
        %v3629 = vadd.f32 %v3529, %v3581
        %v3630 = vadd.f32 %v3530, %v3582
        %v3631 = vadd.f32 %v3531, %v3583
        %v3632 = vadd.f32 %v3532, %v3584
        %v3633 = vadd.f32 %v3533, %v3585
        %v3634 = vadd.f32 %v3534, %v3586
        %v3635 = vadd.f32 %v3535, %v3587
        %v3636 = vadd.f32 %v3536, %v3588
        %v3637 = vadd.f32 %v3537, %v3589
        %v3638 = vadd.f32 %v3538, %v3590
        %v3639 = vlaneseq
        %v3640 = vshrl.u32 %v3639, 7
        %v3641 = vsub.s32 6, %v3640
        %v3642 = vrot.slane %v556, %v3641
        %v3643 = vmul.f32 %v1612, %v3642
        %v3644 = vmul.f32 %v1613, %v3642
        %v3645 = vmul.f32 %v1615, %v3642
        %v3646 = vmul.f32 %v1616, %v3642
        %v3647 = vmul.f32 %v1618, %v3642
        %v3648 = vmul.f32 %v1619, %v3642
        %v3649 = vmul.f32 %v1621, %v3642
        %v3650 = vmul.f32 %v1622, %v3642
        %v3651 = vmul.f32 %v1624, %v3642
        %v3652 = vmul.f32 %v1625, %v3642
        %v3653 = vmul.f32 %v1627, %v3642
        %v3654 = vmul.f32 %v1628, %v3642
        %v3655 = vmul.f32 %v1630, %v3642
        %v3656 = vmul.f32 %v1631, %v3642
        %v3657 = vmul.f32 %v1633, %v3642
        %v3658 = vmul.f32 %v1634, %v3642
        %v3659 = vmul.f32 %v1636, %v3642
        %v3660 = vmul.f32 %v1637, %v3642
        %v3661 = vmul.f32 %v1639, %v3642
        %v3662 = vmul.f32 %v1640, %v3642
        %v3663 = vmul.f32 %v1642, %v3642
        %v3664 = vmul.f32 %v1643, %v3642
        %v3665 = vmul.f32 %v1645, %v3642
        %v3666 = vmul.f32 %v1646, %v3642
        %v3667 = vmul.f32 %v1648, %v3642
        %v3668 = vmul.f32 %v1649, %v3642
        %v3669 = vmul.f32 %v1651, %v3642
        %v3670 = vmul.f32 %v1652, %v3642
        %v3671 = vmul.f32 %v1654, %v3642
        %v3672 = vmul.f32 %v1655, %v3642
        %v3673 = vmul.f32 %v1657, %v3642
        %v3674 = vmul.f32 %v1658, %v3642
        %v3675 = vmul.f32 %v1660, %v3642
        %v3676 = vmul.f32 %v1661, %v3642
        %v3677 = vmul.f32 %v1663, %v3642
        %v3678 = vmul.f32 %v1664, %v3642
        %v3679 = vmul.f32 %v1666, %v3642
        %v3680 = vmul.f32 %v1667, %v3642
        %v3681 = vmul.f32 %v1669, %v3642
        %v3682 = vmul.f32 %v1670, %v3642
        %v3683 = vmul.f32 %v1672, %v3642
        %v3684 = vmul.f32 %v1673, %v3642
        %v3685 = vmul.f32 %v1675, %v3642
        %v3686 = vmul.f32 %v1676, %v3642
        %v3687 = vmul.f32 %v1678, %v3642
        %v3688 = vmul.f32 %v1679, %v3642
        %v3689 = vmul.f32 %v1681, %v3642
        %v3690 = vmul.f32 %v1682, %v3642
        %v3691 = vadd.f32 %v3591, %v3643
        %v3692 = vadd.f32 %v3592, %v3644
        %v3693 = vadd.f32 %v3593, %v3645
        %v3694 = vadd.f32 %v3594, %v3646
        %v3695 = vadd.f32 %v3595, %v3647
        %v3696 = vadd.f32 %v3596, %v3648
        %v3697 = vadd.f32 %v3597, %v3649
        %v3698 = vadd.f32 %v3598, %v3650
        %v3699 = vadd.f32 %v3599, %v3651
        %v3700 = vadd.f32 %v3600, %v3652
        %v3701 = vadd.f32 %v3601, %v3653
        %v3702 = vadd.f32 %v3602, %v3654
        %v3703 = vadd.f32 %v3603, %v3655
        %v3704 = vadd.f32 %v3604, %v3656
        %v3705 = vadd.f32 %v3605, %v3657
        %v3706 = vadd.f32 %v3606, %v3658
        %v3707 = vadd.f32 %v3607, %v3659
        %v3708 = vadd.f32 %v3608, %v3660
        %v3709 = vadd.f32 %v3609, %v3661
        %v3710 = vadd.f32 %v3610, %v3662
        %v3711 = vadd.f32 %v3611, %v3663
        %v3712 = vadd.f32 %v3612, %v3664
        %v3713 = vadd.f32 %v3613, %v3665
        %v3714 = vadd.f32 %v3614, %v3666
        %v3715 = vadd.f32 %v3615, %v3667
        %v3716 = vadd.f32 %v3616, %v3668
        %v3717 = vadd.f32 %v3617, %v3669
        %v3718 = vadd.f32 %v3618, %v3670
        %v3719 = vadd.f32 %v3619, %v3671
        %v3720 = vadd.f32 %v3620, %v3672
        %v3721 = vadd.f32 %v3621, %v3673
        %v3722 = vadd.f32 %v3622, %v3674
        %v3723 = vadd.f32 %v3623, %v3675
        %v3724 = vadd.f32 %v3624, %v3676
        %v3725 = vadd.f32 %v3625, %v3677
        %v3726 = vadd.f32 %v3626, %v3678
        %v3727 = vadd.f32 %v3627, %v3679
        %v3728 = vadd.f32 %v3628, %v3680
        %v3729 = vadd.f32 %v3629, %v3681
        %v3730 = vadd.f32 %v3630, %v3682
        %v3731 = vadd.f32 %v3631, %v3683
        %v3732 = vadd.f32 %v3632, %v3684
        %v3733 = vadd.f32 %v3633, %v3685
        %v3734 = vadd.f32 %v3634, %v3686
        %v3735 = vadd.f32 %v3635, %v3687
        %v3736 = vadd.f32 %v3636, %v3688
        %v3737 = vadd.f32 %v3637, %v3689
        %v3738 = vadd.f32 %v3638, %v3690
        %v3739 = vlaneseq
        %v3740 = vshrl.u32 %v3739, 7
        %v3741 = vsub.s32 5, %v3740
        %v3742 = vrot.slane %v557, %v3741
        %v3743 = vmul.f32 %v1857, %v3742
        %v3744 = vmul.f32 %v1858, %v3742
        %v3745 = vmul.f32 %v1860, %v3742
        %v3746 = vmul.f32 %v1861, %v3742
        %v3747 = vmul.f32 %v1863, %v3742
        %v3748 = vmul.f32 %v1864, %v3742
        %v3749 = vmul.f32 %v1866, %v3742
        %v3750 = vmul.f32 %v1867, %v3742
        %v3751 = vmul.f32 %v1869, %v3742
        %v3752 = vmul.f32 %v1870, %v3742
        %v3753 = vmul.f32 %v1872, %v3742
        %v3754 = vmul.f32 %v1873, %v3742
        %v3755 = vmul.f32 %v1875, %v3742
        %v3756 = vmul.f32 %v1876, %v3742
        %v3757 = vmul.f32 %v1878, %v3742
        %v3758 = vmul.f32 %v1879, %v3742
        %v3759 = vmul.f32 %v1881, %v3742
        %v3760 = vmul.f32 %v1882, %v3742
        %v3761 = vmul.f32 %v1884, %v3742
        %v3762 = vmul.f32 %v1885, %v3742
        %v3763 = vmul.f32 %v1887, %v3742
        %v3764 = vmul.f32 %v1888, %v3742
        %v3765 = vmul.f32 %v1890, %v3742
        %v3766 = vmul.f32 %v1891, %v3742
        %v3767 = vmul.f32 %v1893, %v3742
        %v3768 = vmul.f32 %v1894, %v3742
        %v3769 = vmul.f32 %v1896, %v3742
        %v3770 = vmul.f32 %v1897, %v3742
        %v3771 = vmul.f32 %v1899, %v3742
        %v3772 = vmul.f32 %v1900, %v3742
        %v3773 = vmul.f32 %v1902, %v3742
        %v3774 = vmul.f32 %v1903, %v3742
        %v3775 = vmul.f32 %v1905, %v3742
        %v3776 = vmul.f32 %v1906, %v3742
        %v3777 = vmul.f32 %v1908, %v3742
        %v3778 = vmul.f32 %v1909, %v3742
        %v3779 = vmul.f32 %v1911, %v3742
        %v3780 = vmul.f32 %v1912, %v3742
        %v3781 = vmul.f32 %v1914, %v3742
        %v3782 = vmul.f32 %v1915, %v3742
        %v3783 = vmul.f32 %v1917, %v3742
        %v3784 = vmul.f32 %v1918, %v3742
        %v3785 = vmul.f32 %v1920, %v3742
        %v3786 = vmul.f32 %v1921, %v3742
        %v3787 = vmul.f32 %v1923, %v3742
        %v3788 = vmul.f32 %v1924, %v3742
        %v3789 = vmul.f32 %v1926, %v3742
        %v3790 = vmul.f32 %v1927, %v3742
        %v3791 = vadd.f32 %v3691, %v3743
        %v3792 = vadd.f32 %v3692, %v3744
        %v3793 = vadd.f32 %v3693, %v3745
        %v3794 = vadd.f32 %v3694, %v3746
        %v3795 = vadd.f32 %v3695, %v3747
        %v3796 = vadd.f32 %v3696, %v3748
        %v3797 = vadd.f32 %v3697, %v3749
        %v3798 = vadd.f32 %v3698, %v3750
        %v3799 = vadd.f32 %v3699, %v3751
        %v3800 = vadd.f32 %v3700, %v3752
        %v3801 = vadd.f32 %v3701, %v3753
        %v3802 = vadd.f32 %v3702, %v3754
        %v3803 = vadd.f32 %v3703, %v3755
        %v3804 = vadd.f32 %v3704, %v3756
        %v3805 = vadd.f32 %v3705, %v3757
        %v3806 = vadd.f32 %v3706, %v3758
        %v3807 = vadd.f32 %v3707, %v3759
        %v3808 = vadd.f32 %v3708, %v3760
        %v3809 = vadd.f32 %v3709, %v3761
        %v3810 = vadd.f32 %v3710, %v3762
        %v3811 = vadd.f32 %v3711, %v3763
        %v3812 = vadd.f32 %v3712, %v3764
        %v3813 = vadd.f32 %v3713, %v3765
        %v3814 = vadd.f32 %v3714, %v3766
        %v3815 = vadd.f32 %v3715, %v3767
        %v3816 = vadd.f32 %v3716, %v3768
        %v3817 = vadd.f32 %v3717, %v3769
        %v3818 = vadd.f32 %v3718, %v3770
        %v3819 = vadd.f32 %v3719, %v3771
        %v3820 = vadd.f32 %v3720, %v3772
        %v3821 = vadd.f32 %v3721, %v3773
        %v3822 = vadd.f32 %v3722, %v3774
        %v3823 = vadd.f32 %v3723, %v3775
        %v3824 = vadd.f32 %v3724, %v3776
        %v3825 = vadd.f32 %v3725, %v3777
        %v3826 = vadd.f32 %v3726, %v3778
        %v3827 = vadd.f32 %v3727, %v3779
        %v3828 = vadd.f32 %v3728, %v3780
        %v3829 = vadd.f32 %v3729, %v3781
        %v3830 = vadd.f32 %v3730, %v3782
        %v3831 = vadd.f32 %v3731, %v3783
        %v3832 = vadd.f32 %v3732, %v3784
        %v3833 = vadd.f32 %v3733, %v3785
        %v3834 = vadd.f32 %v3734, %v3786
        %v3835 = vadd.f32 %v3735, %v3787
        %v3836 = vadd.f32 %v3736, %v3788
        %v3837 = vadd.f32 %v3737, %v3789
        %v3838 = vadd.f32 %v3738, %v3790
        %v3839 = vlaneseq
        %v3840 = vshrl.u32 %v3839, 7
        %v3841 = vsub.s32 4, %v3840
        %v3842 = vrot.slane %v558, %v3841
        %v3843 = vmul.f32 %v2102, %v3842
        %v3844 = vmul.f32 %v2103, %v3842
        %v3845 = vmul.f32 %v2105, %v3842
        %v3846 = vmul.f32 %v2106, %v3842
        %v3847 = vmul.f32 %v2108, %v3842
        %v3848 = vmul.f32 %v2109, %v3842
        %v3849 = vmul.f32 %v2111, %v3842
        %v3850 = vmul.f32 %v2112, %v3842
        %v3851 = vmul.f32 %v2114, %v3842
        %v3852 = vmul.f32 %v2115, %v3842
        %v3853 = vmul.f32 %v2117, %v3842
        %v3854 = vmul.f32 %v2118, %v3842
        %v3855 = vmul.f32 %v2120, %v3842
        %v3856 = vmul.f32 %v2121, %v3842
        %v3857 = vmul.f32 %v2123, %v3842
        %v3858 = vmul.f32 %v2124, %v3842
        %v3859 = vmul.f32 %v2126, %v3842
        %v3860 = vmul.f32 %v2127, %v3842
        %v3861 = vmul.f32 %v2129, %v3842
        %v3862 = vmul.f32 %v2130, %v3842
        %v3863 = vmul.f32 %v2132, %v3842
        %v3864 = vmul.f32 %v2133, %v3842
        %v3865 = vmul.f32 %v2135, %v3842
        %v3866 = vmul.f32 %v2136, %v3842
        %v3867 = vmul.f32 %v2138, %v3842
        %v3868 = vmul.f32 %v2139, %v3842
        %v3869 = vmul.f32 %v2141, %v3842
        %v3870 = vmul.f32 %v2142, %v3842
        %v3871 = vmul.f32 %v2144, %v3842
        %v3872 = vmul.f32 %v2145, %v3842
        %v3873 = vmul.f32 %v2147, %v3842
        %v3874 = vmul.f32 %v2148, %v3842
        %v3875 = vmul.f32 %v2150, %v3842
        %v3876 = vmul.f32 %v2151, %v3842
        %v3877 = vmul.f32 %v2153, %v3842
        %v3878 = vmul.f32 %v2154, %v3842
        %v3879 = vmul.f32 %v2156, %v3842
        %v3880 = vmul.f32 %v2157, %v3842
        %v3881 = vmul.f32 %v2159, %v3842
        %v3882 = vmul.f32 %v2160, %v3842
        %v3883 = vmul.f32 %v2162, %v3842
        %v3884 = vmul.f32 %v2163, %v3842
        %v3885 = vmul.f32 %v2165, %v3842
        %v3886 = vmul.f32 %v2166, %v3842
        %v3887 = vmul.f32 %v2168, %v3842
        %v3888 = vmul.f32 %v2169, %v3842
        %v3889 = vmul.f32 %v2171, %v3842
        %v3890 = vmul.f32 %v2172, %v3842
        %v3891 = vadd.f32 %v3791, %v3843
        %v3892 = vadd.f32 %v3792, %v3844
        %v3893 = vadd.f32 %v3793, %v3845
        %v3894 = vadd.f32 %v3794, %v3846
        %v3895 = vadd.f32 %v3795, %v3847
        %v3896 = vadd.f32 %v3796, %v3848
        %v3897 = vadd.f32 %v3797, %v3849
        %v3898 = vadd.f32 %v3798, %v3850
        %v3899 = vadd.f32 %v3799, %v3851
        %v3900 = vadd.f32 %v3800, %v3852
        %v3901 = vadd.f32 %v3801, %v3853
        %v3902 = vadd.f32 %v3802, %v3854
        %v3903 = vadd.f32 %v3803, %v3855
        %v3904 = vadd.f32 %v3804, %v3856
        %v3905 = vadd.f32 %v3805, %v3857
        %v3906 = vadd.f32 %v3806, %v3858
        %v3907 = vadd.f32 %v3807, %v3859
        %v3908 = vadd.f32 %v3808, %v3860
        %v3909 = vadd.f32 %v3809, %v3861
        %v3910 = vadd.f32 %v3810, %v3862
        %v3911 = vadd.f32 %v3811, %v3863
        %v3912 = vadd.f32 %v3812, %v3864
        %v3913 = vadd.f32 %v3813, %v3865
        %v3914 = vadd.f32 %v3814, %v3866
        %v3915 = vadd.f32 %v3815, %v3867
        %v3916 = vadd.f32 %v3816, %v3868
        %v3917 = vadd.f32 %v3817, %v3869
        %v3918 = vadd.f32 %v3818, %v3870
        %v3919 = vadd.f32 %v3819, %v3871
        %v3920 = vadd.f32 %v3820, %v3872
        %v3921 = vadd.f32 %v3821, %v3873
        %v3922 = vadd.f32 %v3822, %v3874
        %v3923 = vadd.f32 %v3823, %v3875
        %v3924 = vadd.f32 %v3824, %v3876
        %v3925 = vadd.f32 %v3825, %v3877
        %v3926 = vadd.f32 %v3826, %v3878
        %v3927 = vadd.f32 %v3827, %v3879
        %v3928 = vadd.f32 %v3828, %v3880
        %v3929 = vadd.f32 %v3829, %v3881
        %v3930 = vadd.f32 %v3830, %v3882
        %v3931 = vadd.f32 %v3831, %v3883
        %v3932 = vadd.f32 %v3832, %v3884
        %v3933 = vadd.f32 %v3833, %v3885
        %v3934 = vadd.f32 %v3834, %v3886
        %v3935 = vadd.f32 %v3835, %v3887
        %v3936 = vadd.f32 %v3836, %v3888
        %v3937 = vadd.f32 %v3837, %v3889
        %v3938 = vadd.f32 %v3838, %v3890
        %vm3987 = vcmask 1045504
        %v3988 = vrot.slane %v3891, 2
        %v3989 = vrot.slane %v3892, 2
        %v3990 = vsel %vm3987, %v3988, %v3989
        %v3991 = vrot.slane %v3893, 2
        %v3992 = vrot.slane %v3894, 2
        %v3993 = vsel %vm3987, %v3991, %v3992
        %v3994 = vrot.slane %v3895, 2
        %v3995 = vrot.slane %v3896, 2
        %v3996 = vsel %vm3987, %v3994, %v3995
        %v3997 = vrot.slane %v3897, 2
        %v3998 = vrot.slane %v3898, 2
        %v3999 = vsel %vm3987, %v3997, %v3998
        %v4000 = vrot.slane %v3899, 2
        %v4001 = vrot.slane %v3900, 2
        %v4002 = vsel %vm3987, %v4000, %v4001
        %v4003 = vrot.slane %v3901, 2
        %v4004 = vrot.slane %v3902, 2
        %v4005 = vsel %vm3987, %v4003, %v4004
        %v4006 = vrot.slane %v3903, 2
        %v4007 = vrot.slane %v3904, 2
        %v4008 = vsel %vm3987, %v4006, %v4007
        %v4009 = vrot.slane %v3905, 2
        %v4010 = vrot.slane %v3906, 2
        %v4011 = vsel %vm3987, %v4009, %v4010
        %v4012 = vrot.slane %v3907, 2
        %v4013 = vrot.slane %v3908, 2
        %v4014 = vsel %vm3987, %v4012, %v4013
        %v4015 = vrot.slane %v3909, 2
        %v4016 = vrot.slane %v3910, 2
        %v4017 = vsel %vm3987, %v4015, %v4016
        %v4018 = vrot.slane %v3911, 2
        %v4019 = vrot.slane %v3912, 2
        %v4020 = vsel %vm3987, %v4018, %v4019
        %v4021 = vrot.slane %v3913, 2
        %v4022 = vrot.slane %v3914, 2
        %v4023 = vsel %vm3987, %v4021, %v4022
        %v4024 = vrot.slane %v3915, 2
        %v4025 = vrot.slane %v3916, 2
        %v4026 = vsel %vm3987, %v4024, %v4025
        %v4027 = vrot.slane %v3917, 2
        %v4028 = vrot.slane %v3918, 2
        %v4029 = vsel %vm3987, %v4027, %v4028
        %v4030 = vrot.slane %v3919, 2
        %v4031 = vrot.slane %v3920, 2
        %v4032 = vsel %vm3987, %v4030, %v4031
        %v4033 = vrot.slane %v3921, 2
        %v4034 = vrot.slane %v3922, 2
        %v4035 = vsel %vm3987, %v4033, %v4034
        %v4036 = vrot.slane %v3923, 2
        %v4037 = vrot.slane %v3924, 2
        %v4038 = vsel %vm3987, %v4036, %v4037
        %v4039 = vrot.slane %v3925, 2
        %v4040 = vrot.slane %v3926, 2
        %v4041 = vsel %vm3987, %v4039, %v4040
        %v4042 = vrot.slane %v3927, 2
        %v4043 = vrot.slane %v3928, 2
        %v4044 = vsel %vm3987, %v4042, %v4043
        %v4045 = vrot.slane %v3929, 2
        %v4046 = vrot.slane %v3930, 2
        %v4047 = vsel %vm3987, %v4045, %v4046
        %v4048 = vrot.slane %v3931, 2
        %v4049 = vrot.slane %v3932, 2
        %v4050 = vsel %vm3987, %v4048, %v4049
        %v4051 = vrot.slane %v3933, 2
        %v4052 = vrot.slane %v3934, 2
        %v4053 = vsel %vm3987, %v4051, %v4052
        %v4054 = vrot.slane %v3935, 2
        %v4055 = vrot.slane %v3936, 2
        %v4056 = vsel %vm3987, %v4054, %v4055
        %v4057 = vrot.slane %v3937, 2
        %v4058 = vrot.slane %v3938, 2
        %v4059 = vsel %vm3987, %v4057, %v4058
        %v4108 = vadd.f32 %v3191, %v3990
        %v4109 = vadd.f32 %v3192, %v3989
        %v4110 = vadd.f32 %v3193, %v3993
        %v4111 = vadd.f32 %v3194, %v3992
        %v4112 = vadd.f32 %v3195, %v3996
        %v4113 = vadd.f32 %v3196, %v3995
        %v4114 = vadd.f32 %v3197, %v3999
        %v4115 = vadd.f32 %v3198, %v3998
        %v4116 = vadd.f32 %v3199, %v4002
        %v4117 = vadd.f32 %v3200, %v4001
        %v4118 = vadd.f32 %v3201, %v4005
        %v4119 = vadd.f32 %v3202, %v4004
        %v4120 = vadd.f32 %v3203, %v4008
        %v4121 = vadd.f32 %v3204, %v4007
        %v4122 = vadd.f32 %v3205, %v4011
        %v4123 = vadd.f32 %v3206, %v4010
        %v4124 = vadd.f32 %v3207, %v4014
        %v4125 = vadd.f32 %v3208, %v4013
        %v4126 = vadd.f32 %v3209, %v4017
        %v4127 = vadd.f32 %v3210, %v4016
        %v4128 = vadd.f32 %v3211, %v4020
        %v4129 = vadd.f32 %v3212, %v4019
        %v4130 = vadd.f32 %v3213, %v4023
        %v4131 = vadd.f32 %v3214, %v4022
        %v4132 = vadd.f32 %v3215, %v4026
        %v4133 = vadd.f32 %v3216, %v4025
        %v4134 = vadd.f32 %v3217, %v4029
        %v4135 = vadd.f32 %v3218, %v4028
        %v4136 = vadd.f32 %v3219, %v4032
        %v4137 = vadd.f32 %v3220, %v4031
        %v4138 = vadd.f32 %v3221, %v4035
        %v4139 = vadd.f32 %v3222, %v4034
        %v4140 = vadd.f32 %v3223, %v4038
        %v4141 = vadd.f32 %v3224, %v4037
        %v4142 = vadd.f32 %v3225, %v4041
        %v4143 = vadd.f32 %v3226, %v4040
        %v4144 = vadd.f32 %v3227, %v4044
        %v4145 = vadd.f32 %v3228, %v4043
        %v4146 = vadd.f32 %v3229, %v4047
        %v4147 = vadd.f32 %v3230, %v4046
        %v4148 = vadd.f32 %v3231, %v4050
        %v4149 = vadd.f32 %v3232, %v4049
        %v4150 = vadd.f32 %v3233, %v4053
        %v4151 = vadd.f32 %v3234, %v4052
        %v4152 = vadd.f32 %v3235, %v4056
        %v4153 = vadd.f32 %v3236, %v4055
        %v4154 = vadd.f32 %v3237, %v4059
        %v4155 = vadd.f32 %v3238, %v4058
        %v4156 = vlaneseq
        %v4157 = vshrl.u32 %v4156, 7
        %v4158 = vsub.s32 3, %v4157
        %v4159 = vrot.slane %v553, %v4158
        %v4160 = vmul.f32 %v632, %v4159
        %v4161 = vmul.f32 %v633, %v4159
        %v4162 = vmul.f32 %v635, %v4159
        %v4163 = vmul.f32 %v636, %v4159
        %v4164 = vmul.f32 %v638, %v4159
        %v4165 = vmul.f32 %v639, %v4159
        %v4166 = vmul.f32 %v641, %v4159
        %v4167 = vmul.f32 %v642, %v4159
        %v4168 = vmul.f32 %v644, %v4159
        %v4169 = vmul.f32 %v645, %v4159
        %v4170 = vmul.f32 %v647, %v4159
        %v4171 = vmul.f32 %v648, %v4159
        %v4172 = vmul.f32 %v650, %v4159
        %v4173 = vmul.f32 %v651, %v4159
        %v4174 = vmul.f32 %v653, %v4159
        %v4175 = vmul.f32 %v654, %v4159
        %v4176 = vmul.f32 %v656, %v4159
        %v4177 = vmul.f32 %v657, %v4159
        %v4178 = vmul.f32 %v659, %v4159
        %v4179 = vmul.f32 %v660, %v4159
        %v4180 = vmul.f32 %v662, %v4159
        %v4181 = vmul.f32 %v663, %v4159
        %v4182 = vmul.f32 %v665, %v4159
        %v4183 = vmul.f32 %v666, %v4159
        %v4184 = vmul.f32 %v668, %v4159
        %v4185 = vmul.f32 %v669, %v4159
        %v4186 = vmul.f32 %v671, %v4159
        %v4187 = vmul.f32 %v672, %v4159
        %v4188 = vmul.f32 %v674, %v4159
        %v4189 = vmul.f32 %v675, %v4159
        %v4190 = vmul.f32 %v677, %v4159
        %v4191 = vmul.f32 %v678, %v4159
        %v4192 = vmul.f32 %v680, %v4159
        %v4193 = vmul.f32 %v681, %v4159
        %v4194 = vmul.f32 %v683, %v4159
        %v4195 = vmul.f32 %v684, %v4159
        %v4196 = vmul.f32 %v686, %v4159
        %v4197 = vmul.f32 %v687, %v4159
        %v4198 = vmul.f32 %v689, %v4159
        %v4199 = vmul.f32 %v690, %v4159
        %v4200 = vmul.f32 %v692, %v4159
        %v4201 = vmul.f32 %v693, %v4159
        %v4202 = vmul.f32 %v695, %v4159
        %v4203 = vmul.f32 %v696, %v4159
        %v4204 = vmul.f32 %v698, %v4159
        %v4205 = vmul.f32 %v699, %v4159
        %v4206 = vmul.f32 %v701, %v4159
        %v4207 = vmul.f32 %v702, %v4159
        %v4208 = vadd.f32 %v4160, 0.0
        %v4209 = vadd.f32 %v4161, 0.0
        %v4210 = vadd.f32 %v4162, 0.0
        %v4211 = vadd.f32 %v4163, 0.0
        %v4212 = vadd.f32 %v4164, 0.0
        %v4213 = vadd.f32 %v4165, 0.0
        %v4214 = vadd.f32 %v4166, 0.0
        %v4215 = vadd.f32 %v4167, 0.0
        %v4216 = vadd.f32 %v4168, 0.0
        %v4217 = vadd.f32 %v4169, 0.0
        %v4218 = vadd.f32 %v4170, 0.0
        %v4219 = vadd.f32 %v4171, 0.0
        %v4220 = vadd.f32 %v4172, 0.0
        %v4221 = vadd.f32 %v4173, 0.0
        %v4222 = vadd.f32 %v4174, 0.0
        %v4223 = vadd.f32 %v4175, 0.0
        %v4224 = vadd.f32 %v4176, 0.0
        %v4225 = vadd.f32 %v4177, 0.0
        %v4226 = vadd.f32 %v4178, 0.0
        %v4227 = vadd.f32 %v4179, 0.0
        %v4228 = vadd.f32 %v4180, 0.0
        %v4229 = vadd.f32 %v4181, 0.0
        %v4230 = vadd.f32 %v4182, 0.0
        %v4231 = vadd.f32 %v4183, 0.0
        %v4232 = vadd.f32 %v4184, 0.0
        %v4233 = vadd.f32 %v4185, 0.0
        %v4234 = vadd.f32 %v4186, 0.0
        %v4235 = vadd.f32 %v4187, 0.0
        %v4236 = vadd.f32 %v4188, 0.0
        %v4237 = vadd.f32 %v4189, 0.0
        %v4238 = vadd.f32 %v4190, 0.0
        %v4239 = vadd.f32 %v4191, 0.0
        %v4240 = vadd.f32 %v4192, 0.0
        %v4241 = vadd.f32 %v4193, 0.0
        %v4242 = vadd.f32 %v4194, 0.0
        %v4243 = vadd.f32 %v4195, 0.0
        %v4244 = vadd.f32 %v4196, 0.0
        %v4245 = vadd.f32 %v4197, 0.0
        %v4246 = vadd.f32 %v4198, 0.0
        %v4247 = vadd.f32 %v4199, 0.0
        %v4248 = vadd.f32 %v4200, 0.0
        %v4249 = vadd.f32 %v4201, 0.0
        %v4250 = vadd.f32 %v4202, 0.0
        %v4251 = vadd.f32 %v4203, 0.0
        %v4252 = vadd.f32 %v4204, 0.0
        %v4253 = vadd.f32 %v4205, 0.0
        %v4254 = vadd.f32 %v4206, 0.0
        %v4255 = vadd.f32 %v4207, 0.0
        %v4256 = vlaneseq
        %v4257 = vshrl.u32 %v4256, 7
        %v4258 = vsub.s32 2, %v4257
        %v4259 = vrot.slane %v554, %v4258
        %v4260 = vmul.f32 %v877, %v4259
        %v4261 = vmul.f32 %v878, %v4259
        %v4262 = vmul.f32 %v880, %v4259
        %v4263 = vmul.f32 %v881, %v4259
        %v4264 = vmul.f32 %v883, %v4259
        %v4265 = vmul.f32 %v884, %v4259
        %v4266 = vmul.f32 %v886, %v4259
        %v4267 = vmul.f32 %v887, %v4259
        %v4268 = vmul.f32 %v889, %v4259
        %v4269 = vmul.f32 %v890, %v4259
        %v4270 = vmul.f32 %v892, %v4259
        %v4271 = vmul.f32 %v893, %v4259
        %v4272 = vmul.f32 %v895, %v4259
        %v4273 = vmul.f32 %v896, %v4259
        %v4274 = vmul.f32 %v898, %v4259
        %v4275 = vmul.f32 %v899, %v4259
        %v4276 = vmul.f32 %v901, %v4259
        %v4277 = vmul.f32 %v902, %v4259
        %v4278 = vmul.f32 %v904, %v4259
        %v4279 = vmul.f32 %v905, %v4259
        %v4280 = vmul.f32 %v907, %v4259
        %v4281 = vmul.f32 %v908, %v4259
        %v4282 = vmul.f32 %v910, %v4259
        %v4283 = vmul.f32 %v911, %v4259
        %v4284 = vmul.f32 %v913, %v4259
        %v4285 = vmul.f32 %v914, %v4259
        %v4286 = vmul.f32 %v916, %v4259
        %v4287 = vmul.f32 %v917, %v4259
        %v4288 = vmul.f32 %v919, %v4259
        %v4289 = vmul.f32 %v920, %v4259
        %v4290 = vmul.f32 %v922, %v4259
        %v4291 = vmul.f32 %v923, %v4259
        %v4292 = vmul.f32 %v925, %v4259
        %v4293 = vmul.f32 %v926, %v4259
        %v4294 = vmul.f32 %v928, %v4259
        %v4295 = vmul.f32 %v929, %v4259
        %v4296 = vmul.f32 %v931, %v4259
        %v4297 = vmul.f32 %v932, %v4259
        %v4298 = vmul.f32 %v934, %v4259
        %v4299 = vmul.f32 %v935, %v4259
        %v4300 = vmul.f32 %v937, %v4259
        %v4301 = vmul.f32 %v938, %v4259
        %v4302 = vmul.f32 %v940, %v4259
        %v4303 = vmul.f32 %v941, %v4259
        %v4304 = vmul.f32 %v943, %v4259
        %v4305 = vmul.f32 %v944, %v4259
        %v4306 = vmul.f32 %v946, %v4259
        %v4307 = vmul.f32 %v947, %v4259
        %v4308 = vadd.f32 %v4208, %v4260
        %v4309 = vadd.f32 %v4209, %v4261
        %v4310 = vadd.f32 %v4210, %v4262
        %v4311 = vadd.f32 %v4211, %v4263
        %v4312 = vadd.f32 %v4212, %v4264
        %v4313 = vadd.f32 %v4213, %v4265
        %v4314 = vadd.f32 %v4214, %v4266
        %v4315 = vadd.f32 %v4215, %v4267
        %v4316 = vadd.f32 %v4216, %v4268
        %v4317 = vadd.f32 %v4217, %v4269
        %v4318 = vadd.f32 %v4218, %v4270
        %v4319 = vadd.f32 %v4219, %v4271
        %v4320 = vadd.f32 %v4220, %v4272
        %v4321 = vadd.f32 %v4221, %v4273
        %v4322 = vadd.f32 %v4222, %v4274
        %v4323 = vadd.f32 %v4223, %v4275
        %v4324 = vadd.f32 %v4224, %v4276
        %v4325 = vadd.f32 %v4225, %v4277
        %v4326 = vadd.f32 %v4226, %v4278
        %v4327 = vadd.f32 %v4227, %v4279
        %v4328 = vadd.f32 %v4228, %v4280
        %v4329 = vadd.f32 %v4229, %v4281
        %v4330 = vadd.f32 %v4230, %v4282
        %v4331 = vadd.f32 %v4231, %v4283
        %v4332 = vadd.f32 %v4232, %v4284
        %v4333 = vadd.f32 %v4233, %v4285
        %v4334 = vadd.f32 %v4234, %v4286
        %v4335 = vadd.f32 %v4235, %v4287
        %v4336 = vadd.f32 %v4236, %v4288
        %v4337 = vadd.f32 %v4237, %v4289
        %v4338 = vadd.f32 %v4238, %v4290
        %v4339 = vadd.f32 %v4239, %v4291
        %v4340 = vadd.f32 %v4240, %v4292
        %v4341 = vadd.f32 %v4241, %v4293
        %v4342 = vadd.f32 %v4242, %v4294
        %v4343 = vadd.f32 %v4243, %v4295
        %v4344 = vadd.f32 %v4244, %v4296
        %v4345 = vadd.f32 %v4245, %v4297
        %v4346 = vadd.f32 %v4246, %v4298
        %v4347 = vadd.f32 %v4247, %v4299
        %v4348 = vadd.f32 %v4248, %v4300
        %v4349 = vadd.f32 %v4249, %v4301
        %v4350 = vadd.f32 %v4250, %v4302
        %v4351 = vadd.f32 %v4251, %v4303
        %v4352 = vadd.f32 %v4252, %v4304
        %v4353 = vadd.f32 %v4253, %v4305
        %v4354 = vadd.f32 %v4254, %v4306
        %v4355 = vadd.f32 %v4255, %v4307
        %v4356 = vlaneseq
        %v4357 = vshrl.u32 %v4356, 7
        %v4358 = vsub.s32 1, %v4357
        %v4359 = vrot.slane %v555, %v4358
        %v4360 = vmul.f32 %v1122, %v4359
        %v4361 = vmul.f32 %v1123, %v4359
        %v4362 = vmul.f32 %v1125, %v4359
        %v4363 = vmul.f32 %v1126, %v4359
        %v4364 = vmul.f32 %v1128, %v4359
        %v4365 = vmul.f32 %v1129, %v4359
        %v4366 = vmul.f32 %v1131, %v4359
        %v4367 = vmul.f32 %v1132, %v4359
        %v4368 = vmul.f32 %v1134, %v4359
        %v4369 = vmul.f32 %v1135, %v4359
        %v4370 = vmul.f32 %v1137, %v4359
        %v4371 = vmul.f32 %v1138, %v4359
        %v4372 = vmul.f32 %v1140, %v4359
        %v4373 = vmul.f32 %v1141, %v4359
        %v4374 = vmul.f32 %v1143, %v4359
        %v4375 = vmul.f32 %v1144, %v4359
        %v4376 = vmul.f32 %v1146, %v4359
        %v4377 = vmul.f32 %v1147, %v4359
        %v4378 = vmul.f32 %v1149, %v4359
        %v4379 = vmul.f32 %v1150, %v4359
        %v4380 = vmul.f32 %v1152, %v4359
        %v4381 = vmul.f32 %v1153, %v4359
        %v4382 = vmul.f32 %v1155, %v4359
        %v4383 = vmul.f32 %v1156, %v4359
        %v4384 = vmul.f32 %v1158, %v4359
        %v4385 = vmul.f32 %v1159, %v4359
        %v4386 = vmul.f32 %v1161, %v4359
        %v4387 = vmul.f32 %v1162, %v4359
        %v4388 = vmul.f32 %v1164, %v4359
        %v4389 = vmul.f32 %v1165, %v4359
        %v4390 = vmul.f32 %v1167, %v4359
        %v4391 = vmul.f32 %v1168, %v4359
        %v4392 = vmul.f32 %v1170, %v4359
        %v4393 = vmul.f32 %v1171, %v4359
        %v4394 = vmul.f32 %v1173, %v4359
        %v4395 = vmul.f32 %v1174, %v4359
        %v4396 = vmul.f32 %v1176, %v4359
        %v4397 = vmul.f32 %v1177, %v4359
        %v4398 = vmul.f32 %v1179, %v4359
        %v4399 = vmul.f32 %v1180, %v4359
        %v4400 = vmul.f32 %v1182, %v4359
        %v4401 = vmul.f32 %v1183, %v4359
        %v4402 = vmul.f32 %v1185, %v4359
        %v4403 = vmul.f32 %v1186, %v4359
        %v4404 = vmul.f32 %v1188, %v4359
        %v4405 = vmul.f32 %v1189, %v4359
        %v4406 = vmul.f32 %v1191, %v4359
        %v4407 = vmul.f32 %v1192, %v4359
        %v4408 = vadd.f32 %v4308, %v4360
        %v4409 = vadd.f32 %v4309, %v4361
        %v4410 = vadd.f32 %v4310, %v4362
        %v4411 = vadd.f32 %v4311, %v4363
        %v4412 = vadd.f32 %v4312, %v4364
        %v4413 = vadd.f32 %v4313, %v4365
        %v4414 = vadd.f32 %v4314, %v4366
        %v4415 = vadd.f32 %v4315, %v4367
        %v4416 = vadd.f32 %v4316, %v4368
        %v4417 = vadd.f32 %v4317, %v4369
        %v4418 = vadd.f32 %v4318, %v4370
        %v4419 = vadd.f32 %v4319, %v4371
        %v4420 = vadd.f32 %v4320, %v4372
        %v4421 = vadd.f32 %v4321, %v4373
        %v4422 = vadd.f32 %v4322, %v4374
        %v4423 = vadd.f32 %v4323, %v4375
        %v4424 = vadd.f32 %v4324, %v4376
        %v4425 = vadd.f32 %v4325, %v4377
        %v4426 = vadd.f32 %v4326, %v4378
        %v4427 = vadd.f32 %v4327, %v4379
        %v4428 = vadd.f32 %v4328, %v4380
        %v4429 = vadd.f32 %v4329, %v4381
        %v4430 = vadd.f32 %v4330, %v4382
        %v4431 = vadd.f32 %v4331, %v4383
        %v4432 = vadd.f32 %v4332, %v4384
        %v4433 = vadd.f32 %v4333, %v4385
        %v4434 = vadd.f32 %v4334, %v4386
        %v4435 = vadd.f32 %v4335, %v4387
        %v4436 = vadd.f32 %v4336, %v4388
        %v4437 = vadd.f32 %v4337, %v4389
        %v4438 = vadd.f32 %v4338, %v4390
        %v4439 = vadd.f32 %v4339, %v4391
        %v4440 = vadd.f32 %v4340, %v4392
        %v4441 = vadd.f32 %v4341, %v4393
        %v4442 = vadd.f32 %v4342, %v4394
        %v4443 = vadd.f32 %v4343, %v4395
        %v4444 = vadd.f32 %v4344, %v4396
        %v4445 = vadd.f32 %v4345, %v4397
        %v4446 = vadd.f32 %v4346, %v4398
        %v4447 = vadd.f32 %v4347, %v4399
        %v4448 = vadd.f32 %v4348, %v4400
        %v4449 = vadd.f32 %v4349, %v4401
        %v4450 = vadd.f32 %v4350, %v4402
        %v4451 = vadd.f32 %v4351, %v4403
        %v4452 = vadd.f32 %v4352, %v4404
        %v4453 = vadd.f32 %v4353, %v4405
        %v4454 = vadd.f32 %v4354, %v4406
        %v4455 = vadd.f32 %v4355, %v4407
        %v4456 = vlaneseq
        %v4457 = vshrl.u32 %v4456, 7
        %v4458 = vsub.s32 0, %v4457
        %v4459 = vrot.slane %v556, %v4458
        %v4460 = vmul.f32 %v1367, %v4459
        %v4461 = vmul.f32 %v1368, %v4459
        %v4462 = vmul.f32 %v1370, %v4459
        %v4463 = vmul.f32 %v1371, %v4459
        %v4464 = vmul.f32 %v1373, %v4459
        %v4465 = vmul.f32 %v1374, %v4459
        %v4466 = vmul.f32 %v1376, %v4459
        %v4467 = vmul.f32 %v1377, %v4459
        %v4468 = vmul.f32 %v1379, %v4459
        %v4469 = vmul.f32 %v1380, %v4459
        %v4470 = vmul.f32 %v1382, %v4459
        %v4471 = vmul.f32 %v1383, %v4459
        %v4472 = vmul.f32 %v1385, %v4459
        %v4473 = vmul.f32 %v1386, %v4459
        %v4474 = vmul.f32 %v1388, %v4459
        %v4475 = vmul.f32 %v1389, %v4459
        %v4476 = vmul.f32 %v1391, %v4459
        %v4477 = vmul.f32 %v1392, %v4459
        %v4478 = vmul.f32 %v1394, %v4459
        %v4479 = vmul.f32 %v1395, %v4459
        %v4480 = vmul.f32 %v1397, %v4459
        %v4481 = vmul.f32 %v1398, %v4459
        %v4482 = vmul.f32 %v1400, %v4459
        %v4483 = vmul.f32 %v1401, %v4459
        %v4484 = vmul.f32 %v1403, %v4459
        %v4485 = vmul.f32 %v1404, %v4459
        %v4486 = vmul.f32 %v1406, %v4459
        %v4487 = vmul.f32 %v1407, %v4459
        %v4488 = vmul.f32 %v1409, %v4459
        %v4489 = vmul.f32 %v1410, %v4459
        %v4490 = vmul.f32 %v1412, %v4459
        %v4491 = vmul.f32 %v1413, %v4459
        %v4492 = vmul.f32 %v1415, %v4459
        %v4493 = vmul.f32 %v1416, %v4459
        %v4494 = vmul.f32 %v1418, %v4459
        %v4495 = vmul.f32 %v1419, %v4459
        %v4496 = vmul.f32 %v1421, %v4459
        %v4497 = vmul.f32 %v1422, %v4459
        %v4498 = vmul.f32 %v1424, %v4459
        %v4499 = vmul.f32 %v1425, %v4459
        %v4500 = vmul.f32 %v1427, %v4459
        %v4501 = vmul.f32 %v1428, %v4459
        %v4502 = vmul.f32 %v1430, %v4459
        %v4503 = vmul.f32 %v1431, %v4459
        %v4504 = vmul.f32 %v1433, %v4459
        %v4505 = vmul.f32 %v1434, %v4459
        %v4506 = vmul.f32 %v1436, %v4459
        %v4507 = vmul.f32 %v1437, %v4459
        %v4508 = vadd.f32 %v4408, %v4460
        %v4509 = vadd.f32 %v4409, %v4461
        %v4510 = vadd.f32 %v4410, %v4462
        %v4511 = vadd.f32 %v4411, %v4463
        %v4512 = vadd.f32 %v4412, %v4464
        %v4513 = vadd.f32 %v4413, %v4465
        %v4514 = vadd.f32 %v4414, %v4466
        %v4515 = vadd.f32 %v4415, %v4467
        %v4516 = vadd.f32 %v4416, %v4468
        %v4517 = vadd.f32 %v4417, %v4469
        %v4518 = vadd.f32 %v4418, %v4470
        %v4519 = vadd.f32 %v4419, %v4471
        %v4520 = vadd.f32 %v4420, %v4472
        %v4521 = vadd.f32 %v4421, %v4473
        %v4522 = vadd.f32 %v4422, %v4474
        %v4523 = vadd.f32 %v4423, %v4475
        %v4524 = vadd.f32 %v4424, %v4476
        %v4525 = vadd.f32 %v4425, %v4477
        %v4526 = vadd.f32 %v4426, %v4478
        %v4527 = vadd.f32 %v4427, %v4479
        %v4528 = vadd.f32 %v4428, %v4480
        %v4529 = vadd.f32 %v4429, %v4481
        %v4530 = vadd.f32 %v4430, %v4482
        %v4531 = vadd.f32 %v4431, %v4483
        %v4532 = vadd.f32 %v4432, %v4484
        %v4533 = vadd.f32 %v4433, %v4485
        %v4534 = vadd.f32 %v4434, %v4486
        %v4535 = vadd.f32 %v4435, %v4487
        %v4536 = vadd.f32 %v4436, %v4488
        %v4537 = vadd.f32 %v4437, %v4489
        %v4538 = vadd.f32 %v4438, %v4490
        %v4539 = vadd.f32 %v4439, %v4491
        %v4540 = vadd.f32 %v4440, %v4492
        %v4541 = vadd.f32 %v4441, %v4493
        %v4542 = vadd.f32 %v4442, %v4494
        %v4543 = vadd.f32 %v4443, %v4495
        %v4544 = vadd.f32 %v4444, %v4496
        %v4545 = vadd.f32 %v4445, %v4497
        %v4546 = vadd.f32 %v4446, %v4498
        %v4547 = vadd.f32 %v4447, %v4499
        %v4548 = vadd.f32 %v4448, %v4500
        %v4549 = vadd.f32 %v4449, %v4501
        %v4550 = vadd.f32 %v4450, %v4502
        %v4551 = vadd.f32 %v4451, %v4503
        %v4552 = vadd.f32 %v4452, %v4504
        %v4553 = vadd.f32 %v4453, %v4505
        %v4554 = vadd.f32 %v4454, %v4506
        %v4555 = vadd.f32 %v4455, %v4507
        %v4556 = vlaneseq
        %v4557 = vshrl.u32 %v4556, 7
        %v4558 = vsub.s32 7, %v4557
        %v4559 = vrot.slane %v556, %v4558
        %v4560 = vmul.f32 %v1612, %v4559
        %v4561 = vmul.f32 %v1613, %v4559
        %v4562 = vmul.f32 %v1615, %v4559
        %v4563 = vmul.f32 %v1616, %v4559
        %v4564 = vmul.f32 %v1618, %v4559
        %v4565 = vmul.f32 %v1619, %v4559
        %v4566 = vmul.f32 %v1621, %v4559
        %v4567 = vmul.f32 %v1622, %v4559
        %v4568 = vmul.f32 %v1624, %v4559
        %v4569 = vmul.f32 %v1625, %v4559
        %v4570 = vmul.f32 %v1627, %v4559
        %v4571 = vmul.f32 %v1628, %v4559
        %v4572 = vmul.f32 %v1630, %v4559
        %v4573 = vmul.f32 %v1631, %v4559
        %v4574 = vmul.f32 %v1633, %v4559
        %v4575 = vmul.f32 %v1634, %v4559
        %v4576 = vmul.f32 %v1636, %v4559
        %v4577 = vmul.f32 %v1637, %v4559
        %v4578 = vmul.f32 %v1639, %v4559
        %v4579 = vmul.f32 %v1640, %v4559
        %v4580 = vmul.f32 %v1642, %v4559
        %v4581 = vmul.f32 %v1643, %v4559
        %v4582 = vmul.f32 %v1645, %v4559
        %v4583 = vmul.f32 %v1646, %v4559
        %v4584 = vmul.f32 %v1648, %v4559
        %v4585 = vmul.f32 %v1649, %v4559
        %v4586 = vmul.f32 %v1651, %v4559
        %v4587 = vmul.f32 %v1652, %v4559
        %v4588 = vmul.f32 %v1654, %v4559
        %v4589 = vmul.f32 %v1655, %v4559
        %v4590 = vmul.f32 %v1657, %v4559
        %v4591 = vmul.f32 %v1658, %v4559
        %v4592 = vmul.f32 %v1660, %v4559
        %v4593 = vmul.f32 %v1661, %v4559
        %v4594 = vmul.f32 %v1663, %v4559
        %v4595 = vmul.f32 %v1664, %v4559
        %v4596 = vmul.f32 %v1666, %v4559
        %v4597 = vmul.f32 %v1667, %v4559
        %v4598 = vmul.f32 %v1669, %v4559
        %v4599 = vmul.f32 %v1670, %v4559
        %v4600 = vmul.f32 %v1672, %v4559
        %v4601 = vmul.f32 %v1673, %v4559
        %v4602 = vmul.f32 %v1675, %v4559
        %v4603 = vmul.f32 %v1676, %v4559
        %v4604 = vmul.f32 %v1678, %v4559
        %v4605 = vmul.f32 %v1679, %v4559
        %v4606 = vmul.f32 %v1681, %v4559
        %v4607 = vmul.f32 %v1682, %v4559
        %v4608 = vadd.f32 %v4508, %v4560
        %v4609 = vadd.f32 %v4509, %v4561
        %v4610 = vadd.f32 %v4510, %v4562
        %v4611 = vadd.f32 %v4511, %v4563
        %v4612 = vadd.f32 %v4512, %v4564
        %v4613 = vadd.f32 %v4513, %v4565
        %v4614 = vadd.f32 %v4514, %v4566
        %v4615 = vadd.f32 %v4515, %v4567
        %v4616 = vadd.f32 %v4516, %v4568
        %v4617 = vadd.f32 %v4517, %v4569
        %v4618 = vadd.f32 %v4518, %v4570
        %v4619 = vadd.f32 %v4519, %v4571
        %v4620 = vadd.f32 %v4520, %v4572
        %v4621 = vadd.f32 %v4521, %v4573
        %v4622 = vadd.f32 %v4522, %v4574
        %v4623 = vadd.f32 %v4523, %v4575
        %v4624 = vadd.f32 %v4524, %v4576
        %v4625 = vadd.f32 %v4525, %v4577
        %v4626 = vadd.f32 %v4526, %v4578
        %v4627 = vadd.f32 %v4527, %v4579
        %v4628 = vadd.f32 %v4528, %v4580
        %v4629 = vadd.f32 %v4529, %v4581
        %v4630 = vadd.f32 %v4530, %v4582
        %v4631 = vadd.f32 %v4531, %v4583
        %v4632 = vadd.f32 %v4532, %v4584
        %v4633 = vadd.f32 %v4533, %v4585
        %v4634 = vadd.f32 %v4534, %v4586
        %v4635 = vadd.f32 %v4535, %v4587
        %v4636 = vadd.f32 %v4536, %v4588
        %v4637 = vadd.f32 %v4537, %v4589
        %v4638 = vadd.f32 %v4538, %v4590
        %v4639 = vadd.f32 %v4539, %v4591
        %v4640 = vadd.f32 %v4540, %v4592
        %v4641 = vadd.f32 %v4541, %v4593
        %v4642 = vadd.f32 %v4542, %v4594
        %v4643 = vadd.f32 %v4543, %v4595
        %v4644 = vadd.f32 %v4544, %v4596
        %v4645 = vadd.f32 %v4545, %v4597
        %v4646 = vadd.f32 %v4546, %v4598
        %v4647 = vadd.f32 %v4547, %v4599
        %v4648 = vadd.f32 %v4548, %v4600
        %v4649 = vadd.f32 %v4549, %v4601
        %v4650 = vadd.f32 %v4550, %v4602
        %v4651 = vadd.f32 %v4551, %v4603
        %v4652 = vadd.f32 %v4552, %v4604
        %v4653 = vadd.f32 %v4553, %v4605
        %v4654 = vadd.f32 %v4554, %v4606
        %v4655 = vadd.f32 %v4555, %v4607
        %v4656 = vlaneseq
        %v4657 = vshrl.u32 %v4656, 7
        %v4658 = vsub.s32 6, %v4657
        %v4659 = vrot.slane %v557, %v4658
        %v4660 = vmul.f32 %v1857, %v4659
        %v4661 = vmul.f32 %v1858, %v4659
        %v4662 = vmul.f32 %v1860, %v4659
        %v4663 = vmul.f32 %v1861, %v4659
        %v4664 = vmul.f32 %v1863, %v4659
        %v4665 = vmul.f32 %v1864, %v4659
        %v4666 = vmul.f32 %v1866, %v4659
        %v4667 = vmul.f32 %v1867, %v4659
        %v4668 = vmul.f32 %v1869, %v4659
        %v4669 = vmul.f32 %v1870, %v4659
        %v4670 = vmul.f32 %v1872, %v4659
        %v4671 = vmul.f32 %v1873, %v4659
        %v4672 = vmul.f32 %v1875, %v4659
        %v4673 = vmul.f32 %v1876, %v4659
        %v4674 = vmul.f32 %v1878, %v4659
        %v4675 = vmul.f32 %v1879, %v4659
        %v4676 = vmul.f32 %v1881, %v4659
        %v4677 = vmul.f32 %v1882, %v4659
        %v4678 = vmul.f32 %v1884, %v4659
        %v4679 = vmul.f32 %v1885, %v4659
        %v4680 = vmul.f32 %v1887, %v4659
        %v4681 = vmul.f32 %v1888, %v4659
        %v4682 = vmul.f32 %v1890, %v4659
        %v4683 = vmul.f32 %v1891, %v4659
        %v4684 = vmul.f32 %v1893, %v4659
        %v4685 = vmul.f32 %v1894, %v4659
        %v4686 = vmul.f32 %v1896, %v4659
        %v4687 = vmul.f32 %v1897, %v4659
        %v4688 = vmul.f32 %v1899, %v4659
        %v4689 = vmul.f32 %v1900, %v4659
        %v4690 = vmul.f32 %v1902, %v4659
        %v4691 = vmul.f32 %v1903, %v4659
        %v4692 = vmul.f32 %v1905, %v4659
        %v4693 = vmul.f32 %v1906, %v4659
        %v4694 = vmul.f32 %v1908, %v4659
        %v4695 = vmul.f32 %v1909, %v4659
        %v4696 = vmul.f32 %v1911, %v4659
        %v4697 = vmul.f32 %v1912, %v4659
        %v4698 = vmul.f32 %v1914, %v4659
        %v4699 = vmul.f32 %v1915, %v4659
        %v4700 = vmul.f32 %v1917, %v4659
        %v4701 = vmul.f32 %v1918, %v4659
        %v4702 = vmul.f32 %v1920, %v4659
        %v4703 = vmul.f32 %v1921, %v4659
        %v4704 = vmul.f32 %v1923, %v4659
        %v4705 = vmul.f32 %v1924, %v4659
        %v4706 = vmul.f32 %v1926, %v4659
        %v4707 = vmul.f32 %v1927, %v4659
        %v4708 = vadd.f32 %v4608, %v4660
        %v4709 = vadd.f32 %v4609, %v4661
        %v4710 = vadd.f32 %v4610, %v4662
        %v4711 = vadd.f32 %v4611, %v4663
        %v4712 = vadd.f32 %v4612, %v4664
        %v4713 = vadd.f32 %v4613, %v4665
        %v4714 = vadd.f32 %v4614, %v4666
        %v4715 = vadd.f32 %v4615, %v4667
        %v4716 = vadd.f32 %v4616, %v4668
        %v4717 = vadd.f32 %v4617, %v4669
        %v4718 = vadd.f32 %v4618, %v4670
        %v4719 = vadd.f32 %v4619, %v4671
        %v4720 = vadd.f32 %v4620, %v4672
        %v4721 = vadd.f32 %v4621, %v4673
        %v4722 = vadd.f32 %v4622, %v4674
        %v4723 = vadd.f32 %v4623, %v4675
        %v4724 = vadd.f32 %v4624, %v4676
        %v4725 = vadd.f32 %v4625, %v4677
        %v4726 = vadd.f32 %v4626, %v4678
        %v4727 = vadd.f32 %v4627, %v4679
        %v4728 = vadd.f32 %v4628, %v4680
        %v4729 = vadd.f32 %v4629, %v4681
        %v4730 = vadd.f32 %v4630, %v4682
        %v4731 = vadd.f32 %v4631, %v4683
        %v4732 = vadd.f32 %v4632, %v4684
        %v4733 = vadd.f32 %v4633, %v4685
        %v4734 = vadd.f32 %v4634, %v4686
        %v4735 = vadd.f32 %v4635, %v4687
        %v4736 = vadd.f32 %v4636, %v4688
        %v4737 = vadd.f32 %v4637, %v4689
        %v4738 = vadd.f32 %v4638, %v4690
        %v4739 = vadd.f32 %v4639, %v4691
        %v4740 = vadd.f32 %v4640, %v4692
        %v4741 = vadd.f32 %v4641, %v4693
        %v4742 = vadd.f32 %v4642, %v4694
        %v4743 = vadd.f32 %v4643, %v4695
        %v4744 = vadd.f32 %v4644, %v4696
        %v4745 = vadd.f32 %v4645, %v4697
        %v4746 = vadd.f32 %v4646, %v4698
        %v4747 = vadd.f32 %v4647, %v4699
        %v4748 = vadd.f32 %v4648, %v4700
        %v4749 = vadd.f32 %v4649, %v4701
        %v4750 = vadd.f32 %v4650, %v4702
        %v4751 = vadd.f32 %v4651, %v4703
        %v4752 = vadd.f32 %v4652, %v4704
        %v4753 = vadd.f32 %v4653, %v4705
        %v4754 = vadd.f32 %v4654, %v4706
        %v4755 = vadd.f32 %v4655, %v4707
        %v4756 = vlaneseq
        %v4757 = vshrl.u32 %v4756, 7
        %v4758 = vsub.s32 5, %v4757
        %v4759 = vrot.slane %v558, %v4758
        %v4760 = vmul.f32 %v2102, %v4759
        %v4761 = vmul.f32 %v2103, %v4759
        %v4762 = vmul.f32 %v2105, %v4759
        %v4763 = vmul.f32 %v2106, %v4759
        %v4764 = vmul.f32 %v2108, %v4759
        %v4765 = vmul.f32 %v2109, %v4759
        %v4766 = vmul.f32 %v2111, %v4759
        %v4767 = vmul.f32 %v2112, %v4759
        %v4768 = vmul.f32 %v2114, %v4759
        %v4769 = vmul.f32 %v2115, %v4759
        %v4770 = vmul.f32 %v2117, %v4759
        %v4771 = vmul.f32 %v2118, %v4759
        %v4772 = vmul.f32 %v2120, %v4759
        %v4773 = vmul.f32 %v2121, %v4759
        %v4774 = vmul.f32 %v2123, %v4759
        %v4775 = vmul.f32 %v2124, %v4759
        %v4776 = vmul.f32 %v2126, %v4759
        %v4777 = vmul.f32 %v2127, %v4759
        %v4778 = vmul.f32 %v2129, %v4759
        %v4779 = vmul.f32 %v2130, %v4759
        %v4780 = vmul.f32 %v2132, %v4759
        %v4781 = vmul.f32 %v2133, %v4759
        %v4782 = vmul.f32 %v2135, %v4759
        %v4783 = vmul.f32 %v2136, %v4759
        %v4784 = vmul.f32 %v2138, %v4759
        %v4785 = vmul.f32 %v2139, %v4759
        %v4786 = vmul.f32 %v2141, %v4759
        %v4787 = vmul.f32 %v2142, %v4759
        %v4788 = vmul.f32 %v2144, %v4759
        %v4789 = vmul.f32 %v2145, %v4759
        %v4790 = vmul.f32 %v2147, %v4759
        %v4791 = vmul.f32 %v2148, %v4759
        %v4792 = vmul.f32 %v2150, %v4759
        %v4793 = vmul.f32 %v2151, %v4759
        %v4794 = vmul.f32 %v2153, %v4759
        %v4795 = vmul.f32 %v2154, %v4759
        %v4796 = vmul.f32 %v2156, %v4759
        %v4797 = vmul.f32 %v2157, %v4759
        %v4798 = vmul.f32 %v2159, %v4759
        %v4799 = vmul.f32 %v2160, %v4759
        %v4800 = vmul.f32 %v2162, %v4759
        %v4801 = vmul.f32 %v2163, %v4759
        %v4802 = vmul.f32 %v2165, %v4759
        %v4803 = vmul.f32 %v2166, %v4759
        %v4804 = vmul.f32 %v2168, %v4759
        %v4805 = vmul.f32 %v2169, %v4759
        %v4806 = vmul.f32 %v2171, %v4759
        %v4807 = vmul.f32 %v2172, %v4759
        %v4808 = vadd.f32 %v4708, %v4760
        %v4809 = vadd.f32 %v4709, %v4761
        %v4810 = vadd.f32 %v4710, %v4762
        %v4811 = vadd.f32 %v4711, %v4763
        %v4812 = vadd.f32 %v4712, %v4764
        %v4813 = vadd.f32 %v4713, %v4765
        %v4814 = vadd.f32 %v4714, %v4766
        %v4815 = vadd.f32 %v4715, %v4767
        %v4816 = vadd.f32 %v4716, %v4768
        %v4817 = vadd.f32 %v4717, %v4769
        %v4818 = vadd.f32 %v4718, %v4770
        %v4819 = vadd.f32 %v4719, %v4771
        %v4820 = vadd.f32 %v4720, %v4772
        %v4821 = vadd.f32 %v4721, %v4773
        %v4822 = vadd.f32 %v4722, %v4774
        %v4823 = vadd.f32 %v4723, %v4775
        %v4824 = vadd.f32 %v4724, %v4776
        %v4825 = vadd.f32 %v4725, %v4777
        %v4826 = vadd.f32 %v4726, %v4778
        %v4827 = vadd.f32 %v4727, %v4779
        %v4828 = vadd.f32 %v4728, %v4780
        %v4829 = vadd.f32 %v4729, %v4781
        %v4830 = vadd.f32 %v4730, %v4782
        %v4831 = vadd.f32 %v4731, %v4783
        %v4832 = vadd.f32 %v4732, %v4784
        %v4833 = vadd.f32 %v4733, %v4785
        %v4834 = vadd.f32 %v4734, %v4786
        %v4835 = vadd.f32 %v4735, %v4787
        %v4836 = vadd.f32 %v4736, %v4788
        %v4837 = vadd.f32 %v4737, %v4789
        %v4838 = vadd.f32 %v4738, %v4790
        %v4839 = vadd.f32 %v4739, %v4791
        %v4840 = vadd.f32 %v4740, %v4792
        %v4841 = vadd.f32 %v4741, %v4793
        %v4842 = vadd.f32 %v4742, %v4794
        %v4843 = vadd.f32 %v4743, %v4795
        %v4844 = vadd.f32 %v4744, %v4796
        %v4845 = vadd.f32 %v4745, %v4797
        %v4846 = vadd.f32 %v4746, %v4798
        %v4847 = vadd.f32 %v4747, %v4799
        %v4848 = vadd.f32 %v4748, %v4800
        %v4849 = vadd.f32 %v4749, %v4801
        %v4850 = vadd.f32 %v4750, %v4802
        %v4851 = vadd.f32 %v4751, %v4803
        %v4852 = vadd.f32 %v4752, %v4804
        %v4853 = vadd.f32 %v4753, %v4805
        %v4854 = vadd.f32 %v4754, %v4806
        %v4855 = vadd.f32 %v4755, %v4807
        %vm4904 = vcmask 1044480
        %v4905 = vrot.slane %v4808, 3
        %v4906 = vrot.slane %v4809, 3
        %v4907 = vsel %vm4904, %v4905, %v4906
        %v4908 = vrot.slane %v4810, 3
        %v4909 = vrot.slane %v4811, 3
        %v4910 = vsel %vm4904, %v4908, %v4909
        %v4911 = vrot.slane %v4812, 3
        %v4912 = vrot.slane %v4813, 3
        %v4913 = vsel %vm4904, %v4911, %v4912
        %v4914 = vrot.slane %v4814, 3
        %v4915 = vrot.slane %v4815, 3
        %v4916 = vsel %vm4904, %v4914, %v4915
        %v4917 = vrot.slane %v4816, 3
        %v4918 = vrot.slane %v4817, 3
        %v4919 = vsel %vm4904, %v4917, %v4918
        %v4920 = vrot.slane %v4818, 3
        %v4921 = vrot.slane %v4819, 3
        %v4922 = vsel %vm4904, %v4920, %v4921
        %v4923 = vrot.slane %v4820, 3
        %v4924 = vrot.slane %v4821, 3
        %v4925 = vsel %vm4904, %v4923, %v4924
        %v4926 = vrot.slane %v4822, 3
        %v4927 = vrot.slane %v4823, 3
        %v4928 = vsel %vm4904, %v4926, %v4927
        %v4929 = vrot.slane %v4824, 3
        %v4930 = vrot.slane %v4825, 3
        %v4931 = vsel %vm4904, %v4929, %v4930
        %v4932 = vrot.slane %v4826, 3
        %v4933 = vrot.slane %v4827, 3
        %v4934 = vsel %vm4904, %v4932, %v4933
        %v4935 = vrot.slane %v4828, 3
        %v4936 = vrot.slane %v4829, 3
        %v4937 = vsel %vm4904, %v4935, %v4936
        %v4938 = vrot.slane %v4830, 3
        %v4939 = vrot.slane %v4831, 3
        %v4940 = vsel %vm4904, %v4938, %v4939
        %v4941 = vrot.slane %v4832, 3
        %v4942 = vrot.slane %v4833, 3
        %v4943 = vsel %vm4904, %v4941, %v4942
        %v4944 = vrot.slane %v4834, 3
        %v4945 = vrot.slane %v4835, 3
        %v4946 = vsel %vm4904, %v4944, %v4945
        %v4947 = vrot.slane %v4836, 3
        %v4948 = vrot.slane %v4837, 3
        %v4949 = vsel %vm4904, %v4947, %v4948
        %v4950 = vrot.slane %v4838, 3
        %v4951 = vrot.slane %v4839, 3
        %v4952 = vsel %vm4904, %v4950, %v4951
        %v4953 = vrot.slane %v4840, 3
        %v4954 = vrot.slane %v4841, 3
        %v4955 = vsel %vm4904, %v4953, %v4954
        %v4956 = vrot.slane %v4842, 3
        %v4957 = vrot.slane %v4843, 3
        %v4958 = vsel %vm4904, %v4956, %v4957
        %v4959 = vrot.slane %v4844, 3
        %v4960 = vrot.slane %v4845, 3
        %v4961 = vsel %vm4904, %v4959, %v4960
        %v4962 = vrot.slane %v4846, 3
        %v4963 = vrot.slane %v4847, 3
        %v4964 = vsel %vm4904, %v4962, %v4963
        %v4965 = vrot.slane %v4848, 3
        %v4966 = vrot.slane %v4849, 3
        %v4967 = vsel %vm4904, %v4965, %v4966
        %v4968 = vrot.slane %v4850, 3
        %v4969 = vrot.slane %v4851, 3
        %v4970 = vsel %vm4904, %v4968, %v4969
        %v4971 = vrot.slane %v4852, 3
        %v4972 = vrot.slane %v4853, 3
        %v4973 = vsel %vm4904, %v4971, %v4972
        %v4974 = vrot.slane %v4854, 3
        %v4975 = vrot.slane %v4855, 3
        %v4976 = vsel %vm4904, %v4974, %v4975
        %v5025 = vadd.f32 %v4108, %v4907
        %v5026 = vadd.f32 %v4109, %v4906
        %v5027 = vadd.f32 %v4110, %v4910
        %v5028 = vadd.f32 %v4111, %v4909
        %v5029 = vadd.f32 %v4112, %v4913
        %v5030 = vadd.f32 %v4113, %v4912
        %v5031 = vadd.f32 %v4114, %v4916
        %v5032 = vadd.f32 %v4115, %v4915
        %v5033 = vadd.f32 %v4116, %v4919
        %v5034 = vadd.f32 %v4117, %v4918
        %v5035 = vadd.f32 %v4118, %v4922
        %v5036 = vadd.f32 %v4119, %v4921
        %v5037 = vadd.f32 %v4120, %v4925
        %v5038 = vadd.f32 %v4121, %v4924
        %v5039 = vadd.f32 %v4122, %v4928
        %v5040 = vadd.f32 %v4123, %v4927
        %v5041 = vadd.f32 %v4124, %v4931
        %v5042 = vadd.f32 %v4125, %v4930
        %v5043 = vadd.f32 %v4126, %v4934
        %v5044 = vadd.f32 %v4127, %v4933
        %v5045 = vadd.f32 %v4128, %v4937
        %v5046 = vadd.f32 %v4129, %v4936
        %v5047 = vadd.f32 %v4130, %v4940
        %v5048 = vadd.f32 %v4131, %v4939
        %v5049 = vadd.f32 %v4132, %v4943
        %v5050 = vadd.f32 %v4133, %v4942
        %v5051 = vadd.f32 %v4134, %v4946
        %v5052 = vadd.f32 %v4135, %v4945
        %v5053 = vadd.f32 %v4136, %v4949
        %v5054 = vadd.f32 %v4137, %v4948
        %v5055 = vadd.f32 %v4138, %v4952
        %v5056 = vadd.f32 %v4139, %v4951
        %v5057 = vadd.f32 %v4140, %v4955
        %v5058 = vadd.f32 %v4141, %v4954
        %v5059 = vadd.f32 %v4142, %v4958
        %v5060 = vadd.f32 %v4143, %v4957
        %v5061 = vadd.f32 %v4144, %v4961
        %v5062 = vadd.f32 %v4145, %v4960
        %v5063 = vadd.f32 %v4146, %v4964
        %v5064 = vadd.f32 %v4147, %v4963
        %v5065 = vadd.f32 %v4148, %v4967
        %v5066 = vadd.f32 %v4149, %v4966
        %v5067 = vadd.f32 %v4150, %v4970
        %v5068 = vadd.f32 %v4151, %v4969
        %v5069 = vadd.f32 %v4152, %v4973
        %v5070 = vadd.f32 %v4153, %v4972
        %v5071 = vadd.f32 %v4154, %v4976
        %v5072 = vadd.f32 %v4155, %v4975
        %v5073 = vlaneseq
        %v5074 = vshrl.u32 %v5073, 7
        %v5075 = vsub.s32 4, %v5074
        %v5076 = vrot.slane %v553, %v5075
        %v5077 = vmul.f32 %v632, %v5076
        %v5078 = vmul.f32 %v633, %v5076
        %v5079 = vmul.f32 %v635, %v5076
        %v5080 = vmul.f32 %v636, %v5076
        %v5081 = vmul.f32 %v638, %v5076
        %v5082 = vmul.f32 %v639, %v5076
        %v5083 = vmul.f32 %v641, %v5076
        %v5084 = vmul.f32 %v642, %v5076
        %v5085 = vmul.f32 %v644, %v5076
        %v5086 = vmul.f32 %v645, %v5076
        %v5087 = vmul.f32 %v647, %v5076
        %v5088 = vmul.f32 %v648, %v5076
        %v5089 = vmul.f32 %v650, %v5076
        %v5090 = vmul.f32 %v651, %v5076
        %v5091 = vmul.f32 %v653, %v5076
        %v5092 = vmul.f32 %v654, %v5076
        %v5093 = vmul.f32 %v656, %v5076
        %v5094 = vmul.f32 %v657, %v5076
        %v5095 = vmul.f32 %v659, %v5076
        %v5096 = vmul.f32 %v660, %v5076
        %v5097 = vmul.f32 %v662, %v5076
        %v5098 = vmul.f32 %v663, %v5076
        %v5099 = vmul.f32 %v665, %v5076
        %v5100 = vmul.f32 %v666, %v5076
        %v5101 = vmul.f32 %v668, %v5076
        %v5102 = vmul.f32 %v669, %v5076
        %v5103 = vmul.f32 %v671, %v5076
        %v5104 = vmul.f32 %v672, %v5076
        %v5105 = vmul.f32 %v674, %v5076
        %v5106 = vmul.f32 %v675, %v5076
        %v5107 = vmul.f32 %v677, %v5076
        %v5108 = vmul.f32 %v678, %v5076
        %v5109 = vmul.f32 %v680, %v5076
        %v5110 = vmul.f32 %v681, %v5076
        %v5111 = vmul.f32 %v683, %v5076
        %v5112 = vmul.f32 %v684, %v5076
        %v5113 = vmul.f32 %v686, %v5076
        %v5114 = vmul.f32 %v687, %v5076
        %v5115 = vmul.f32 %v689, %v5076
        %v5116 = vmul.f32 %v690, %v5076
        %v5117 = vmul.f32 %v692, %v5076
        %v5118 = vmul.f32 %v693, %v5076
        %v5119 = vmul.f32 %v695, %v5076
        %v5120 = vmul.f32 %v696, %v5076
        %v5121 = vmul.f32 %v698, %v5076
        %v5122 = vmul.f32 %v699, %v5076
        %v5123 = vmul.f32 %v701, %v5076
        %v5124 = vmul.f32 %v702, %v5076
        %v5125 = vadd.f32 %v5077, 0.0
        %v5126 = vadd.f32 %v5078, 0.0
        %v5127 = vadd.f32 %v5079, 0.0
        %v5128 = vadd.f32 %v5080, 0.0
        %v5129 = vadd.f32 %v5081, 0.0
        %v5130 = vadd.f32 %v5082, 0.0
        %v5131 = vadd.f32 %v5083, 0.0
        %v5132 = vadd.f32 %v5084, 0.0
        %v5133 = vadd.f32 %v5085, 0.0
        %v5134 = vadd.f32 %v5086, 0.0
        %v5135 = vadd.f32 %v5087, 0.0
        %v5136 = vadd.f32 %v5088, 0.0
        %v5137 = vadd.f32 %v5089, 0.0
        %v5138 = vadd.f32 %v5090, 0.0
        %v5139 = vadd.f32 %v5091, 0.0
        %v5140 = vadd.f32 %v5092, 0.0
        %v5141 = vadd.f32 %v5093, 0.0
        %v5142 = vadd.f32 %v5094, 0.0
        %v5143 = vadd.f32 %v5095, 0.0
        %v5144 = vadd.f32 %v5096, 0.0
        %v5145 = vadd.f32 %v5097, 0.0
        %v5146 = vadd.f32 %v5098, 0.0
        %v5147 = vadd.f32 %v5099, 0.0
        %v5148 = vadd.f32 %v5100, 0.0
        %v5149 = vadd.f32 %v5101, 0.0
        %v5150 = vadd.f32 %v5102, 0.0
        %v5151 = vadd.f32 %v5103, 0.0
        %v5152 = vadd.f32 %v5104, 0.0
        %v5153 = vadd.f32 %v5105, 0.0
        %v5154 = vadd.f32 %v5106, 0.0
        %v5155 = vadd.f32 %v5107, 0.0
        %v5156 = vadd.f32 %v5108, 0.0
        %v5157 = vadd.f32 %v5109, 0.0
        %v5158 = vadd.f32 %v5110, 0.0
        %v5159 = vadd.f32 %v5111, 0.0
        %v5160 = vadd.f32 %v5112, 0.0
        %v5161 = vadd.f32 %v5113, 0.0
        %v5162 = vadd.f32 %v5114, 0.0
        %v5163 = vadd.f32 %v5115, 0.0
        %v5164 = vadd.f32 %v5116, 0.0
        %v5165 = vadd.f32 %v5117, 0.0
        %v5166 = vadd.f32 %v5118, 0.0
        %v5167 = vadd.f32 %v5119, 0.0
        %v5168 = vadd.f32 %v5120, 0.0
        %v5169 = vadd.f32 %v5121, 0.0
        %v5170 = vadd.f32 %v5122, 0.0
        %v5171 = vadd.f32 %v5123, 0.0
        %v5172 = vadd.f32 %v5124, 0.0
        %v5173 = vlaneseq
        %v5174 = vshrl.u32 %v5173, 7
        %v5175 = vsub.s32 3, %v5174
        %v5176 = vrot.slane %v554, %v5175
        %v5177 = vmul.f32 %v877, %v5176
        %v5178 = vmul.f32 %v878, %v5176
        %v5179 = vmul.f32 %v880, %v5176
        %v5180 = vmul.f32 %v881, %v5176
        %v5181 = vmul.f32 %v883, %v5176
        %v5182 = vmul.f32 %v884, %v5176
        %v5183 = vmul.f32 %v886, %v5176
        %v5184 = vmul.f32 %v887, %v5176
        %v5185 = vmul.f32 %v889, %v5176
        %v5186 = vmul.f32 %v890, %v5176
        %v5187 = vmul.f32 %v892, %v5176
        %v5188 = vmul.f32 %v893, %v5176
        %v5189 = vmul.f32 %v895, %v5176
        %v5190 = vmul.f32 %v896, %v5176
        %v5191 = vmul.f32 %v898, %v5176
        %v5192 = vmul.f32 %v899, %v5176
        %v5193 = vmul.f32 %v901, %v5176
        %v5194 = vmul.f32 %v902, %v5176
        %v5195 = vmul.f32 %v904, %v5176
        %v5196 = vmul.f32 %v905, %v5176
        %v5197 = vmul.f32 %v907, %v5176
        %v5198 = vmul.f32 %v908, %v5176
        %v5199 = vmul.f32 %v910, %v5176
        %v5200 = vmul.f32 %v911, %v5176
        %v5201 = vmul.f32 %v913, %v5176
        %v5202 = vmul.f32 %v914, %v5176
        %v5203 = vmul.f32 %v916, %v5176
        %v5204 = vmul.f32 %v917, %v5176
        %v5205 = vmul.f32 %v919, %v5176
        %v5206 = vmul.f32 %v920, %v5176
        %v5207 = vmul.f32 %v922, %v5176
        %v5208 = vmul.f32 %v923, %v5176
        %v5209 = vmul.f32 %v925, %v5176
        %v5210 = vmul.f32 %v926, %v5176
        %v5211 = vmul.f32 %v928, %v5176
        %v5212 = vmul.f32 %v929, %v5176
        %v5213 = vmul.f32 %v931, %v5176
        %v5214 = vmul.f32 %v932, %v5176
        %v5215 = vmul.f32 %v934, %v5176
        %v5216 = vmul.f32 %v935, %v5176
        %v5217 = vmul.f32 %v937, %v5176
        %v5218 = vmul.f32 %v938, %v5176
        %v5219 = vmul.f32 %v940, %v5176
        %v5220 = vmul.f32 %v941, %v5176
        %v5221 = vmul.f32 %v943, %v5176
        %v5222 = vmul.f32 %v944, %v5176
        %v5223 = vmul.f32 %v946, %v5176
        %v5224 = vmul.f32 %v947, %v5176
        %v5225 = vadd.f32 %v5125, %v5177
        %v5226 = vadd.f32 %v5126, %v5178
        %v5227 = vadd.f32 %v5127, %v5179
        %v5228 = vadd.f32 %v5128, %v5180
        %v5229 = vadd.f32 %v5129, %v5181
        %v5230 = vadd.f32 %v5130, %v5182
        %v5231 = vadd.f32 %v5131, %v5183
        %v5232 = vadd.f32 %v5132, %v5184
        %v5233 = vadd.f32 %v5133, %v5185
        %v5234 = vadd.f32 %v5134, %v5186
        %v5235 = vadd.f32 %v5135, %v5187
        %v5236 = vadd.f32 %v5136, %v5188
        %v5237 = vadd.f32 %v5137, %v5189
        %v5238 = vadd.f32 %v5138, %v5190
        %v5239 = vadd.f32 %v5139, %v5191
        %v5240 = vadd.f32 %v5140, %v5192
        %v5241 = vadd.f32 %v5141, %v5193
        %v5242 = vadd.f32 %v5142, %v5194
        %v5243 = vadd.f32 %v5143, %v5195
        %v5244 = vadd.f32 %v5144, %v5196
        %v5245 = vadd.f32 %v5145, %v5197
        %v5246 = vadd.f32 %v5146, %v5198
        %v5247 = vadd.f32 %v5147, %v5199
        %v5248 = vadd.f32 %v5148, %v5200
        %v5249 = vadd.f32 %v5149, %v5201
        %v5250 = vadd.f32 %v5150, %v5202
        %v5251 = vadd.f32 %v5151, %v5203
        %v5252 = vadd.f32 %v5152, %v5204
        %v5253 = vadd.f32 %v5153, %v5205
        %v5254 = vadd.f32 %v5154, %v5206
        %v5255 = vadd.f32 %v5155, %v5207
        %v5256 = vadd.f32 %v5156, %v5208
        %v5257 = vadd.f32 %v5157, %v5209
        %v5258 = vadd.f32 %v5158, %v5210
        %v5259 = vadd.f32 %v5159, %v5211
        %v5260 = vadd.f32 %v5160, %v5212
        %v5261 = vadd.f32 %v5161, %v5213
        %v5262 = vadd.f32 %v5162, %v5214
        %v5263 = vadd.f32 %v5163, %v5215
        %v5264 = vadd.f32 %v5164, %v5216
        %v5265 = vadd.f32 %v5165, %v5217
        %v5266 = vadd.f32 %v5166, %v5218
        %v5267 = vadd.f32 %v5167, %v5219
        %v5268 = vadd.f32 %v5168, %v5220
        %v5269 = vadd.f32 %v5169, %v5221
        %v5270 = vadd.f32 %v5170, %v5222
        %v5271 = vadd.f32 %v5171, %v5223
        %v5272 = vadd.f32 %v5172, %v5224
        %v5273 = vlaneseq
        %v5274 = vshrl.u32 %v5273, 7
        %v5275 = vsub.s32 2, %v5274
        %v5276 = vrot.slane %v555, %v5275
        %v5277 = vmul.f32 %v1122, %v5276
        %v5278 = vmul.f32 %v1123, %v5276
        %v5279 = vmul.f32 %v1125, %v5276
        %v5280 = vmul.f32 %v1126, %v5276
        %v5281 = vmul.f32 %v1128, %v5276
        %v5282 = vmul.f32 %v1129, %v5276
        %v5283 = vmul.f32 %v1131, %v5276
        %v5284 = vmul.f32 %v1132, %v5276
        %v5285 = vmul.f32 %v1134, %v5276
        %v5286 = vmul.f32 %v1135, %v5276
        %v5287 = vmul.f32 %v1137, %v5276
        %v5288 = vmul.f32 %v1138, %v5276
        %v5289 = vmul.f32 %v1140, %v5276
        %v5290 = vmul.f32 %v1141, %v5276
        %v5291 = vmul.f32 %v1143, %v5276
        %v5292 = vmul.f32 %v1144, %v5276
        %v5293 = vmul.f32 %v1146, %v5276
        %v5294 = vmul.f32 %v1147, %v5276
        %v5295 = vmul.f32 %v1149, %v5276
        %v5296 = vmul.f32 %v1150, %v5276
        %v5297 = vmul.f32 %v1152, %v5276
        %v5298 = vmul.f32 %v1153, %v5276
        %v5299 = vmul.f32 %v1155, %v5276
        %v5300 = vmul.f32 %v1156, %v5276
        %v5301 = vmul.f32 %v1158, %v5276
        %v5302 = vmul.f32 %v1159, %v5276
        %v5303 = vmul.f32 %v1161, %v5276
        %v5304 = vmul.f32 %v1162, %v5276
        %v5305 = vmul.f32 %v1164, %v5276
        %v5306 = vmul.f32 %v1165, %v5276
        %v5307 = vmul.f32 %v1167, %v5276
        %v5308 = vmul.f32 %v1168, %v5276
        %v5309 = vmul.f32 %v1170, %v5276
        %v5310 = vmul.f32 %v1171, %v5276
        %v5311 = vmul.f32 %v1173, %v5276
        %v5312 = vmul.f32 %v1174, %v5276
        %v5313 = vmul.f32 %v1176, %v5276
        %v5314 = vmul.f32 %v1177, %v5276
        %v5315 = vmul.f32 %v1179, %v5276
        %v5316 = vmul.f32 %v1180, %v5276
        %v5317 = vmul.f32 %v1182, %v5276
        %v5318 = vmul.f32 %v1183, %v5276
        %v5319 = vmul.f32 %v1185, %v5276
        %v5320 = vmul.f32 %v1186, %v5276
        %v5321 = vmul.f32 %v1188, %v5276
        %v5322 = vmul.f32 %v1189, %v5276
        %v5323 = vmul.f32 %v1191, %v5276
        %v5324 = vmul.f32 %v1192, %v5276
        %v5325 = vadd.f32 %v5225, %v5277
        %v5326 = vadd.f32 %v5226, %v5278
        %v5327 = vadd.f32 %v5227, %v5279
        %v5328 = vadd.f32 %v5228, %v5280
        %v5329 = vadd.f32 %v5229, %v5281
        %v5330 = vadd.f32 %v5230, %v5282
        %v5331 = vadd.f32 %v5231, %v5283
        %v5332 = vadd.f32 %v5232, %v5284
        %v5333 = vadd.f32 %v5233, %v5285
        %v5334 = vadd.f32 %v5234, %v5286
        %v5335 = vadd.f32 %v5235, %v5287
        %v5336 = vadd.f32 %v5236, %v5288
        %v5337 = vadd.f32 %v5237, %v5289
        %v5338 = vadd.f32 %v5238, %v5290
        %v5339 = vadd.f32 %v5239, %v5291
        %v5340 = vadd.f32 %v5240, %v5292
        %v5341 = vadd.f32 %v5241, %v5293
        %v5342 = vadd.f32 %v5242, %v5294
        %v5343 = vadd.f32 %v5243, %v5295
        %v5344 = vadd.f32 %v5244, %v5296
        %v5345 = vadd.f32 %v5245, %v5297
        %v5346 = vadd.f32 %v5246, %v5298
        %v5347 = vadd.f32 %v5247, %v5299
        %v5348 = vadd.f32 %v5248, %v5300
        %v5349 = vadd.f32 %v5249, %v5301
        %v5350 = vadd.f32 %v5250, %v5302
        %v5351 = vadd.f32 %v5251, %v5303
        %v5352 = vadd.f32 %v5252, %v5304
        %v5353 = vadd.f32 %v5253, %v5305
        %v5354 = vadd.f32 %v5254, %v5306
        %v5355 = vadd.f32 %v5255, %v5307
        %v5356 = vadd.f32 %v5256, %v5308
        %v5357 = vadd.f32 %v5257, %v5309
        %v5358 = vadd.f32 %v5258, %v5310
        %v5359 = vadd.f32 %v5259, %v5311
        %v5360 = vadd.f32 %v5260, %v5312
        %v5361 = vadd.f32 %v5261, %v5313
        %v5362 = vadd.f32 %v5262, %v5314
        %v5363 = vadd.f32 %v5263, %v5315
        %v5364 = vadd.f32 %v5264, %v5316
        %v5365 = vadd.f32 %v5265, %v5317
        %v5366 = vadd.f32 %v5266, %v5318
        %v5367 = vadd.f32 %v5267, %v5319
        %v5368 = vadd.f32 %v5268, %v5320
        %v5369 = vadd.f32 %v5269, %v5321
        %v5370 = vadd.f32 %v5270, %v5322
        %v5371 = vadd.f32 %v5271, %v5323
        %v5372 = vadd.f32 %v5272, %v5324
        %v5373 = vlaneseq
        %v5374 = vshrl.u32 %v5373, 7
        %v5375 = vsub.s32 1, %v5374
        %v5376 = vrot.slane %v556, %v5375
        %v5377 = vmul.f32 %v1367, %v5376
        %v5378 = vmul.f32 %v1368, %v5376
        %v5379 = vmul.f32 %v1370, %v5376
        %v5380 = vmul.f32 %v1371, %v5376
        %v5381 = vmul.f32 %v1373, %v5376
        %v5382 = vmul.f32 %v1374, %v5376
        %v5383 = vmul.f32 %v1376, %v5376
        %v5384 = vmul.f32 %v1377, %v5376
        %v5385 = vmul.f32 %v1379, %v5376
        %v5386 = vmul.f32 %v1380, %v5376
        %v5387 = vmul.f32 %v1382, %v5376
        %v5388 = vmul.f32 %v1383, %v5376
        %v5389 = vmul.f32 %v1385, %v5376
        %v5390 = vmul.f32 %v1386, %v5376
        %v5391 = vmul.f32 %v1388, %v5376
        %v5392 = vmul.f32 %v1389, %v5376
        %v5393 = vmul.f32 %v1391, %v5376
        %v5394 = vmul.f32 %v1392, %v5376
        %v5395 = vmul.f32 %v1394, %v5376
        %v5396 = vmul.f32 %v1395, %v5376
        %v5397 = vmul.f32 %v1397, %v5376
        %v5398 = vmul.f32 %v1398, %v5376
        %v5399 = vmul.f32 %v1400, %v5376
        %v5400 = vmul.f32 %v1401, %v5376
        %v5401 = vmul.f32 %v1403, %v5376
        %v5402 = vmul.f32 %v1404, %v5376
        %v5403 = vmul.f32 %v1406, %v5376
        %v5404 = vmul.f32 %v1407, %v5376
        %v5405 = vmul.f32 %v1409, %v5376
        %v5406 = vmul.f32 %v1410, %v5376
        %v5407 = vmul.f32 %v1412, %v5376
        %v5408 = vmul.f32 %v1413, %v5376
        %v5409 = vmul.f32 %v1415, %v5376
        %v5410 = vmul.f32 %v1416, %v5376
        %v5411 = vmul.f32 %v1418, %v5376
        %v5412 = vmul.f32 %v1419, %v5376
        %v5413 = vmul.f32 %v1421, %v5376
        %v5414 = vmul.f32 %v1422, %v5376
        %v5415 = vmul.f32 %v1424, %v5376
        %v5416 = vmul.f32 %v1425, %v5376
        %v5417 = vmul.f32 %v1427, %v5376
        %v5418 = vmul.f32 %v1428, %v5376
        %v5419 = vmul.f32 %v1430, %v5376
        %v5420 = vmul.f32 %v1431, %v5376
        %v5421 = vmul.f32 %v1433, %v5376
        %v5422 = vmul.f32 %v1434, %v5376
        %v5423 = vmul.f32 %v1436, %v5376
        %v5424 = vmul.f32 %v1437, %v5376
        %v5425 = vadd.f32 %v5325, %v5377
        %v5426 = vadd.f32 %v5326, %v5378
        %v5427 = vadd.f32 %v5327, %v5379
        %v5428 = vadd.f32 %v5328, %v5380
        %v5429 = vadd.f32 %v5329, %v5381
        %v5430 = vadd.f32 %v5330, %v5382
        %v5431 = vadd.f32 %v5331, %v5383
        %v5432 = vadd.f32 %v5332, %v5384
        %v5433 = vadd.f32 %v5333, %v5385
        %v5434 = vadd.f32 %v5334, %v5386
        %v5435 = vadd.f32 %v5335, %v5387
        %v5436 = vadd.f32 %v5336, %v5388
        %v5437 = vadd.f32 %v5337, %v5389
        %v5438 = vadd.f32 %v5338, %v5390
        %v5439 = vadd.f32 %v5339, %v5391
        %v5440 = vadd.f32 %v5340, %v5392
        %v5441 = vadd.f32 %v5341, %v5393
        %v5442 = vadd.f32 %v5342, %v5394
        %v5443 = vadd.f32 %v5343, %v5395
        %v5444 = vadd.f32 %v5344, %v5396
        %v5445 = vadd.f32 %v5345, %v5397
        %v5446 = vadd.f32 %v5346, %v5398
        %v5447 = vadd.f32 %v5347, %v5399
        %v5448 = vadd.f32 %v5348, %v5400
        %v5449 = vadd.f32 %v5349, %v5401
        %v5450 = vadd.f32 %v5350, %v5402
        %v5451 = vadd.f32 %v5351, %v5403
        %v5452 = vadd.f32 %v5352, %v5404
        %v5453 = vadd.f32 %v5353, %v5405
        %v5454 = vadd.f32 %v5354, %v5406
        %v5455 = vadd.f32 %v5355, %v5407
        %v5456 = vadd.f32 %v5356, %v5408
        %v5457 = vadd.f32 %v5357, %v5409
        %v5458 = vadd.f32 %v5358, %v5410
        %v5459 = vadd.f32 %v5359, %v5411
        %v5460 = vadd.f32 %v5360, %v5412
        %v5461 = vadd.f32 %v5361, %v5413
        %v5462 = vadd.f32 %v5362, %v5414
        %v5463 = vadd.f32 %v5363, %v5415
        %v5464 = vadd.f32 %v5364, %v5416
        %v5465 = vadd.f32 %v5365, %v5417
        %v5466 = vadd.f32 %v5366, %v5418
        %v5467 = vadd.f32 %v5367, %v5419
        %v5468 = vadd.f32 %v5368, %v5420
        %v5469 = vadd.f32 %v5369, %v5421
        %v5470 = vadd.f32 %v5370, %v5422
        %v5471 = vadd.f32 %v5371, %v5423
        %v5472 = vadd.f32 %v5372, %v5424
        %v5473 = vlaneseq
        %v5474 = vshrl.u32 %v5473, 7
        %v5475 = vsub.s32 0, %v5474
        %v5476 = vrot.slane %v557, %v5475
        %v5477 = vmul.f32 %v1612, %v5476
        %v5478 = vmul.f32 %v1613, %v5476
        %v5479 = vmul.f32 %v1615, %v5476
        %v5480 = vmul.f32 %v1616, %v5476
        %v5481 = vmul.f32 %v1618, %v5476
        %v5482 = vmul.f32 %v1619, %v5476
        %v5483 = vmul.f32 %v1621, %v5476
        %v5484 = vmul.f32 %v1622, %v5476
        %v5485 = vmul.f32 %v1624, %v5476
        %v5486 = vmul.f32 %v1625, %v5476
        %v5487 = vmul.f32 %v1627, %v5476
        %v5488 = vmul.f32 %v1628, %v5476
        %v5489 = vmul.f32 %v1630, %v5476
        %v5490 = vmul.f32 %v1631, %v5476
        %v5491 = vmul.f32 %v1633, %v5476
        %v5492 = vmul.f32 %v1634, %v5476
        %v5493 = vmul.f32 %v1636, %v5476
        %v5494 = vmul.f32 %v1637, %v5476
        %v5495 = vmul.f32 %v1639, %v5476
        %v5496 = vmul.f32 %v1640, %v5476
        %v5497 = vmul.f32 %v1642, %v5476
        %v5498 = vmul.f32 %v1643, %v5476
        %v5499 = vmul.f32 %v1645, %v5476
        %v5500 = vmul.f32 %v1646, %v5476
        %v5501 = vmul.f32 %v1648, %v5476
        %v5502 = vmul.f32 %v1649, %v5476
        %v5503 = vmul.f32 %v1651, %v5476
        %v5504 = vmul.f32 %v1652, %v5476
        %v5505 = vmul.f32 %v1654, %v5476
        %v5506 = vmul.f32 %v1655, %v5476
        %v5507 = vmul.f32 %v1657, %v5476
        %v5508 = vmul.f32 %v1658, %v5476
        %v5509 = vmul.f32 %v1660, %v5476
        %v5510 = vmul.f32 %v1661, %v5476
        %v5511 = vmul.f32 %v1663, %v5476
        %v5512 = vmul.f32 %v1664, %v5476
        %v5513 = vmul.f32 %v1666, %v5476
        %v5514 = vmul.f32 %v1667, %v5476
        %v5515 = vmul.f32 %v1669, %v5476
        %v5516 = vmul.f32 %v1670, %v5476
        %v5517 = vmul.f32 %v1672, %v5476
        %v5518 = vmul.f32 %v1673, %v5476
        %v5519 = vmul.f32 %v1675, %v5476
        %v5520 = vmul.f32 %v1676, %v5476
        %v5521 = vmul.f32 %v1678, %v5476
        %v5522 = vmul.f32 %v1679, %v5476
        %v5523 = vmul.f32 %v1681, %v5476
        %v5524 = vmul.f32 %v1682, %v5476
        %v5525 = vadd.f32 %v5425, %v5477
        %v5526 = vadd.f32 %v5426, %v5478
        %v5527 = vadd.f32 %v5427, %v5479
        %v5528 = vadd.f32 %v5428, %v5480
        %v5529 = vadd.f32 %v5429, %v5481
        %v5530 = vadd.f32 %v5430, %v5482
        %v5531 = vadd.f32 %v5431, %v5483
        %v5532 = vadd.f32 %v5432, %v5484
        %v5533 = vadd.f32 %v5433, %v5485
        %v5534 = vadd.f32 %v5434, %v5486
        %v5535 = vadd.f32 %v5435, %v5487
        %v5536 = vadd.f32 %v5436, %v5488
        %v5537 = vadd.f32 %v5437, %v5489
        %v5538 = vadd.f32 %v5438, %v5490
        %v5539 = vadd.f32 %v5439, %v5491
        %v5540 = vadd.f32 %v5440, %v5492
        %v5541 = vadd.f32 %v5441, %v5493
        %v5542 = vadd.f32 %v5442, %v5494
        %v5543 = vadd.f32 %v5443, %v5495
        %v5544 = vadd.f32 %v5444, %v5496
        %v5545 = vadd.f32 %v5445, %v5497
        %v5546 = vadd.f32 %v5446, %v5498
        %v5547 = vadd.f32 %v5447, %v5499
        %v5548 = vadd.f32 %v5448, %v5500
        %v5549 = vadd.f32 %v5449, %v5501
        %v5550 = vadd.f32 %v5450, %v5502
        %v5551 = vadd.f32 %v5451, %v5503
        %v5552 = vadd.f32 %v5452, %v5504
        %v5553 = vadd.f32 %v5453, %v5505
        %v5554 = vadd.f32 %v5454, %v5506
        %v5555 = vadd.f32 %v5455, %v5507
        %v5556 = vadd.f32 %v5456, %v5508
        %v5557 = vadd.f32 %v5457, %v5509
        %v5558 = vadd.f32 %v5458, %v5510
        %v5559 = vadd.f32 %v5459, %v5511
        %v5560 = vadd.f32 %v5460, %v5512
        %v5561 = vadd.f32 %v5461, %v5513
        %v5562 = vadd.f32 %v5462, %v5514
        %v5563 = vadd.f32 %v5463, %v5515
        %v5564 = vadd.f32 %v5464, %v5516
        %v5565 = vadd.f32 %v5465, %v5517
        %v5566 = vadd.f32 %v5466, %v5518
        %v5567 = vadd.f32 %v5467, %v5519
        %v5568 = vadd.f32 %v5468, %v5520
        %v5569 = vadd.f32 %v5469, %v5521
        %v5570 = vadd.f32 %v5470, %v5522
        %v5571 = vadd.f32 %v5471, %v5523
        %v5572 = vadd.f32 %v5472, %v5524
        %v5573 = vlaneseq
        %v5574 = vshrl.u32 %v5573, 7
        %v5575 = vsub.s32 7, %v5574
        %v5576 = vrot.slane %v557, %v5575
        %v5577 = vmul.f32 %v1857, %v5576
        %v5578 = vmul.f32 %v1858, %v5576
        %v5579 = vmul.f32 %v1860, %v5576
        %v5580 = vmul.f32 %v1861, %v5576
        %v5581 = vmul.f32 %v1863, %v5576
        %v5582 = vmul.f32 %v1864, %v5576
        %v5583 = vmul.f32 %v1866, %v5576
        %v5584 = vmul.f32 %v1867, %v5576
        %v5585 = vmul.f32 %v1869, %v5576
        %v5586 = vmul.f32 %v1870, %v5576
        %v5587 = vmul.f32 %v1872, %v5576
        %v5588 = vmul.f32 %v1873, %v5576
        %v5589 = vmul.f32 %v1875, %v5576
        %v5590 = vmul.f32 %v1876, %v5576
        %v5591 = vmul.f32 %v1878, %v5576
        %v5592 = vmul.f32 %v1879, %v5576
        %v5593 = vmul.f32 %v1881, %v5576
        %v5594 = vmul.f32 %v1882, %v5576
        %v5595 = vmul.f32 %v1884, %v5576
        %v5596 = vmul.f32 %v1885, %v5576
        %v5597 = vmul.f32 %v1887, %v5576
        %v5598 = vmul.f32 %v1888, %v5576
        %v5599 = vmul.f32 %v1890, %v5576
        %v5600 = vmul.f32 %v1891, %v5576
        %v5601 = vmul.f32 %v1893, %v5576
        %v5602 = vmul.f32 %v1894, %v5576
        %v5603 = vmul.f32 %v1896, %v5576
        %v5604 = vmul.f32 %v1897, %v5576
        %v5605 = vmul.f32 %v1899, %v5576
        %v5606 = vmul.f32 %v1900, %v5576
        %v5607 = vmul.f32 %v1902, %v5576
        %v5608 = vmul.f32 %v1903, %v5576
        %v5609 = vmul.f32 %v1905, %v5576
        %v5610 = vmul.f32 %v1906, %v5576
        %v5611 = vmul.f32 %v1908, %v5576
        %v5612 = vmul.f32 %v1909, %v5576
        %v5613 = vmul.f32 %v1911, %v5576
        %v5614 = vmul.f32 %v1912, %v5576
        %v5615 = vmul.f32 %v1914, %v5576
        %v5616 = vmul.f32 %v1915, %v5576
        %v5617 = vmul.f32 %v1917, %v5576
        %v5618 = vmul.f32 %v1918, %v5576
        %v5619 = vmul.f32 %v1920, %v5576
        %v5620 = vmul.f32 %v1921, %v5576
        %v5621 = vmul.f32 %v1923, %v5576
        %v5622 = vmul.f32 %v1924, %v5576
        %v5623 = vmul.f32 %v1926, %v5576
        %v5624 = vmul.f32 %v1927, %v5576
        %v5625 = vadd.f32 %v5525, %v5577
        %v5626 = vadd.f32 %v5526, %v5578
        %v5627 = vadd.f32 %v5527, %v5579
        %v5628 = vadd.f32 %v5528, %v5580
        %v5629 = vadd.f32 %v5529, %v5581
        %v5630 = vadd.f32 %v5530, %v5582
        %v5631 = vadd.f32 %v5531, %v5583
        %v5632 = vadd.f32 %v5532, %v5584
        %v5633 = vadd.f32 %v5533, %v5585
        %v5634 = vadd.f32 %v5534, %v5586
        %v5635 = vadd.f32 %v5535, %v5587
        %v5636 = vadd.f32 %v5536, %v5588
        %v5637 = vadd.f32 %v5537, %v5589
        %v5638 = vadd.f32 %v5538, %v5590
        %v5639 = vadd.f32 %v5539, %v5591
        %v5640 = vadd.f32 %v5540, %v5592
        %v5641 = vadd.f32 %v5541, %v5593
        %v5642 = vadd.f32 %v5542, %v5594
        %v5643 = vadd.f32 %v5543, %v5595
        %v5644 = vadd.f32 %v5544, %v5596
        %v5645 = vadd.f32 %v5545, %v5597
        %v5646 = vadd.f32 %v5546, %v5598
        %v5647 = vadd.f32 %v5547, %v5599
        %v5648 = vadd.f32 %v5548, %v5600
        %v5649 = vadd.f32 %v5549, %v5601
        %v5650 = vadd.f32 %v5550, %v5602
        %v5651 = vadd.f32 %v5551, %v5603
        %v5652 = vadd.f32 %v5552, %v5604
        %v5653 = vadd.f32 %v5553, %v5605
        %v5654 = vadd.f32 %v5554, %v5606
        %v5655 = vadd.f32 %v5555, %v5607
        %v5656 = vadd.f32 %v5556, %v5608
        %v5657 = vadd.f32 %v5557, %v5609
        %v5658 = vadd.f32 %v5558, %v5610
        %v5659 = vadd.f32 %v5559, %v5611
        %v5660 = vadd.f32 %v5560, %v5612
        %v5661 = vadd.f32 %v5561, %v5613
        %v5662 = vadd.f32 %v5562, %v5614
        %v5663 = vadd.f32 %v5563, %v5615
        %v5664 = vadd.f32 %v5564, %v5616
        %v5665 = vadd.f32 %v5565, %v5617
        %v5666 = vadd.f32 %v5566, %v5618
        %v5667 = vadd.f32 %v5567, %v5619
        %v5668 = vadd.f32 %v5568, %v5620
        %v5669 = vadd.f32 %v5569, %v5621
        %v5670 = vadd.f32 %v5570, %v5622
        %v5671 = vadd.f32 %v5571, %v5623
        %v5672 = vadd.f32 %v5572, %v5624
        %v5673 = vlaneseq
        %v5674 = vshrl.u32 %v5673, 7
        %v5675 = vsub.s32 6, %v5674
        %v5676 = vrot.slane %v558, %v5675
        %v5677 = vmul.f32 %v2102, %v5676
        %v5678 = vmul.f32 %v2103, %v5676
        %v5679 = vmul.f32 %v2105, %v5676
        %v5680 = vmul.f32 %v2106, %v5676
        %v5681 = vmul.f32 %v2108, %v5676
        %v5682 = vmul.f32 %v2109, %v5676
        %v5683 = vmul.f32 %v2111, %v5676
        %v5684 = vmul.f32 %v2112, %v5676
        %v5685 = vmul.f32 %v2114, %v5676
        %v5686 = vmul.f32 %v2115, %v5676
        %v5687 = vmul.f32 %v2117, %v5676
        %v5688 = vmul.f32 %v2118, %v5676
        %v5689 = vmul.f32 %v2120, %v5676
        %v5690 = vmul.f32 %v2121, %v5676
        %v5691 = vmul.f32 %v2123, %v5676
        %v5692 = vmul.f32 %v2124, %v5676
        %v5693 = vmul.f32 %v2126, %v5676
        %v5694 = vmul.f32 %v2127, %v5676
        %v5695 = vmul.f32 %v2129, %v5676
        %v5696 = vmul.f32 %v2130, %v5676
        %v5697 = vmul.f32 %v2132, %v5676
        %v5698 = vmul.f32 %v2133, %v5676
        %v5699 = vmul.f32 %v2135, %v5676
        %v5700 = vmul.f32 %v2136, %v5676
        %v5701 = vmul.f32 %v2138, %v5676
        %v5702 = vmul.f32 %v2139, %v5676
        %v5703 = vmul.f32 %v2141, %v5676
        %v5704 = vmul.f32 %v2142, %v5676
        %v5705 = vmul.f32 %v2144, %v5676
        %v5706 = vmul.f32 %v2145, %v5676
        %v5707 = vmul.f32 %v2147, %v5676
        %v5708 = vmul.f32 %v2148, %v5676
        %v5709 = vmul.f32 %v2150, %v5676
        %v5710 = vmul.f32 %v2151, %v5676
        %v5711 = vmul.f32 %v2153, %v5676
        %v5712 = vmul.f32 %v2154, %v5676
        %v5713 = vmul.f32 %v2156, %v5676
        %v5714 = vmul.f32 %v2157, %v5676
        %v5715 = vmul.f32 %v2159, %v5676
        %v5716 = vmul.f32 %v2160, %v5676
        %v5717 = vmul.f32 %v2162, %v5676
        %v5718 = vmul.f32 %v2163, %v5676
        %v5719 = vmul.f32 %v2165, %v5676
        %v5720 = vmul.f32 %v2166, %v5676
        %v5721 = vmul.f32 %v2168, %v5676
        %v5722 = vmul.f32 %v2169, %v5676
        %v5723 = vmul.f32 %v2171, %v5676
        %v5724 = vmul.f32 %v2172, %v5676
        %v5725 = vadd.f32 %v5625, %v5677
        %v5726 = vadd.f32 %v5626, %v5678
        %v5727 = vadd.f32 %v5627, %v5679
        %v5728 = vadd.f32 %v5628, %v5680
        %v5729 = vadd.f32 %v5629, %v5681
        %v5730 = vadd.f32 %v5630, %v5682
        %v5731 = vadd.f32 %v5631, %v5683
        %v5732 = vadd.f32 %v5632, %v5684
        %v5733 = vadd.f32 %v5633, %v5685
        %v5734 = vadd.f32 %v5634, %v5686
        %v5735 = vadd.f32 %v5635, %v5687
        %v5736 = vadd.f32 %v5636, %v5688
        %v5737 = vadd.f32 %v5637, %v5689
        %v5738 = vadd.f32 %v5638, %v5690
        %v5739 = vadd.f32 %v5639, %v5691
        %v5740 = vadd.f32 %v5640, %v5692
        %v5741 = vadd.f32 %v5641, %v5693
        %v5742 = vadd.f32 %v5642, %v5694
        %v5743 = vadd.f32 %v5643, %v5695
        %v5744 = vadd.f32 %v5644, %v5696
        %v5745 = vadd.f32 %v5645, %v5697
        %v5746 = vadd.f32 %v5646, %v5698
        %v5747 = vadd.f32 %v5647, %v5699
        %v5748 = vadd.f32 %v5648, %v5700
        %v5749 = vadd.f32 %v5649, %v5701
        %v5750 = vadd.f32 %v5650, %v5702
        %v5751 = vadd.f32 %v5651, %v5703
        %v5752 = vadd.f32 %v5652, %v5704
        %v5753 = vadd.f32 %v5653, %v5705
        %v5754 = vadd.f32 %v5654, %v5706
        %v5755 = vadd.f32 %v5655, %v5707
        %v5756 = vadd.f32 %v5656, %v5708
        %v5757 = vadd.f32 %v5657, %v5709
        %v5758 = vadd.f32 %v5658, %v5710
        %v5759 = vadd.f32 %v5659, %v5711
        %v5760 = vadd.f32 %v5660, %v5712
        %v5761 = vadd.f32 %v5661, %v5713
        %v5762 = vadd.f32 %v5662, %v5714
        %v5763 = vadd.f32 %v5663, %v5715
        %v5764 = vadd.f32 %v5664, %v5716
        %v5765 = vadd.f32 %v5665, %v5717
        %v5766 = vadd.f32 %v5666, %v5718
        %v5767 = vadd.f32 %v5667, %v5719
        %v5768 = vadd.f32 %v5668, %v5720
        %v5769 = vadd.f32 %v5669, %v5721
        %v5770 = vadd.f32 %v5670, %v5722
        %v5771 = vadd.f32 %v5671, %v5723
        %v5772 = vadd.f32 %v5672, %v5724
        %vm5821 = vcmask 1043456
        %v5822 = vrot.slane %v5725, 4
        %v5823 = vrot.slane %v5726, 4
        %v5824 = vsel %vm5821, %v5822, %v5823
        %v5825 = vrot.slane %v5727, 4
        %v5826 = vrot.slane %v5728, 4
        %v5827 = vsel %vm5821, %v5825, %v5826
        %v5828 = vrot.slane %v5729, 4
        %v5829 = vrot.slane %v5730, 4
        %v5830 = vsel %vm5821, %v5828, %v5829
        %v5831 = vrot.slane %v5731, 4
        %v5832 = vrot.slane %v5732, 4
        %v5833 = vsel %vm5821, %v5831, %v5832
        %v5834 = vrot.slane %v5733, 4
        %v5835 = vrot.slane %v5734, 4
        %v5836 = vsel %vm5821, %v5834, %v5835
        %v5837 = vrot.slane %v5735, 4
        %v5838 = vrot.slane %v5736, 4
        %v5839 = vsel %vm5821, %v5837, %v5838
        %v5840 = vrot.slane %v5737, 4
        %v5841 = vrot.slane %v5738, 4
        %v5842 = vsel %vm5821, %v5840, %v5841
        %v5843 = vrot.slane %v5739, 4
        %v5844 = vrot.slane %v5740, 4
        %v5845 = vsel %vm5821, %v5843, %v5844
        %v5846 = vrot.slane %v5741, 4
        %v5847 = vrot.slane %v5742, 4
        %v5848 = vsel %vm5821, %v5846, %v5847
        %v5849 = vrot.slane %v5743, 4
        %v5850 = vrot.slane %v5744, 4
        %v5851 = vsel %vm5821, %v5849, %v5850
        %v5852 = vrot.slane %v5745, 4
        %v5853 = vrot.slane %v5746, 4
        %v5854 = vsel %vm5821, %v5852, %v5853
        %v5855 = vrot.slane %v5747, 4
        %v5856 = vrot.slane %v5748, 4
        %v5857 = vsel %vm5821, %v5855, %v5856
        %v5858 = vrot.slane %v5749, 4
        %v5859 = vrot.slane %v5750, 4
        %v5860 = vsel %vm5821, %v5858, %v5859
        %v5861 = vrot.slane %v5751, 4
        %v5862 = vrot.slane %v5752, 4
        %v5863 = vsel %vm5821, %v5861, %v5862
        %v5864 = vrot.slane %v5753, 4
        %v5865 = vrot.slane %v5754, 4
        %v5866 = vsel %vm5821, %v5864, %v5865
        %v5867 = vrot.slane %v5755, 4
        %v5868 = vrot.slane %v5756, 4
        %v5869 = vsel %vm5821, %v5867, %v5868
        %v5870 = vrot.slane %v5757, 4
        %v5871 = vrot.slane %v5758, 4
        %v5872 = vsel %vm5821, %v5870, %v5871
        %v5873 = vrot.slane %v5759, 4
        %v5874 = vrot.slane %v5760, 4
        %v5875 = vsel %vm5821, %v5873, %v5874
        %v5876 = vrot.slane %v5761, 4
        %v5877 = vrot.slane %v5762, 4
        %v5878 = vsel %vm5821, %v5876, %v5877
        %v5879 = vrot.slane %v5763, 4
        %v5880 = vrot.slane %v5764, 4
        %v5881 = vsel %vm5821, %v5879, %v5880
        %v5882 = vrot.slane %v5765, 4
        %v5883 = vrot.slane %v5766, 4
        %v5884 = vsel %vm5821, %v5882, %v5883
        %v5885 = vrot.slane %v5767, 4
        %v5886 = vrot.slane %v5768, 4
        %v5887 = vsel %vm5821, %v5885, %v5886
        %v5888 = vrot.slane %v5769, 4
        %v5889 = vrot.slane %v5770, 4
        %v5890 = vsel %vm5821, %v5888, %v5889
        %v5891 = vrot.slane %v5771, 4
        %v5892 = vrot.slane %v5772, 4
        %v5893 = vsel %vm5821, %v5891, %v5892
        %v5942 = vadd.f32 %v5025, %v5824
        %v5943 = vadd.f32 %v5026, %v5823
        %v5944 = vadd.f32 %v5027, %v5827
        %v5945 = vadd.f32 %v5028, %v5826
        %v5946 = vadd.f32 %v5029, %v5830
        %v5947 = vadd.f32 %v5030, %v5829
        %v5948 = vadd.f32 %v5031, %v5833
        %v5949 = vadd.f32 %v5032, %v5832
        %v5950 = vadd.f32 %v5033, %v5836
        %v5951 = vadd.f32 %v5034, %v5835
        %v5952 = vadd.f32 %v5035, %v5839
        %v5953 = vadd.f32 %v5036, %v5838
        %v5954 = vadd.f32 %v5037, %v5842
        %v5955 = vadd.f32 %v5038, %v5841
        %v5956 = vadd.f32 %v5039, %v5845
        %v5957 = vadd.f32 %v5040, %v5844
        %v5958 = vadd.f32 %v5041, %v5848
        %v5959 = vadd.f32 %v5042, %v5847
        %v5960 = vadd.f32 %v5043, %v5851
        %v5961 = vadd.f32 %v5044, %v5850
        %v5962 = vadd.f32 %v5045, %v5854
        %v5963 = vadd.f32 %v5046, %v5853
        %v5964 = vadd.f32 %v5047, %v5857
        %v5965 = vadd.f32 %v5048, %v5856
        %v5966 = vadd.f32 %v5049, %v5860
        %v5967 = vadd.f32 %v5050, %v5859
        %v5968 = vadd.f32 %v5051, %v5863
        %v5969 = vadd.f32 %v5052, %v5862
        %v5970 = vadd.f32 %v5053, %v5866
        %v5971 = vadd.f32 %v5054, %v5865
        %v5972 = vadd.f32 %v5055, %v5869
        %v5973 = vadd.f32 %v5056, %v5868
        %v5974 = vadd.f32 %v5057, %v5872
        %v5975 = vadd.f32 %v5058, %v5871
        %v5976 = vadd.f32 %v5059, %v5875
        %v5977 = vadd.f32 %v5060, %v5874
        %v5978 = vadd.f32 %v5061, %v5878
        %v5979 = vadd.f32 %v5062, %v5877
        %v5980 = vadd.f32 %v5063, %v5881
        %v5981 = vadd.f32 %v5064, %v5880
        %v5982 = vadd.f32 %v5065, %v5884
        %v5983 = vadd.f32 %v5066, %v5883
        %v5984 = vadd.f32 %v5067, %v5887
        %v5985 = vadd.f32 %v5068, %v5886
        %v5986 = vadd.f32 %v5069, %v5890
        %v5987 = vadd.f32 %v5070, %v5889
        %v5988 = vadd.f32 %v5071, %v5893
        %v5989 = vadd.f32 %v5072, %v5892
        %v5990 = vlaneseq
        %v5991 = vshrl.u32 %v5990, 7
        %v5992 = vsub.s32 5, %v5991
        %v5993 = vrot.slane %v553, %v5992
        %v5994 = vmul.f32 %v632, %v5993
        %v5995 = vmul.f32 %v633, %v5993
        %v5996 = vmul.f32 %v634, %v5993
        %v5997 = vmul.f32 %v635, %v5993
        %v5998 = vmul.f32 %v636, %v5993
        %v5999 = vmul.f32 %v637, %v5993
        %v6000 = vmul.f32 %v638, %v5993
        %v6001 = vmul.f32 %v639, %v5993
        %v6002 = vmul.f32 %v640, %v5993
        %v6003 = vmul.f32 %v641, %v5993
        %v6004 = vmul.f32 %v642, %v5993
        %v6005 = vmul.f32 %v643, %v5993
        %v6006 = vmul.f32 %v644, %v5993
        %v6007 = vmul.f32 %v645, %v5993
        %v6008 = vmul.f32 %v646, %v5993
        %v6009 = vmul.f32 %v647, %v5993
        %v6010 = vmul.f32 %v648, %v5993
        %v6011 = vmul.f32 %v649, %v5993
        %v6012 = vmul.f32 %v650, %v5993
        %v6013 = vmul.f32 %v651, %v5993
        %v6014 = vmul.f32 %v652, %v5993
        %v6015 = vmul.f32 %v653, %v5993
        %v6016 = vmul.f32 %v654, %v5993
        %v6017 = vmul.f32 %v655, %v5993
        %v6018 = vmul.f32 %v656, %v5993
        %v6019 = vmul.f32 %v657, %v5993
        %v6020 = vmul.f32 %v658, %v5993
        %v6021 = vmul.f32 %v659, %v5993
        %v6022 = vmul.f32 %v660, %v5993
        %v6023 = vmul.f32 %v661, %v5993
        %v6024 = vmul.f32 %v662, %v5993
        %v6025 = vmul.f32 %v663, %v5993
        %v6026 = vmul.f32 %v664, %v5993
        %v6027 = vmul.f32 %v665, %v5993
        %v6028 = vmul.f32 %v666, %v5993
        %v6029 = vmul.f32 %v667, %v5993
        %v6030 = vmul.f32 %v668, %v5993
        %v6031 = vmul.f32 %v669, %v5993
        %v6032 = vmul.f32 %v670, %v5993
        %v6033 = vmul.f32 %v671, %v5993
        %v6034 = vmul.f32 %v672, %v5993
        %v6035 = vmul.f32 %v673, %v5993
        %v6036 = vmul.f32 %v674, %v5993
        %v6037 = vmul.f32 %v675, %v5993
        %v6038 = vmul.f32 %v676, %v5993
        %v6039 = vmul.f32 %v677, %v5993
        %v6040 = vmul.f32 %v678, %v5993
        %v6041 = vmul.f32 %v679, %v5993
        %v6042 = vmul.f32 %v680, %v5993
        %v6043 = vmul.f32 %v681, %v5993
        %v6044 = vmul.f32 %v682, %v5993
        %v6045 = vmul.f32 %v683, %v5993
        %v6046 = vmul.f32 %v684, %v5993
        %v6047 = vmul.f32 %v685, %v5993
        %v6048 = vmul.f32 %v686, %v5993
        %v6049 = vmul.f32 %v687, %v5993
        %v6050 = vmul.f32 %v688, %v5993
        %v6051 = vmul.f32 %v689, %v5993
        %v6052 = vmul.f32 %v690, %v5993
        %v6053 = vmul.f32 %v691, %v5993
        %v6054 = vmul.f32 %v692, %v5993
        %v6055 = vmul.f32 %v693, %v5993
        %v6056 = vmul.f32 %v694, %v5993
        %v6057 = vmul.f32 %v695, %v5993
        %v6058 = vmul.f32 %v696, %v5993
        %v6059 = vmul.f32 %v697, %v5993
        %v6060 = vmul.f32 %v698, %v5993
        %v6061 = vmul.f32 %v699, %v5993
        %v6062 = vmul.f32 %v700, %v5993
        %v6063 = vmul.f32 %v701, %v5993
        %v6064 = vmul.f32 %v702, %v5993
        %v6065 = vmul.f32 %v703, %v5993
        %v6066 = vadd.f32 %v5994, 0.0
        %v6067 = vadd.f32 %v5995, 0.0
        %v6068 = vadd.f32 %v5996, 0.0
        %v6069 = vadd.f32 %v5997, 0.0
        %v6070 = vadd.f32 %v5998, 0.0
        %v6071 = vadd.f32 %v5999, 0.0
        %v6072 = vadd.f32 %v6000, 0.0
        %v6073 = vadd.f32 %v6001, 0.0
        %v6074 = vadd.f32 %v6002, 0.0
        %v6075 = vadd.f32 %v6003, 0.0
        %v6076 = vadd.f32 %v6004, 0.0
        %v6077 = vadd.f32 %v6005, 0.0
        %v6078 = vadd.f32 %v6006, 0.0
        %v6079 = vadd.f32 %v6007, 0.0
        %v6080 = vadd.f32 %v6008, 0.0
        %v6081 = vadd.f32 %v6009, 0.0
        %v6082 = vadd.f32 %v6010, 0.0
        %v6083 = vadd.f32 %v6011, 0.0
        %v6084 = vadd.f32 %v6012, 0.0
        %v6085 = vadd.f32 %v6013, 0.0
        %v6086 = vadd.f32 %v6014, 0.0
        %v6087 = vadd.f32 %v6015, 0.0
        %v6088 = vadd.f32 %v6016, 0.0
        %v6089 = vadd.f32 %v6017, 0.0
        %v6090 = vadd.f32 %v6018, 0.0
        %v6091 = vadd.f32 %v6019, 0.0
        %v6092 = vadd.f32 %v6020, 0.0
        %v6093 = vadd.f32 %v6021, 0.0
        %v6094 = vadd.f32 %v6022, 0.0
        %v6095 = vadd.f32 %v6023, 0.0
        %v6096 = vadd.f32 %v6024, 0.0
        %v6097 = vadd.f32 %v6025, 0.0
        %v6098 = vadd.f32 %v6026, 0.0
        %v6099 = vadd.f32 %v6027, 0.0
        %v6100 = vadd.f32 %v6028, 0.0
        %v6101 = vadd.f32 %v6029, 0.0
        %v6102 = vadd.f32 %v6030, 0.0
        %v6103 = vadd.f32 %v6031, 0.0
        %v6104 = vadd.f32 %v6032, 0.0
        %v6105 = vadd.f32 %v6033, 0.0
        %v6106 = vadd.f32 %v6034, 0.0
        %v6107 = vadd.f32 %v6035, 0.0
        %v6108 = vadd.f32 %v6036, 0.0
        %v6109 = vadd.f32 %v6037, 0.0
        %v6110 = vadd.f32 %v6038, 0.0
        %v6111 = vadd.f32 %v6039, 0.0
        %v6112 = vadd.f32 %v6040, 0.0
        %v6113 = vadd.f32 %v6041, 0.0
        %v6114 = vadd.f32 %v6042, 0.0
        %v6115 = vadd.f32 %v6043, 0.0
        %v6116 = vadd.f32 %v6044, 0.0
        %v6117 = vadd.f32 %v6045, 0.0
        %v6118 = vadd.f32 %v6046, 0.0
        %v6119 = vadd.f32 %v6047, 0.0
        %v6120 = vadd.f32 %v6048, 0.0
        %v6121 = vadd.f32 %v6049, 0.0
        %v6122 = vadd.f32 %v6050, 0.0
        %v6123 = vadd.f32 %v6051, 0.0
        %v6124 = vadd.f32 %v6052, 0.0
        %v6125 = vadd.f32 %v6053, 0.0
        %v6126 = vadd.f32 %v6054, 0.0
        %v6127 = vadd.f32 %v6055, 0.0
        %v6128 = vadd.f32 %v6056, 0.0
        %v6129 = vadd.f32 %v6057, 0.0
        %v6130 = vadd.f32 %v6058, 0.0
        %v6131 = vadd.f32 %v6059, 0.0
        %v6132 = vadd.f32 %v6060, 0.0
        %v6133 = vadd.f32 %v6061, 0.0
        %v6134 = vadd.f32 %v6062, 0.0
        %v6135 = vadd.f32 %v6063, 0.0
        %v6136 = vadd.f32 %v6064, 0.0
        %v6137 = vadd.f32 %v6065, 0.0
        %v6138 = vlaneseq
        %v6139 = vshrl.u32 %v6138, 7
        %v6140 = vsub.s32 4, %v6139
        %v6141 = vrot.slane %v554, %v6140
        %v6142 = vmul.f32 %v877, %v6141
        %v6143 = vmul.f32 %v878, %v6141
        %v6144 = vmul.f32 %v879, %v6141
        %v6145 = vmul.f32 %v880, %v6141
        %v6146 = vmul.f32 %v881, %v6141
        %v6147 = vmul.f32 %v882, %v6141
        %v6148 = vmul.f32 %v883, %v6141
        %v6149 = vmul.f32 %v884, %v6141
        %v6150 = vmul.f32 %v885, %v6141
        %v6151 = vmul.f32 %v886, %v6141
        %v6152 = vmul.f32 %v887, %v6141
        %v6153 = vmul.f32 %v888, %v6141
        %v6154 = vmul.f32 %v889, %v6141
        %v6155 = vmul.f32 %v890, %v6141
        %v6156 = vmul.f32 %v891, %v6141
        %v6157 = vmul.f32 %v892, %v6141
        %v6158 = vmul.f32 %v893, %v6141
        %v6159 = vmul.f32 %v894, %v6141
        %v6160 = vmul.f32 %v895, %v6141
        %v6161 = vmul.f32 %v896, %v6141
        %v6162 = vmul.f32 %v897, %v6141
        %v6163 = vmul.f32 %v898, %v6141
        %v6164 = vmul.f32 %v899, %v6141
        %v6165 = vmul.f32 %v900, %v6141
        %v6166 = vmul.f32 %v901, %v6141
        %v6167 = vmul.f32 %v902, %v6141
        %v6168 = vmul.f32 %v903, %v6141
        %v6169 = vmul.f32 %v904, %v6141
        %v6170 = vmul.f32 %v905, %v6141
        %v6171 = vmul.f32 %v906, %v6141
        %v6172 = vmul.f32 %v907, %v6141
        %v6173 = vmul.f32 %v908, %v6141
        %v6174 = vmul.f32 %v909, %v6141
        %v6175 = vmul.f32 %v910, %v6141
        %v6176 = vmul.f32 %v911, %v6141
        %v6177 = vmul.f32 %v912, %v6141
        %v6178 = vmul.f32 %v913, %v6141
        %v6179 = vmul.f32 %v914, %v6141
        %v6180 = vmul.f32 %v915, %v6141
        %v6181 = vmul.f32 %v916, %v6141
        %v6182 = vmul.f32 %v917, %v6141
        %v6183 = vmul.f32 %v918, %v6141
        %v6184 = vmul.f32 %v919, %v6141
        %v6185 = vmul.f32 %v920, %v6141
        %v6186 = vmul.f32 %v921, %v6141
        %v6187 = vmul.f32 %v922, %v6141
        %v6188 = vmul.f32 %v923, %v6141
        %v6189 = vmul.f32 %v924, %v6141
        %v6190 = vmul.f32 %v925, %v6141
        %v6191 = vmul.f32 %v926, %v6141
        %v6192 = vmul.f32 %v927, %v6141
        %v6193 = vmul.f32 %v928, %v6141
        %v6194 = vmul.f32 %v929, %v6141
        %v6195 = vmul.f32 %v930, %v6141
        %v6196 = vmul.f32 %v931, %v6141
        %v6197 = vmul.f32 %v932, %v6141
        %v6198 = vmul.f32 %v933, %v6141
        %v6199 = vmul.f32 %v934, %v6141
        %v6200 = vmul.f32 %v935, %v6141
        %v6201 = vmul.f32 %v936, %v6141
        %v6202 = vmul.f32 %v937, %v6141
        %v6203 = vmul.f32 %v938, %v6141
        %v6204 = vmul.f32 %v939, %v6141
        %v6205 = vmul.f32 %v940, %v6141
        %v6206 = vmul.f32 %v941, %v6141
        %v6207 = vmul.f32 %v942, %v6141
        %v6208 = vmul.f32 %v943, %v6141
        %v6209 = vmul.f32 %v944, %v6141
        %v6210 = vmul.f32 %v945, %v6141
        %v6211 = vmul.f32 %v946, %v6141
        %v6212 = vmul.f32 %v947, %v6141
        %v6213 = vmul.f32 %v948, %v6141
        %v6214 = vadd.f32 %v6066, %v6142
        %v6215 = vadd.f32 %v6067, %v6143
        %v6216 = vadd.f32 %v6068, %v6144
        %v6217 = vadd.f32 %v6069, %v6145
        %v6218 = vadd.f32 %v6070, %v6146
        %v6219 = vadd.f32 %v6071, %v6147
        %v6220 = vadd.f32 %v6072, %v6148
        %v6221 = vadd.f32 %v6073, %v6149
        %v6222 = vadd.f32 %v6074, %v6150
        %v6223 = vadd.f32 %v6075, %v6151
        %v6224 = vadd.f32 %v6076, %v6152
        %v6225 = vadd.f32 %v6077, %v6153
        %v6226 = vadd.f32 %v6078, %v6154
        %v6227 = vadd.f32 %v6079, %v6155
        %v6228 = vadd.f32 %v6080, %v6156
        %v6229 = vadd.f32 %v6081, %v6157
        %v6230 = vadd.f32 %v6082, %v6158
        %v6231 = vadd.f32 %v6083, %v6159
        %v6232 = vadd.f32 %v6084, %v6160
        %v6233 = vadd.f32 %v6085, %v6161
        %v6234 = vadd.f32 %v6086, %v6162
        %v6235 = vadd.f32 %v6087, %v6163
        %v6236 = vadd.f32 %v6088, %v6164
        %v6237 = vadd.f32 %v6089, %v6165
        %v6238 = vadd.f32 %v6090, %v6166
        %v6239 = vadd.f32 %v6091, %v6167
        %v6240 = vadd.f32 %v6092, %v6168
        %v6241 = vadd.f32 %v6093, %v6169
        %v6242 = vadd.f32 %v6094, %v6170
        %v6243 = vadd.f32 %v6095, %v6171
        %v6244 = vadd.f32 %v6096, %v6172
        %v6245 = vadd.f32 %v6097, %v6173
        %v6246 = vadd.f32 %v6098, %v6174
        %v6247 = vadd.f32 %v6099, %v6175
        %v6248 = vadd.f32 %v6100, %v6176
        %v6249 = vadd.f32 %v6101, %v6177
        %v6250 = vadd.f32 %v6102, %v6178
        %v6251 = vadd.f32 %v6103, %v6179
        %v6252 = vadd.f32 %v6104, %v6180
        %v6253 = vadd.f32 %v6105, %v6181
        %v6254 = vadd.f32 %v6106, %v6182
        %v6255 = vadd.f32 %v6107, %v6183
        %v6256 = vadd.f32 %v6108, %v6184
        %v6257 = vadd.f32 %v6109, %v6185
        %v6258 = vadd.f32 %v6110, %v6186
        %v6259 = vadd.f32 %v6111, %v6187
        %v6260 = vadd.f32 %v6112, %v6188
        %v6261 = vadd.f32 %v6113, %v6189
        %v6262 = vadd.f32 %v6114, %v6190
        %v6263 = vadd.f32 %v6115, %v6191
        %v6264 = vadd.f32 %v6116, %v6192
        %v6265 = vadd.f32 %v6117, %v6193
        %v6266 = vadd.f32 %v6118, %v6194
        %v6267 = vadd.f32 %v6119, %v6195
        %v6268 = vadd.f32 %v6120, %v6196
        %v6269 = vadd.f32 %v6121, %v6197
        %v6270 = vadd.f32 %v6122, %v6198
        %v6271 = vadd.f32 %v6123, %v6199
        %v6272 = vadd.f32 %v6124, %v6200
        %v6273 = vadd.f32 %v6125, %v6201
        %v6274 = vadd.f32 %v6126, %v6202
        %v6275 = vadd.f32 %v6127, %v6203
        %v6276 = vadd.f32 %v6128, %v6204
        %v6277 = vadd.f32 %v6129, %v6205
        %v6278 = vadd.f32 %v6130, %v6206
        %v6279 = vadd.f32 %v6131, %v6207
        %v6280 = vadd.f32 %v6132, %v6208
        %v6281 = vadd.f32 %v6133, %v6209
        %v6282 = vadd.f32 %v6134, %v6210
        %v6283 = vadd.f32 %v6135, %v6211
        %v6284 = vadd.f32 %v6136, %v6212
        %v6285 = vadd.f32 %v6137, %v6213
        %v6286 = vlaneseq
        %v6287 = vshrl.u32 %v6286, 7
        %v6288 = vsub.s32 3, %v6287
        %v6289 = vrot.slane %v555, %v6288
        %v6290 = vmul.f32 %v1122, %v6289
        %v6291 = vmul.f32 %v1123, %v6289
        %v6292 = vmul.f32 %v1124, %v6289
        %v6293 = vmul.f32 %v1125, %v6289
        %v6294 = vmul.f32 %v1126, %v6289
        %v6295 = vmul.f32 %v1127, %v6289
        %v6296 = vmul.f32 %v1128, %v6289
        %v6297 = vmul.f32 %v1129, %v6289
        %v6298 = vmul.f32 %v1130, %v6289
        %v6299 = vmul.f32 %v1131, %v6289
        %v6300 = vmul.f32 %v1132, %v6289
        %v6301 = vmul.f32 %v1133, %v6289
        %v6302 = vmul.f32 %v1134, %v6289
        %v6303 = vmul.f32 %v1135, %v6289
        %v6304 = vmul.f32 %v1136, %v6289
        %v6305 = vmul.f32 %v1137, %v6289
        %v6306 = vmul.f32 %v1138, %v6289
        %v6307 = vmul.f32 %v1139, %v6289
        %v6308 = vmul.f32 %v1140, %v6289
        %v6309 = vmul.f32 %v1141, %v6289
        %v6310 = vmul.f32 %v1142, %v6289
        %v6311 = vmul.f32 %v1143, %v6289
        %v6312 = vmul.f32 %v1144, %v6289
        %v6313 = vmul.f32 %v1145, %v6289
        %v6314 = vmul.f32 %v1146, %v6289
        %v6315 = vmul.f32 %v1147, %v6289
        %v6316 = vmul.f32 %v1148, %v6289
        %v6317 = vmul.f32 %v1149, %v6289
        %v6318 = vmul.f32 %v1150, %v6289
        %v6319 = vmul.f32 %v1151, %v6289
        %v6320 = vmul.f32 %v1152, %v6289
        %v6321 = vmul.f32 %v1153, %v6289
        %v6322 = vmul.f32 %v1154, %v6289
        %v6323 = vmul.f32 %v1155, %v6289
        %v6324 = vmul.f32 %v1156, %v6289
        %v6325 = vmul.f32 %v1157, %v6289
        %v6326 = vmul.f32 %v1158, %v6289
        %v6327 = vmul.f32 %v1159, %v6289
        %v6328 = vmul.f32 %v1160, %v6289
        %v6329 = vmul.f32 %v1161, %v6289
        %v6330 = vmul.f32 %v1162, %v6289
        %v6331 = vmul.f32 %v1163, %v6289
        %v6332 = vmul.f32 %v1164, %v6289
        %v6333 = vmul.f32 %v1165, %v6289
        %v6334 = vmul.f32 %v1166, %v6289
        %v6335 = vmul.f32 %v1167, %v6289
        %v6336 = vmul.f32 %v1168, %v6289
        %v6337 = vmul.f32 %v1169, %v6289
        %v6338 = vmul.f32 %v1170, %v6289
        %v6339 = vmul.f32 %v1171, %v6289
        %v6340 = vmul.f32 %v1172, %v6289
        %v6341 = vmul.f32 %v1173, %v6289
        %v6342 = vmul.f32 %v1174, %v6289
        %v6343 = vmul.f32 %v1175, %v6289
        %v6344 = vmul.f32 %v1176, %v6289
        %v6345 = vmul.f32 %v1177, %v6289
        %v6346 = vmul.f32 %v1178, %v6289
        %v6347 = vmul.f32 %v1179, %v6289
        %v6348 = vmul.f32 %v1180, %v6289
        %v6349 = vmul.f32 %v1181, %v6289
        %v6350 = vmul.f32 %v1182, %v6289
        %v6351 = vmul.f32 %v1183, %v6289
        %v6352 = vmul.f32 %v1184, %v6289
        %v6353 = vmul.f32 %v1185, %v6289
        %v6354 = vmul.f32 %v1186, %v6289
        %v6355 = vmul.f32 %v1187, %v6289
        %v6356 = vmul.f32 %v1188, %v6289
        %v6357 = vmul.f32 %v1189, %v6289
        %v6358 = vmul.f32 %v1190, %v6289
        %v6359 = vmul.f32 %v1191, %v6289
        %v6360 = vmul.f32 %v1192, %v6289
        %v6361 = vmul.f32 %v1193, %v6289
        %v6362 = vadd.f32 %v6214, %v6290
        %v6363 = vadd.f32 %v6215, %v6291
        %v6364 = vadd.f32 %v6216, %v6292
        %v6365 = vadd.f32 %v6217, %v6293
        %v6366 = vadd.f32 %v6218, %v6294
        %v6367 = vadd.f32 %v6219, %v6295
        %v6368 = vadd.f32 %v6220, %v6296
        %v6369 = vadd.f32 %v6221, %v6297
        %v6370 = vadd.f32 %v6222, %v6298
        %v6371 = vadd.f32 %v6223, %v6299
        %v6372 = vadd.f32 %v6224, %v6300
        %v6373 = vadd.f32 %v6225, %v6301
        %v6374 = vadd.f32 %v6226, %v6302
        %v6375 = vadd.f32 %v6227, %v6303
        %v6376 = vadd.f32 %v6228, %v6304
        %v6377 = vadd.f32 %v6229, %v6305
        %v6378 = vadd.f32 %v6230, %v6306
        %v6379 = vadd.f32 %v6231, %v6307
        %v6380 = vadd.f32 %v6232, %v6308
        %v6381 = vadd.f32 %v6233, %v6309
        %v6382 = vadd.f32 %v6234, %v6310
        %v6383 = vadd.f32 %v6235, %v6311
        %v6384 = vadd.f32 %v6236, %v6312
        %v6385 = vadd.f32 %v6237, %v6313
        %v6386 = vadd.f32 %v6238, %v6314
        %v6387 = vadd.f32 %v6239, %v6315
        %v6388 = vadd.f32 %v6240, %v6316
        %v6389 = vadd.f32 %v6241, %v6317
        %v6390 = vadd.f32 %v6242, %v6318
        %v6391 = vadd.f32 %v6243, %v6319
        %v6392 = vadd.f32 %v6244, %v6320
        %v6393 = vadd.f32 %v6245, %v6321
        %v6394 = vadd.f32 %v6246, %v6322
        %v6395 = vadd.f32 %v6247, %v6323
        %v6396 = vadd.f32 %v6248, %v6324
        %v6397 = vadd.f32 %v6249, %v6325
        %v6398 = vadd.f32 %v6250, %v6326
        %v6399 = vadd.f32 %v6251, %v6327
        %v6400 = vadd.f32 %v6252, %v6328
        %v6401 = vadd.f32 %v6253, %v6329
        %v6402 = vadd.f32 %v6254, %v6330
        %v6403 = vadd.f32 %v6255, %v6331
        %v6404 = vadd.f32 %v6256, %v6332
        %v6405 = vadd.f32 %v6257, %v6333
        %v6406 = vadd.f32 %v6258, %v6334
        %v6407 = vadd.f32 %v6259, %v6335
        %v6408 = vadd.f32 %v6260, %v6336
        %v6409 = vadd.f32 %v6261, %v6337
        %v6410 = vadd.f32 %v6262, %v6338
        %v6411 = vadd.f32 %v6263, %v6339
        %v6412 = vadd.f32 %v6264, %v6340
        %v6413 = vadd.f32 %v6265, %v6341
        %v6414 = vadd.f32 %v6266, %v6342
        %v6415 = vadd.f32 %v6267, %v6343
        %v6416 = vadd.f32 %v6268, %v6344
        %v6417 = vadd.f32 %v6269, %v6345
        %v6418 = vadd.f32 %v6270, %v6346
        %v6419 = vadd.f32 %v6271, %v6347
        %v6420 = vadd.f32 %v6272, %v6348
        %v6421 = vadd.f32 %v6273, %v6349
        %v6422 = vadd.f32 %v6274, %v6350
        %v6423 = vadd.f32 %v6275, %v6351
        %v6424 = vadd.f32 %v6276, %v6352
        %v6425 = vadd.f32 %v6277, %v6353
        %v6426 = vadd.f32 %v6278, %v6354
        %v6427 = vadd.f32 %v6279, %v6355
        %v6428 = vadd.f32 %v6280, %v6356
        %v6429 = vadd.f32 %v6281, %v6357
        %v6430 = vadd.f32 %v6282, %v6358
        %v6431 = vadd.f32 %v6283, %v6359
        %v6432 = vadd.f32 %v6284, %v6360
        %v6433 = vadd.f32 %v6285, %v6361
        %v6434 = vlaneseq
        %v6435 = vshrl.u32 %v6434, 7
        %v6436 = vsub.s32 2, %v6435
        %v6437 = vrot.slane %v556, %v6436
        %v6438 = vmul.f32 %v1367, %v6437
        %v6439 = vmul.f32 %v1368, %v6437
        %v6440 = vmul.f32 %v1369, %v6437
        %v6441 = vmul.f32 %v1370, %v6437
        %v6442 = vmul.f32 %v1371, %v6437
        %v6443 = vmul.f32 %v1372, %v6437
        %v6444 = vmul.f32 %v1373, %v6437
        %v6445 = vmul.f32 %v1374, %v6437
        %v6446 = vmul.f32 %v1375, %v6437
        %v6447 = vmul.f32 %v1376, %v6437
        %v6448 = vmul.f32 %v1377, %v6437
        %v6449 = vmul.f32 %v1378, %v6437
        %v6450 = vmul.f32 %v1379, %v6437
        %v6451 = vmul.f32 %v1380, %v6437
        %v6452 = vmul.f32 %v1381, %v6437
        %v6453 = vmul.f32 %v1382, %v6437
        %v6454 = vmul.f32 %v1383, %v6437
        %v6455 = vmul.f32 %v1384, %v6437
        %v6456 = vmul.f32 %v1385, %v6437
        %v6457 = vmul.f32 %v1386, %v6437
        %v6458 = vmul.f32 %v1387, %v6437
        %v6459 = vmul.f32 %v1388, %v6437
        %v6460 = vmul.f32 %v1389, %v6437
        %v6461 = vmul.f32 %v1390, %v6437
        %v6462 = vmul.f32 %v1391, %v6437
        %v6463 = vmul.f32 %v1392, %v6437
        %v6464 = vmul.f32 %v1393, %v6437
        %v6465 = vmul.f32 %v1394, %v6437
        %v6466 = vmul.f32 %v1395, %v6437
        %v6467 = vmul.f32 %v1396, %v6437
        %v6468 = vmul.f32 %v1397, %v6437
        %v6469 = vmul.f32 %v1398, %v6437
        %v6470 = vmul.f32 %v1399, %v6437
        %v6471 = vmul.f32 %v1400, %v6437
        %v6472 = vmul.f32 %v1401, %v6437
        %v6473 = vmul.f32 %v1402, %v6437
        %v6474 = vmul.f32 %v1403, %v6437
        %v6475 = vmul.f32 %v1404, %v6437
        %v6476 = vmul.f32 %v1405, %v6437
        %v6477 = vmul.f32 %v1406, %v6437
        %v6478 = vmul.f32 %v1407, %v6437
        %v6479 = vmul.f32 %v1408, %v6437
        %v6480 = vmul.f32 %v1409, %v6437
        %v6481 = vmul.f32 %v1410, %v6437
        %v6482 = vmul.f32 %v1411, %v6437
        %v6483 = vmul.f32 %v1412, %v6437
        %v6484 = vmul.f32 %v1413, %v6437
        %v6485 = vmul.f32 %v1414, %v6437
        %v6486 = vmul.f32 %v1415, %v6437
        %v6487 = vmul.f32 %v1416, %v6437
        %v6488 = vmul.f32 %v1417, %v6437
        %v6489 = vmul.f32 %v1418, %v6437
        %v6490 = vmul.f32 %v1419, %v6437
        %v6491 = vmul.f32 %v1420, %v6437
        %v6492 = vmul.f32 %v1421, %v6437
        %v6493 = vmul.f32 %v1422, %v6437
        %v6494 = vmul.f32 %v1423, %v6437
        %v6495 = vmul.f32 %v1424, %v6437
        %v6496 = vmul.f32 %v1425, %v6437
        %v6497 = vmul.f32 %v1426, %v6437
        %v6498 = vmul.f32 %v1427, %v6437
        %v6499 = vmul.f32 %v1428, %v6437
        %v6500 = vmul.f32 %v1429, %v6437
        %v6501 = vmul.f32 %v1430, %v6437
        %v6502 = vmul.f32 %v1431, %v6437
        %v6503 = vmul.f32 %v1432, %v6437
        %v6504 = vmul.f32 %v1433, %v6437
        %v6505 = vmul.f32 %v1434, %v6437
        %v6506 = vmul.f32 %v1435, %v6437
        %v6507 = vmul.f32 %v1436, %v6437
        %v6508 = vmul.f32 %v1437, %v6437
        %v6509 = vmul.f32 %v1438, %v6437
        %v6510 = vadd.f32 %v6362, %v6438
        %v6511 = vadd.f32 %v6363, %v6439
        %v6512 = vadd.f32 %v6364, %v6440
        %v6513 = vadd.f32 %v6365, %v6441
        %v6514 = vadd.f32 %v6366, %v6442
        %v6515 = vadd.f32 %v6367, %v6443
        %v6516 = vadd.f32 %v6368, %v6444
        %v6517 = vadd.f32 %v6369, %v6445
        %v6518 = vadd.f32 %v6370, %v6446
        %v6519 = vadd.f32 %v6371, %v6447
        %v6520 = vadd.f32 %v6372, %v6448
        %v6521 = vadd.f32 %v6373, %v6449
        %v6522 = vadd.f32 %v6374, %v6450
        %v6523 = vadd.f32 %v6375, %v6451
        %v6524 = vadd.f32 %v6376, %v6452
        %v6525 = vadd.f32 %v6377, %v6453
        %v6526 = vadd.f32 %v6378, %v6454
        %v6527 = vadd.f32 %v6379, %v6455
        %v6528 = vadd.f32 %v6380, %v6456
        %v6529 = vadd.f32 %v6381, %v6457
        %v6530 = vadd.f32 %v6382, %v6458
        %v6531 = vadd.f32 %v6383, %v6459
        %v6532 = vadd.f32 %v6384, %v6460
        %v6533 = vadd.f32 %v6385, %v6461
        %v6534 = vadd.f32 %v6386, %v6462
        %v6535 = vadd.f32 %v6387, %v6463
        %v6536 = vadd.f32 %v6388, %v6464
        %v6537 = vadd.f32 %v6389, %v6465
        %v6538 = vadd.f32 %v6390, %v6466
        %v6539 = vadd.f32 %v6391, %v6467
        %v6540 = vadd.f32 %v6392, %v6468
        %v6541 = vadd.f32 %v6393, %v6469
        %v6542 = vadd.f32 %v6394, %v6470
        %v6543 = vadd.f32 %v6395, %v6471
        %v6544 = vadd.f32 %v6396, %v6472
        %v6545 = vadd.f32 %v6397, %v6473
        %v6546 = vadd.f32 %v6398, %v6474
        %v6547 = vadd.f32 %v6399, %v6475
        %v6548 = vadd.f32 %v6400, %v6476
        %v6549 = vadd.f32 %v6401, %v6477
        %v6550 = vadd.f32 %v6402, %v6478
        %v6551 = vadd.f32 %v6403, %v6479
        %v6552 = vadd.f32 %v6404, %v6480
        %v6553 = vadd.f32 %v6405, %v6481
        %v6554 = vadd.f32 %v6406, %v6482
        %v6555 = vadd.f32 %v6407, %v6483
        %v6556 = vadd.f32 %v6408, %v6484
        %v6557 = vadd.f32 %v6409, %v6485
        %v6558 = vadd.f32 %v6410, %v6486
        %v6559 = vadd.f32 %v6411, %v6487
        %v6560 = vadd.f32 %v6412, %v6488
        %v6561 = vadd.f32 %v6413, %v6489
        %v6562 = vadd.f32 %v6414, %v6490
        %v6563 = vadd.f32 %v6415, %v6491
        %v6564 = vadd.f32 %v6416, %v6492
        %v6565 = vadd.f32 %v6417, %v6493
        %v6566 = vadd.f32 %v6418, %v6494
        %v6567 = vadd.f32 %v6419, %v6495
        %v6568 = vadd.f32 %v6420, %v6496
        %v6569 = vadd.f32 %v6421, %v6497
        %v6570 = vadd.f32 %v6422, %v6498
        %v6571 = vadd.f32 %v6423, %v6499
        %v6572 = vadd.f32 %v6424, %v6500
        %v6573 = vadd.f32 %v6425, %v6501
        %v6574 = vadd.f32 %v6426, %v6502
        %v6575 = vadd.f32 %v6427, %v6503
        %v6576 = vadd.f32 %v6428, %v6504
        %v6577 = vadd.f32 %v6429, %v6505
        %v6578 = vadd.f32 %v6430, %v6506
        %v6579 = vadd.f32 %v6431, %v6507
        %v6580 = vadd.f32 %v6432, %v6508
        %v6581 = vadd.f32 %v6433, %v6509
        %v6582 = vlaneseq
        %v6583 = vshrl.u32 %v6582, 7
        %v6584 = vsub.s32 1, %v6583
        %v6585 = vrot.slane %v557, %v6584
        %v6586 = vmul.f32 %v1612, %v6585
        %v6587 = vmul.f32 %v1613, %v6585
        %v6588 = vmul.f32 %v1614, %v6585
        %v6589 = vmul.f32 %v1615, %v6585
        %v6590 = vmul.f32 %v1616, %v6585
        %v6591 = vmul.f32 %v1617, %v6585
        %v6592 = vmul.f32 %v1618, %v6585
        %v6593 = vmul.f32 %v1619, %v6585
        %v6594 = vmul.f32 %v1620, %v6585
        %v6595 = vmul.f32 %v1621, %v6585
        %v6596 = vmul.f32 %v1622, %v6585
        %v6597 = vmul.f32 %v1623, %v6585
        %v6598 = vmul.f32 %v1624, %v6585
        %v6599 = vmul.f32 %v1625, %v6585
        %v6600 = vmul.f32 %v1626, %v6585
        %v6601 = vmul.f32 %v1627, %v6585
        %v6602 = vmul.f32 %v1628, %v6585
        %v6603 = vmul.f32 %v1629, %v6585
        %v6604 = vmul.f32 %v1630, %v6585
        %v6605 = vmul.f32 %v1631, %v6585
        %v6606 = vmul.f32 %v1632, %v6585
        %v6607 = vmul.f32 %v1633, %v6585
        %v6608 = vmul.f32 %v1634, %v6585
        %v6609 = vmul.f32 %v1635, %v6585
        %v6610 = vmul.f32 %v1636, %v6585
        %v6611 = vmul.f32 %v1637, %v6585
        %v6612 = vmul.f32 %v1638, %v6585
        %v6613 = vmul.f32 %v1639, %v6585
        %v6614 = vmul.f32 %v1640, %v6585
        %v6615 = vmul.f32 %v1641, %v6585
        %v6616 = vmul.f32 %v1642, %v6585
        %v6617 = vmul.f32 %v1643, %v6585
        %v6618 = vmul.f32 %v1644, %v6585
        %v6619 = vmul.f32 %v1645, %v6585
        %v6620 = vmul.f32 %v1646, %v6585
        %v6621 = vmul.f32 %v1647, %v6585
        %v6622 = vmul.f32 %v1648, %v6585
        %v6623 = vmul.f32 %v1649, %v6585
        %v6624 = vmul.f32 %v1650, %v6585
        %v6625 = vmul.f32 %v1651, %v6585
        %v6626 = vmul.f32 %v1652, %v6585
        %v6627 = vmul.f32 %v1653, %v6585
        %v6628 = vmul.f32 %v1654, %v6585
        %v6629 = vmul.f32 %v1655, %v6585
        %v6630 = vmul.f32 %v1656, %v6585
        %v6631 = vmul.f32 %v1657, %v6585
        %v6632 = vmul.f32 %v1658, %v6585
        %v6633 = vmul.f32 %v1659, %v6585
        %v6634 = vmul.f32 %v1660, %v6585
        %v6635 = vmul.f32 %v1661, %v6585
        %v6636 = vmul.f32 %v1662, %v6585
        %v6637 = vmul.f32 %v1663, %v6585
        %v6638 = vmul.f32 %v1664, %v6585
        %v6639 = vmul.f32 %v1665, %v6585
        %v6640 = vmul.f32 %v1666, %v6585
        %v6641 = vmul.f32 %v1667, %v6585
        %v6642 = vmul.f32 %v1668, %v6585
        %v6643 = vmul.f32 %v1669, %v6585
        %v6644 = vmul.f32 %v1670, %v6585
        %v6645 = vmul.f32 %v1671, %v6585
        %v6646 = vmul.f32 %v1672, %v6585
        %v6647 = vmul.f32 %v1673, %v6585
        %v6648 = vmul.f32 %v1674, %v6585
        %v6649 = vmul.f32 %v1675, %v6585
        %v6650 = vmul.f32 %v1676, %v6585
        %v6651 = vmul.f32 %v1677, %v6585
        %v6652 = vmul.f32 %v1678, %v6585
        %v6653 = vmul.f32 %v1679, %v6585
        %v6654 = vmul.f32 %v1680, %v6585
        %v6655 = vmul.f32 %v1681, %v6585
        %v6656 = vmul.f32 %v1682, %v6585
        %v6657 = vmul.f32 %v1683, %v6585
        %v6658 = vadd.f32 %v6510, %v6586
        %v6659 = vadd.f32 %v6511, %v6587
        %v6660 = vadd.f32 %v6512, %v6588
        %v6661 = vadd.f32 %v6513, %v6589
        %v6662 = vadd.f32 %v6514, %v6590
        %v6663 = vadd.f32 %v6515, %v6591
        %v6664 = vadd.f32 %v6516, %v6592
        %v6665 = vadd.f32 %v6517, %v6593
        %v6666 = vadd.f32 %v6518, %v6594
        %v6667 = vadd.f32 %v6519, %v6595
        %v6668 = vadd.f32 %v6520, %v6596
        %v6669 = vadd.f32 %v6521, %v6597
        %v6670 = vadd.f32 %v6522, %v6598
        %v6671 = vadd.f32 %v6523, %v6599
        %v6672 = vadd.f32 %v6524, %v6600
        %v6673 = vadd.f32 %v6525, %v6601
        %v6674 = vadd.f32 %v6526, %v6602
        %v6675 = vadd.f32 %v6527, %v6603
        %v6676 = vadd.f32 %v6528, %v6604
        %v6677 = vadd.f32 %v6529, %v6605
        %v6678 = vadd.f32 %v6530, %v6606
        %v6679 = vadd.f32 %v6531, %v6607
        %v6680 = vadd.f32 %v6532, %v6608
        %v6681 = vadd.f32 %v6533, %v6609
        %v6682 = vadd.f32 %v6534, %v6610
        %v6683 = vadd.f32 %v6535, %v6611
        %v6684 = vadd.f32 %v6536, %v6612
        %v6685 = vadd.f32 %v6537, %v6613
        %v6686 = vadd.f32 %v6538, %v6614
        %v6687 = vadd.f32 %v6539, %v6615
        %v6688 = vadd.f32 %v6540, %v6616
        %v6689 = vadd.f32 %v6541, %v6617
        %v6690 = vadd.f32 %v6542, %v6618
        %v6691 = vadd.f32 %v6543, %v6619
        %v6692 = vadd.f32 %v6544, %v6620
        %v6693 = vadd.f32 %v6545, %v6621
        %v6694 = vadd.f32 %v6546, %v6622
        %v6695 = vadd.f32 %v6547, %v6623
        %v6696 = vadd.f32 %v6548, %v6624
        %v6697 = vadd.f32 %v6549, %v6625
        %v6698 = vadd.f32 %v6550, %v6626
        %v6699 = vadd.f32 %v6551, %v6627
        %v6700 = vadd.f32 %v6552, %v6628
        %v6701 = vadd.f32 %v6553, %v6629
        %v6702 = vadd.f32 %v6554, %v6630
        %v6703 = vadd.f32 %v6555, %v6631
        %v6704 = vadd.f32 %v6556, %v6632
        %v6705 = vadd.f32 %v6557, %v6633
        %v6706 = vadd.f32 %v6558, %v6634
        %v6707 = vadd.f32 %v6559, %v6635
        %v6708 = vadd.f32 %v6560, %v6636
        %v6709 = vadd.f32 %v6561, %v6637
        %v6710 = vadd.f32 %v6562, %v6638
        %v6711 = vadd.f32 %v6563, %v6639
        %v6712 = vadd.f32 %v6564, %v6640
        %v6713 = vadd.f32 %v6565, %v6641
        %v6714 = vadd.f32 %v6566, %v6642
        %v6715 = vadd.f32 %v6567, %v6643
        %v6716 = vadd.f32 %v6568, %v6644
        %v6717 = vadd.f32 %v6569, %v6645
        %v6718 = vadd.f32 %v6570, %v6646
        %v6719 = vadd.f32 %v6571, %v6647
        %v6720 = vadd.f32 %v6572, %v6648
        %v6721 = vadd.f32 %v6573, %v6649
        %v6722 = vadd.f32 %v6574, %v6650
        %v6723 = vadd.f32 %v6575, %v6651
        %v6724 = vadd.f32 %v6576, %v6652
        %v6725 = vadd.f32 %v6577, %v6653
        %v6726 = vadd.f32 %v6578, %v6654
        %v6727 = vadd.f32 %v6579, %v6655
        %v6728 = vadd.f32 %v6580, %v6656
        %v6729 = vadd.f32 %v6581, %v6657
        %v6730 = vlaneseq
        %v6731 = vshrl.u32 %v6730, 7
        %v6732 = vsub.s32 0, %v6731
        %v6733 = vrot.slane %v558, %v6732
        %v6734 = vmul.f32 %v1857, %v6733
        %v6735 = vmul.f32 %v1858, %v6733
        %v6736 = vmul.f32 %v1859, %v6733
        %v6737 = vmul.f32 %v1860, %v6733
        %v6738 = vmul.f32 %v1861, %v6733
        %v6739 = vmul.f32 %v1862, %v6733
        %v6740 = vmul.f32 %v1863, %v6733
        %v6741 = vmul.f32 %v1864, %v6733
        %v6742 = vmul.f32 %v1865, %v6733
        %v6743 = vmul.f32 %v1866, %v6733
        %v6744 = vmul.f32 %v1867, %v6733
        %v6745 = vmul.f32 %v1868, %v6733
        %v6746 = vmul.f32 %v1869, %v6733
        %v6747 = vmul.f32 %v1870, %v6733
        %v6748 = vmul.f32 %v1871, %v6733
        %v6749 = vmul.f32 %v1872, %v6733
        %v6750 = vmul.f32 %v1873, %v6733
        %v6751 = vmul.f32 %v1874, %v6733
        %v6752 = vmul.f32 %v1875, %v6733
        %v6753 = vmul.f32 %v1876, %v6733
        %v6754 = vmul.f32 %v1877, %v6733
        %v6755 = vmul.f32 %v1878, %v6733
        %v6756 = vmul.f32 %v1879, %v6733
        %v6757 = vmul.f32 %v1880, %v6733
        %v6758 = vmul.f32 %v1881, %v6733
        %v6759 = vmul.f32 %v1882, %v6733
        %v6760 = vmul.f32 %v1883, %v6733
        %v6761 = vmul.f32 %v1884, %v6733
        %v6762 = vmul.f32 %v1885, %v6733
        %v6763 = vmul.f32 %v1886, %v6733
        %v6764 = vmul.f32 %v1887, %v6733
        %v6765 = vmul.f32 %v1888, %v6733
        %v6766 = vmul.f32 %v1889, %v6733
        %v6767 = vmul.f32 %v1890, %v6733
        %v6768 = vmul.f32 %v1891, %v6733
        %v6769 = vmul.f32 %v1892, %v6733
        %v6770 = vmul.f32 %v1893, %v6733
        %v6771 = vmul.f32 %v1894, %v6733
        %v6772 = vmul.f32 %v1895, %v6733
        %v6773 = vmul.f32 %v1896, %v6733
        %v6774 = vmul.f32 %v1897, %v6733
        %v6775 = vmul.f32 %v1898, %v6733
        %v6776 = vmul.f32 %v1899, %v6733
        %v6777 = vmul.f32 %v1900, %v6733
        %v6778 = vmul.f32 %v1901, %v6733
        %v6779 = vmul.f32 %v1902, %v6733
        %v6780 = vmul.f32 %v1903, %v6733
        %v6781 = vmul.f32 %v1904, %v6733
        %v6782 = vmul.f32 %v1905, %v6733
        %v6783 = vmul.f32 %v1906, %v6733
        %v6784 = vmul.f32 %v1907, %v6733
        %v6785 = vmul.f32 %v1908, %v6733
        %v6786 = vmul.f32 %v1909, %v6733
        %v6787 = vmul.f32 %v1910, %v6733
        %v6788 = vmul.f32 %v1911, %v6733
        %v6789 = vmul.f32 %v1912, %v6733
        %v6790 = vmul.f32 %v1913, %v6733
        %v6791 = vmul.f32 %v1914, %v6733
        %v6792 = vmul.f32 %v1915, %v6733
        %v6793 = vmul.f32 %v1916, %v6733
        %v6794 = vmul.f32 %v1917, %v6733
        %v6795 = vmul.f32 %v1918, %v6733
        %v6796 = vmul.f32 %v1919, %v6733
        %v6797 = vmul.f32 %v1920, %v6733
        %v6798 = vmul.f32 %v1921, %v6733
        %v6799 = vmul.f32 %v1922, %v6733
        %v6800 = vmul.f32 %v1923, %v6733
        %v6801 = vmul.f32 %v1924, %v6733
        %v6802 = vmul.f32 %v1925, %v6733
        %v6803 = vmul.f32 %v1926, %v6733
        %v6804 = vmul.f32 %v1927, %v6733
        %v6805 = vmul.f32 %v1928, %v6733
        %v6806 = vadd.f32 %v6658, %v6734
        %v6807 = vadd.f32 %v6659, %v6735
        %v6808 = vadd.f32 %v6660, %v6736
        %v6809 = vadd.f32 %v6661, %v6737
        %v6810 = vadd.f32 %v6662, %v6738
        %v6811 = vadd.f32 %v6663, %v6739
        %v6812 = vadd.f32 %v6664, %v6740
        %v6813 = vadd.f32 %v6665, %v6741
        %v6814 = vadd.f32 %v6666, %v6742
        %v6815 = vadd.f32 %v6667, %v6743
        %v6816 = vadd.f32 %v6668, %v6744
        %v6817 = vadd.f32 %v6669, %v6745
        %v6818 = vadd.f32 %v6670, %v6746
        %v6819 = vadd.f32 %v6671, %v6747
        %v6820 = vadd.f32 %v6672, %v6748
        %v6821 = vadd.f32 %v6673, %v6749
        %v6822 = vadd.f32 %v6674, %v6750
        %v6823 = vadd.f32 %v6675, %v6751
        %v6824 = vadd.f32 %v6676, %v6752
        %v6825 = vadd.f32 %v6677, %v6753
        %v6826 = vadd.f32 %v6678, %v6754
        %v6827 = vadd.f32 %v6679, %v6755
        %v6828 = vadd.f32 %v6680, %v6756
        %v6829 = vadd.f32 %v6681, %v6757
        %v6830 = vadd.f32 %v6682, %v6758
        %v6831 = vadd.f32 %v6683, %v6759
        %v6832 = vadd.f32 %v6684, %v6760
        %v6833 = vadd.f32 %v6685, %v6761
        %v6834 = vadd.f32 %v6686, %v6762
        %v6835 = vadd.f32 %v6687, %v6763
        %v6836 = vadd.f32 %v6688, %v6764
        %v6837 = vadd.f32 %v6689, %v6765
        %v6838 = vadd.f32 %v6690, %v6766
        %v6839 = vadd.f32 %v6691, %v6767
        %v6840 = vadd.f32 %v6692, %v6768
        %v6841 = vadd.f32 %v6693, %v6769
        %v6842 = vadd.f32 %v6694, %v6770
        %v6843 = vadd.f32 %v6695, %v6771
        %v6844 = vadd.f32 %v6696, %v6772
        %v6845 = vadd.f32 %v6697, %v6773
        %v6846 = vadd.f32 %v6698, %v6774
        %v6847 = vadd.f32 %v6699, %v6775
        %v6848 = vadd.f32 %v6700, %v6776
        %v6849 = vadd.f32 %v6701, %v6777
        %v6850 = vadd.f32 %v6702, %v6778
        %v6851 = vadd.f32 %v6703, %v6779
        %v6852 = vadd.f32 %v6704, %v6780
        %v6853 = vadd.f32 %v6705, %v6781
        %v6854 = vadd.f32 %v6706, %v6782
        %v6855 = vadd.f32 %v6707, %v6783
        %v6856 = vadd.f32 %v6708, %v6784
        %v6857 = vadd.f32 %v6709, %v6785
        %v6858 = vadd.f32 %v6710, %v6786
        %v6859 = vadd.f32 %v6711, %v6787
        %v6860 = vadd.f32 %v6712, %v6788
        %v6861 = vadd.f32 %v6713, %v6789
        %v6862 = vadd.f32 %v6714, %v6790
        %v6863 = vadd.f32 %v6715, %v6791
        %v6864 = vadd.f32 %v6716, %v6792
        %v6865 = vadd.f32 %v6717, %v6793
        %v6866 = vadd.f32 %v6718, %v6794
        %v6867 = vadd.f32 %v6719, %v6795
        %v6868 = vadd.f32 %v6720, %v6796
        %v6869 = vadd.f32 %v6721, %v6797
        %v6870 = vadd.f32 %v6722, %v6798
        %v6871 = vadd.f32 %v6723, %v6799
        %v6872 = vadd.f32 %v6724, %v6800
        %v6873 = vadd.f32 %v6725, %v6801
        %v6874 = vadd.f32 %v6726, %v6802
        %v6875 = vadd.f32 %v6727, %v6803
        %v6876 = vadd.f32 %v6728, %v6804
        %v6877 = vadd.f32 %v6729, %v6805
        %v6878 = vlaneseq
        %v6879 = vshrl.u32 %v6878, 7
        %v6880 = vsub.s32 7, %v6879
        %v6881 = vrot.slane %v558, %v6880
        %v6882 = vmul.f32 %v2102, %v6881
        %v6883 = vmul.f32 %v2103, %v6881
        %v6884 = vmul.f32 %v2104, %v6881
        %v6885 = vmul.f32 %v2105, %v6881
        %v6886 = vmul.f32 %v2106, %v6881
        %v6887 = vmul.f32 %v2107, %v6881
        %v6888 = vmul.f32 %v2108, %v6881
        %v6889 = vmul.f32 %v2109, %v6881
        %v6890 = vmul.f32 %v2110, %v6881
        %v6891 = vmul.f32 %v2111, %v6881
        %v6892 = vmul.f32 %v2112, %v6881
        %v6893 = vmul.f32 %v2113, %v6881
        %v6894 = vmul.f32 %v2114, %v6881
        %v6895 = vmul.f32 %v2115, %v6881
        %v6896 = vmul.f32 %v2116, %v6881
        %v6897 = vmul.f32 %v2117, %v6881
        %v6898 = vmul.f32 %v2118, %v6881
        %v6899 = vmul.f32 %v2119, %v6881
        %v6900 = vmul.f32 %v2120, %v6881
        %v6901 = vmul.f32 %v2121, %v6881
        %v6902 = vmul.f32 %v2122, %v6881
        %v6903 = vmul.f32 %v2123, %v6881
        %v6904 = vmul.f32 %v2124, %v6881
        %v6905 = vmul.f32 %v2125, %v6881
        %v6906 = vmul.f32 %v2126, %v6881
        %v6907 = vmul.f32 %v2127, %v6881
        %v6908 = vmul.f32 %v2128, %v6881
        %v6909 = vmul.f32 %v2129, %v6881
        %v6910 = vmul.f32 %v2130, %v6881
        %v6911 = vmul.f32 %v2131, %v6881
        %v6912 = vmul.f32 %v2132, %v6881
        %v6913 = vmul.f32 %v2133, %v6881
        %v6914 = vmul.f32 %v2134, %v6881
        %v6915 = vmul.f32 %v2135, %v6881
        %v6916 = vmul.f32 %v2136, %v6881
        %v6917 = vmul.f32 %v2137, %v6881
        %v6918 = vmul.f32 %v2138, %v6881
        %v6919 = vmul.f32 %v2139, %v6881
        %v6920 = vmul.f32 %v2140, %v6881
        %v6921 = vmul.f32 %v2141, %v6881
        %v6922 = vmul.f32 %v2142, %v6881
        %v6923 = vmul.f32 %v2143, %v6881
        %v6924 = vmul.f32 %v2144, %v6881
        %v6925 = vmul.f32 %v2145, %v6881
        %v6926 = vmul.f32 %v2146, %v6881
        %v6927 = vmul.f32 %v2147, %v6881
        %v6928 = vmul.f32 %v2148, %v6881
        %v6929 = vmul.f32 %v2149, %v6881
        %v6930 = vmul.f32 %v2150, %v6881
        %v6931 = vmul.f32 %v2151, %v6881
        %v6932 = vmul.f32 %v2152, %v6881
        %v6933 = vmul.f32 %v2153, %v6881
        %v6934 = vmul.f32 %v2154, %v6881
        %v6935 = vmul.f32 %v2155, %v6881
        %v6936 = vmul.f32 %v2156, %v6881
        %v6937 = vmul.f32 %v2157, %v6881
        %v6938 = vmul.f32 %v2158, %v6881
        %v6939 = vmul.f32 %v2159, %v6881
        %v6940 = vmul.f32 %v2160, %v6881
        %v6941 = vmul.f32 %v2161, %v6881
        %v6942 = vmul.f32 %v2162, %v6881
        %v6943 = vmul.f32 %v2163, %v6881
        %v6944 = vmul.f32 %v2164, %v6881
        %v6945 = vmul.f32 %v2165, %v6881
        %v6946 = vmul.f32 %v2166, %v6881
        %v6947 = vmul.f32 %v2167, %v6881
        %v6948 = vmul.f32 %v2168, %v6881
        %v6949 = vmul.f32 %v2169, %v6881
        %v6950 = vmul.f32 %v2170, %v6881
        %v6951 = vmul.f32 %v2171, %v6881
        %v6952 = vmul.f32 %v2172, %v6881
        %v6953 = vmul.f32 %v2173, %v6881
        %v6954 = vadd.f32 %v6806, %v6882
        %v6955 = vadd.f32 %v6807, %v6883
        %v6956 = vadd.f32 %v6808, %v6884
        %v6957 = vadd.f32 %v6809, %v6885
        %v6958 = vadd.f32 %v6810, %v6886
        %v6959 = vadd.f32 %v6811, %v6887
        %v6960 = vadd.f32 %v6812, %v6888
        %v6961 = vadd.f32 %v6813, %v6889
        %v6962 = vadd.f32 %v6814, %v6890
        %v6963 = vadd.f32 %v6815, %v6891
        %v6964 = vadd.f32 %v6816, %v6892
        %v6965 = vadd.f32 %v6817, %v6893
        %v6966 = vadd.f32 %v6818, %v6894
        %v6967 = vadd.f32 %v6819, %v6895
        %v6968 = vadd.f32 %v6820, %v6896
        %v6969 = vadd.f32 %v6821, %v6897
        %v6970 = vadd.f32 %v6822, %v6898
        %v6971 = vadd.f32 %v6823, %v6899
        %v6972 = vadd.f32 %v6824, %v6900
        %v6973 = vadd.f32 %v6825, %v6901
        %v6974 = vadd.f32 %v6826, %v6902
        %v6975 = vadd.f32 %v6827, %v6903
        %v6976 = vadd.f32 %v6828, %v6904
        %v6977 = vadd.f32 %v6829, %v6905
        %v6978 = vadd.f32 %v6830, %v6906
        %v6979 = vadd.f32 %v6831, %v6907
        %v6980 = vadd.f32 %v6832, %v6908
        %v6981 = vadd.f32 %v6833, %v6909
        %v6982 = vadd.f32 %v6834, %v6910
        %v6983 = vadd.f32 %v6835, %v6911
        %v6984 = vadd.f32 %v6836, %v6912
        %v6985 = vadd.f32 %v6837, %v6913
        %v6986 = vadd.f32 %v6838, %v6914
        %v6987 = vadd.f32 %v6839, %v6915
        %v6988 = vadd.f32 %v6840, %v6916
        %v6989 = vadd.f32 %v6841, %v6917
        %v6990 = vadd.f32 %v6842, %v6918
        %v6991 = vadd.f32 %v6843, %v6919
        %v6992 = vadd.f32 %v6844, %v6920
        %v6993 = vadd.f32 %v6845, %v6921
        %v6994 = vadd.f32 %v6846, %v6922
        %v6995 = vadd.f32 %v6847, %v6923
        %v6996 = vadd.f32 %v6848, %v6924
        %v6997 = vadd.f32 %v6849, %v6925
        %v6998 = vadd.f32 %v6850, %v6926
        %v6999 = vadd.f32 %v6851, %v6927
        %v7000 = vadd.f32 %v6852, %v6928
        %v7001 = vadd.f32 %v6853, %v6929
        %v7002 = vadd.f32 %v6854, %v6930
        %v7003 = vadd.f32 %v6855, %v6931
        %v7004 = vadd.f32 %v6856, %v6932
        %v7005 = vadd.f32 %v6857, %v6933
        %v7006 = vadd.f32 %v6858, %v6934
        %v7007 = vadd.f32 %v6859, %v6935
        %v7008 = vadd.f32 %v6860, %v6936
        %v7009 = vadd.f32 %v6861, %v6937
        %v7010 = vadd.f32 %v6862, %v6938
        %v7011 = vadd.f32 %v6863, %v6939
        %v7012 = vadd.f32 %v6864, %v6940
        %v7013 = vadd.f32 %v6865, %v6941
        %v7014 = vadd.f32 %v6866, %v6942
        %v7015 = vadd.f32 %v6867, %v6943
        %v7016 = vadd.f32 %v6868, %v6944
        %v7017 = vadd.f32 %v6869, %v6945
        %v7018 = vadd.f32 %v6870, %v6946
        %v7019 = vadd.f32 %v6871, %v6947
        %v7020 = vadd.f32 %v6872, %v6948
        %v7021 = vadd.f32 %v6873, %v6949
        %v7022 = vadd.f32 %v6874, %v6950
        %v7023 = vadd.f32 %v6875, %v6951
        %v7024 = vadd.f32 %v6876, %v6952
        %v7025 = vadd.f32 %v6877, %v6953
        %vm7098 = vcmask 1042432
        %v7099 = vrot.slane %v6954, 5
        %v7100 = vrot.slane %v6955, 5
        %v7101 = vsel %vm7098, %v7099, %v7100
        %v7102 = vrot.slane %v6956, 5
        %v7103 = vsel %vm7098, %v7100, %v7102
        %v7104 = vrot.slane %v6957, 5
        %v7105 = vrot.slane %v6958, 5
        %v7106 = vsel %vm7098, %v7104, %v7105
        %v7107 = vrot.slane %v6959, 5
        %v7108 = vsel %vm7098, %v7105, %v7107
        %v7109 = vrot.slane %v6960, 5
        %v7110 = vrot.slane %v6961, 5
        %v7111 = vsel %vm7098, %v7109, %v7110
        %v7112 = vrot.slane %v6962, 5
        %v7113 = vsel %vm7098, %v7110, %v7112
        %v7114 = vrot.slane %v6963, 5
        %v7115 = vrot.slane %v6964, 5
        %v7116 = vsel %vm7098, %v7114, %v7115
        %v7117 = vrot.slane %v6965, 5
        %v7118 = vsel %vm7098, %v7115, %v7117
        %v7119 = vrot.slane %v6966, 5
        %v7120 = vrot.slane %v6967, 5
        %v7121 = vsel %vm7098, %v7119, %v7120
        %v7122 = vrot.slane %v6968, 5
        %v7123 = vsel %vm7098, %v7120, %v7122
        %v7124 = vrot.slane %v6969, 5
        %v7125 = vrot.slane %v6970, 5
        %v7126 = vsel %vm7098, %v7124, %v7125
        %v7127 = vrot.slane %v6971, 5
        %v7128 = vsel %vm7098, %v7125, %v7127
        %v7129 = vrot.slane %v6972, 5
        %v7130 = vrot.slane %v6973, 5
        %v7131 = vsel %vm7098, %v7129, %v7130
        %v7132 = vrot.slane %v6974, 5
        %v7133 = vsel %vm7098, %v7130, %v7132
        %v7134 = vrot.slane %v6975, 5
        %v7135 = vrot.slane %v6976, 5
        %v7136 = vsel %vm7098, %v7134, %v7135
        %v7137 = vrot.slane %v6977, 5
        %v7138 = vsel %vm7098, %v7135, %v7137
        %v7139 = vrot.slane %v6978, 5
        %v7140 = vrot.slane %v6979, 5
        %v7141 = vsel %vm7098, %v7139, %v7140
        %v7142 = vrot.slane %v6980, 5
        %v7143 = vsel %vm7098, %v7140, %v7142
        %v7144 = vrot.slane %v6981, 5
        %v7145 = vrot.slane %v6982, 5
        %v7146 = vsel %vm7098, %v7144, %v7145
        %v7147 = vrot.slane %v6983, 5
        %v7148 = vsel %vm7098, %v7145, %v7147
        %v7149 = vrot.slane %v6984, 5
        %v7150 = vrot.slane %v6985, 5
        %v7151 = vsel %vm7098, %v7149, %v7150
        %v7152 = vrot.slane %v6986, 5
        %v7153 = vsel %vm7098, %v7150, %v7152
        %v7154 = vrot.slane %v6987, 5
        %v7155 = vrot.slane %v6988, 5
        %v7156 = vsel %vm7098, %v7154, %v7155
        %v7157 = vrot.slane %v6989, 5
        %v7158 = vsel %vm7098, %v7155, %v7157
        %v7159 = vrot.slane %v6990, 5
        %v7160 = vrot.slane %v6991, 5
        %v7161 = vsel %vm7098, %v7159, %v7160
        %v7162 = vrot.slane %v6992, 5
        %v7163 = vsel %vm7098, %v7160, %v7162
        %v7164 = vrot.slane %v6993, 5
        %v7165 = vrot.slane %v6994, 5
        %v7166 = vsel %vm7098, %v7164, %v7165
        %v7167 = vrot.slane %v6995, 5
        %v7168 = vsel %vm7098, %v7165, %v7167
        %v7169 = vrot.slane %v6996, 5
        %v7170 = vrot.slane %v6997, 5
        %v7171 = vsel %vm7098, %v7169, %v7170
        %v7172 = vrot.slane %v6998, 5
        %v7173 = vsel %vm7098, %v7170, %v7172
        %v7174 = vrot.slane %v6999, 5
        %v7175 = vrot.slane %v7000, 5
        %v7176 = vsel %vm7098, %v7174, %v7175
        %v7177 = vrot.slane %v7001, 5
        %v7178 = vsel %vm7098, %v7175, %v7177
        %v7179 = vrot.slane %v7002, 5
        %v7180 = vrot.slane %v7003, 5
        %v7181 = vsel %vm7098, %v7179, %v7180
        %v7182 = vrot.slane %v7004, 5
        %v7183 = vsel %vm7098, %v7180, %v7182
        %v7184 = vrot.slane %v7005, 5
        %v7185 = vrot.slane %v7006, 5
        %v7186 = vsel %vm7098, %v7184, %v7185
        %v7187 = vrot.slane %v7007, 5
        %v7188 = vsel %vm7098, %v7185, %v7187
        %v7189 = vrot.slane %v7008, 5
        %v7190 = vrot.slane %v7009, 5
        %v7191 = vsel %vm7098, %v7189, %v7190
        %v7192 = vrot.slane %v7010, 5
        %v7193 = vsel %vm7098, %v7190, %v7192
        %v7194 = vrot.slane %v7011, 5
        %v7195 = vrot.slane %v7012, 5
        %v7196 = vsel %vm7098, %v7194, %v7195
        %v7197 = vrot.slane %v7013, 5
        %v7198 = vsel %vm7098, %v7195, %v7197
        %v7199 = vrot.slane %v7014, 5
        %v7200 = vrot.slane %v7015, 5
        %v7201 = vsel %vm7098, %v7199, %v7200
        %v7202 = vrot.slane %v7016, 5
        %v7203 = vsel %vm7098, %v7200, %v7202
        %v7204 = vrot.slane %v7017, 5
        %v7205 = vrot.slane %v7018, 5
        %v7206 = vsel %vm7098, %v7204, %v7205
        %v7207 = vrot.slane %v7019, 5
        %v7208 = vsel %vm7098, %v7205, %v7207
        %v7209 = vrot.slane %v7020, 5
        %v7210 = vrot.slane %v7021, 5
        %v7211 = vsel %vm7098, %v7209, %v7210
        %v7212 = vrot.slane %v7022, 5
        %v7213 = vsel %vm7098, %v7210, %v7212
        %v7214 = vrot.slane %v7023, 5
        %v7215 = vrot.slane %v7024, 5
        %v7216 = vsel %vm7098, %v7214, %v7215
        %v7217 = vrot.slane %v7025, 5
        %v7218 = vsel %vm7098, %v7215, %v7217
        %v7267 = vadd.f32 %v5942, %v7101
        %v7268 = vadd.f32 %v5943, %v7103
        %v7269 = vadd.f32 %v5944, %v7106
        %v7270 = vadd.f32 %v5945, %v7108
        %v7271 = vadd.f32 %v5946, %v7111
        %v7272 = vadd.f32 %v5947, %v7113
        %v7273 = vadd.f32 %v5948, %v7116
        %v7274 = vadd.f32 %v5949, %v7118
        %v7275 = vadd.f32 %v5950, %v7121
        %v7276 = vadd.f32 %v5951, %v7123
        %v7277 = vadd.f32 %v5952, %v7126
        %v7278 = vadd.f32 %v5953, %v7128
        %v7279 = vadd.f32 %v5954, %v7131
        %v7280 = vadd.f32 %v5955, %v7133
        %v7281 = vadd.f32 %v5956, %v7136
        %v7282 = vadd.f32 %v5957, %v7138
        %v7283 = vadd.f32 %v5958, %v7141
        %v7284 = vadd.f32 %v5959, %v7143
        %v7285 = vadd.f32 %v5960, %v7146
        %v7286 = vadd.f32 %v5961, %v7148
        %v7287 = vadd.f32 %v5962, %v7151
        %v7288 = vadd.f32 %v5963, %v7153
        %v7289 = vadd.f32 %v5964, %v7156
        %v7290 = vadd.f32 %v5965, %v7158
        %v7291 = vadd.f32 %v5966, %v7161
        %v7292 = vadd.f32 %v5967, %v7163
        %v7293 = vadd.f32 %v5968, %v7166
        %v7294 = vadd.f32 %v5969, %v7168
        %v7295 = vadd.f32 %v5970, %v7171
        %v7296 = vadd.f32 %v5971, %v7173
        %v7297 = vadd.f32 %v5972, %v7176
        %v7298 = vadd.f32 %v5973, %v7178
        %v7299 = vadd.f32 %v5974, %v7181
        %v7300 = vadd.f32 %v5975, %v7183
        %v7301 = vadd.f32 %v5976, %v7186
        %v7302 = vadd.f32 %v5977, %v7188
        %v7303 = vadd.f32 %v5978, %v7191
        %v7304 = vadd.f32 %v5979, %v7193
        %v7305 = vadd.f32 %v5980, %v7196
        %v7306 = vadd.f32 %v5981, %v7198
        %v7307 = vadd.f32 %v5982, %v7201
        %v7308 = vadd.f32 %v5983, %v7203
        %v7309 = vadd.f32 %v5984, %v7206
        %v7310 = vadd.f32 %v5985, %v7208
        %v7311 = vadd.f32 %v5986, %v7211
        %v7312 = vadd.f32 %v5987, %v7213
        %v7313 = vadd.f32 %v5988, %v7216
        %v7314 = vadd.f32 %v5989, %v7218
        %v7315 = vlaneseq
        %v7316 = vshrl.u32 %v7315, 7
        %v7317 = vsub.s32 6, %v7316
        %v7318 = vrot.slane %v553, %v7317
        %v7319 = vmul.f32 %v632, %v7318
        %v7320 = vmul.f32 %v633, %v7318
        %v7321 = vmul.f32 %v634, %v7318
        %v7322 = vmul.f32 %v635, %v7318
        %v7323 = vmul.f32 %v636, %v7318
        %v7324 = vmul.f32 %v637, %v7318
        %v7325 = vmul.f32 %v638, %v7318
        %v7326 = vmul.f32 %v639, %v7318
        %v7327 = vmul.f32 %v640, %v7318
        %v7328 = vmul.f32 %v641, %v7318
        %v7329 = vmul.f32 %v642, %v7318
        %v7330 = vmul.f32 %v643, %v7318
        %v7331 = vmul.f32 %v644, %v7318
        %v7332 = vmul.f32 %v645, %v7318
        %v7333 = vmul.f32 %v646, %v7318
        %v7334 = vmul.f32 %v647, %v7318
        %v7335 = vmul.f32 %v648, %v7318
        %v7336 = vmul.f32 %v649, %v7318
        %v7337 = vmul.f32 %v650, %v7318
        %v7338 = vmul.f32 %v651, %v7318
        %v7339 = vmul.f32 %v652, %v7318
        %v7340 = vmul.f32 %v653, %v7318
        %v7341 = vmul.f32 %v654, %v7318
        %v7342 = vmul.f32 %v655, %v7318
        %v7343 = vmul.f32 %v656, %v7318
        %v7344 = vmul.f32 %v657, %v7318
        %v7345 = vmul.f32 %v658, %v7318
        %v7346 = vmul.f32 %v659, %v7318
        %v7347 = vmul.f32 %v660, %v7318
        %v7348 = vmul.f32 %v661, %v7318
        %v7349 = vmul.f32 %v662, %v7318
        %v7350 = vmul.f32 %v663, %v7318
        %v7351 = vmul.f32 %v664, %v7318
        %v7352 = vmul.f32 %v665, %v7318
        %v7353 = vmul.f32 %v666, %v7318
        %v7354 = vmul.f32 %v667, %v7318
        %v7355 = vmul.f32 %v668, %v7318
        %v7356 = vmul.f32 %v669, %v7318
        %v7357 = vmul.f32 %v670, %v7318
        %v7358 = vmul.f32 %v671, %v7318
        %v7359 = vmul.f32 %v672, %v7318
        %v7360 = vmul.f32 %v673, %v7318
        %v7361 = vmul.f32 %v674, %v7318
        %v7362 = vmul.f32 %v675, %v7318
        %v7363 = vmul.f32 %v676, %v7318
        %v7364 = vmul.f32 %v677, %v7318
        %v7365 = vmul.f32 %v678, %v7318
        %v7366 = vmul.f32 %v679, %v7318
        %v7367 = vmul.f32 %v680, %v7318
        %v7368 = vmul.f32 %v681, %v7318
        %v7369 = vmul.f32 %v682, %v7318
        %v7370 = vmul.f32 %v683, %v7318
        %v7371 = vmul.f32 %v684, %v7318
        %v7372 = vmul.f32 %v685, %v7318
        %v7373 = vmul.f32 %v686, %v7318
        %v7374 = vmul.f32 %v687, %v7318
        %v7375 = vmul.f32 %v688, %v7318
        %v7376 = vmul.f32 %v689, %v7318
        %v7377 = vmul.f32 %v690, %v7318
        %v7378 = vmul.f32 %v691, %v7318
        %v7379 = vmul.f32 %v692, %v7318
        %v7380 = vmul.f32 %v693, %v7318
        %v7381 = vmul.f32 %v694, %v7318
        %v7382 = vmul.f32 %v695, %v7318
        %v7383 = vmul.f32 %v696, %v7318
        %v7384 = vmul.f32 %v697, %v7318
        %v7385 = vmul.f32 %v698, %v7318
        %v7386 = vmul.f32 %v699, %v7318
        %v7387 = vmul.f32 %v700, %v7318
        %v7388 = vmul.f32 %v701, %v7318
        %v7389 = vmul.f32 %v702, %v7318
        %v7390 = vmul.f32 %v703, %v7318
        %v7391 = vadd.f32 %v7319, 0.0
        %v7392 = vadd.f32 %v7320, 0.0
        %v7393 = vadd.f32 %v7321, 0.0
        %v7394 = vadd.f32 %v7322, 0.0
        %v7395 = vadd.f32 %v7323, 0.0
        %v7396 = vadd.f32 %v7324, 0.0
        %v7397 = vadd.f32 %v7325, 0.0
        %v7398 = vadd.f32 %v7326, 0.0
        %v7399 = vadd.f32 %v7327, 0.0
        %v7400 = vadd.f32 %v7328, 0.0
        %v7401 = vadd.f32 %v7329, 0.0
        %v7402 = vadd.f32 %v7330, 0.0
        %v7403 = vadd.f32 %v7331, 0.0
        %v7404 = vadd.f32 %v7332, 0.0
        %v7405 = vadd.f32 %v7333, 0.0
        %v7406 = vadd.f32 %v7334, 0.0
        %v7407 = vadd.f32 %v7335, 0.0
        %v7408 = vadd.f32 %v7336, 0.0
        %v7409 = vadd.f32 %v7337, 0.0
        %v7410 = vadd.f32 %v7338, 0.0
        %v7411 = vadd.f32 %v7339, 0.0
        %v7412 = vadd.f32 %v7340, 0.0
        %v7413 = vadd.f32 %v7341, 0.0
        %v7414 = vadd.f32 %v7342, 0.0
        %v7415 = vadd.f32 %v7343, 0.0
        %v7416 = vadd.f32 %v7344, 0.0
        %v7417 = vadd.f32 %v7345, 0.0
        %v7418 = vadd.f32 %v7346, 0.0
        %v7419 = vadd.f32 %v7347, 0.0
        %v7420 = vadd.f32 %v7348, 0.0
        %v7421 = vadd.f32 %v7349, 0.0
        %v7422 = vadd.f32 %v7350, 0.0
        %v7423 = vadd.f32 %v7351, 0.0
        %v7424 = vadd.f32 %v7352, 0.0
        %v7425 = vadd.f32 %v7353, 0.0
        %v7426 = vadd.f32 %v7354, 0.0
        %v7427 = vadd.f32 %v7355, 0.0
        %v7428 = vadd.f32 %v7356, 0.0
        %v7429 = vadd.f32 %v7357, 0.0
        %v7430 = vadd.f32 %v7358, 0.0
        %v7431 = vadd.f32 %v7359, 0.0
        %v7432 = vadd.f32 %v7360, 0.0
        %v7433 = vadd.f32 %v7361, 0.0
        %v7434 = vadd.f32 %v7362, 0.0
        %v7435 = vadd.f32 %v7363, 0.0
        %v7436 = vadd.f32 %v7364, 0.0
        %v7437 = vadd.f32 %v7365, 0.0
        %v7438 = vadd.f32 %v7366, 0.0
        %v7439 = vadd.f32 %v7367, 0.0
        %v7440 = vadd.f32 %v7368, 0.0
        %v7441 = vadd.f32 %v7369, 0.0
        %v7442 = vadd.f32 %v7370, 0.0
        %v7443 = vadd.f32 %v7371, 0.0
        %v7444 = vadd.f32 %v7372, 0.0
        %v7445 = vadd.f32 %v7373, 0.0
        %v7446 = vadd.f32 %v7374, 0.0
        %v7447 = vadd.f32 %v7375, 0.0
        %v7448 = vadd.f32 %v7376, 0.0
        %v7449 = vadd.f32 %v7377, 0.0
        %v7450 = vadd.f32 %v7378, 0.0
        %v7451 = vadd.f32 %v7379, 0.0
        %v7452 = vadd.f32 %v7380, 0.0
        %v7453 = vadd.f32 %v7381, 0.0
        %v7454 = vadd.f32 %v7382, 0.0
        %v7455 = vadd.f32 %v7383, 0.0
        %v7456 = vadd.f32 %v7384, 0.0
        %v7457 = vadd.f32 %v7385, 0.0
        %v7458 = vadd.f32 %v7386, 0.0
        %v7459 = vadd.f32 %v7387, 0.0
        %v7460 = vadd.f32 %v7388, 0.0
        %v7461 = vadd.f32 %v7389, 0.0
        %v7462 = vadd.f32 %v7390, 0.0
        %v7463 = vlaneseq
        %v7464 = vshrl.u32 %v7463, 7
        %v7465 = vsub.s32 5, %v7464
        %v7466 = vrot.slane %v554, %v7465
        %v7467 = vmul.f32 %v877, %v7466
        %v7468 = vmul.f32 %v878, %v7466
        %v7469 = vmul.f32 %v879, %v7466
        %v7470 = vmul.f32 %v880, %v7466
        %v7471 = vmul.f32 %v881, %v7466
        %v7472 = vmul.f32 %v882, %v7466
        %v7473 = vmul.f32 %v883, %v7466
        %v7474 = vmul.f32 %v884, %v7466
        %v7475 = vmul.f32 %v885, %v7466
        %v7476 = vmul.f32 %v886, %v7466
        %v7477 = vmul.f32 %v887, %v7466
        %v7478 = vmul.f32 %v888, %v7466
        %v7479 = vmul.f32 %v889, %v7466
        %v7480 = vmul.f32 %v890, %v7466
        %v7481 = vmul.f32 %v891, %v7466
        %v7482 = vmul.f32 %v892, %v7466
        %v7483 = vmul.f32 %v893, %v7466
        %v7484 = vmul.f32 %v894, %v7466
        %v7485 = vmul.f32 %v895, %v7466
        %v7486 = vmul.f32 %v896, %v7466
        %v7487 = vmul.f32 %v897, %v7466
        %v7488 = vmul.f32 %v898, %v7466
        %v7489 = vmul.f32 %v899, %v7466
        %v7490 = vmul.f32 %v900, %v7466
        %v7491 = vmul.f32 %v901, %v7466
        %v7492 = vmul.f32 %v902, %v7466
        %v7493 = vmul.f32 %v903, %v7466
        %v7494 = vmul.f32 %v904, %v7466
        %v7495 = vmul.f32 %v905, %v7466
        %v7496 = vmul.f32 %v906, %v7466
        %v7497 = vmul.f32 %v907, %v7466
        %v7498 = vmul.f32 %v908, %v7466
        %v7499 = vmul.f32 %v909, %v7466
        %v7500 = vmul.f32 %v910, %v7466
        %v7501 = vmul.f32 %v911, %v7466
        %v7502 = vmul.f32 %v912, %v7466
        %v7503 = vmul.f32 %v913, %v7466
        %v7504 = vmul.f32 %v914, %v7466
        %v7505 = vmul.f32 %v915, %v7466
        %v7506 = vmul.f32 %v916, %v7466
        %v7507 = vmul.f32 %v917, %v7466
        %v7508 = vmul.f32 %v918, %v7466
        %v7509 = vmul.f32 %v919, %v7466
        %v7510 = vmul.f32 %v920, %v7466
        %v7511 = vmul.f32 %v921, %v7466
        %v7512 = vmul.f32 %v922, %v7466
        %v7513 = vmul.f32 %v923, %v7466
        %v7514 = vmul.f32 %v924, %v7466
        %v7515 = vmul.f32 %v925, %v7466
        %v7516 = vmul.f32 %v926, %v7466
        %v7517 = vmul.f32 %v927, %v7466
        %v7518 = vmul.f32 %v928, %v7466
        %v7519 = vmul.f32 %v929, %v7466
        %v7520 = vmul.f32 %v930, %v7466
        %v7521 = vmul.f32 %v931, %v7466
        %v7522 = vmul.f32 %v932, %v7466
        %v7523 = vmul.f32 %v933, %v7466
        %v7524 = vmul.f32 %v934, %v7466
        %v7525 = vmul.f32 %v935, %v7466
        %v7526 = vmul.f32 %v936, %v7466
        %v7527 = vmul.f32 %v937, %v7466
        %v7528 = vmul.f32 %v938, %v7466
        %v7529 = vmul.f32 %v939, %v7466
        %v7530 = vmul.f32 %v940, %v7466
        %v7531 = vmul.f32 %v941, %v7466
        %v7532 = vmul.f32 %v942, %v7466
        %v7533 = vmul.f32 %v943, %v7466
        %v7534 = vmul.f32 %v944, %v7466
        %v7535 = vmul.f32 %v945, %v7466
        %v7536 = vmul.f32 %v946, %v7466
        %v7537 = vmul.f32 %v947, %v7466
        %v7538 = vmul.f32 %v948, %v7466
        %v7539 = vadd.f32 %v7391, %v7467
        %v7540 = vadd.f32 %v7392, %v7468
        %v7541 = vadd.f32 %v7393, %v7469
        %v7542 = vadd.f32 %v7394, %v7470
        %v7543 = vadd.f32 %v7395, %v7471
        %v7544 = vadd.f32 %v7396, %v7472
        %v7545 = vadd.f32 %v7397, %v7473
        %v7546 = vadd.f32 %v7398, %v7474
        %v7547 = vadd.f32 %v7399, %v7475
        %v7548 = vadd.f32 %v7400, %v7476
        %v7549 = vadd.f32 %v7401, %v7477
        %v7550 = vadd.f32 %v7402, %v7478
        %v7551 = vadd.f32 %v7403, %v7479
        %v7552 = vadd.f32 %v7404, %v7480
        %v7553 = vadd.f32 %v7405, %v7481
        %v7554 = vadd.f32 %v7406, %v7482
        %v7555 = vadd.f32 %v7407, %v7483
        %v7556 = vadd.f32 %v7408, %v7484
        %v7557 = vadd.f32 %v7409, %v7485
        %v7558 = vadd.f32 %v7410, %v7486
        %v7559 = vadd.f32 %v7411, %v7487
        %v7560 = vadd.f32 %v7412, %v7488
        %v7561 = vadd.f32 %v7413, %v7489
        %v7562 = vadd.f32 %v7414, %v7490
        %v7563 = vadd.f32 %v7415, %v7491
        %v7564 = vadd.f32 %v7416, %v7492
        %v7565 = vadd.f32 %v7417, %v7493
        %v7566 = vadd.f32 %v7418, %v7494
        %v7567 = vadd.f32 %v7419, %v7495
        %v7568 = vadd.f32 %v7420, %v7496
        %v7569 = vadd.f32 %v7421, %v7497
        %v7570 = vadd.f32 %v7422, %v7498
        %v7571 = vadd.f32 %v7423, %v7499
        %v7572 = vadd.f32 %v7424, %v7500
        %v7573 = vadd.f32 %v7425, %v7501
        %v7574 = vadd.f32 %v7426, %v7502
        %v7575 = vadd.f32 %v7427, %v7503
        %v7576 = vadd.f32 %v7428, %v7504
        %v7577 = vadd.f32 %v7429, %v7505
        %v7578 = vadd.f32 %v7430, %v7506
        %v7579 = vadd.f32 %v7431, %v7507
        %v7580 = vadd.f32 %v7432, %v7508
        %v7581 = vadd.f32 %v7433, %v7509
        %v7582 = vadd.f32 %v7434, %v7510
        %v7583 = vadd.f32 %v7435, %v7511
        %v7584 = vadd.f32 %v7436, %v7512
        %v7585 = vadd.f32 %v7437, %v7513
        %v7586 = vadd.f32 %v7438, %v7514
        %v7587 = vadd.f32 %v7439, %v7515
        %v7588 = vadd.f32 %v7440, %v7516
        %v7589 = vadd.f32 %v7441, %v7517
        %v7590 = vadd.f32 %v7442, %v7518
        %v7591 = vadd.f32 %v7443, %v7519
        %v7592 = vadd.f32 %v7444, %v7520
        %v7593 = vadd.f32 %v7445, %v7521
        %v7594 = vadd.f32 %v7446, %v7522
        %v7595 = vadd.f32 %v7447, %v7523
        %v7596 = vadd.f32 %v7448, %v7524
        %v7597 = vadd.f32 %v7449, %v7525
        %v7598 = vadd.f32 %v7450, %v7526
        %v7599 = vadd.f32 %v7451, %v7527
        %v7600 = vadd.f32 %v7452, %v7528
        %v7601 = vadd.f32 %v7453, %v7529
        %v7602 = vadd.f32 %v7454, %v7530
        %v7603 = vadd.f32 %v7455, %v7531
        %v7604 = vadd.f32 %v7456, %v7532
        %v7605 = vadd.f32 %v7457, %v7533
        %v7606 = vadd.f32 %v7458, %v7534
        %v7607 = vadd.f32 %v7459, %v7535
        %v7608 = vadd.f32 %v7460, %v7536
        %v7609 = vadd.f32 %v7461, %v7537
        %v7610 = vadd.f32 %v7462, %v7538
        %v7611 = vlaneseq
        %v7612 = vshrl.u32 %v7611, 7
        %v7613 = vsub.s32 4, %v7612
        %v7614 = vrot.slane %v555, %v7613
        %v7615 = vmul.f32 %v1122, %v7614
        %v7616 = vmul.f32 %v1123, %v7614
        %v7617 = vmul.f32 %v1124, %v7614
        %v7618 = vmul.f32 %v1125, %v7614
        %v7619 = vmul.f32 %v1126, %v7614
        %v7620 = vmul.f32 %v1127, %v7614
        %v7621 = vmul.f32 %v1128, %v7614
        %v7622 = vmul.f32 %v1129, %v7614
        %v7623 = vmul.f32 %v1130, %v7614
        %v7624 = vmul.f32 %v1131, %v7614
        %v7625 = vmul.f32 %v1132, %v7614
        %v7626 = vmul.f32 %v1133, %v7614
        %v7627 = vmul.f32 %v1134, %v7614
        %v7628 = vmul.f32 %v1135, %v7614
        %v7629 = vmul.f32 %v1136, %v7614
        %v7630 = vmul.f32 %v1137, %v7614
        %v7631 = vmul.f32 %v1138, %v7614
        %v7632 = vmul.f32 %v1139, %v7614
        %v7633 = vmul.f32 %v1140, %v7614
        %v7634 = vmul.f32 %v1141, %v7614
        %v7635 = vmul.f32 %v1142, %v7614
        %v7636 = vmul.f32 %v1143, %v7614
        %v7637 = vmul.f32 %v1144, %v7614
        %v7638 = vmul.f32 %v1145, %v7614
        %v7639 = vmul.f32 %v1146, %v7614
        %v7640 = vmul.f32 %v1147, %v7614
        %v7641 = vmul.f32 %v1148, %v7614
        %v7642 = vmul.f32 %v1149, %v7614
        %v7643 = vmul.f32 %v1150, %v7614
        %v7644 = vmul.f32 %v1151, %v7614
        %v7645 = vmul.f32 %v1152, %v7614
        %v7646 = vmul.f32 %v1153, %v7614
        %v7647 = vmul.f32 %v1154, %v7614
        %v7648 = vmul.f32 %v1155, %v7614
        %v7649 = vmul.f32 %v1156, %v7614
        %v7650 = vmul.f32 %v1157, %v7614
        %v7651 = vmul.f32 %v1158, %v7614
        %v7652 = vmul.f32 %v1159, %v7614
        %v7653 = vmul.f32 %v1160, %v7614
        %v7654 = vmul.f32 %v1161, %v7614
        %v7655 = vmul.f32 %v1162, %v7614
        %v7656 = vmul.f32 %v1163, %v7614
        %v7657 = vmul.f32 %v1164, %v7614
        %v7658 = vmul.f32 %v1165, %v7614
        %v7659 = vmul.f32 %v1166, %v7614
        %v7660 = vmul.f32 %v1167, %v7614
        %v7661 = vmul.f32 %v1168, %v7614
        %v7662 = vmul.f32 %v1169, %v7614
        %v7663 = vmul.f32 %v1170, %v7614
        %v7664 = vmul.f32 %v1171, %v7614
        %v7665 = vmul.f32 %v1172, %v7614
        %v7666 = vmul.f32 %v1173, %v7614
        %v7667 = vmul.f32 %v1174, %v7614
        %v7668 = vmul.f32 %v1175, %v7614
        %v7669 = vmul.f32 %v1176, %v7614
        %v7670 = vmul.f32 %v1177, %v7614
        %v7671 = vmul.f32 %v1178, %v7614
        %v7672 = vmul.f32 %v1179, %v7614
        %v7673 = vmul.f32 %v1180, %v7614
        %v7674 = vmul.f32 %v1181, %v7614
        %v7675 = vmul.f32 %v1182, %v7614
        %v7676 = vmul.f32 %v1183, %v7614
        %v7677 = vmul.f32 %v1184, %v7614
        %v7678 = vmul.f32 %v1185, %v7614
        %v7679 = vmul.f32 %v1186, %v7614
        %v7680 = vmul.f32 %v1187, %v7614
        %v7681 = vmul.f32 %v1188, %v7614
        %v7682 = vmul.f32 %v1189, %v7614
        %v7683 = vmul.f32 %v1190, %v7614
        %v7684 = vmul.f32 %v1191, %v7614
        %v7685 = vmul.f32 %v1192, %v7614
        %v7686 = vmul.f32 %v1193, %v7614
        %v7687 = vadd.f32 %v7539, %v7615
        %v7688 = vadd.f32 %v7540, %v7616
        %v7689 = vadd.f32 %v7541, %v7617
        %v7690 = vadd.f32 %v7542, %v7618
        %v7691 = vadd.f32 %v7543, %v7619
        %v7692 = vadd.f32 %v7544, %v7620
        %v7693 = vadd.f32 %v7545, %v7621
        %v7694 = vadd.f32 %v7546, %v7622
        %v7695 = vadd.f32 %v7547, %v7623
        %v7696 = vadd.f32 %v7548, %v7624
        %v7697 = vadd.f32 %v7549, %v7625
        %v7698 = vadd.f32 %v7550, %v7626
        %v7699 = vadd.f32 %v7551, %v7627
        %v7700 = vadd.f32 %v7552, %v7628
        %v7701 = vadd.f32 %v7553, %v7629
        %v7702 = vadd.f32 %v7554, %v7630
        %v7703 = vadd.f32 %v7555, %v7631
        %v7704 = vadd.f32 %v7556, %v7632
        %v7705 = vadd.f32 %v7557, %v7633
        %v7706 = vadd.f32 %v7558, %v7634
        %v7707 = vadd.f32 %v7559, %v7635
        %v7708 = vadd.f32 %v7560, %v7636
        %v7709 = vadd.f32 %v7561, %v7637
        %v7710 = vadd.f32 %v7562, %v7638
        %v7711 = vadd.f32 %v7563, %v7639
        %v7712 = vadd.f32 %v7564, %v7640
        %v7713 = vadd.f32 %v7565, %v7641
        %v7714 = vadd.f32 %v7566, %v7642
        %v7715 = vadd.f32 %v7567, %v7643
        %v7716 = vadd.f32 %v7568, %v7644
        %v7717 = vadd.f32 %v7569, %v7645
        %v7718 = vadd.f32 %v7570, %v7646
        %v7719 = vadd.f32 %v7571, %v7647
        %v7720 = vadd.f32 %v7572, %v7648
        %v7721 = vadd.f32 %v7573, %v7649
        %v7722 = vadd.f32 %v7574, %v7650
        %v7723 = vadd.f32 %v7575, %v7651
        %v7724 = vadd.f32 %v7576, %v7652
        %v7725 = vadd.f32 %v7577, %v7653
        %v7726 = vadd.f32 %v7578, %v7654
        %v7727 = vadd.f32 %v7579, %v7655
        %v7728 = vadd.f32 %v7580, %v7656
        %v7729 = vadd.f32 %v7581, %v7657
        %v7730 = vadd.f32 %v7582, %v7658
        %v7731 = vadd.f32 %v7583, %v7659
        %v7732 = vadd.f32 %v7584, %v7660
        %v7733 = vadd.f32 %v7585, %v7661
        %v7734 = vadd.f32 %v7586, %v7662
        %v7735 = vadd.f32 %v7587, %v7663
        %v7736 = vadd.f32 %v7588, %v7664
        %v7737 = vadd.f32 %v7589, %v7665
        %v7738 = vadd.f32 %v7590, %v7666
        %v7739 = vadd.f32 %v7591, %v7667
        %v7740 = vadd.f32 %v7592, %v7668
        %v7741 = vadd.f32 %v7593, %v7669
        %v7742 = vadd.f32 %v7594, %v7670
        %v7743 = vadd.f32 %v7595, %v7671
        %v7744 = vadd.f32 %v7596, %v7672
        %v7745 = vadd.f32 %v7597, %v7673
        %v7746 = vadd.f32 %v7598, %v7674
        %v7747 = vadd.f32 %v7599, %v7675
        %v7748 = vadd.f32 %v7600, %v7676
        %v7749 = vadd.f32 %v7601, %v7677
        %v7750 = vadd.f32 %v7602, %v7678
        %v7751 = vadd.f32 %v7603, %v7679
        %v7752 = vadd.f32 %v7604, %v7680
        %v7753 = vadd.f32 %v7605, %v7681
        %v7754 = vadd.f32 %v7606, %v7682
        %v7755 = vadd.f32 %v7607, %v7683
        %v7756 = vadd.f32 %v7608, %v7684
        %v7757 = vadd.f32 %v7609, %v7685
        %v7758 = vadd.f32 %v7610, %v7686
        %v7759 = vlaneseq
        %v7760 = vshrl.u32 %v7759, 7
        %v7761 = vsub.s32 3, %v7760
        %v7762 = vrot.slane %v556, %v7761
        %v7763 = vmul.f32 %v1367, %v7762
        %v7764 = vmul.f32 %v1368, %v7762
        %v7765 = vmul.f32 %v1369, %v7762
        %v7766 = vmul.f32 %v1370, %v7762
        %v7767 = vmul.f32 %v1371, %v7762
        %v7768 = vmul.f32 %v1372, %v7762
        %v7769 = vmul.f32 %v1373, %v7762
        %v7770 = vmul.f32 %v1374, %v7762
        %v7771 = vmul.f32 %v1375, %v7762
        %v7772 = vmul.f32 %v1376, %v7762
        %v7773 = vmul.f32 %v1377, %v7762
        %v7774 = vmul.f32 %v1378, %v7762
        %v7775 = vmul.f32 %v1379, %v7762
        %v7776 = vmul.f32 %v1380, %v7762
        %v7777 = vmul.f32 %v1381, %v7762
        %v7778 = vmul.f32 %v1382, %v7762
        %v7779 = vmul.f32 %v1383, %v7762
        %v7780 = vmul.f32 %v1384, %v7762
        %v7781 = vmul.f32 %v1385, %v7762
        %v7782 = vmul.f32 %v1386, %v7762
        %v7783 = vmul.f32 %v1387, %v7762
        %v7784 = vmul.f32 %v1388, %v7762
        %v7785 = vmul.f32 %v1389, %v7762
        %v7786 = vmul.f32 %v1390, %v7762
        %v7787 = vmul.f32 %v1391, %v7762
        %v7788 = vmul.f32 %v1392, %v7762
        %v7789 = vmul.f32 %v1393, %v7762
        %v7790 = vmul.f32 %v1394, %v7762
        %v7791 = vmul.f32 %v1395, %v7762
        %v7792 = vmul.f32 %v1396, %v7762
        %v7793 = vmul.f32 %v1397, %v7762
        %v7794 = vmul.f32 %v1398, %v7762
        %v7795 = vmul.f32 %v1399, %v7762
        %v7796 = vmul.f32 %v1400, %v7762
        %v7797 = vmul.f32 %v1401, %v7762
        %v7798 = vmul.f32 %v1402, %v7762
        %v7799 = vmul.f32 %v1403, %v7762
        %v7800 = vmul.f32 %v1404, %v7762
        %v7801 = vmul.f32 %v1405, %v7762
        %v7802 = vmul.f32 %v1406, %v7762
        %v7803 = vmul.f32 %v1407, %v7762
        %v7804 = vmul.f32 %v1408, %v7762
        %v7805 = vmul.f32 %v1409, %v7762
        %v7806 = vmul.f32 %v1410, %v7762
        %v7807 = vmul.f32 %v1411, %v7762
        %v7808 = vmul.f32 %v1412, %v7762
        %v7809 = vmul.f32 %v1413, %v7762
        %v7810 = vmul.f32 %v1414, %v7762
        %v7811 = vmul.f32 %v1415, %v7762
        %v7812 = vmul.f32 %v1416, %v7762
        %v7813 = vmul.f32 %v1417, %v7762
        %v7814 = vmul.f32 %v1418, %v7762
        %v7815 = vmul.f32 %v1419, %v7762
        %v7816 = vmul.f32 %v1420, %v7762
        %v7817 = vmul.f32 %v1421, %v7762
        %v7818 = vmul.f32 %v1422, %v7762
        %v7819 = vmul.f32 %v1423, %v7762
        %v7820 = vmul.f32 %v1424, %v7762
        %v7821 = vmul.f32 %v1425, %v7762
        %v7822 = vmul.f32 %v1426, %v7762
        %v7823 = vmul.f32 %v1427, %v7762
        %v7824 = vmul.f32 %v1428, %v7762
        %v7825 = vmul.f32 %v1429, %v7762
        %v7826 = vmul.f32 %v1430, %v7762
        %v7827 = vmul.f32 %v1431, %v7762
        %v7828 = vmul.f32 %v1432, %v7762
        %v7829 = vmul.f32 %v1433, %v7762
        %v7830 = vmul.f32 %v1434, %v7762
        %v7831 = vmul.f32 %v1435, %v7762
        %v7832 = vmul.f32 %v1436, %v7762
        %v7833 = vmul.f32 %v1437, %v7762
        %v7834 = vmul.f32 %v1438, %v7762
        %v7835 = vadd.f32 %v7687, %v7763
        %v7836 = vadd.f32 %v7688, %v7764
        %v7837 = vadd.f32 %v7689, %v7765
        %v7838 = vadd.f32 %v7690, %v7766
        %v7839 = vadd.f32 %v7691, %v7767
        %v7840 = vadd.f32 %v7692, %v7768
        %v7841 = vadd.f32 %v7693, %v7769
        %v7842 = vadd.f32 %v7694, %v7770
        %v7843 = vadd.f32 %v7695, %v7771
        %v7844 = vadd.f32 %v7696, %v7772
        %v7845 = vadd.f32 %v7697, %v7773
        %v7846 = vadd.f32 %v7698, %v7774
        %v7847 = vadd.f32 %v7699, %v7775
        %v7848 = vadd.f32 %v7700, %v7776
        %v7849 = vadd.f32 %v7701, %v7777
        %v7850 = vadd.f32 %v7702, %v7778
        %v7851 = vadd.f32 %v7703, %v7779
        %v7852 = vadd.f32 %v7704, %v7780
        %v7853 = vadd.f32 %v7705, %v7781
        %v7854 = vadd.f32 %v7706, %v7782
        %v7855 = vadd.f32 %v7707, %v7783
        %v7856 = vadd.f32 %v7708, %v7784
        %v7857 = vadd.f32 %v7709, %v7785
        %v7858 = vadd.f32 %v7710, %v7786
        %v7859 = vadd.f32 %v7711, %v7787
        %v7860 = vadd.f32 %v7712, %v7788
        %v7861 = vadd.f32 %v7713, %v7789
        %v7862 = vadd.f32 %v7714, %v7790
        %v7863 = vadd.f32 %v7715, %v7791
        %v7864 = vadd.f32 %v7716, %v7792
        %v7865 = vadd.f32 %v7717, %v7793
        %v7866 = vadd.f32 %v7718, %v7794
        %v7867 = vadd.f32 %v7719, %v7795
        %v7868 = vadd.f32 %v7720, %v7796
        %v7869 = vadd.f32 %v7721, %v7797
        %v7870 = vadd.f32 %v7722, %v7798
        %v7871 = vadd.f32 %v7723, %v7799
        %v7872 = vadd.f32 %v7724, %v7800
        %v7873 = vadd.f32 %v7725, %v7801
        %v7874 = vadd.f32 %v7726, %v7802
        %v7875 = vadd.f32 %v7727, %v7803
        %v7876 = vadd.f32 %v7728, %v7804
        %v7877 = vadd.f32 %v7729, %v7805
        %v7878 = vadd.f32 %v7730, %v7806
        %v7879 = vadd.f32 %v7731, %v7807
        %v7880 = vadd.f32 %v7732, %v7808
        %v7881 = vadd.f32 %v7733, %v7809
        %v7882 = vadd.f32 %v7734, %v7810
        %v7883 = vadd.f32 %v7735, %v7811
        %v7884 = vadd.f32 %v7736, %v7812
        %v7885 = vadd.f32 %v7737, %v7813
        %v7886 = vadd.f32 %v7738, %v7814
        %v7887 = vadd.f32 %v7739, %v7815
        %v7888 = vadd.f32 %v7740, %v7816
        %v7889 = vadd.f32 %v7741, %v7817
        %v7890 = vadd.f32 %v7742, %v7818
        %v7891 = vadd.f32 %v7743, %v7819
        %v7892 = vadd.f32 %v7744, %v7820
        %v7893 = vadd.f32 %v7745, %v7821
        %v7894 = vadd.f32 %v7746, %v7822
        %v7895 = vadd.f32 %v7747, %v7823
        %v7896 = vadd.f32 %v7748, %v7824
        %v7897 = vadd.f32 %v7749, %v7825
        %v7898 = vadd.f32 %v7750, %v7826
        %v7899 = vadd.f32 %v7751, %v7827
        %v7900 = vadd.f32 %v7752, %v7828
        %v7901 = vadd.f32 %v7753, %v7829
        %v7902 = vadd.f32 %v7754, %v7830
        %v7903 = vadd.f32 %v7755, %v7831
        %v7904 = vadd.f32 %v7756, %v7832
        %v7905 = vadd.f32 %v7757, %v7833
        %v7906 = vadd.f32 %v7758, %v7834
        %v7907 = vlaneseq
        %v7908 = vshrl.u32 %v7907, 7
        %v7909 = vsub.s32 2, %v7908
        %v7910 = vrot.slane %v557, %v7909
        %v7911 = vmul.f32 %v1612, %v7910
        %v7912 = vmul.f32 %v1613, %v7910
        %v7913 = vmul.f32 %v1614, %v7910
        %v7914 = vmul.f32 %v1615, %v7910
        %v7915 = vmul.f32 %v1616, %v7910
        %v7916 = vmul.f32 %v1617, %v7910
        %v7917 = vmul.f32 %v1618, %v7910
        %v7918 = vmul.f32 %v1619, %v7910
        %v7919 = vmul.f32 %v1620, %v7910
        %v7920 = vmul.f32 %v1621, %v7910
        %v7921 = vmul.f32 %v1622, %v7910
        %v7922 = vmul.f32 %v1623, %v7910
        %v7923 = vmul.f32 %v1624, %v7910
        %v7924 = vmul.f32 %v1625, %v7910
        %v7925 = vmul.f32 %v1626, %v7910
        %v7926 = vmul.f32 %v1627, %v7910
        %v7927 = vmul.f32 %v1628, %v7910
        %v7928 = vmul.f32 %v1629, %v7910
        %v7929 = vmul.f32 %v1630, %v7910
        %v7930 = vmul.f32 %v1631, %v7910
        %v7931 = vmul.f32 %v1632, %v7910
        %v7932 = vmul.f32 %v1633, %v7910
        %v7933 = vmul.f32 %v1634, %v7910
        %v7934 = vmul.f32 %v1635, %v7910
        %v7935 = vmul.f32 %v1636, %v7910
        %v7936 = vmul.f32 %v1637, %v7910
        %v7937 = vmul.f32 %v1638, %v7910
        %v7938 = vmul.f32 %v1639, %v7910
        %v7939 = vmul.f32 %v1640, %v7910
        %v7940 = vmul.f32 %v1641, %v7910
        %v7941 = vmul.f32 %v1642, %v7910
        %v7942 = vmul.f32 %v1643, %v7910
        %v7943 = vmul.f32 %v1644, %v7910
        %v7944 = vmul.f32 %v1645, %v7910
        %v7945 = vmul.f32 %v1646, %v7910
        %v7946 = vmul.f32 %v1647, %v7910
        %v7947 = vmul.f32 %v1648, %v7910
        %v7948 = vmul.f32 %v1649, %v7910
        %v7949 = vmul.f32 %v1650, %v7910
        %v7950 = vmul.f32 %v1651, %v7910
        %v7951 = vmul.f32 %v1652, %v7910
        %v7952 = vmul.f32 %v1653, %v7910
        %v7953 = vmul.f32 %v1654, %v7910
        %v7954 = vmul.f32 %v1655, %v7910
        %v7955 = vmul.f32 %v1656, %v7910
        %v7956 = vmul.f32 %v1657, %v7910
        %v7957 = vmul.f32 %v1658, %v7910
        %v7958 = vmul.f32 %v1659, %v7910
        %v7959 = vmul.f32 %v1660, %v7910
        %v7960 = vmul.f32 %v1661, %v7910
        %v7961 = vmul.f32 %v1662, %v7910
        %v7962 = vmul.f32 %v1663, %v7910
        %v7963 = vmul.f32 %v1664, %v7910
        %v7964 = vmul.f32 %v1665, %v7910
        %v7965 = vmul.f32 %v1666, %v7910
        %v7966 = vmul.f32 %v1667, %v7910
        %v7967 = vmul.f32 %v1668, %v7910
        %v7968 = vmul.f32 %v1669, %v7910
        %v7969 = vmul.f32 %v1670, %v7910
        %v7970 = vmul.f32 %v1671, %v7910
        %v7971 = vmul.f32 %v1672, %v7910
        %v7972 = vmul.f32 %v1673, %v7910
        %v7973 = vmul.f32 %v1674, %v7910
        %v7974 = vmul.f32 %v1675, %v7910
        %v7975 = vmul.f32 %v1676, %v7910
        %v7976 = vmul.f32 %v1677, %v7910
        %v7977 = vmul.f32 %v1678, %v7910
        %v7978 = vmul.f32 %v1679, %v7910
        %v7979 = vmul.f32 %v1680, %v7910
        %v7980 = vmul.f32 %v1681, %v7910
        %v7981 = vmul.f32 %v1682, %v7910
        %v7982 = vmul.f32 %v1683, %v7910
        %v7983 = vadd.f32 %v7835, %v7911
        %v7984 = vadd.f32 %v7836, %v7912
        %v7985 = vadd.f32 %v7837, %v7913
        %v7986 = vadd.f32 %v7838, %v7914
        %v7987 = vadd.f32 %v7839, %v7915
        %v7988 = vadd.f32 %v7840, %v7916
        %v7989 = vadd.f32 %v7841, %v7917
        %v7990 = vadd.f32 %v7842, %v7918
        %v7991 = vadd.f32 %v7843, %v7919
        %v7992 = vadd.f32 %v7844, %v7920
        %v7993 = vadd.f32 %v7845, %v7921
        %v7994 = vadd.f32 %v7846, %v7922
        %v7995 = vadd.f32 %v7847, %v7923
        %v7996 = vadd.f32 %v7848, %v7924
        %v7997 = vadd.f32 %v7849, %v7925
        %v7998 = vadd.f32 %v7850, %v7926
        %v7999 = vadd.f32 %v7851, %v7927
        %v8000 = vadd.f32 %v7852, %v7928
        %v8001 = vadd.f32 %v7853, %v7929
        %v8002 = vadd.f32 %v7854, %v7930
        %v8003 = vadd.f32 %v7855, %v7931
        %v8004 = vadd.f32 %v7856, %v7932
        %v8005 = vadd.f32 %v7857, %v7933
        %v8006 = vadd.f32 %v7858, %v7934
        %v8007 = vadd.f32 %v7859, %v7935
        %v8008 = vadd.f32 %v7860, %v7936
        %v8009 = vadd.f32 %v7861, %v7937
        %v8010 = vadd.f32 %v7862, %v7938
        %v8011 = vadd.f32 %v7863, %v7939
        %v8012 = vadd.f32 %v7864, %v7940
        %v8013 = vadd.f32 %v7865, %v7941
        %v8014 = vadd.f32 %v7866, %v7942
        %v8015 = vadd.f32 %v7867, %v7943
        %v8016 = vadd.f32 %v7868, %v7944
        %v8017 = vadd.f32 %v7869, %v7945
        %v8018 = vadd.f32 %v7870, %v7946
        %v8019 = vadd.f32 %v7871, %v7947
        %v8020 = vadd.f32 %v7872, %v7948
        %v8021 = vadd.f32 %v7873, %v7949
        %v8022 = vadd.f32 %v7874, %v7950
        %v8023 = vadd.f32 %v7875, %v7951
        %v8024 = vadd.f32 %v7876, %v7952
        %v8025 = vadd.f32 %v7877, %v7953
        %v8026 = vadd.f32 %v7878, %v7954
        %v8027 = vadd.f32 %v7879, %v7955
        %v8028 = vadd.f32 %v7880, %v7956
        %v8029 = vadd.f32 %v7881, %v7957
        %v8030 = vadd.f32 %v7882, %v7958
        %v8031 = vadd.f32 %v7883, %v7959
        %v8032 = vadd.f32 %v7884, %v7960
        %v8033 = vadd.f32 %v7885, %v7961
        %v8034 = vadd.f32 %v7886, %v7962
        %v8035 = vadd.f32 %v7887, %v7963
        %v8036 = vadd.f32 %v7888, %v7964
        %v8037 = vadd.f32 %v7889, %v7965
        %v8038 = vadd.f32 %v7890, %v7966
        %v8039 = vadd.f32 %v7891, %v7967
        %v8040 = vadd.f32 %v7892, %v7968
        %v8041 = vadd.f32 %v7893, %v7969
        %v8042 = vadd.f32 %v7894, %v7970
        %v8043 = vadd.f32 %v7895, %v7971
        %v8044 = vadd.f32 %v7896, %v7972
        %v8045 = vadd.f32 %v7897, %v7973
        %v8046 = vadd.f32 %v7898, %v7974
        %v8047 = vadd.f32 %v7899, %v7975
        %v8048 = vadd.f32 %v7900, %v7976
        %v8049 = vadd.f32 %v7901, %v7977
        %v8050 = vadd.f32 %v7902, %v7978
        %v8051 = vadd.f32 %v7903, %v7979
        %v8052 = vadd.f32 %v7904, %v7980
        %v8053 = vadd.f32 %v7905, %v7981
        %v8054 = vadd.f32 %v7906, %v7982
        %v8055 = vlaneseq
        %v8056 = vshrl.u32 %v8055, 7
        %v8057 = vsub.s32 1, %v8056
        %v8058 = vrot.slane %v558, %v8057
        %v8059 = vmul.f32 %v1857, %v8058
        %v8060 = vmul.f32 %v1858, %v8058
        %v8061 = vmul.f32 %v1859, %v8058
        %v8062 = vmul.f32 %v1860, %v8058
        %v8063 = vmul.f32 %v1861, %v8058
        %v8064 = vmul.f32 %v1862, %v8058
        %v8065 = vmul.f32 %v1863, %v8058
        %v8066 = vmul.f32 %v1864, %v8058
        %v8067 = vmul.f32 %v1865, %v8058
        %v8068 = vmul.f32 %v1866, %v8058
        %v8069 = vmul.f32 %v1867, %v8058
        %v8070 = vmul.f32 %v1868, %v8058
        %v8071 = vmul.f32 %v1869, %v8058
        %v8072 = vmul.f32 %v1870, %v8058
        %v8073 = vmul.f32 %v1871, %v8058
        %v8074 = vmul.f32 %v1872, %v8058
        %v8075 = vmul.f32 %v1873, %v8058
        %v8076 = vmul.f32 %v1874, %v8058
        %v8077 = vmul.f32 %v1875, %v8058
        %v8078 = vmul.f32 %v1876, %v8058
        %v8079 = vmul.f32 %v1877, %v8058
        %v8080 = vmul.f32 %v1878, %v8058
        %v8081 = vmul.f32 %v1879, %v8058
        %v8082 = vmul.f32 %v1880, %v8058
        %v8083 = vmul.f32 %v1881, %v8058
        %v8084 = vmul.f32 %v1882, %v8058
        %v8085 = vmul.f32 %v1883, %v8058
        %v8086 = vmul.f32 %v1884, %v8058
        %v8087 = vmul.f32 %v1885, %v8058
        %v8088 = vmul.f32 %v1886, %v8058
        %v8089 = vmul.f32 %v1887, %v8058
        %v8090 = vmul.f32 %v1888, %v8058
        %v8091 = vmul.f32 %v1889, %v8058
        %v8092 = vmul.f32 %v1890, %v8058
        %v8093 = vmul.f32 %v1891, %v8058
        %v8094 = vmul.f32 %v1892, %v8058
        %v8095 = vmul.f32 %v1893, %v8058
        %v8096 = vmul.f32 %v1894, %v8058
        %v8097 = vmul.f32 %v1895, %v8058
        %v8098 = vmul.f32 %v1896, %v8058
        %v8099 = vmul.f32 %v1897, %v8058
        %v8100 = vmul.f32 %v1898, %v8058
        %v8101 = vmul.f32 %v1899, %v8058
        %v8102 = vmul.f32 %v1900, %v8058
        %v8103 = vmul.f32 %v1901, %v8058
        %v8104 = vmul.f32 %v1902, %v8058
        %v8105 = vmul.f32 %v1903, %v8058
        %v8106 = vmul.f32 %v1904, %v8058
        %v8107 = vmul.f32 %v1905, %v8058
        %v8108 = vmul.f32 %v1906, %v8058
        %v8109 = vmul.f32 %v1907, %v8058
        %v8110 = vmul.f32 %v1908, %v8058
        %v8111 = vmul.f32 %v1909, %v8058
        %v8112 = vmul.f32 %v1910, %v8058
        %v8113 = vmul.f32 %v1911, %v8058
        %v8114 = vmul.f32 %v1912, %v8058
        %v8115 = vmul.f32 %v1913, %v8058
        %v8116 = vmul.f32 %v1914, %v8058
        %v8117 = vmul.f32 %v1915, %v8058
        %v8118 = vmul.f32 %v1916, %v8058
        %v8119 = vmul.f32 %v1917, %v8058
        %v8120 = vmul.f32 %v1918, %v8058
        %v8121 = vmul.f32 %v1919, %v8058
        %v8122 = vmul.f32 %v1920, %v8058
        %v8123 = vmul.f32 %v1921, %v8058
        %v8124 = vmul.f32 %v1922, %v8058
        %v8125 = vmul.f32 %v1923, %v8058
        %v8126 = vmul.f32 %v1924, %v8058
        %v8127 = vmul.f32 %v1925, %v8058
        %v8128 = vmul.f32 %v1926, %v8058
        %v8129 = vmul.f32 %v1927, %v8058
        %v8130 = vmul.f32 %v1928, %v8058
        %v8131 = vadd.f32 %v7983, %v8059
        %v8132 = vadd.f32 %v7984, %v8060
        %v8133 = vadd.f32 %v7985, %v8061
        %v8134 = vadd.f32 %v7986, %v8062
        %v8135 = vadd.f32 %v7987, %v8063
        %v8136 = vadd.f32 %v7988, %v8064
        %v8137 = vadd.f32 %v7989, %v8065
        %v8138 = vadd.f32 %v7990, %v8066
        %v8139 = vadd.f32 %v7991, %v8067
        %v8140 = vadd.f32 %v7992, %v8068
        %v8141 = vadd.f32 %v7993, %v8069
        %v8142 = vadd.f32 %v7994, %v8070
        %v8143 = vadd.f32 %v7995, %v8071
        %v8144 = vadd.f32 %v7996, %v8072
        %v8145 = vadd.f32 %v7997, %v8073
        %v8146 = vadd.f32 %v7998, %v8074
        %v8147 = vadd.f32 %v7999, %v8075
        %v8148 = vadd.f32 %v8000, %v8076
        %v8149 = vadd.f32 %v8001, %v8077
        %v8150 = vadd.f32 %v8002, %v8078
        %v8151 = vadd.f32 %v8003, %v8079
        %v8152 = vadd.f32 %v8004, %v8080
        %v8153 = vadd.f32 %v8005, %v8081
        %v8154 = vadd.f32 %v8006, %v8082
        %v8155 = vadd.f32 %v8007, %v8083
        %v8156 = vadd.f32 %v8008, %v8084
        %v8157 = vadd.f32 %v8009, %v8085
        %v8158 = vadd.f32 %v8010, %v8086
        %v8159 = vadd.f32 %v8011, %v8087
        %v8160 = vadd.f32 %v8012, %v8088
        %v8161 = vadd.f32 %v8013, %v8089
        %v8162 = vadd.f32 %v8014, %v8090
        %v8163 = vadd.f32 %v8015, %v8091
        %v8164 = vadd.f32 %v8016, %v8092
        %v8165 = vadd.f32 %v8017, %v8093
        %v8166 = vadd.f32 %v8018, %v8094
        %v8167 = vadd.f32 %v8019, %v8095
        %v8168 = vadd.f32 %v8020, %v8096
        %v8169 = vadd.f32 %v8021, %v8097
        %v8170 = vadd.f32 %v8022, %v8098
        %v8171 = vadd.f32 %v8023, %v8099
        %v8172 = vadd.f32 %v8024, %v8100
        %v8173 = vadd.f32 %v8025, %v8101
        %v8174 = vadd.f32 %v8026, %v8102
        %v8175 = vadd.f32 %v8027, %v8103
        %v8176 = vadd.f32 %v8028, %v8104
        %v8177 = vadd.f32 %v8029, %v8105
        %v8178 = vadd.f32 %v8030, %v8106
        %v8179 = vadd.f32 %v8031, %v8107
        %v8180 = vadd.f32 %v8032, %v8108
        %v8181 = vadd.f32 %v8033, %v8109
        %v8182 = vadd.f32 %v8034, %v8110
        %v8183 = vadd.f32 %v8035, %v8111
        %v8184 = vadd.f32 %v8036, %v8112
        %v8185 = vadd.f32 %v8037, %v8113
        %v8186 = vadd.f32 %v8038, %v8114
        %v8187 = vadd.f32 %v8039, %v8115
        %v8188 = vadd.f32 %v8040, %v8116
        %v8189 = vadd.f32 %v8041, %v8117
        %v8190 = vadd.f32 %v8042, %v8118
        %v8191 = vadd.f32 %v8043, %v8119
        %v8192 = vadd.f32 %v8044, %v8120
        %v8193 = vadd.f32 %v8045, %v8121
        %v8194 = vadd.f32 %v8046, %v8122
        %v8195 = vadd.f32 %v8047, %v8123
        %v8196 = vadd.f32 %v8048, %v8124
        %v8197 = vadd.f32 %v8049, %v8125
        %v8198 = vadd.f32 %v8050, %v8126
        %v8199 = vadd.f32 %v8051, %v8127
        %v8200 = vadd.f32 %v8052, %v8128
        %v8201 = vadd.f32 %v8053, %v8129
        %v8202 = vadd.f32 %v8054, %v8130
        %v8203 = vlaneseq
        %v8204 = vshrl.u32 %v8203, 7
        %v8205 = vsub.s32 0, %v8204
        %v8206 = vrot.slane %v559, %v8205
        %v8207 = vmul.f32 %v2102, %v8206
        %v8208 = vmul.f32 %v2103, %v8206
        %v8209 = vmul.f32 %v2104, %v8206
        %v8210 = vmul.f32 %v2105, %v8206
        %v8211 = vmul.f32 %v2106, %v8206
        %v8212 = vmul.f32 %v2107, %v8206
        %v8213 = vmul.f32 %v2108, %v8206
        %v8214 = vmul.f32 %v2109, %v8206
        %v8215 = vmul.f32 %v2110, %v8206
        %v8216 = vmul.f32 %v2111, %v8206
        %v8217 = vmul.f32 %v2112, %v8206
        %v8218 = vmul.f32 %v2113, %v8206
        %v8219 = vmul.f32 %v2114, %v8206
        %v8220 = vmul.f32 %v2115, %v8206
        %v8221 = vmul.f32 %v2116, %v8206
        %v8222 = vmul.f32 %v2117, %v8206
        %v8223 = vmul.f32 %v2118, %v8206
        %v8224 = vmul.f32 %v2119, %v8206
        %v8225 = vmul.f32 %v2120, %v8206
        %v8226 = vmul.f32 %v2121, %v8206
        %v8227 = vmul.f32 %v2122, %v8206
        %v8228 = vmul.f32 %v2123, %v8206
        %v8229 = vmul.f32 %v2124, %v8206
        %v8230 = vmul.f32 %v2125, %v8206
        %v8231 = vmul.f32 %v2126, %v8206
        %v8232 = vmul.f32 %v2127, %v8206
        %v8233 = vmul.f32 %v2128, %v8206
        %v8234 = vmul.f32 %v2129, %v8206
        %v8235 = vmul.f32 %v2130, %v8206
        %v8236 = vmul.f32 %v2131, %v8206
        %v8237 = vmul.f32 %v2132, %v8206
        %v8238 = vmul.f32 %v2133, %v8206
        %v8239 = vmul.f32 %v2134, %v8206
        %v8240 = vmul.f32 %v2135, %v8206
        %v8241 = vmul.f32 %v2136, %v8206
        %v8242 = vmul.f32 %v2137, %v8206
        %v8243 = vmul.f32 %v2138, %v8206
        %v8244 = vmul.f32 %v2139, %v8206
        %v8245 = vmul.f32 %v2140, %v8206
        %v8246 = vmul.f32 %v2141, %v8206
        %v8247 = vmul.f32 %v2142, %v8206
        %v8248 = vmul.f32 %v2143, %v8206
        %v8249 = vmul.f32 %v2144, %v8206
        %v8250 = vmul.f32 %v2145, %v8206
        %v8251 = vmul.f32 %v2146, %v8206
        %v8252 = vmul.f32 %v2147, %v8206
        %v8253 = vmul.f32 %v2148, %v8206
        %v8254 = vmul.f32 %v2149, %v8206
        %v8255 = vmul.f32 %v2150, %v8206
        %v8256 = vmul.f32 %v2151, %v8206
        %v8257 = vmul.f32 %v2152, %v8206
        %v8258 = vmul.f32 %v2153, %v8206
        %v8259 = vmul.f32 %v2154, %v8206
        %v8260 = vmul.f32 %v2155, %v8206
        %v8261 = vmul.f32 %v2156, %v8206
        %v8262 = vmul.f32 %v2157, %v8206
        %v8263 = vmul.f32 %v2158, %v8206
        %v8264 = vmul.f32 %v2159, %v8206
        %v8265 = vmul.f32 %v2160, %v8206
        %v8266 = vmul.f32 %v2161, %v8206
        %v8267 = vmul.f32 %v2162, %v8206
        %v8268 = vmul.f32 %v2163, %v8206
        %v8269 = vmul.f32 %v2164, %v8206
        %v8270 = vmul.f32 %v2165, %v8206
        %v8271 = vmul.f32 %v2166, %v8206
        %v8272 = vmul.f32 %v2167, %v8206
        %v8273 = vmul.f32 %v2168, %v8206
        %v8274 = vmul.f32 %v2169, %v8206
        %v8275 = vmul.f32 %v2170, %v8206
        %v8276 = vmul.f32 %v2171, %v8206
        %v8277 = vmul.f32 %v2172, %v8206
        %v8278 = vmul.f32 %v2173, %v8206
        %v8279 = vadd.f32 %v8131, %v8207
        %v8280 = vadd.f32 %v8132, %v8208
        %v8281 = vadd.f32 %v8133, %v8209
        %v8282 = vadd.f32 %v8134, %v8210
        %v8283 = vadd.f32 %v8135, %v8211
        %v8284 = vadd.f32 %v8136, %v8212
        %v8285 = vadd.f32 %v8137, %v8213
        %v8286 = vadd.f32 %v8138, %v8214
        %v8287 = vadd.f32 %v8139, %v8215
        %v8288 = vadd.f32 %v8140, %v8216
        %v8289 = vadd.f32 %v8141, %v8217
        %v8290 = vadd.f32 %v8142, %v8218
        %v8291 = vadd.f32 %v8143, %v8219
        %v8292 = vadd.f32 %v8144, %v8220
        %v8293 = vadd.f32 %v8145, %v8221
        %v8294 = vadd.f32 %v8146, %v8222
        %v8295 = vadd.f32 %v8147, %v8223
        %v8296 = vadd.f32 %v8148, %v8224
        %v8297 = vadd.f32 %v8149, %v8225
        %v8298 = vadd.f32 %v8150, %v8226
        %v8299 = vadd.f32 %v8151, %v8227
        %v8300 = vadd.f32 %v8152, %v8228
        %v8301 = vadd.f32 %v8153, %v8229
        %v8302 = vadd.f32 %v8154, %v8230
        %v8303 = vadd.f32 %v8155, %v8231
        %v8304 = vadd.f32 %v8156, %v8232
        %v8305 = vadd.f32 %v8157, %v8233
        %v8306 = vadd.f32 %v8158, %v8234
        %v8307 = vadd.f32 %v8159, %v8235
        %v8308 = vadd.f32 %v8160, %v8236
        %v8309 = vadd.f32 %v8161, %v8237
        %v8310 = vadd.f32 %v8162, %v8238
        %v8311 = vadd.f32 %v8163, %v8239
        %v8312 = vadd.f32 %v8164, %v8240
        %v8313 = vadd.f32 %v8165, %v8241
        %v8314 = vadd.f32 %v8166, %v8242
        %v8315 = vadd.f32 %v8167, %v8243
        %v8316 = vadd.f32 %v8168, %v8244
        %v8317 = vadd.f32 %v8169, %v8245
        %v8318 = vadd.f32 %v8170, %v8246
        %v8319 = vadd.f32 %v8171, %v8247
        %v8320 = vadd.f32 %v8172, %v8248
        %v8321 = vadd.f32 %v8173, %v8249
        %v8322 = vadd.f32 %v8174, %v8250
        %v8323 = vadd.f32 %v8175, %v8251
        %v8324 = vadd.f32 %v8176, %v8252
        %v8325 = vadd.f32 %v8177, %v8253
        %v8326 = vadd.f32 %v8178, %v8254
        %v8327 = vadd.f32 %v8179, %v8255
        %v8328 = vadd.f32 %v8180, %v8256
        %v8329 = vadd.f32 %v8181, %v8257
        %v8330 = vadd.f32 %v8182, %v8258
        %v8331 = vadd.f32 %v8183, %v8259
        %v8332 = vadd.f32 %v8184, %v8260
        %v8333 = vadd.f32 %v8185, %v8261
        %v8334 = vadd.f32 %v8186, %v8262
        %v8335 = vadd.f32 %v8187, %v8263
        %v8336 = vadd.f32 %v8188, %v8264
        %v8337 = vadd.f32 %v8189, %v8265
        %v8338 = vadd.f32 %v8190, %v8266
        %v8339 = vadd.f32 %v8191, %v8267
        %v8340 = vadd.f32 %v8192, %v8268
        %v8341 = vadd.f32 %v8193, %v8269
        %v8342 = vadd.f32 %v8194, %v8270
        %v8343 = vadd.f32 %v8195, %v8271
        %v8344 = vadd.f32 %v8196, %v8272
        %v8345 = vadd.f32 %v8197, %v8273
        %v8346 = vadd.f32 %v8198, %v8274
        %v8347 = vadd.f32 %v8199, %v8275
        %v8348 = vadd.f32 %v8200, %v8276
        %v8349 = vadd.f32 %v8201, %v8277
        %v8350 = vadd.f32 %v8202, %v8278
        %vm8423 = vcmask 1041408
        %v8424 = vrot.slane %v8279, 6
        %v8425 = vrot.slane %v8280, 6
        %v8426 = vsel %vm8423, %v8424, %v8425
        %v8427 = vrot.slane %v8281, 6
        %v8428 = vsel %vm8423, %v8425, %v8427
        %v8429 = vrot.slane %v8282, 6
        %v8430 = vrot.slane %v8283, 6
        %v8431 = vsel %vm8423, %v8429, %v8430
        %v8432 = vrot.slane %v8284, 6
        %v8433 = vsel %vm8423, %v8430, %v8432
        %v8434 = vrot.slane %v8285, 6
        %v8435 = vrot.slane %v8286, 6
        %v8436 = vsel %vm8423, %v8434, %v8435
        %v8437 = vrot.slane %v8287, 6
        %v8438 = vsel %vm8423, %v8435, %v8437
        %v8439 = vrot.slane %v8288, 6
        %v8440 = vrot.slane %v8289, 6
        %v8441 = vsel %vm8423, %v8439, %v8440
        %v8442 = vrot.slane %v8290, 6
        %v8443 = vsel %vm8423, %v8440, %v8442
        %v8444 = vrot.slane %v8291, 6
        %v8445 = vrot.slane %v8292, 6
        %v8446 = vsel %vm8423, %v8444, %v8445
        %v8447 = vrot.slane %v8293, 6
        %v8448 = vsel %vm8423, %v8445, %v8447
        %v8449 = vrot.slane %v8294, 6
        %v8450 = vrot.slane %v8295, 6
        %v8451 = vsel %vm8423, %v8449, %v8450
        %v8452 = vrot.slane %v8296, 6
        %v8453 = vsel %vm8423, %v8450, %v8452
        %v8454 = vrot.slane %v8297, 6
        %v8455 = vrot.slane %v8298, 6
        %v8456 = vsel %vm8423, %v8454, %v8455
        %v8457 = vrot.slane %v8299, 6
        %v8458 = vsel %vm8423, %v8455, %v8457
        %v8459 = vrot.slane %v8300, 6
        %v8460 = vrot.slane %v8301, 6
        %v8461 = vsel %vm8423, %v8459, %v8460
        %v8462 = vrot.slane %v8302, 6
        %v8463 = vsel %vm8423, %v8460, %v8462
        %v8464 = vrot.slane %v8303, 6
        %v8465 = vrot.slane %v8304, 6
        %v8466 = vsel %vm8423, %v8464, %v8465
        %v8467 = vrot.slane %v8305, 6
        %v8468 = vsel %vm8423, %v8465, %v8467
        %v8469 = vrot.slane %v8306, 6
        %v8470 = vrot.slane %v8307, 6
        %v8471 = vsel %vm8423, %v8469, %v8470
        %v8472 = vrot.slane %v8308, 6
        %v8473 = vsel %vm8423, %v8470, %v8472
        %v8474 = vrot.slane %v8309, 6
        %v8475 = vrot.slane %v8310, 6
        %v8476 = vsel %vm8423, %v8474, %v8475
        %v8477 = vrot.slane %v8311, 6
        %v8478 = vsel %vm8423, %v8475, %v8477
        %v8479 = vrot.slane %v8312, 6
        %v8480 = vrot.slane %v8313, 6
        %v8481 = vsel %vm8423, %v8479, %v8480
        %v8482 = vrot.slane %v8314, 6
        %v8483 = vsel %vm8423, %v8480, %v8482
        %v8484 = vrot.slane %v8315, 6
        %v8485 = vrot.slane %v8316, 6
        %v8486 = vsel %vm8423, %v8484, %v8485
        %v8487 = vrot.slane %v8317, 6
        %v8488 = vsel %vm8423, %v8485, %v8487
        %v8489 = vrot.slane %v8318, 6
        %v8490 = vrot.slane %v8319, 6
        %v8491 = vsel %vm8423, %v8489, %v8490
        %v8492 = vrot.slane %v8320, 6
        %v8493 = vsel %vm8423, %v8490, %v8492
        %v8494 = vrot.slane %v8321, 6
        %v8495 = vrot.slane %v8322, 6
        %v8496 = vsel %vm8423, %v8494, %v8495
        %v8497 = vrot.slane %v8323, 6
        %v8498 = vsel %vm8423, %v8495, %v8497
        %v8499 = vrot.slane %v8324, 6
        %v8500 = vrot.slane %v8325, 6
        %v8501 = vsel %vm8423, %v8499, %v8500
        %v8502 = vrot.slane %v8326, 6
        %v8503 = vsel %vm8423, %v8500, %v8502
        %v8504 = vrot.slane %v8327, 6
        %v8505 = vrot.slane %v8328, 6
        %v8506 = vsel %vm8423, %v8504, %v8505
        %v8507 = vrot.slane %v8329, 6
        %v8508 = vsel %vm8423, %v8505, %v8507
        %v8509 = vrot.slane %v8330, 6
        %v8510 = vrot.slane %v8331, 6
        %v8511 = vsel %vm8423, %v8509, %v8510
        %v8512 = vrot.slane %v8332, 6
        %v8513 = vsel %vm8423, %v8510, %v8512
        %v8514 = vrot.slane %v8333, 6
        %v8515 = vrot.slane %v8334, 6
        %v8516 = vsel %vm8423, %v8514, %v8515
        %v8517 = vrot.slane %v8335, 6
        %v8518 = vsel %vm8423, %v8515, %v8517
        %v8519 = vrot.slane %v8336, 6
        %v8520 = vrot.slane %v8337, 6
        %v8521 = vsel %vm8423, %v8519, %v8520
        %v8522 = vrot.slane %v8338, 6
        %v8523 = vsel %vm8423, %v8520, %v8522
        %v8524 = vrot.slane %v8339, 6
        %v8525 = vrot.slane %v8340, 6
        %v8526 = vsel %vm8423, %v8524, %v8525
        %v8527 = vrot.slane %v8341, 6
        %v8528 = vsel %vm8423, %v8525, %v8527
        %v8529 = vrot.slane %v8342, 6
        %v8530 = vrot.slane %v8343, 6
        %v8531 = vsel %vm8423, %v8529, %v8530
        %v8532 = vrot.slane %v8344, 6
        %v8533 = vsel %vm8423, %v8530, %v8532
        %v8534 = vrot.slane %v8345, 6
        %v8535 = vrot.slane %v8346, 6
        %v8536 = vsel %vm8423, %v8534, %v8535
        %v8537 = vrot.slane %v8347, 6
        %v8538 = vsel %vm8423, %v8535, %v8537
        %v8539 = vrot.slane %v8348, 6
        %v8540 = vrot.slane %v8349, 6
        %v8541 = vsel %vm8423, %v8539, %v8540
        %v8542 = vrot.slane %v8350, 6
        %v8543 = vsel %vm8423, %v8540, %v8542
        %v8592 = vadd.f32 %v7267, %v8426
        %v8593 = vadd.f32 %v7268, %v8428
        %v8594 = vadd.f32 %v7269, %v8431
        %v8595 = vadd.f32 %v7270, %v8433
        %v8596 = vadd.f32 %v7271, %v8436
        %v8597 = vadd.f32 %v7272, %v8438
        %v8598 = vadd.f32 %v7273, %v8441
        %v8599 = vadd.f32 %v7274, %v8443
        %v8600 = vadd.f32 %v7275, %v8446
        %v8601 = vadd.f32 %v7276, %v8448
        %v8602 = vadd.f32 %v7277, %v8451
        %v8603 = vadd.f32 %v7278, %v8453
        %v8604 = vadd.f32 %v7279, %v8456
        %v8605 = vadd.f32 %v7280, %v8458
        %v8606 = vadd.f32 %v7281, %v8461
        %v8607 = vadd.f32 %v7282, %v8463
        %v8608 = vadd.f32 %v7283, %v8466
        %v8609 = vadd.f32 %v7284, %v8468
        %v8610 = vadd.f32 %v7285, %v8471
        %v8611 = vadd.f32 %v7286, %v8473
        %v8612 = vadd.f32 %v7287, %v8476
        %v8613 = vadd.f32 %v7288, %v8478
        %v8614 = vadd.f32 %v7289, %v8481
        %v8615 = vadd.f32 %v7290, %v8483
        %v8616 = vadd.f32 %v7291, %v8486
        %v8617 = vadd.f32 %v7292, %v8488
        %v8618 = vadd.f32 %v7293, %v8491
        %v8619 = vadd.f32 %v7294, %v8493
        %v8620 = vadd.f32 %v7295, %v8496
        %v8621 = vadd.f32 %v7296, %v8498
        %v8622 = vadd.f32 %v7297, %v8501
        %v8623 = vadd.f32 %v7298, %v8503
        %v8624 = vadd.f32 %v7299, %v8506
        %v8625 = vadd.f32 %v7300, %v8508
        %v8626 = vadd.f32 %v7301, %v8511
        %v8627 = vadd.f32 %v7302, %v8513
        %v8628 = vadd.f32 %v7303, %v8516
        %v8629 = vadd.f32 %v7304, %v8518
        %v8630 = vadd.f32 %v7305, %v8521
        %v8631 = vadd.f32 %v7306, %v8523
        %v8632 = vadd.f32 %v7307, %v8526
        %v8633 = vadd.f32 %v7308, %v8528
        %v8634 = vadd.f32 %v7309, %v8531
        %v8635 = vadd.f32 %v7310, %v8533
        %v8636 = vadd.f32 %v7311, %v8536
        %v8637 = vadd.f32 %v7312, %v8538
        %v8638 = vadd.f32 %v7313, %v8541
        %v8639 = vadd.f32 %v7314, %v8543
        %v8640 = vld [vmem:[%s357] sm:$0x1]
        %v8642 = vlaneseq
        %v8643 = vshrl.u32 %v8642, 7
        %v8644 = vsub.s32 0, %v8643
        %v8645 = vrot.slane %v8640, %v8644
        %v8647 = vadd.f32 %v8592, %v8645
        %v8648 = vadd.f32 %v8593, %v8645
        %v8649 = vadd.f32 %v8594, %v8645
        %v8650 = vadd.f32 %v8595, %v8645
        %v8651 = vadd.f32 %v8596, %v8645
        %v8652 = vadd.f32 %v8597, %v8645
        %v8653 = vadd.f32 %v8598, %v8645
        %v8654 = vadd.f32 %v8599, %v8645
        %v8655 = vadd.f32 %v8600, %v8645
        %v8656 = vadd.f32 %v8601, %v8645
        %v8657 = vadd.f32 %v8602, %v8645
        %v8658 = vadd.f32 %v8603, %v8645
        %v8659 = vadd.f32 %v8604, %v8645
        %v8660 = vadd.f32 %v8605, %v8645
        %v8661 = vadd.f32 %v8606, %v8645
        %v8662 = vadd.f32 %v8607, %v8645
        %v8663 = vadd.f32 %v8608, %v8645
        %v8664 = vadd.f32 %v8609, %v8645
        %v8665 = vadd.f32 %v8610, %v8645
        %v8666 = vadd.f32 %v8611, %v8645
        %v8667 = vadd.f32 %v8612, %v8645
        %v8668 = vadd.f32 %v8613, %v8645
        %v8669 = vadd.f32 %v8614, %v8645
        %v8670 = vadd.f32 %v8615, %v8645
        %v8671 = vadd.f32 %v8616, %v8645
        %v8672 = vadd.f32 %v8617, %v8645
        %v8673 = vadd.f32 %v8618, %v8645
        %v8674 = vadd.f32 %v8619, %v8645
        %v8675 = vadd.f32 %v8620, %v8645
        %v8676 = vadd.f32 %v8621, %v8645
        %v8677 = vadd.f32 %v8622, %v8645
        %v8678 = vadd.f32 %v8623, %v8645
        %v8679 = vadd.f32 %v8624, %v8645
        %v8680 = vadd.f32 %v8625, %v8645
        %v8681 = vadd.f32 %v8626, %v8645
        %v8682 = vadd.f32 %v8627, %v8645
        %v8683 = vadd.f32 %v8628, %v8645
        %v8684 = vadd.f32 %v8629, %v8645
        %v8685 = vadd.f32 %v8630, %v8645
        %v8686 = vadd.f32 %v8631, %v8645
        %v8687 = vadd.f32 %v8632, %v8645
        %v8688 = vadd.f32 %v8633, %v8645
        %v8689 = vadd.f32 %v8634, %v8645
        %v8690 = vadd.f32 %v8635, %v8645
        %v8691 = vadd.f32 %v8636, %v8645
        %v8692 = vadd.f32 %v8637, %v8645
        %v8693 = vadd.f32 %v8638, %v8645
        %v8694 = vadd.f32 %v8639, %v8645
        %v8695 = vpack.c.bf16 %v8648, %v8647
        %v8696 = vpack.c.bf16 %v8650, %v8649
        %v8697 = vpack.c.bf16 %v8652, %v8651
        %v8698 = vpack.c.bf16 %v8654, %v8653
        %v8699 = vpack.c.bf16 %v8656, %v8655
        %v8700 = vpack.c.bf16 %v8658, %v8657
        %v8701 = vpack.c.bf16 %v8660, %v8659
        %v8702 = vpack.c.bf16 %v8662, %v8661
        %v8703 = vpack.c.bf16 %v8664, %v8663
        %v8704 = vpack.c.bf16 %v8666, %v8665
        %v8705 = vpack.c.bf16 %v8668, %v8667
        %v8706 = vpack.c.bf16 %v8670, %v8669
        %v8707 = vpack.c.bf16 %v8672, %v8671
        %v8708 = vpack.c.bf16 %v8674, %v8673
        %v8709 = vpack.c.bf16 %v8676, %v8675
        %v8710 = vpack.c.bf16 %v8678, %v8677
        %v8711 = vpack.c.bf16 %v8680, %v8679
        %v8712 = vpack.c.bf16 %v8682, %v8681
        %v8713 = vpack.c.bf16 %v8684, %v8683
        %v8714 = vpack.c.bf16 %v8686, %v8685
        %v8715 = vpack.c.bf16 %v8688, %v8687
        %v8716 = vpack.c.bf16 %v8690, %v8689
        %v8717 = vpack.c.bf16 %v8692, %v8691
        %v8718 = vpack.c.bf16 %v8694, %v8693
        %v8743 = vunpack.c.l.b16 %v8695
        %v8744 = vunpack.c.h.b16 %v8695
        %v8745 = vunpack.c.l.b16 %v8696
        %v8746 = vunpack.c.h.b16 %v8696
        %v8747 = vunpack.c.l.b16 %v8697
        %v8748 = vunpack.c.h.b16 %v8697
        %v8749 = vunpack.c.l.b16 %v8698
        %v8750 = vunpack.c.h.b16 %v8698
        %v8751 = vunpack.c.l.b16 %v8699
        %v8752 = vunpack.c.h.b16 %v8699
        %v8753 = vunpack.c.l.b16 %v8700
        %v8754 = vunpack.c.h.b16 %v8700
        %v8755 = vunpack.c.l.b16 %v8701
        %v8756 = vunpack.c.h.b16 %v8701
        %v8757 = vunpack.c.l.b16 %v8702
        %v8758 = vunpack.c.h.b16 %v8702
        %v8759 = vunpack.c.l.b16 %v8703
        %v8760 = vunpack.c.h.b16 %v8703
        %v8761 = vunpack.c.l.b16 %v8704
        %v8762 = vunpack.c.h.b16 %v8704
        %v8763 = vunpack.c.l.b16 %v8705
        %v8764 = vunpack.c.h.b16 %v8705
        %v8765 = vunpack.c.l.b16 %v8706
        %v8766 = vunpack.c.h.b16 %v8706
        %v8767 = vunpack.c.l.b16 %v8707
        %v8768 = vunpack.c.h.b16 %v8707
        %v8769 = vunpack.c.l.b16 %v8708
        %v8770 = vunpack.c.h.b16 %v8708
        %v8771 = vunpack.c.l.b16 %v8709
        %v8772 = vunpack.c.h.b16 %v8709
        %v8773 = vunpack.c.l.b16 %v8710
        %v8774 = vunpack.c.h.b16 %v8710
        %v8775 = vunpack.c.l.b16 %v8711
        %v8776 = vunpack.c.h.b16 %v8711
        %v8777 = vunpack.c.l.b16 %v8712
        %v8778 = vunpack.c.h.b16 %v8712
        %v8779 = vunpack.c.l.b16 %v8713
        %v8780 = vunpack.c.h.b16 %v8713
        %v8781 = vunpack.c.l.b16 %v8714
        %v8782 = vunpack.c.h.b16 %v8714
        %v8783 = vunpack.c.l.b16 %v8715
        %v8784 = vunpack.c.h.b16 %v8715
        %v8785 = vunpack.c.l.b16 %v8716
        %v8786 = vunpack.c.h.b16 %v8716
        %v8787 = vunpack.c.l.b16 %v8717
        %v8788 = vunpack.c.h.b16 %v8717
        %v8789 = vunpack.c.l.b16 %v8718
        %v8790 = vunpack.c.h.b16 %v8718
        %v8791 = vpack.c.b16 %v8743, %v8743
        %v8792 = vpack.c.b16 %v8744, %v8744
        %v8793 = vpack.c.b16 %v8745, %v8745
        %v8794 = vpack.c.b16 %v8746, %v8746
        %v8795 = vpack.c.b16 %v8747, %v8747
        %v8796 = vpack.c.b16 %v8748, %v8748
        %v8797 = vpack.c.b16 %v8749, %v8749
        %v8798 = vpack.c.b16 %v8750, %v8750
        %v8799 = vpack.c.b16 %v8751, %v8751
        %v8800 = vpack.c.b16 %v8752, %v8752
        %v8801 = vpack.c.b16 %v8753, %v8753
        %v8802 = vpack.c.b16 %v8754, %v8754
        %v8803 = vpack.c.b16 %v8755, %v8755
        %v8804 = vpack.c.b16 %v8756, %v8756
        %v8805 = vpack.c.b16 %v8757, %v8757
        %v8806 = vpack.c.b16 %v8758, %v8758
        %v8807 = vpack.c.b16 %v8759, %v8759
        %v8808 = vpack.c.b16 %v8760, %v8760
        %v8809 = vpack.c.b16 %v8761, %v8761
        %v8810 = vpack.c.b16 %v8762, %v8762
        %v8811 = vpack.c.b16 %v8763, %v8763
        %v8812 = vpack.c.b16 %v8764, %v8764
        %v8813 = vpack.c.b16 %v8765, %v8765
        %v8814 = vpack.c.b16 %v8766, %v8766
        %v8815 = vpack.c.b16 %v8767, %v8767
        %v8816 = vpack.c.b16 %v8768, %v8768
        %v8817 = vpack.c.b16 %v8769, %v8769
        %v8818 = vpack.c.b16 %v8770, %v8770
        %v8819 = vpack.c.b16 %v8771, %v8771
        %v8820 = vpack.c.b16 %v8772, %v8772
        %v8821 = vpack.c.b16 %v8773, %v8773
        %v8822 = vpack.c.b16 %v8774, %v8774
        %v8823 = vpack.c.b16 %v8775, %v8775
        %v8824 = vpack.c.b16 %v8776, %v8776
        %v8825 = vpack.c.b16 %v8777, %v8777
        %v8826 = vpack.c.b16 %v8778, %v8778
        %v8827 = vpack.c.b16 %v8779, %v8779
        %v8828 = vpack.c.b16 %v8780, %v8780
        %v8829 = vpack.c.b16 %v8781, %v8781
        %v8830 = vpack.c.b16 %v8782, %v8782
        %v8831 = vpack.c.b16 %v8783, %v8783
        %v8832 = vpack.c.b16 %v8784, %v8784
        %v8833 = vpack.c.b16 %v8785, %v8785
        %v8834 = vpack.c.b16 %v8786, %v8786
        %v8835 = vpack.c.b16 %v8787, %v8787
        %v8836 = vpack.c.b16 %v8788, %v8788
        %v8837 = vpack.c.b16 %v8789, %v8789
        %v8838 = vpack.c.b16 %v8790, %v8790
        %8887 = vst [vmem:[%s370] sm:$0xf] %v8791
        %8888 = vst [vmem:[%s370 + $0x4] sm:$0x3] %v8792
        %8889 = vst [vmem:[%s370 + $0x8] sm:$0xf] %v8793
        %8890 = vst [vmem:[%s370 + $0xc] sm:$0x3] %v8794
        %8891 = vst [vmem:[%s370 + $0x10] sm:$0xf] %v8795
        %8892 = vst [vmem:[%s370 + $0x14] sm:$0x3] %v8796
        %8893 = vst [vmem:[%s370 + $0x18] sm:$0xf] %v8797
        %8894 = vst [vmem:[%s370 + $0x1c] sm:$0x3] %v8798
        %8895 = vst [vmem:[%s370 + $0x20] sm:$0xf] %v8799
        %8896 = vst [vmem:[%s370 + $0x24] sm:$0x3] %v8800
        %8897 = vst [vmem:[%s370 + $0x28] sm:$0xf] %v8801
        %8898 = vst [vmem:[%s370 + $0x2c] sm:$0x3] %v8802
        %8899 = vst [vmem:[%s370 + $0x30] sm:$0xf] %v8803
        %8900 = vst [vmem:[%s370 + $0x34] sm:$0x3] %v8804
        %8901 = vst [vmem:[%s370 + $0x38] sm:$0xf] %v8805
        %8902 = vst [vmem:[%s370 + $0x3c] sm:$0x3] %v8806
        %8903 = vst [vmem:[%s370 + $0x40] sm:$0xf] %v8807
        %8904 = vst [vmem:[%s370 + $0x44] sm:$0x3] %v8808
        %8905 = vst [vmem:[%s370 + $0x48] sm:$0xf] %v8809
        %8906 = vst [vmem:[%s370 + $0x4c] sm:$0x3] %v8810
        %8907 = vst [vmem:[%s370 + $0x50] sm:$0xf] %v8811
        %8908 = vst [vmem:[%s370 + $0x54] sm:$0x3] %v8812
        %8909 = vst [vmem:[%s370 + $0x58] sm:$0xf] %v8813
        %8910 = vst [vmem:[%s370 + $0x5c] sm:$0x3] %v8814
        %8911 = vst [vmem:[%s370 + $0x60] sm:$0xf] %v8815
        %8912 = vst [vmem:[%s370 + $0x64] sm:$0x3] %v8816
        %8913 = vst [vmem:[%s370 + $0x68] sm:$0xf] %v8817
        %8914 = vst [vmem:[%s370 + $0x6c] sm:$0x3] %v8818
        %8915 = vst [vmem:[%s370 + $0x70] sm:$0xf] %v8819
        %8916 = vst [vmem:[%s370 + $0x74] sm:$0x3] %v8820
        %8917 = vst [vmem:[%s370 + $0x78] sm:$0xf] %v8821
        %8918 = vst [vmem:[%s370 + $0x7c] sm:$0x3] %v8822
        %8919 = vst [vmem:[%s370 + $0x80] sm:$0xf] %v8823
        %8920 = vst [vmem:[%s370 + $0x84] sm:$0x3] %v8824
        %8921 = vst [vmem:[%s370 + $0x88] sm:$0xf] %v8825
        %8922 = vst [vmem:[%s370 + $0x8c] sm:$0x3] %v8826
        %8923 = vst [vmem:[%s370 + $0x90] sm:$0xf] %v8827
        %8924 = vst [vmem:[%s370 + $0x94] sm:$0x3] %v8828
        %8925 = vst [vmem:[%s370 + $0x98] sm:$0xf] %v8829
        %8926 = vst [vmem:[%s370 + $0x9c] sm:$0x3] %v8830
        %8927 = vst [vmem:[%s370 + $0xa0] sm:$0xf] %v8831
        %8928 = vst [vmem:[%s370 + $0xa4] sm:$0x3] %v8832
        %8929 = vst [vmem:[%s370 + $0xa8] sm:$0xf] %v8833
        %8930 = vst [vmem:[%s370 + $0xac] sm:$0x3] %v8834
        %8931 = vst [vmem:[%s370 + $0xb0] sm:$0xf] %v8835
        %8932 = vst [vmem:[%s370 + $0xb4] sm:$0x3] %v8836
        %8933 = vst [vmem:[%s370 + $0xb8] sm:$0xf] %v8837
        %8934 = vst [vmem:[%s370 + $0xbc] sm:$0x3] %v8838
        %s8935 = smul.u32 24, %s27
        %p8936 = scmp.lt.s32.totalorder %s26, 0
        %s8937 = scalar_select %p8936, %s26, 0
        %p8938 = scmp.lt.s32.totalorder %s8935, 71
        %s8939 = scalar_select %p8938, %s8935, 71
        %p8940 = scmp.lt.s32.totalorder %s28, 0
        %s8941 = scalar_select %p8940, %s28, 0
        %s8942 = smul.addr %s8939, 2
        %s8943 = sadd.s32 %s8941, %s8942
        %s8944 = smul.addr %s8937, 144
        %s8945 = sadd.s32 %s8943, %s8944
        %s8946 = smul.addr %s8945, 4
        %s8947 = scalar_lea.vmem %s4, %s8946
        // Predicated region
        $region49: #{tpu_custom_call.1} parent=35 // pred_check
          %p8948 = pneg %p178
        $region50: #{tpu_custom_call.1} parent=35 // pred_check_branch
          %8950 = sbr.rel (%p8948) target = $region52
        $region51: #{tpu_custom_call.1} parent=35 // pred_region
          %s8951 = smul.u32 24, %s27
        $region52: #{tpu_custom_call.1} parent=35 // pred_fallthru
          _
      $region36: #{tpu_custom_call.1} parent=5 // pred_fallthru
        _
      %p8952 = scmp.le.s32.totalorder 2, %s16
      // Predicated region
      $region53: #{tpu_custom_call.1} parent=5 // pred_check
        %p8953 = pneg %p8952
      $region54: #{tpu_custom_call.1} parent=5 // pred_check_branch
        %8955 = sbr.rel (%p8953) target = $region56
      $region55: #{tpu_custom_call.1} parent=5 // pred_region
        %s8956 = ssub.s32 %s16, 2
        // Predicated region
        $region57: #{tpu_custom_call.1} parent=55 // pred_check
          %p8957 = pneg %p184
        $region58: #{tpu_custom_call.1} parent=55 // pred_check_branch
          %8959 = sbr.rel (%p8957) target = $region60
        $region59: #{tpu_custom_call.1} parent=55 // pred_region
          %s8960 = smul.u32 24, %s30
          %p8961 = scmp.lt.s32.totalorder %s29, 0
          %s8962 = scalar_select %p8961, %s29, 0
          %p8963 = scmp.lt.s32.totalorder %s8960, 71
          %s8964 = scalar_select %p8963, %s8960, 71
          %p8965 = scmp.lt.s32.totalorder %s31, 0
          %s8966 = scalar_select %p8965, %s31, 0
          %s8967 = smul.addr %s8964, 2
          %s8968 = sadd.s32 %s8966, %s8967
          %s8969 = smul.addr %s8962, 144
          %s8970 = sadd.s32 %s8968, %s8969
          %s8971 = smul.addr %s8970, 4
          %s8972 = scalar_lea.vmem %s4, %s8971
        $region60: #{tpu_custom_call.1} parent=55 // pred_fallthru
          _
      $region56: #{tpu_custom_call.1} parent=5 // pred_fallthru
        _
    $region6: #{tpu_custom_call.1} parent=1 // loop_footer
      %s20 = sadd.s32 1, %s16
    $region7: #{tpu_custom_call.1} parent=1 // loop_footer_branch
      %15 = sbr.rel target = $region3
    $region8: #{tpu_custom_call.1} parent=1 // loop_exit
      _
    %8973 = vsyncpa [#allocation4], 1
    %s8974 = scalar_lea.sflag [#allocation4], 1
    %8975 = vsyncpa %s8974, 1
    %8976 = vsyncpa [#allocation6], 1
    %s8977 = scalar_lea.sflag [#allocation6], 1
    %8978 = vsyncpa %s8977, 1

</llo_original>
